<compile_context>
chip_gen: v7x
topology: tpu7x:2x2x1
jax: 0.10.0
libtpu: 0.0.40
codegen_flags: <defaults>
</compile_context>

<pallas_src>
import jax
import jax.numpy as jnp
from jax import lax
from jax.experimental import pallas as pl
from jax.experimental.pallas import tpu as pltpu

NEGATIVE_SLOPE = 0.9503408

# Problem sizes (small, consistent with the module definition).
N, C_IN, H, W = 2, 128, 32, 16        # input  (NCHW in PyTorch terms)
C_OUT, KH, KW = 16, 30, 10            # conv weight (OC, IC, KH, KW)
OH, OW = H - KH + 1, W - KW + 1       # stride=1, padding=0 -> (3, 7)

R = N * OW                            # 14 output rows handled per oh
KWC = KW * C_IN                       # 1280  (one h-slab of a patch row)
K = KH * KWC                          # 38400 total reduction length

TRANS_B_DIMS = (((1,), (1,)), ((), ()))   # contract dim1(lhs) with dim1(rhs)


def _num_reduction_steps():
    """Grid steps over the weight K dim.

    v7x: HBM (~3.2 TB/s) makes the ~2.4 MB operand DMA cheaper than an extra
    pipeline step -> single grid step.  v5e/v6e: 3 reduction steps let ~2/3 of
    the weight DMA pipeline against the MXU stream (the biggest exposed-DMA
    win without introducing halos on `a`).
    """
    try:
        kind = jax.devices()[0].device_kind.lower()
    except Exception:  # pragma: no cover - defensive; fall back to pipelined
        kind = ""
    return 1 if "v7" in kind else 3


def conv_leaky_kernel(a_ref, w_ref, b_ref, o_ref):
    """One reduction step over a K-slab of the weights.

    a_ref: (R, H*KWC)      bf16  a[r, h*KWC + kw*C + c] = x[n, h, ow+kw, c],
                                 r = n*OW + ow  (W-direction unfold only).
                                 Constant index_map -> DMA'd once, resident.
    w_ref: (OC, K_STEP)    bf16  K-slab s of w[oc, kh*KWC + kw*C + c]
                                 = weight[oc, c, kh, kw].
    b_ref: (1, OC)         f32
    o_ref: (OH, R, OC)     f32   resident accumulator (constant index_map).
    """
    s = pl.program_id(0)
    k_step = w_ref.shape[1]                       # static: K // num_steps

    @pl.when(s == 0)
    def _():
        o_ref[...] = jnp.zeros_like(o_ref)

    rhs = w_ref[...]                              # (OC, K_STEP), reused by all oh
    for oh in range(OH):
        # output row oh needs A columns [oh*KWC + s*k_step, ... + k_step)
        start = pl.multiple_of(oh * KWC + s * k_step, 128)
        lhs = a_ref[:, pl.ds(start, k_step)]      # (R, K_STEP)
        o_ref[oh] = o_ref[oh] + lax.dot_general(
            lhs, rhs, TRANS_B_DIMS, preferred_element_type=jnp.float32)

    @pl.when(s == pl.num_programs(0) - 1)
    def _():
        v = o_ref[...] + b_ref[...]               # (OH,R,OC) + (1,OC) broadcast
        o_ref[...] = jnp.where(v > 0, v, v * NEGATIVE_SLOPE)


def conv_leaky(x_nchw, weight_oihw, bias):
    """Exact forward of the PyTorch Model, NCHW in / NCHW out (f32)."""
    assert x_nchw.shape == (N, C_IN, H, W), x_nchw.shape
    assert weight_oihw.shape == (C_OUT, C_IN, KH, KW), weight_oihw.shape
    assert bias.shape == (C_OUT,), bias.shape

    n_steps = _num_reduction_steps()
    assert K % n_steps == 0
    k_step = K // n_steps

    # ---- glue: cheap W-direction unfold in bf16 (no full im2col) ----
    # Transpose once to (N, W, H, C); the KW slices then stack directly into
    # (N, OW, H, KW, C) and the reshape to (R, H*KWC) is a free view.
    xt = jnp.transpose(x_nchw.astype(jnp.bfloat16), (0, 3, 2, 1))   # (N,W,H,C)
    a = jnp.stack([xt[:, kw:kw + OW] for kw in range(KW)], axis=3)  # (N,OW,H,KW,C)
    a = a.reshape(R, H * KWC)                                       # (14, 40960)

    # weight (OC, IC, KH, KW) -> (OC, KH, KW, IC) -> (OC, K)  (lane-dense)
    w = jnp.transpose(weight_oihw, (0, 2, 3, 1)).reshape(C_OUT, K)
    w = w.astype(jnp.bfloat16)
    b = bias.reshape(1, C_OUT).astype(jnp.float32)

    # ---- hot path: Pallas kernel; `a` and output stay VMEM-resident, the
    #      weight K dim is (optionally) pipelined over the reduction grid ----
    out = pl.pallas_call(
        conv_leaky_kernel,
        out_shape=jax.ShapeDtypeStruct((OH, R, C_OUT), jnp.float32),
        grid_spec=pltpu.PrefetchScalarGridSpec(
            num_scalar_prefetch=0,
            grid=(n_steps,),
            in_specs=[
                pl.BlockSpec((R, H * KWC), lambda s: (0, 0)),       # resident
                pl.BlockSpec((C_OUT, k_step), lambda s: (0, s)),    # K-slab s
                pl.BlockSpec((1, C_OUT), lambda s: (0, 0)),
            ],
            out_specs=pl.BlockSpec((OH, R, C_OUT), lambda s: (0, 0, 0)),
        ),
        compiler_params=pltpu.CompilerParams(
            dimension_semantics=("arbitrary",),
            vmem_limit_bytes=32 * 1024 * 1024),
    )(a, w, b)

    # ---- glue: (OH, N*OW, OC) -> NCHW ----
    out = out.reshape(OH, N, OW, C_OUT)
    return jnp.transpose(out, (1, 3, 0, 2))                         # (N,OC,OH,OW)


if __name__ == "__main__":
    key = jax.random.PRNGKey(0)
    kx, kwt, kb = jax.random.split(key, 3)

    x = jax.random.normal(kx, (N, C_IN, H, W), dtype=jnp.float32)

    # Deterministic parameter init (Conv2d-style uniform fan-in scaling).
    fan_in = C_IN * KH * KW
    bound = 1.0 / (fan_in ** 0.5)
    weight = jax.random.uniform(kwt, (C_OUT, C_IN, KH, KW),
                                minval=-bound, maxval=bound, dtype=jnp.float32)
    bias = jax.random.uniform(kb, (C_OUT,), minval=-bound, maxval=bound,
                              dtype=jnp.float32)

    out = jax.jit(conv_leaky)(x, weight, bias)
    jax.block_until_ready(out)

    assert out.shape == (N, C_OUT, OH, OW), out.shape

    # Reference: full-f32 conv + leaky select.
    ref = lax.conv_general_dilated(
        x, weight, window_strides=(1, 1), padding="VALID",
        dimension_numbers=("NCHW", "OIHW", "NCHW"),
        precision=lax.Precision.HIGHEST) + bias[None, :, None, None]
    ref = jnp.where(ref > 0, ref, ref * NEGATIVE_SLOPE)

    # bf16 operands with f32 accumulation over K=38400 -> small numeric delta
    # vs the pure-f32 reference; 2e-2 leaves ample headroom over expected error.
    assert jnp.allclose(out, ref, atol=2e-2, rtol=2e-2), \
        float(jnp.max(jnp.abs(out - ref)))

    print("KERNEL_OK")
</pallas_src>

<mosaic_0001>
module attributes {stable_mosaic.version = 11 : i64} {
  func.func @conv_leaky_kernel(%arg0: i32, %arg1: memref<14x40960xbf16, #tpu.memory_space<vmem>>, %arg2: memref<16x12800xbf16, #tpu.memory_space<vmem>>, %arg3: memref<1x16xf32, #tpu.memory_space<vmem>>, %arg4: memref<3x14x16xf32, #tpu.memory_space<vmem>>) attributes {dimension_semantics = [#tpu.dimension_semantics<arbitrary>], iteration_bounds = array<i64: 3>, scalar_prefetch = 0 : i64, scratch_operands = 0 : i64, tpu.core_type = #tpu.core_type<tc>, window_params = [{pipeline_mode = #tpu.pipeline_mode<synchronous>, transform_indices = @transform_0, window_bounds = array<i64: 14, 40960>}, {transform_indices = @transform_1, window_bounds = array<i64: 16, 12800>}, {pipeline_mode = #tpu.pipeline_mode<synchronous>, transform_indices = @transform_2, window_bounds = array<i64: 1, 16>}, {pipeline_mode = #tpu.pipeline_mode<synchronous>, transform_indices = @transform_3, window_bounds = array<i64: 3, 14, 16>}]} {
    %c0_i32 = arith.constant 0 : i32
    %0 = arith.cmpi eq, %arg0, %c0_i32 : i32
    %1 = arith.extui %0 : i1 to i32
    %c0_i32_0 = arith.constant 0 : i32
    %2 = arith.cmpi ne, %1, %c0_i32_0 : i32
    scf.if %2 {
      %cst_27 = arith.constant 0.000000e+00 : f32
      %43 = vector.broadcast %cst_27 : f32 to vector<3x14x16xf32>
      %c0_28 = arith.constant 0 : index
      %c0_29 = arith.constant 0 : index
      %c0_30 = arith.constant 0 : index
      %44 = vector.load %arg4[%c0_28, %c0_29, %c0_30] : memref<3x14x16xf32, #tpu.memory_space<vmem>>, vector<3x14x16xf32>
      tpu.vector_store %arg4[%c0_28, %c0_29, %c0_30], %43 {strides = array<i32>} : memref<3x14x16xf32, #tpu.memory_space<vmem>>, vector<3x14x16xf32>,
    } else {
    }
    %c0 = arith.constant 0 : index
    %c0_1 = arith.constant 0 : index
    %3 = vector.load %arg2[%c0, %c0_1] : memref<16x12800xbf16, #tpu.memory_space<vmem>>, vector<16x12800xbf16>
    %c12800_i32 = arith.constant 12800 : i32
    %4 = arith.muli %arg0, %c12800_i32 : i32
    %c0_i32_2 = arith.constant 0 : i32
    %5 = arith.addi %c0_i32_2, %4 : i32
    %6 = tpu.assume_multiple %5, 128 : i32
    %c0_3 = arith.constant 0 : index
    %7 = arith.index_cast %6 : i32 to index
    %8 = vector.load %arg1[%c0_3, %7] : memref<14x40960xbf16, #tpu.memory_space<vmem>>, vector<14x12800xbf16>
    %c0_4 = arith.constant 0 : index
    %c0_5 = arith.constant 0 : index
    %c0_6 = arith.constant 0 : index
    %9 = vector.load %arg4[%c0_4, %c0_5, %c0_6] : memref<3x14x16xf32, #tpu.memory_space<vmem>>, vector<1x14x16xf32>
    %10 = vector.shape_cast %9 : vector<1x14x16xf32> to vector<14x16xf32>
    %cst = arith.constant dense<0.000000e+00> : vector<14x16xf32>
    %11 = tpu.matmul %8, %3, %cst {dimension_numbers = #tpu.dot_dimension_numbers<[1], [1], [0], [0], [0, 0, 1, 0], [], []>} : vector<14x12800xbf16>, vector<16x12800xbf16>, vector<14x16xf32> -> vector<14x16xf32>
    %12 = arith.addf %10, %11 : vector<14x16xf32>
    %c0_7 = arith.constant 0 : index
    %c0_8 = arith.constant 0 : index
    %c0_9 = arith.constant 0 : index
    %13 = vector.load %arg4[%c0_7, %c0_8, %c0_9] : memref<3x14x16xf32, #tpu.memory_space<vmem>>, vector<1x14x16xf32>
    %14 = vector.shape_cast %13 : vector<1x14x16xf32> to vector<14x16xf32>
    %15 = vector.shape_cast %12 : vector<14x16xf32> to vector<1x14x16xf32>
    tpu.vector_store %arg4[%c0_7, %c0_8, %c0_9], %15 {strides = array<i32>} : memref<3x14x16xf32, #tpu.memory_space<vmem>>, vector<1x14x16xf32>,
    %c12800_i32_10 = arith.constant 12800 : i32
    %16 = arith.muli %arg0, %c12800_i32_10 : i32
    %c1280_i32 = arith.constant 1280 : i32
    %17 = arith.addi %c1280_i32, %16 : i32
    %18 = tpu.assume_multiple %17, 128 : i32
    %c0_11 = arith.constant 0 : index
    %19 = arith.index_cast %18 : i32 to index
    %20 = vector.load %arg1[%c0_11, %19] : memref<14x40960xbf16, #tpu.memory_space<vmem>>, vector<14x12800xbf16>
    %c1 = arith.constant 1 : index
    %c0_12 = arith.constant 0 : index
    %c0_13 = arith.constant 0 : index
    %21 = vector.load %arg4[%c1, %c0_12, %c0_13] : memref<3x14x16xf32, #tpu.memory_space<vmem>>, vector<1x14x16xf32>
    %22 = vector.shape_cast %21 : vector<1x14x16xf32> to vector<14x16xf32>
    %cst_14 = arith.constant dense<0.000000e+00> : vector<14x16xf32>
    %23 = tpu.matmul %20, %3, %cst_14 {dimension_numbers = #tpu.dot_dimension_numbers<[1], [1], [0], [0], [0, 0, 1, 0], [], []>} : vector<14x12800xbf16>, vector<16x12800xbf16>, vector<14x16xf32> -> vector<14x16xf32>
    %24 = arith.addf %22, %23 : vector<14x16xf32>
    %c1_15 = arith.constant 1 : index
    %c0_16 = arith.constant 0 : index
    %c0_17 = arith.constant 0 : index
    %25 = vector.load %arg4[%c1_15, %c0_16, %c0_17] : memref<3x14x16xf32, #tpu.memory_space<vmem>>, vector<1x14x16xf32>
    %26 = vector.shape_cast %25 : vector<1x14x16xf32> to vector<14x16xf32>
    %27 = vector.shape_cast %24 : vector<14x16xf32> to vector<1x14x16xf32>
    tpu.vector_store %arg4[%c1_15, %c0_16, %c0_17], %27 {strides = array<i32>} : memref<3x14x16xf32, #tpu.memory_space<vmem>>, vector<1x14x16xf32>,
    %c12800_i32_18 = arith.constant 12800 : i32
    %28 = arith.muli %arg0, %c12800_i32_18 : i32
    %c2560_i32 = arith.constant 2560 : i32
    %29 = arith.addi %c2560_i32, %28 : i32
    %30 = tpu.assume_multiple %29, 128 : i32
    %c0_19 = arith.constant 0 : index
    %31 = arith.index_cast %30 : i32 to index
    %32 = vector.load %arg1[%c0_19, %31] : memref<14x40960xbf16, #tpu.memory_space<vmem>>, vector<14x12800xbf16>
    %c2 = arith.constant 2 : index
    %c0_20 = arith.constant 0 : index
    %c0_21 = arith.constant 0 : index
    %33 = vector.load %arg4[%c2, %c0_20, %c0_21] : memref<3x14x16xf32, #tpu.memory_space<vmem>>, vector<1x14x16xf32>
    %34 = vector.shape_cast %33 : vector<1x14x16xf32> to vector<14x16xf32>
    %cst_22 = arith.constant dense<0.000000e+00> : vector<14x16xf32>
    %35 = tpu.matmul %32, %3, %cst_22 {dimension_numbers = #tpu.dot_dimension_numbers<[1], [1], [0], [0], [0, 0, 1, 0], [], []>} : vector<14x12800xbf16>, vector<16x12800xbf16>, vector<14x16xf32> -> vector<14x16xf32>
    %36 = arith.addf %34, %35 : vector<14x16xf32>
    %c2_23 = arith.constant 2 : index
    %c0_24 = arith.constant 0 : index
    %c0_25 = arith.constant 0 : index
    %37 = vector.load %arg4[%c2_23, %c0_24, %c0_25] : memref<3x14x16xf32, #tpu.memory_space<vmem>>, vector<1x14x16xf32>
    %38 = vector.shape_cast %37 : vector<1x14x16xf32> to vector<14x16xf32>
    %39 = vector.shape_cast %36 : vector<14x16xf32> to vector<1x14x16xf32>
    tpu.vector_store %arg4[%c2_23, %c0_24, %c0_25], %39 {strides = array<i32>} : memref<3x14x16xf32, #tpu.memory_space<vmem>>, vector<1x14x16xf32>,
    %c2_i32 = arith.constant 2 : i32
    %40 = arith.cmpi eq, %arg0, %c2_i32 : i32
    %41 = arith.extui %40 : i1 to i32
    %c0_i32_26 = arith.constant 0 : i32
    %42 = arith.cmpi ne, %41, %c0_i32_26 : i32
    scf.if %42 {
      %c0_27 = arith.constant 0 : index
      %c0_28 = arith.constant 0 : index
      %c0_29 = arith.constant 0 : index
      %43 = vector.load %arg4[%c0_27, %c0_28, %c0_29] : memref<3x14x16xf32, #tpu.memory_space<vmem>>, vector<3x14x16xf32>
      %c0_30 = arith.constant 0 : index
      %c0_31 = arith.constant 0 : index
      %44 = vector.load %arg3[%c0_30, %c0_31] : memref<1x16xf32, #tpu.memory_space<vmem>>, vector<1x16xf32>
      %45 = vector.shape_cast %44 : vector<1x16xf32> to vector<1x1x16xf32>
      %46 = vector.broadcast %45 : vector<1x1x16xf32> to vector<3x14x16xf32>
      %47 = arith.addf %43, %46 : vector<3x14x16xf32>
      %cst_32 = arith.constant 0.000000e+00 : f32
      %48 = vector.broadcast %cst_32 : f32 to vector<3x14x16xf32>
      %49 = arith.cmpf ogt, %47, %48 : vector<3x14x16xf32>
      %cst_33 = arith.constant 0.950340807 : f32
      %50 = vector.broadcast %cst_33 : f32 to vector<3x14x16xf32>
      %51 = arith.mulf %47, %50 : vector<3x14x16xf32>
      %52 = arith.select %49, %47, %51 : vector<3x14x16xi1>, vector<3x14x16xf32>
      %c0_34 = arith.constant 0 : index
      %c0_35 = arith.constant 0 : index
      %c0_36 = arith.constant 0 : index
      %53 = vector.load %arg4[%c0_34, %c0_35, %c0_36] : memref<3x14x16xf32, #tpu.memory_space<vmem>>, vector<3x14x16xf32>
      tpu.vector_store %arg4[%c0_34, %c0_35, %c0_36], %52 {strides = array<i32>} : memref<3x14x16xf32, #tpu.memory_space<vmem>>, vector<3x14x16xf32>,
    } else {
    }
    return
  }
  func.func @transform_0(%arg0: i32) -> (i32, i32) {
    %c0_i32 = arith.constant 0 : i32
    %c0_i32_0 = arith.constant 0 : i32
    %c0_i32_1 = arith.constant 0 : i32
    return %c0_i32, %c0_i32_0 : i32, i32
  }
  func.func @transform_1(%arg0: i32) -> (i32, i32) {
    %c0_i32 = arith.constant 0 : i32
    %c0_i32_0 = arith.constant 0 : i32
    return %c0_i32, %arg0 : i32, i32
  }
  func.func @transform_2(%arg0: i32) -> (i32, i32) {
    %c0_i32 = arith.constant 0 : i32
    %c0_i32_0 = arith.constant 0 : i32
    %c0_i32_1 = arith.constant 0 : i32
    return %c0_i32, %c0_i32_0 : i32, i32
  }
  func.func @transform_3(%arg0: i32) -> (i32, i32, i32) {
    %c0_i32 = arith.constant 0 : i32
    %c0_i32_0 = arith.constant 0 : i32
    %c0_i32_1 = arith.constant 0 : i32
    %c0_i32_2 = arith.constant 0 : i32
    return %c0_i32, %c0_i32_0, %c0_i32_1 : i32, i32, i32
  }
}

</mosaic_0001>

<llo_original>
// kernel: conv_leaky.1
$region0: #{conv_leaky.1}
  #allocation0 [shape = 'u32[]', space=smem, size = 0x4, offset = 0x4, fixed_abs, tag = 'smem constant byte address 0x4 - core index']
  #allocation1 [shape = 'u32[144,128]{1,0:T(1,128)}', space=vmem, size = 0x12000, scoped, tag = 'internal scratch']
  %s0 = inlined_call_operand.vmem [shape: bf16[14,40960], index: 0, kind: input, shape index: {}]
  %s1 = inlined_call_operand.vmem [shape: bf16[16,38400], index: 1, kind: input, shape index: {}]
  %s2 = inlined_call_operand.vmem [shape: f32[1,16], index: 2, kind: input, shape index: {}]
  %s3 = inlined_call_operand.vmem [shape: f32[3,14,16], index: 3, kind: output, shape index: {}]
  %s4 = sld [smem:[#allocation0]]
  $region76: #{conv_leaky.1} parent=0
    _
  %s6 = ssub.s32 1, %s4
  %s7 = scalar_select 0, %s6, %s4
  $region1: #{conv_leaky.1} parent=0
    #allocation2 [shape = 'u8[819200]{0}', space=vmem, size = 0xc8000, scoped, tag = 'input window, operand 1']
    loop: start=0, step=1, limit=5
    $region2: #{conv_leaky.1} parent=1 // loop_pre_header
      _
    $region3: #{conv_leaky.1} parent=1 // loop_header
      %s9 = sphi 0, %s13
      %p10 = scmp.ge.s32.totalorder %s9, 5
      %s17 = sphi 0, %s17
      %s19 = sphi 0, %s17
      %s20 = sphi 0, %s19
      %s34 = sphi 0, %s20
      %s40 = sphi 0, %s42
      %s43 = sphi 0, %s40
      %s44 = sphi 0, %s43
      %s60 = sphi 0, %s44
      %s64 = sphi 0, %s64
      %s66 = sphi 0, %s64
      %s67 = sphi 0, %s66
      %s81 = sphi 0, %s67
      %s85 = sphi 0, %s85
      %s87 = sphi 0, %s85
      %s88 = sphi 0, %s87
      %s102 = sphi 0, %s88
    $region4: #{conv_leaky.1} parent=1 // loop_header_branch
      %12 = sbr.rel (%p10) target = $region8
    $region5: #{conv_leaky.1} parent=1 // loop_body
      %s14 = ssub.s32 %s9, 1
      %s15 = ssub.s32 %s9, 2
      %s16 = sadd.s32 %s9, 1
      %s18 = sadd.s32 %s17, 1
      %p21 = scmp.eq.s32.totalorder %s9, 2
      %p22 = scmp.ne.s32.totalorder %s17, %s19
      %p23 = scmp.eq.s32.totalorder %s9, 0
      %p24 = por %p22, %p23
      %p25 = scmp.ne.s32.totalorder %s17, %s19
      %p26 = scmp.eq.s32.totalorder %s14, 2
      %p27 = por %p25, %p26
      %p28 = scmp.ne.s32.totalorder %s19, %s20
      %p29 = scmp.eq.s32.totalorder %s14, 0
      %p30 = por %p28, %p29
      %p31 = scmp.ne.s32.totalorder %s19, %s20
      %p32 = scmp.eq.s32.totalorder %s15, 2
      %p33 = por %p31, %p32
      %p35 = scmp.ne.s32.totalorder %s20, %s34
      %p36 = scmp.eq.s32.totalorder %s15, 0
      %p37 = por %p35, %p36
      %s38 = ssub.s32 %s9, %s16
      %p39 = scmp.eq.s32.totalorder %s38, 0
      %s41 = sadd.s32 %s40, 1
      %s42 = scalar_select %p39, %s40, %s41
      %p45 = pneg %p39
      %p46 = scmp.eq.s32.totalorder %s9, 2
      %p47 = por %p45, %p46
      %p48 = scmp.ne.s32.totalorder %s40, %s43
      %p49 = scmp.eq.s32.totalorder %s9, 0
      %p50 = por %p48, %p49
      %p51 = scmp.ne.s32.totalorder %s40, %s43
      %p52 = scmp.eq.s32.totalorder %s14, 2
      %p53 = por %p51, %p52
      %p54 = scmp.ne.s32.totalorder %s43, %s44
      %p55 = scmp.eq.s32.totalorder %s14, 0
      %p56 = por %p54, %p55
      %p57 = scmp.ne.s32.totalorder %s43, %s44
      %p58 = scmp.eq.s32.totalorder %s15, 2
      %p59 = por %p57, %p58
      %p61 = scmp.ne.s32.totalorder %s44, %s60
      %p62 = scmp.eq.s32.totalorder %s15, 0
      %p63 = por %p61, %p62
      %s65 = sadd.s32 %s64, 1
      %p68 = scmp.eq.s32.totalorder %s9, 2
      %p69 = scmp.ne.s32.totalorder %s64, %s66
      %p70 = scmp.eq.s32.totalorder %s9, 0
      %p71 = por %p69, %p70
      %p72 = scmp.ne.s32.totalorder %s64, %s66
      %p73 = scmp.eq.s32.totalorder %s14, 2
      %p74 = por %p72, %p73
      %p75 = scmp.ne.s32.totalorder %s66, %s67
      %p76 = scmp.eq.s32.totalorder %s14, 0
      %p77 = por %p75, %p76
      %p78 = scmp.ne.s32.totalorder %s66, %s67
      %p79 = scmp.eq.s32.totalorder %s15, 2
      %p80 = por %p78, %p79
      %p82 = scmp.ne.s32.totalorder %s67, %s81
      %p83 = scmp.eq.s32.totalorder %s15, 0
      %p84 = por %p82, %p83
      %s86 = sadd.s32 %s85, 1
      %p89 = scmp.eq.s32.totalorder %s9, 2
      %p90 = scmp.ne.s32.totalorder %s85, %s87
      %p91 = scmp.eq.s32.totalorder %s9, 0
      %p92 = por %p90, %p91
      %p93 = scmp.ne.s32.totalorder %s85, %s87
      %p94 = scmp.eq.s32.totalorder %s14, 2
      %p95 = por %p93, %p94
      %p96 = scmp.ne.s32.totalorder %s87, %s88
      %p97 = scmp.eq.s32.totalorder %s14, 0
      %p98 = por %p96, %p97
      %p99 = scmp.ne.s32.totalorder %s87, %s88
      %p100 = scmp.eq.s32.totalorder %s15, 2
      %p101 = por %p99, %p100
      %p103 = scmp.ne.s32.totalorder %s88, %s102
      %p104 = scmp.eq.s32.totalorder %s15, 0
      %p105 = por %p103, %p104
      %p106 = scmp.le.s32.totalorder 1, %s9
      %p107 = scmp.lt.s32.totalorder %s9, 4
      %p108 = pnand %p106, %p107
      %p109 = pneg %p108
      // Predicated region
      $region9: #{conv_leaky.1} parent=5 // pred_check
        _
      $region10: #{conv_leaky.1} parent=5 // pred_check_branch
        %111 = sbr.rel (%p108) target = $region12
      $region11: #{conv_leaky.1} parent=5 // pred_region
        %s112 = ssub.s32 %s9, 1
        // Predicated region
        $region13: #{conv_leaky.1} parent=11 // pred_check
          %p113 = pneg %p30
        $region14: #{conv_leaky.1} parent=11 // pred_check_branch
          %115 = sbr.rel (%p113) target = $region16
        $region15: #{conv_leaky.1} parent=11 // pred_region
          _
        $region16: #{conv_leaky.1} parent=11 // pred_fallthru
          _
        // Predicated region
        $region17: #{conv_leaky.1} parent=11 // pred_check
          %p116 = pneg %p77
        $region18: #{conv_leaky.1} parent=11 // pred_check_branch
          %118 = sbr.rel (%p116) target = $region20
        $region19: #{conv_leaky.1} parent=11 // pred_region
          _
        $region20: #{conv_leaky.1} parent=11 // pred_fallthru
          _
      $region12: #{conv_leaky.1} parent=5 // pred_fallthru
        _
      %p119 = scmp.lt.s32.totalorder %s9, 3
      // Predicated region
      $region21: #{conv_leaky.1} parent=5 // pred_check
        %p120 = pneg %p119
      $region22: #{conv_leaky.1} parent=5 // pred_check_branch
        %122 = sbr.rel (%p120) target = $region24
      $region23: #{conv_leaky.1} parent=5 // pred_region
        // Predicated region
        $region25: #{conv_leaky.1} parent=23 // pred_check
          %p123 = pneg %p50
        $region26: #{conv_leaky.1} parent=23 // pred_check_branch
          %125 = sbr.rel (%p123) target = $region28
        $region27: #{conv_leaky.1} parent=23 // pred_region
          %s126 = sand.u32 %s40, 1
          %s127 = sand.u32 %s40, 1
          %s128 = smul.addr %s127, 800
          %s129 = scalar_lea.vmem [#allocation2], %s128
          %s130 = smul.u32 100, %s9
          %s131 = smul.addr %s130, 4
          %s132 = scalar_lea.vmem %s1, %s131
          // Predicated region
          $region29: #{conv_leaky.1} parent=27 // pred_check
            _
          $region30: #{conv_leaky.1} parent=27 // pred_check_branch
            %134 = sbr.rel (0) target = $region32
          $region31: #{conv_leaky.1} parent=27 // pred_region
            // Predicated region
            $region33: #{conv_leaky.1} parent=31 // pred_check
              _
            $region34: #{conv_leaky.1} parent=31 // pred_check_branch
              %136 = sbr.rel (0) target = $region36
            $region35: #{conv_leaky.1} parent=31 // pred_region
              loop: start=0, step=1, limit=1
              $region37: #{conv_leaky.1} parent=35 // loop_pre_header
                _
              $region38: #{conv_leaky.1} parent=35 // loop_header
                %s138 = sphi 0, %s142
                %p139 = scmp.ge.s32.totalorder %s138, 1
                %s143 = sphi %s132, %s132
                %s144 = sphi %s129, %s129
              $region39: #{conv_leaky.1} parent=35 // loop_header_branch
                %141 = sbr.rel (%p139) target = $region43
              $region40: #{conv_leaky.1} parent=35 // loop_body
                %v145 = vld [vmem:[%s143] sm:$0xff]
                %146 = vst [vmem:[%s144] sm:$0xff] %v145
                %v147 = vld [vmem:[%s143 + $0x8] sm:$0xff]
                %148 = vst [vmem:[%s144 + $0x8] sm:$0xff] %v147
                %v149 = vld [vmem:[%s143 + $0x10] sm:$0xff]
                %150 = vst [vmem:[%s144 + $0x10] sm:$0xff] %v149
                %v151 = vld [vmem:[%s143 + $0x18] sm:$0xff]
                %152 = vst [vmem:[%s144 + $0x18] sm:$0xff] %v151
                %v153 = vld [vmem:[%s143 + $0x20] sm:$0xff]
                %154 = vst [vmem:[%s144 + $0x20] sm:$0xff] %v153
                %v155 = vld [vmem:[%s143 + $0x28] sm:$0xff]
                %156 = vst [vmem:[%s144 + $0x28] sm:$0xff] %v155
                %v157 = vld [vmem:[%s143 + $0x30] sm:$0xff]
                %158 = vst [vmem:[%s144 + $0x30] sm:$0xff] %v157
                %v159 = vld [vmem:[%s143 + $0x38] sm:$0xff]
                %160 = vst [vmem:[%s144 + $0x38] sm:$0xff] %v159
                %v161 = vld [vmem:[%s143 + $0x40] sm:$0xff]
                %162 = vst [vmem:[%s144 + $0x40] sm:$0xff] %v161
                %v163 = vld [vmem:[%s143 + $0x48] sm:$0xff]
                %164 = vst [vmem:[%s144 + $0x48] sm:$0xff] %v163
                %v165 = vld [vmem:[%s143 + $0x50] sm:$0xff]
                %166 = vst [vmem:[%s144 + $0x50] sm:$0xff] %v165
                %v167 = vld [vmem:[%s143 + $0x58] sm:$0xff]
                %168 = vst [vmem:[%s144 + $0x58] sm:$0xff] %v167
                %v169 = vld [vmem:[%s143 + $0x60] sm:$0xff]
                %170 = vst [vmem:[%s144 + $0x60] sm:$0xff] %v169
                %v171 = vld [vmem:[%s143 + $0x68] sm:$0xff]
                %172 = vst [vmem:[%s144 + $0x68] sm:$0xff] %v171
                %v173 = vld [vmem:[%s143 + $0x70] sm:$0xff]
                %174 = vst [vmem:[%s144 + $0x70] sm:$0xff] %v173
                %v175 = vld [vmem:[%s143 + $0x78] sm:$0xff]
                %176 = vst [vmem:[%s144 + $0x78] sm:$0xff] %v175
                %v177 = vld [vmem:[%s143 + $0x80] sm:$0xff]
                %178 = vst [vmem:[%s144 + $0x80] sm:$0xff] %v177
                %v179 = vld [vmem:[%s143 + $0x88] sm:$0xff]
                %180 = vst [vmem:[%s144 + $0x88] sm:$0xff] %v179
                %v181 = vld [vmem:[%s143 + $0x90] sm:$0xff]
                %182 = vst [vmem:[%s144 + $0x90] sm:$0xff] %v181
                %v183 = vld [vmem:[%s143 + $0x98] sm:$0xff]
                %184 = vst [vmem:[%s144 + $0x98] sm:$0xff] %v183
                %v185 = vld [vmem:[%s143 + $0xa0] sm:$0xff]
                %186 = vst [vmem:[%s144 + $0xa0] sm:$0xff] %v185
                %v187 = vld [vmem:[%s143 + $0xa8] sm:$0xff]
                %188 = vst [vmem:[%s144 + $0xa8] sm:$0xff] %v187
                %v189 = vld [vmem:[%s143 + $0xb0] sm:$0xff]
                %190 = vst [vmem:[%s144 + $0xb0] sm:$0xff] %v189
                %v191 = vld [vmem:[%s143 + $0xb8] sm:$0xff]
                %192 = vst [vmem:[%s144 + $0xb8] sm:$0xff] %v191
                %v193 = vld [vmem:[%s143 + $0xc0] sm:$0xff]
                %194 = vst [vmem:[%s144 + $0xc0] sm:$0xff] %v193
                %v195 = vld [vmem:[%s143 + $0xc8] sm:$0xff]
                %196 = vst [vmem:[%s144 + $0xc8] sm:$0xff] %v195
                %v197 = vld [vmem:[%s143 + $0xd0] sm:$0xff]
                %198 = vst [vmem:[%s144 + $0xd0] sm:$0xff] %v197
                %v199 = vld [vmem:[%s143 + $0xd8] sm:$0xff]
                %200 = vst [vmem:[%s144 + $0xd8] sm:$0xff] %v199
                %v201 = vld [vmem:[%s143 + $0xe0] sm:$0xff]
                %202 = vst [vmem:[%s144 + $0xe0] sm:$0xff] %v201
                %v203 = vld [vmem:[%s143 + $0xe8] sm:$0xff]
                %204 = vst [vmem:[%s144 + $0xe8] sm:$0xff] %v203
                %v205 = vld [vmem:[%s143 + $0xf0] sm:$0xff]
                %206 = vst [vmem:[%s144 + $0xf0] sm:$0xff] %v205
                %v207 = vld [vmem:[%s143 + $0xf8] sm:$0xff]
                %208 = vst [vmem:[%s144 + $0xf8] sm:$0xff] %v207
                %v209 = vld [vmem:[%s143 + $0x100] sm:$0xff]
                %210 = vst [vmem:[%s144 + $0x100] sm:$0xff] %v209
                %v211 = vld [vmem:[%s143 + $0x108] sm:$0xff]
                %212 = vst [vmem:[%s144 + $0x108] sm:$0xff] %v211
                %v213 = vld [vmem:[%s143 + $0x110] sm:$0xff]
                %214 = vst [vmem:[%s144 + $0x110] sm:$0xff] %v213
                %v215 = vld [vmem:[%s143 + $0x118] sm:$0xff]
                %216 = vst [vmem:[%s144 + $0x118] sm:$0xff] %v215
                %v217 = vld [vmem:[%s143 + $0x120] sm:$0xff]
                %218 = vst [vmem:[%s144 + $0x120] sm:$0xff] %v217
                %v219 = vld [vmem:[%s143 + $0x128] sm:$0xff]
                %220 = vst [vmem:[%s144 + $0x128] sm:$0xff] %v219
                %v221 = vld [vmem:[%s143 + $0x130] sm:$0xff]
                %222 = vst [vmem:[%s144 + $0x130] sm:$0xff] %v221
                %v223 = vld [vmem:[%s143 + $0x138] sm:$0xff]
                %224 = vst [vmem:[%s144 + $0x138] sm:$0xff] %v223
                %v225 = vld [vmem:[%s143 + $0x140] sm:$0xff]
                %226 = vst [vmem:[%s144 + $0x140] sm:$0xff] %v225
                %v227 = vld [vmem:[%s143 + $0x148] sm:$0xff]
                %228 = vst [vmem:[%s144 + $0x148] sm:$0xff] %v227
                %v229 = vld [vmem:[%s143 + $0x150] sm:$0xff]
                %230 = vst [vmem:[%s144 + $0x150] sm:$0xff] %v229
                %v231 = vld [vmem:[%s143 + $0x158] sm:$0xff]
                %232 = vst [vmem:[%s144 + $0x158] sm:$0xff] %v231
                %v233 = vld [vmem:[%s143 + $0x160] sm:$0xff]
                %234 = vst [vmem:[%s144 + $0x160] sm:$0xff] %v233
                %v235 = vld [vmem:[%s143 + $0x168] sm:$0xff]
                %236 = vst [vmem:[%s144 + $0x168] sm:$0xff] %v235
                %v237 = vld [vmem:[%s143 + $0x170] sm:$0xff]
                %238 = vst [vmem:[%s144 + $0x170] sm:$0xff] %v237
                %v239 = vld [vmem:[%s143 + $0x178] sm:$0xff]
                %240 = vst [vmem:[%s144 + $0x178] sm:$0xff] %v239
                %v241 = vld [vmem:[%s143 + $0x180] sm:$0xff]
                %242 = vst [vmem:[%s144 + $0x180] sm:$0xff] %v241
                %v243 = vld [vmem:[%s143 + $0x188] sm:$0xff]
                %244 = vst [vmem:[%s144 + $0x188] sm:$0xff] %v243
                %v245 = vld [vmem:[%s143 + $0x4b0] sm:$0xff]
                %246 = vst [vmem:[%s144 + $0x190] sm:$0xff] %v245
                %v247 = vld [vmem:[%s143 + $0x4b8] sm:$0xff]
                %248 = vst [vmem:[%s144 + $0x198] sm:$0xff] %v247
                %v249 = vld [vmem:[%s143 + $0x4c0] sm:$0xff]
                %250 = vst [vmem:[%s144 + $0x1a0] sm:$0xff] %v249
                %v251 = vld [vmem:[%s143 + $0x4c8] sm:$0xff]
                %252 = vst [vmem:[%s144 + $0x1a8] sm:$0xff] %v251
                %v253 = vld [vmem:[%s143 + $0x4d0] sm:$0xff]
                %254 = vst [vmem:[%s144 + $0x1b0] sm:$0xff] %v253
                %v255 = vld [vmem:[%s143 + $0x4d8] sm:$0xff]
                %256 = vst [vmem:[%s144 + $0x1b8] sm:$0xff] %v255
                %v257 = vld [vmem:[%s143 + $0x4e0] sm:$0xff]
                %258 = vst [vmem:[%s144 + $0x1c0] sm:$0xff] %v257
                %v259 = vld [vmem:[%s143 + $0x4e8] sm:$0xff]
                %260 = vst [vmem:[%s144 + $0x1c8] sm:$0xff] %v259
                %v261 = vld [vmem:[%s143 + $0x4f0] sm:$0xff]
                %262 = vst [vmem:[%s144 + $0x1d0] sm:$0xff] %v261
                %v263 = vld [vmem:[%s143 + $0x4f8] sm:$0xff]
                %264 = vst [vmem:[%s144 + $0x1d8] sm:$0xff] %v263
                %v265 = vld [vmem:[%s143 + $0x500] sm:$0xff]
                %266 = vst [vmem:[%s144 + $0x1e0] sm:$0xff] %v265
                %v267 = vld [vmem:[%s143 + $0x508] sm:$0xff]
                %268 = vst [vmem:[%s144 + $0x1e8] sm:$0xff] %v267
                %v269 = vld [vmem:[%s143 + $0x510] sm:$0xff]
                %270 = vst [vmem:[%s144 + $0x1f0] sm:$0xff] %v269
                %v271 = vld [vmem:[%s143 + $0x518] sm:$0xff]
                %272 = vst [vmem:[%s144 + $0x1f8] sm:$0xff] %v271
                %v273 = vld [vmem:[%s143 + $0x520] sm:$0xff]
                %274 = vst [vmem:[%s144 + $0x200] sm:$0xff] %v273
                %v275 = vld [vmem:[%s143 + $0x528] sm:$0xff]
                %276 = vst [vmem:[%s144 + $0x208] sm:$0xff] %v275
                %v277 = vld [vmem:[%s143 + $0x530] sm:$0xff]
                %278 = vst [vmem:[%s144 + $0x210] sm:$0xff] %v277
                %v279 = vld [vmem:[%s143 + $0x538] sm:$0xff]
                %280 = vst [vmem:[%s144 + $0x218] sm:$0xff] %v279
                %v281 = vld [vmem:[%s143 + $0x540] sm:$0xff]
                %282 = vst [vmem:[%s144 + $0x220] sm:$0xff] %v281
                %v283 = vld [vmem:[%s143 + $0x548] sm:$0xff]
                %284 = vst [vmem:[%s144 + $0x228] sm:$0xff] %v283
                %v285 = vld [vmem:[%s143 + $0x550] sm:$0xff]
                %286 = vst [vmem:[%s144 + $0x230] sm:$0xff] %v285
                %v287 = vld [vmem:[%s143 + $0x558] sm:$0xff]
                %288 = vst [vmem:[%s144 + $0x238] sm:$0xff] %v287
                %v289 = vld [vmem:[%s143 + $0x560] sm:$0xff]
                %290 = vst [vmem:[%s144 + $0x240] sm:$0xff] %v289
                %v291 = vld [vmem:[%s143 + $0x568] sm:$0xff]
                %292 = vst [vmem:[%s144 + $0x248] sm:$0xff] %v291
                %v293 = vld [vmem:[%s143 + $0x570] sm:$0xff]
                %294 = vst [vmem:[%s144 + $0x250] sm:$0xff] %v293
                %v295 = vld [vmem:[%s143 + $0x578] sm:$0xff]
                %296 = vst [vmem:[%s144 + $0x258] sm:$0xff] %v295
                %v297 = vld [vmem:[%s143 + $0x580] sm:$0xff]
                %298 = vst [vmem:[%s144 + $0x260] sm:$0xff] %v297
                %v299 = vld [vmem:[%s143 + $0x588] sm:$0xff]
                %300 = vst [vmem:[%s144 + $0x268] sm:$0xff] %v299
                %v301 = vld [vmem:[%s143 + $0x590] sm:$0xff]
                %302 = vst [vmem:[%s144 + $0x270] sm:$0xff] %v301
                %v303 = vld [vmem:[%s143 + $0x598] sm:$0xff]
                %304 = vst [vmem:[%s144 + $0x278] sm:$0xff] %v303
                %v305 = vld [vmem:[%s143 + $0x5a0] sm:$0xff]
                %306 = vst [vmem:[%s144 + $0x280] sm:$0xff] %v305
                %v307 = vld [vmem:[%s143 + $0x5a8] sm:$0xff]
                %308 = vst [vmem:[%s144 + $0x288] sm:$0xff] %v307
                %v309 = vld [vmem:[%s143 + $0x5b0] sm:$0xff]
                %310 = vst [vmem:[%s144 + $0x290] sm:$0xff] %v309
                %v311 = vld [vmem:[%s143 + $0x5b8] sm:$0xff]
                %312 = vst [vmem:[%s144 + $0x298] sm:$0xff] %v311
                %v313 = vld [vmem:[%s143 + $0x5c0] sm:$0xff]
                %314 = vst [vmem:[%s144 + $0x2a0] sm:$0xff] %v313
                %v315 = vld [vmem:[%s143 + $0x5c8] sm:$0xff]
                %316 = vst [vmem:[%s144 + $0x2a8] sm:$0xff] %v315
                %v317 = vld [vmem:[%s143 + $0x5d0] sm:$0xff]
                %318 = vst [vmem:[%s144 + $0x2b0] sm:$0xff] %v317
                %v319 = vld [vmem:[%s143 + $0x5d8] sm:$0xff]
                %320 = vst [vmem:[%s144 + $0x2b8] sm:$0xff] %v319
                %v321 = vld [vmem:[%s143 + $0x5e0] sm:$0xff]
                %322 = vst [vmem:[%s144 + $0x2c0] sm:$0xff] %v321
                %v323 = vld [vmem:[%s143 + $0x5e8] sm:$0xff]
                %324 = vst [vmem:[%s144 + $0x2c8] sm:$0xff] %v323
                %v325 = vld [vmem:[%s143 + $0x5f0] sm:$0xff]
                %326 = vst [vmem:[%s144 + $0x2d0] sm:$0xff] %v325
                %v327 = vld [vmem:[%s143 + $0x5f8] sm:$0xff]
                %328 = vst [vmem:[%s144 + $0x2d8] sm:$0xff] %v327
                %v329 = vld [vmem:[%s143 + $0x600] sm:$0xff]
                %330 = vst [vmem:[%s144 + $0x2e0] sm:$0xff] %v329
                %v331 = vld [vmem:[%s143 + $0x608] sm:$0xff]
                %332 = vst [vmem:[%s144 + $0x2e8] sm:$0xff] %v331
                %v333 = vld [vmem:[%s143 + $0x610] sm:$0xff]
                %334 = vst [vmem:[%s144 + $0x2f0] sm:$0xff] %v333
                %v335 = vld [vmem:[%s143 + $0x618] sm:$0xff]
                %336 = vst [vmem:[%s144 + $0x2f8] sm:$0xff] %v335
                %v337 = vld [vmem:[%s143 + $0x620] sm:$0xff]
                %338 = vst [vmem:[%s144 + $0x300] sm:$0xff] %v337
                %v339 = vld [vmem:[%s143 + $0x628] sm:$0xff]
                %340 = vst [vmem:[%s144 + $0x308] sm:$0xff] %v339
                %v341 = vld [vmem:[%s143 + $0x630] sm:$0xff]
                %342 = vst [vmem:[%s144 + $0x310] sm:$0xff] %v341
                %v343 = vld [vmem:[%s143 + $0x638] sm:$0xff]
                %344 = vst [vmem:[%s144 + $0x318] sm:$0xff] %v343
              $region41: #{conv_leaky.1} parent=35 // loop_footer
                %s142 = sadd.s32 1, %s138
              $region42: #{conv_leaky.1} parent=35 // loop_footer_branch
                %137 = sbr.rel target = $region38
              $region43: #{conv_leaky.1} parent=35 // loop_exit
                _
            $region36: #{conv_leaky.1} parent=31 // pred_fallthru
              _
            // Predicated region
            $region44: #{conv_leaky.1} parent=31 // pred_check
              _
            $region45: #{conv_leaky.1} parent=31 // pred_check_branch
              %346 = sbr.rel target = $region47
            $region46: #{conv_leaky.1} parent=31 // pred_region
              _
            $region47: #{conv_leaky.1} parent=31 // pred_fallthru
              _
          $region32: #{conv_leaky.1} parent=27 // pred_fallthru
            _
          %347 = vnop
        $region28: #{conv_leaky.1} parent=23 // pred_fallthru
          _
      $region24: #{conv_leaky.1} parent=5 // pred_fallthru
        _
      %p348 = scmp.le.s32.totalorder 1, %s9
      %p349 = scmp.lt.s32.totalorder %s9, 4
      %p350 = pnand %p348, %p349
      %p351 = pneg %p350
      // Predicated region
      $region48: #{conv_leaky.1} parent=5 // pred_check
        _
      $region49: #{conv_leaky.1} parent=5 // pred_check_branch
        %353 = sbr.rel (%p350) target = $region51
      $region50: #{conv_leaky.1} parent=5 // pred_region
        %s354 = ssub.s32 %s9, 1
        %s355 = sand.u32 %s43, 1
        %s356 = sand.u32 %s43, 1
        %s357 = smul.addr %s356, 800
        %s358 = scalar_lea.vmem [#allocation2], %s357
        // Predicated region
        $region52: #{conv_leaky.1} parent=50 // pred_check
          %p359 = pneg %p56
        $region53: #{conv_leaky.1} parent=50 // pred_check_branch
          %361 = sbr.rel (%p359) target = $region55
        $region54: #{conv_leaky.1} parent=50 // pred_region
          _
        $region55: #{conv_leaky.1} parent=50 // pred_fallthru
          _
        %p362 = pneg %p30
        %p363 = pneg %p27
        %s364 = sand.u32 %s43, 1
        %s365 = sand.u32 %s43, 1
        %s366 = smul.addr %s365, 800
        %s367 = scalar_lea.vmem [#allocation2], %s366
        %p368 = pneg %p56
        %p369 = pneg %p53
        %p370 = pneg %p77
        %p371 = pneg %p74
        %p372 = pneg %p98
        %p373 = pneg %p95
        %s374 = smul.u32 100, %s14
        %p376 = scmp.eq.s32.totalorder %s14, 0
        // Predicated region
        $region56: #{conv_leaky.1} parent=50 // pred_check
          %p377 = pneg %p376
        $region57: #{conv_leaky.1} parent=50 // pred_check_branch
          %379 = sbr.rel (%p377) target = $region59
        $region58: #{conv_leaky.1} parent=50 // pred_region
          %vm380 = vcmask 130048
          %381 = vst.msk [vmem:[%s3] sm:$0xff] %vm380, 0.0
          %vm382 = vcmask 128000
          %383 = vst.msk [vmem:[%s3 + $0x8] sm:$0x3f] %vm382, 0.0
          %384 = vst.msk [vmem:[%s3 + $0x10] sm:$0xff] %vm380, 0.0
          %385 = vst.msk [vmem:[%s3 + $0x18] sm:$0x3f] %vm382, 0.0
          %386 = vst.msk [vmem:[%s3 + $0x20] sm:$0xff] %vm380, 0.0
          %387 = vst.msk [vmem:[%s3 + $0x28] sm:$0x3f] %vm382, 0.0
        $region59: #{conv_leaky.1} parent=50 // pred_fallthru
          _
        %v388 = vld [vmem:[%s358] sm:$0xff]
        %v389 = vld [vmem:[%s358 + $0x8] sm:$0xff]
        %v390 = vld [vmem:[%s358 + $0x10] sm:$0xff]
        %v391 = vld [vmem:[%s358 + $0x18] sm:$0xff]
        %v392 = vld [vmem:[%s358 + $0x20] sm:$0xff]
        %v393 = vld [vmem:[%s358 + $0x28] sm:$0xff]
        %v394 = vld [vmem:[%s358 + $0x30] sm:$0xff]
        %v395 = vld [vmem:[%s358 + $0x38] sm:$0xff]
        %v396 = vld [vmem:[%s358 + $0x40] sm:$0xff]
        %v397 = vld [vmem:[%s358 + $0x48] sm:$0xff]
        %v398 = vld [vmem:[%s358 + $0x50] sm:$0xff]
        %v399 = vld [vmem:[%s358 + $0x58] sm:$0xff]
        %v400 = vld [vmem:[%s358 + $0x60] sm:$0xff]
        %v401 = vld [vmem:[%s358 + $0x68] sm:$0xff]
        %v402 = vld [vmem:[%s358 + $0x70] sm:$0xff]
        %v403 = vld [vmem:[%s358 + $0x78] sm:$0xff]
        %v404 = vld [vmem:[%s358 + $0x80] sm:$0xff]
        %v405 = vld [vmem:[%s358 + $0x88] sm:$0xff]
        %v406 = vld [vmem:[%s358 + $0x90] sm:$0xff]
        %v407 = vld [vmem:[%s358 + $0x98] sm:$0xff]
        %v408 = vld [vmem:[%s358 + $0xa0] sm:$0xff]
        %v409 = vld [vmem:[%s358 + $0xa8] sm:$0xff]
        %v410 = vld [vmem:[%s358 + $0xb0] sm:$0xff]
        %v411 = vld [vmem:[%s358 + $0xb8] sm:$0xff]
        %v412 = vld [vmem:[%s358 + $0xc0] sm:$0xff]
        %v413 = vld [vmem:[%s358 + $0xc8] sm:$0xff]
        %v414 = vld [vmem:[%s358 + $0xd0] sm:$0xff]
        %v415 = vld [vmem:[%s358 + $0xd8] sm:$0xff]
        %v416 = vld [vmem:[%s358 + $0xe0] sm:$0xff]
        %v417 = vld [vmem:[%s358 + $0xe8] sm:$0xff]
        %v418 = vld [vmem:[%s358 + $0xf0] sm:$0xff]
        %v419 = vld [vmem:[%s358 + $0xf8] sm:$0xff]
        %v420 = vld [vmem:[%s358 + $0x100] sm:$0xff]
        %v421 = vld [vmem:[%s358 + $0x108] sm:$0xff]
        %v422 = vld [vmem:[%s358 + $0x110] sm:$0xff]
        %v423 = vld [vmem:[%s358 + $0x118] sm:$0xff]
        %v424 = vld [vmem:[%s358 + $0x120] sm:$0xff]
        %v425 = vld [vmem:[%s358 + $0x128] sm:$0xff]
        %v426 = vld [vmem:[%s358 + $0x130] sm:$0xff]
        %v427 = vld [vmem:[%s358 + $0x138] sm:$0xff]
        %v428 = vld [vmem:[%s358 + $0x140] sm:$0xff]
        %v429 = vld [vmem:[%s358 + $0x148] sm:$0xff]
        %v430 = vld [vmem:[%s358 + $0x150] sm:$0xff]
        %v431 = vld [vmem:[%s358 + $0x158] sm:$0xff]
        %v432 = vld [vmem:[%s358 + $0x160] sm:$0xff]
        %v433 = vld [vmem:[%s358 + $0x168] sm:$0xff]
        %v434 = vld [vmem:[%s358 + $0x170] sm:$0xff]
        %v435 = vld [vmem:[%s358 + $0x178] sm:$0xff]
        %v436 = vld [vmem:[%s358 + $0x180] sm:$0xff]
        %v437 = vld [vmem:[%s358 + $0x188] sm:$0xff]
        %v438 = vld [vmem:[%s358 + $0x190] sm:$0xff]
        %v439 = vld [vmem:[%s358 + $0x198] sm:$0xff]
        %v440 = vld [vmem:[%s358 + $0x1a0] sm:$0xff]
        %v441 = vld [vmem:[%s358 + $0x1a8] sm:$0xff]
        %v442 = vld [vmem:[%s358 + $0x1b0] sm:$0xff]
        %v443 = vld [vmem:[%s358 + $0x1b8] sm:$0xff]
        %v444 = vld [vmem:[%s358 + $0x1c0] sm:$0xff]
        %v445 = vld [vmem:[%s358 + $0x1c8] sm:$0xff]
        %v446 = vld [vmem:[%s358 + $0x1d0] sm:$0xff]
        %v447 = vld [vmem:[%s358 + $0x1d8] sm:$0xff]
        %v448 = vld [vmem:[%s358 + $0x1e0] sm:$0xff]
        %v449 = vld [vmem:[%s358 + $0x1e8] sm:$0xff]
        %v450 = vld [vmem:[%s358 + $0x1f0] sm:$0xff]
        %v451 = vld [vmem:[%s358 + $0x1f8] sm:$0xff]
        %v452 = vld [vmem:[%s358 + $0x200] sm:$0xff]
        %v453 = vld [vmem:[%s358 + $0x208] sm:$0xff]
        %v454 = vld [vmem:[%s358 + $0x210] sm:$0xff]
        %v455 = vld [vmem:[%s358 + $0x218] sm:$0xff]
        %v456 = vld [vmem:[%s358 + $0x220] sm:$0xff]
        %v457 = vld [vmem:[%s358 + $0x228] sm:$0xff]
        %v458 = vld [vmem:[%s358 + $0x230] sm:$0xff]
        %v459 = vld [vmem:[%s358 + $0x238] sm:$0xff]
        %v460 = vld [vmem:[%s358 + $0x240] sm:$0xff]
        %v461 = vld [vmem:[%s358 + $0x248] sm:$0xff]
        %v462 = vld [vmem:[%s358 + $0x250] sm:$0xff]
        %v463 = vld [vmem:[%s358 + $0x258] sm:$0xff]
        %v464 = vld [vmem:[%s358 + $0x260] sm:$0xff]
        %v465 = vld [vmem:[%s358 + $0x268] sm:$0xff]
        %v466 = vld [vmem:[%s358 + $0x270] sm:$0xff]
        %v467 = vld [vmem:[%s358 + $0x278] sm:$0xff]
        %v468 = vld [vmem:[%s358 + $0x280] sm:$0xff]
        %v469 = vld [vmem:[%s358 + $0x288] sm:$0xff]
        %v470 = vld [vmem:[%s358 + $0x290] sm:$0xff]
        %v471 = vld [vmem:[%s358 + $0x298] sm:$0xff]
        %v472 = vld [vmem:[%s358 + $0x2a0] sm:$0xff]
        %v473 = vld [vmem:[%s358 + $0x2a8] sm:$0xff]
        %v474 = vld [vmem:[%s358 + $0x2b0] sm:$0xff]
        %v475 = vld [vmem:[%s358 + $0x2b8] sm:$0xff]
        %v476 = vld [vmem:[%s358 + $0x2c0] sm:$0xff]
        %v477 = vld [vmem:[%s358 + $0x2c8] sm:$0xff]
        %v478 = vld [vmem:[%s358 + $0x2d0] sm:$0xff]
        %v479 = vld [vmem:[%s358 + $0x2d8] sm:$0xff]
        %v480 = vld [vmem:[%s358 + $0x2e0] sm:$0xff]
        %v481 = vld [vmem:[%s358 + $0x2e8] sm:$0xff]
        %v482 = vld [vmem:[%s358 + $0x2f0] sm:$0xff]
        %v483 = vld [vmem:[%s358 + $0x2f8] sm:$0xff]
        %v484 = vld [vmem:[%s358 + $0x300] sm:$0xff]
        %v485 = vld [vmem:[%s358 + $0x308] sm:$0xff]
        %v486 = vld [vmem:[%s358 + $0x310] sm:$0xff]
        %v487 = vld [vmem:[%s358 + $0x318] sm:$0xff]
        %s488 = smul.u32 %s14, 12800
        %s489 = sshra.s32 %s488, 7
        %s490 = sand.u32 %s488, 127
        %s491 = smul.addr %s489, 4
        %s492 = scalar_lea.vmem %s0, %s491
        %v493 = vld [vmem:[%s492] sm:$0xff]
        %v494 = vld [vmem:[%s492 + $0x8] sm:$0xff]
        %v495 = vld [vmem:[%s492 + $0x10] sm:$0xff]
        %v496 = vld [vmem:[%s492 + $0x18] sm:$0xff]
        %v497 = vld [vmem:[%s492 + $0x20] sm:$0xff]
        %v498 = vld [vmem:[%s492 + $0x28] sm:$0xff]
        %v499 = vld [vmem:[%s492 + $0x30] sm:$0xff]
        %v500 = vld [vmem:[%s492 + $0x38] sm:$0xff]
        %v501 = vld [vmem:[%s492 + $0x40] sm:$0xff]
        %v502 = vld [vmem:[%s492 + $0x48] sm:$0xff]
        %v503 = vld [vmem:[%s492 + $0x50] sm:$0xff]
        %v504 = vld [vmem:[%s492 + $0x58] sm:$0xff]
        %v505 = vld [vmem:[%s492 + $0x60] sm:$0xff]
        %v506 = vld [vmem:[%s492 + $0x68] sm:$0xff]
        %v507 = vld [vmem:[%s492 + $0x70] sm:$0xff]
        %v508 = vld [vmem:[%s492 + $0x78] sm:$0xff]
        %v509 = vld [vmem:[%s492 + $0x80] sm:$0xff]
        %v510 = vld [vmem:[%s492 + $0x88] sm:$0xff]
        %v511 = vld [vmem:[%s492 + $0x90] sm:$0xff]
        %v512 = vld [vmem:[%s492 + $0x98] sm:$0xff]
        %v513 = vld [vmem:[%s492 + $0xa0] sm:$0xff]
        %v514 = vld [vmem:[%s492 + $0xa8] sm:$0xff]
        %v515 = vld [vmem:[%s492 + $0xb0] sm:$0xff]
        %v516 = vld [vmem:[%s492 + $0xb8] sm:$0xff]
        %v517 = vld [vmem:[%s492 + $0xc0] sm:$0xff]
        %v518 = vld [vmem:[%s492 + $0xc8] sm:$0xff]
        %v519 = vld [vmem:[%s492 + $0xd0] sm:$0xff]
        %v520 = vld [vmem:[%s492 + $0xd8] sm:$0xff]
        %v521 = vld [vmem:[%s492 + $0xe0] sm:$0xff]
        %v522 = vld [vmem:[%s492 + $0xe8] sm:$0xff]
        %v523 = vld [vmem:[%s492 + $0xf0] sm:$0xff]
        %v524 = vld [vmem:[%s492 + $0xf8] sm:$0xff]
        %v525 = vld [vmem:[%s492 + $0x100] sm:$0xff]
        %v526 = vld [vmem:[%s492 + $0x108] sm:$0xff]
        %v527 = vld [vmem:[%s492 + $0x110] sm:$0xff]
        %v528 = vld [vmem:[%s492 + $0x118] sm:$0xff]
        %v529 = vld [vmem:[%s492 + $0x120] sm:$0xff]
        %v530 = vld [vmem:[%s492 + $0x128] sm:$0xff]
        %v531 = vld [vmem:[%s492 + $0x130] sm:$0xff]
        %v532 = vld [vmem:[%s492 + $0x138] sm:$0xff]
        %v533 = vld [vmem:[%s492 + $0x140] sm:$0xff]
        %v534 = vld [vmem:[%s492 + $0x148] sm:$0xff]
        %v535 = vld [vmem:[%s492 + $0x150] sm:$0xff]
        %v536 = vld [vmem:[%s492 + $0x158] sm:$0xff]
        %v537 = vld [vmem:[%s492 + $0x160] sm:$0xff]
        %v538 = vld [vmem:[%s492 + $0x168] sm:$0xff]
        %v539 = vld [vmem:[%s492 + $0x170] sm:$0xff]
        %v540 = vld [vmem:[%s492 + $0x178] sm:$0xff]
        %v541 = vld [vmem:[%s492 + $0x180] sm:$0xff]
        %v542 = vld [vmem:[%s492 + $0x188] sm:$0xff]
        %v543 = vld [vmem:[%s492 + $0x500] sm:$0x77]
        %v544 = vld [vmem:[%s492 + $0x508] sm:$0x77]
        %v545 = vld [vmem:[%s492 + $0x510] sm:$0x77]
        %v546 = vld [vmem:[%s492 + $0x518] sm:$0x77]
        %v547 = vld [vmem:[%s492 + $0x520] sm:$0x77]
        %v548 = vld [vmem:[%s492 + $0x528] sm:$0x77]
        %v549 = vld [vmem:[%s492 + $0x530] sm:$0x77]
        %v550 = vld [vmem:[%s492 + $0x538] sm:$0x77]
        %v551 = vld [vmem:[%s492 + $0x540] sm:$0x77]
        %v552 = vld [vmem:[%s492 + $0x548] sm:$0x77]
        %v553 = vld [vmem:[%s492 + $0x550] sm:$0x77]
        %v554 = vld [vmem:[%s492 + $0x558] sm:$0x77]
        %v555 = vld [vmem:[%s492 + $0x560] sm:$0x77]
        %v556 = vld [vmem:[%s492 + $0x568] sm:$0x77]
        %v557 = vld [vmem:[%s492 + $0x570] sm:$0x77]
        %v558 = vld [vmem:[%s492 + $0x578] sm:$0x77]
        %v559 = vld [vmem:[%s492 + $0x580] sm:$0x77]
        %v560 = vld [vmem:[%s492 + $0x588] sm:$0x77]
        %v561 = vld [vmem:[%s492 + $0x590] sm:$0x77]
        %v562 = vld [vmem:[%s492 + $0x598] sm:$0x77]
        %v563 = vld [vmem:[%s492 + $0x5a0] sm:$0x77]
        %v564 = vld [vmem:[%s492 + $0x5a8] sm:$0x77]
        %v565 = vld [vmem:[%s492 + $0x5b0] sm:$0x77]
        %v566 = vld [vmem:[%s492 + $0x5b8] sm:$0x77]
        %v567 = vld [vmem:[%s492 + $0x5c0] sm:$0x77]
        %v568 = vld [vmem:[%s492 + $0x5c8] sm:$0x77]
        %v569 = vld [vmem:[%s492 + $0x5d0] sm:$0x77]
        %v570 = vld [vmem:[%s492 + $0x5d8] sm:$0x77]
        %v571 = vld [vmem:[%s492 + $0x5e0] sm:$0x77]
        %v572 = vld [vmem:[%s492 + $0x5e8] sm:$0x77]
        %v573 = vld [vmem:[%s492 + $0x5f0] sm:$0x77]
        %v574 = vld [vmem:[%s492 + $0x5f8] sm:$0x77]
        %v575 = vld [vmem:[%s492 + $0x600] sm:$0x77]
        %v576 = vld [vmem:[%s492 + $0x608] sm:$0x77]
        %v577 = vld [vmem:[%s492 + $0x610] sm:$0x77]
        %v578 = vld [vmem:[%s492 + $0x618] sm:$0x77]
        %v579 = vld [vmem:[%s492 + $0x620] sm:$0x77]
        %v580 = vld [vmem:[%s492 + $0x628] sm:$0x77]
        %v581 = vld [vmem:[%s492 + $0x630] sm:$0x77]
        %v582 = vld [vmem:[%s492 + $0x638] sm:$0x77]
        %v583 = vld [vmem:[%s492 + $0x640] sm:$0x77]
        %v584 = vld [vmem:[%s492 + $0x648] sm:$0x77]
        %v585 = vld [vmem:[%s492 + $0x650] sm:$0x77]
        %v586 = vld [vmem:[%s492 + $0x658] sm:$0x77]
        %v587 = vld [vmem:[%s492 + $0x660] sm:$0x77]
        %v588 = vld [vmem:[%s492 + $0x668] sm:$0x77]
        %v589 = vld [vmem:[%s492 + $0x670] sm:$0x77]
        %v590 = vld [vmem:[%s492 + $0x678] sm:$0x77]
        %v591 = vld [vmem:[%s492 + $0x680] sm:$0x77]
        %v592 = vld [vmem:[%s492 + $0x688] sm:$0x77]
        %v593 = vld [vmem:[%s3] sm:$0xff]
        %v594 = vld [vmem:[%s3 + $0x8] sm:$0x3f]
        %v695 = vunpack.c.l.b16 %v493
        %v696 = vunpack.c.h.b16 %v493
        %v697 = vunpack.c.l.b16 %v494
        %v698 = vunpack.c.h.b16 %v494
        %v699 = vunpack.c.l.b16 %v495
        %v700 = vunpack.c.h.b16 %v495
        %v701 = vunpack.c.l.b16 %v496
        %v702 = vunpack.c.h.b16 %v496
        %v703 = vunpack.c.l.b16 %v497
        %v704 = vunpack.c.h.b16 %v497
        %v705 = vunpack.c.l.b16 %v498
        %v706 = vunpack.c.h.b16 %v498
        %v707 = vunpack.c.l.b16 %v499
        %v708 = vunpack.c.h.b16 %v499
        %v709 = vunpack.c.l.b16 %v500
        %v710 = vunpack.c.h.b16 %v500
        %v711 = vunpack.c.l.b16 %v501
        %v712 = vunpack.c.h.b16 %v501
        %v713 = vunpack.c.l.b16 %v502
        %v714 = vunpack.c.h.b16 %v502
        %v715 = vunpack.c.l.b16 %v503
        %v716 = vunpack.c.h.b16 %v503
        %v717 = vunpack.c.l.b16 %v504
        %v718 = vunpack.c.h.b16 %v504
        %v719 = vunpack.c.l.b16 %v505
        %v720 = vunpack.c.h.b16 %v505
        %v721 = vunpack.c.l.b16 %v506
        %v722 = vunpack.c.h.b16 %v506
        %v723 = vunpack.c.l.b16 %v507
        %v724 = vunpack.c.h.b16 %v507
        %v725 = vunpack.c.l.b16 %v508
        %v726 = vunpack.c.h.b16 %v508
        %v727 = vunpack.c.l.b16 %v509
        %v728 = vunpack.c.h.b16 %v509
        %v729 = vunpack.c.l.b16 %v510
        %v730 = vunpack.c.h.b16 %v510
        %v731 = vunpack.c.l.b16 %v511
        %v732 = vunpack.c.h.b16 %v511
        %v733 = vunpack.c.l.b16 %v512
        %v734 = vunpack.c.h.b16 %v512
        %v735 = vunpack.c.l.b16 %v513
        %v736 = vunpack.c.h.b16 %v513
        %v737 = vunpack.c.l.b16 %v514
        %v738 = vunpack.c.h.b16 %v514
        %v739 = vunpack.c.l.b16 %v515
        %v740 = vunpack.c.h.b16 %v515
        %v741 = vunpack.c.l.b16 %v516
        %v742 = vunpack.c.h.b16 %v516
        %v743 = vunpack.c.l.b16 %v517
        %v744 = vunpack.c.h.b16 %v517
        %v745 = vunpack.c.l.b16 %v518
        %v746 = vunpack.c.h.b16 %v518
        %v747 = vunpack.c.l.b16 %v519
        %v748 = vunpack.c.h.b16 %v519
        %v749 = vunpack.c.l.b16 %v520
        %v750 = vunpack.c.h.b16 %v520
        %v751 = vunpack.c.l.b16 %v521
        %v752 = vunpack.c.h.b16 %v521
        %v753 = vunpack.c.l.b16 %v522
        %v754 = vunpack.c.h.b16 %v522
        %v755 = vunpack.c.l.b16 %v523
        %v756 = vunpack.c.h.b16 %v523
        %v757 = vunpack.c.l.b16 %v524
        %v758 = vunpack.c.h.b16 %v524
        %v759 = vunpack.c.l.b16 %v525
        %v760 = vunpack.c.h.b16 %v525
        %v761 = vunpack.c.l.b16 %v526
        %v762 = vunpack.c.h.b16 %v526
        %v763 = vunpack.c.l.b16 %v527
        %v764 = vunpack.c.h.b16 %v527
        %v765 = vunpack.c.l.b16 %v528
        %v766 = vunpack.c.h.b16 %v528
        %v767 = vunpack.c.l.b16 %v529
        %v768 = vunpack.c.h.b16 %v529
        %v769 = vunpack.c.l.b16 %v530
        %v770 = vunpack.c.h.b16 %v530
        %v771 = vunpack.c.l.b16 %v531
        %v772 = vunpack.c.h.b16 %v531
        %v773 = vunpack.c.l.b16 %v532
        %v774 = vunpack.c.h.b16 %v532
        %v775 = vunpack.c.l.b16 %v533
        %v776 = vunpack.c.h.b16 %v533
        %v777 = vunpack.c.l.b16 %v534
        %v778 = vunpack.c.h.b16 %v534
        %v779 = vunpack.c.l.b16 %v535
        %v780 = vunpack.c.h.b16 %v535
        %v781 = vunpack.c.l.b16 %v536
        %v782 = vunpack.c.h.b16 %v536
        %v783 = vunpack.c.l.b16 %v537
        %v784 = vunpack.c.h.b16 %v537
        %v785 = vunpack.c.l.b16 %v538
        %v786 = vunpack.c.h.b16 %v538
        %v787 = vunpack.c.l.b16 %v539
        %v788 = vunpack.c.h.b16 %v539
        %v789 = vunpack.c.l.b16 %v540
        %v790 = vunpack.c.h.b16 %v540
        %v791 = vunpack.c.l.b16 %v541
        %v792 = vunpack.c.h.b16 %v541
        %v793 = vunpack.c.l.b16 %v542
        %v794 = vunpack.c.h.b16 %v542
        %v795 = vunpack.c.l.b16 %v543
        %v796 = vunpack.c.h.b16 %v543
        %v797 = vunpack.c.l.b16 %v544
        %v798 = vunpack.c.h.b16 %v544
        %v799 = vunpack.c.l.b16 %v545
        %v800 = vunpack.c.h.b16 %v545
        %v801 = vunpack.c.l.b16 %v546
        %v802 = vunpack.c.h.b16 %v546
        %v803 = vunpack.c.l.b16 %v547
        %v804 = vunpack.c.h.b16 %v547
        %v805 = vunpack.c.l.b16 %v548
        %v806 = vunpack.c.h.b16 %v548
        %v807 = vunpack.c.l.b16 %v549
        %v808 = vunpack.c.h.b16 %v549
        %v809 = vunpack.c.l.b16 %v550
        %v810 = vunpack.c.h.b16 %v550
        %v811 = vunpack.c.l.b16 %v551
        %v812 = vunpack.c.h.b16 %v551
        %v813 = vunpack.c.l.b16 %v552
        %v814 = vunpack.c.h.b16 %v552
        %v815 = vunpack.c.l.b16 %v553
        %v816 = vunpack.c.h.b16 %v553
        %v817 = vunpack.c.l.b16 %v554
        %v818 = vunpack.c.h.b16 %v554
        %v819 = vunpack.c.l.b16 %v555
        %v820 = vunpack.c.h.b16 %v555
        %v821 = vunpack.c.l.b16 %v556
        %v822 = vunpack.c.h.b16 %v556
        %v823 = vunpack.c.l.b16 %v557
        %v824 = vunpack.c.h.b16 %v557
        %v825 = vunpack.c.l.b16 %v558
        %v826 = vunpack.c.h.b16 %v558
        %v827 = vunpack.c.l.b16 %v559
        %v828 = vunpack.c.h.b16 %v559
        %v829 = vunpack.c.l.b16 %v560
        %v830 = vunpack.c.h.b16 %v560
        %v831 = vunpack.c.l.b16 %v561
        %v832 = vunpack.c.h.b16 %v561
        %v833 = vunpack.c.l.b16 %v562
        %v834 = vunpack.c.h.b16 %v562
        %v835 = vunpack.c.l.b16 %v563
        %v836 = vunpack.c.h.b16 %v563
        %v837 = vunpack.c.l.b16 %v564
        %v838 = vunpack.c.h.b16 %v564
        %v839 = vunpack.c.l.b16 %v565
        %v840 = vunpack.c.h.b16 %v565
        %v841 = vunpack.c.l.b16 %v566
        %v842 = vunpack.c.h.b16 %v566
        %v843 = vunpack.c.l.b16 %v567
        %v844 = vunpack.c.h.b16 %v567
        %v845 = vunpack.c.l.b16 %v568
        %v846 = vunpack.c.h.b16 %v568
        %v847 = vunpack.c.l.b16 %v569
        %v848 = vunpack.c.h.b16 %v569
        %v849 = vunpack.c.l.b16 %v570
        %v850 = vunpack.c.h.b16 %v570
        %v851 = vunpack.c.l.b16 %v571
        %v852 = vunpack.c.h.b16 %v571
        %v853 = vunpack.c.l.b16 %v572
        %v854 = vunpack.c.h.b16 %v572
        %v855 = vunpack.c.l.b16 %v573
        %v856 = vunpack.c.h.b16 %v573
        %v857 = vunpack.c.l.b16 %v574
        %v858 = vunpack.c.h.b16 %v574
        %v859 = vunpack.c.l.b16 %v575
        %v860 = vunpack.c.h.b16 %v575
        %v861 = vunpack.c.l.b16 %v576
        %v862 = vunpack.c.h.b16 %v576
        %v863 = vunpack.c.l.b16 %v577
        %v864 = vunpack.c.h.b16 %v577
        %v865 = vunpack.c.l.b16 %v578
        %v866 = vunpack.c.h.b16 %v578
        %v867 = vunpack.c.l.b16 %v579
        %v868 = vunpack.c.h.b16 %v579
        %v869 = vunpack.c.l.b16 %v580
        %v870 = vunpack.c.h.b16 %v580
        %v871 = vunpack.c.l.b16 %v581
        %v872 = vunpack.c.h.b16 %v581
        %v873 = vunpack.c.l.b16 %v582
        %v874 = vunpack.c.h.b16 %v582
        %v875 = vunpack.c.l.b16 %v583
        %v876 = vunpack.c.h.b16 %v583
        %v877 = vunpack.c.l.b16 %v584
        %v878 = vunpack.c.h.b16 %v584
        %v879 = vunpack.c.l.b16 %v585
        %v880 = vunpack.c.h.b16 %v585
        %v881 = vunpack.c.l.b16 %v586
        %v882 = vunpack.c.h.b16 %v586
        %v883 = vunpack.c.l.b16 %v587
        %v884 = vunpack.c.h.b16 %v587
        %v885 = vunpack.c.l.b16 %v588
        %v886 = vunpack.c.h.b16 %v588
        %v887 = vunpack.c.l.b16 %v589
        %v888 = vunpack.c.h.b16 %v589
        %v889 = vunpack.c.l.b16 %v590
        %v890 = vunpack.c.h.b16 %v590
        %v891 = vunpack.c.l.b16 %v591
        %v892 = vunpack.c.h.b16 %v591
        %v893 = vunpack.c.l.b16 %v592
        %v894 = vunpack.c.h.b16 %v592
        %v895 = vpack.c.b16 %v795, %v695
        %v896 = vpack.c.b16 %v796, %v696
        %v897 = vpack.c.b16 %v797, %v697
        %v898 = vpack.c.b16 %v798, %v698
        %v899 = vpack.c.b16 %v799, %v699
        %v900 = vpack.c.b16 %v800, %v700
        %v901 = vpack.c.b16 %v801, %v701
        %v902 = vpack.c.b16 %v802, %v702
        %v903 = vpack.c.b16 %v803, %v703
        %v904 = vpack.c.b16 %v804, %v704
        %v905 = vpack.c.b16 %v805, %v705
        %v906 = vpack.c.b16 %v806, %v706
        %v907 = vpack.c.b16 %v807, %v707
        %v908 = vpack.c.b16 %v808, %v708
        %v909 = vpack.c.b16 %v809, %v709
        %v910 = vpack.c.b16 %v810, %v710
        %v911 = vpack.c.b16 %v811, %v711
        %v912 = vpack.c.b16 %v812, %v712
        %v913 = vpack.c.b16 %v813, %v713
        %v914 = vpack.c.b16 %v814, %v714
        %v915 = vpack.c.b16 %v815, %v715
        %v916 = vpack.c.b16 %v816, %v716
        %v917 = vpack.c.b16 %v817, %v717
        %v918 = vpack.c.b16 %v818, %v718
        %v919 = vpack.c.b16 %v819, %v719
        %v920 = vpack.c.b16 %v820, %v720
        %v921 = vpack.c.b16 %v821, %v721
        %v922 = vpack.c.b16 %v822, %v722
        %v923 = vpack.c.b16 %v823, %v723
        %v924 = vpack.c.b16 %v824, %v724
        %v925 = vpack.c.b16 %v825, %v725
        %v926 = vpack.c.b16 %v826, %v726
        %v927 = vpack.c.b16 %v827, %v727
        %v928 = vpack.c.b16 %v828, %v728
        %v929 = vpack.c.b16 %v829, %v729
        %v930 = vpack.c.b16 %v830, %v730
        %v931 = vpack.c.b16 %v831, %v731
        %v932 = vpack.c.b16 %v832, %v732
        %v933 = vpack.c.b16 %v833, %v733
        %v934 = vpack.c.b16 %v834, %v734
        %v935 = vpack.c.b16 %v835, %v735
        %v936 = vpack.c.b16 %v836, %v736
        %v937 = vpack.c.b16 %v837, %v737
        %v938 = vpack.c.b16 %v838, %v738
        %v939 = vpack.c.b16 %v839, %v739
        %v940 = vpack.c.b16 %v840, %v740
        %v941 = vpack.c.b16 %v841, %v741
        %v942 = vpack.c.b16 %v842, %v742
        %v943 = vpack.c.b16 %v843, %v743
        %v944 = vpack.c.b16 %v844, %v744
        %v945 = vpack.c.b16 %v845, %v745
        %v946 = vpack.c.b16 %v846, %v746
        %v947 = vpack.c.b16 %v847, %v747
        %v948 = vpack.c.b16 %v848, %v748
        %v949 = vpack.c.b16 %v849, %v749
        %v950 = vpack.c.b16 %v850, %v750
        %v951 = vpack.c.b16 %v851, %v751
        %v952 = vpack.c.b16 %v852, %v752
        %v953 = vpack.c.b16 %v853, %v753
        %v954 = vpack.c.b16 %v854, %v754
        %v955 = vpack.c.b16 %v855, %v755
        %v956 = vpack.c.b16 %v856, %v756
        %v957 = vpack.c.b16 %v857, %v757
        %v958 = vpack.c.b16 %v858, %v758
        %v959 = vpack.c.b16 %v859, %v759
        %v960 = vpack.c.b16 %v860, %v760
        %v961 = vpack.c.b16 %v861, %v761
        %v962 = vpack.c.b16 %v862, %v762
        %v963 = vpack.c.b16 %v863, %v763
        %v964 = vpack.c.b16 %v864, %v764
        %v965 = vpack.c.b16 %v865, %v765
        %v966 = vpack.c.b16 %v866, %v766
        %v967 = vpack.c.b16 %v867, %v767
        %v968 = vpack.c.b16 %v868, %v768
        %v969 = vpack.c.b16 %v869, %v769
        %v970 = vpack.c.b16 %v870, %v770
        %v971 = vpack.c.b16 %v871, %v771
        %v972 = vpack.c.b16 %v872, %v772
        %v973 = vpack.c.b16 %v873, %v773
        %v974 = vpack.c.b16 %v874, %v774
        %v975 = vpack.c.b16 %v875, %v775
        %v976 = vpack.c.b16 %v876, %v776
        %v977 = vpack.c.b16 %v877, %v777
        %v978 = vpack.c.b16 %v878, %v778
        %v979 = vpack.c.b16 %v879, %v779
        %v980 = vpack.c.b16 %v880, %v780
        %v981 = vpack.c.b16 %v881, %v781
        %v982 = vpack.c.b16 %v882, %v782
        %v983 = vpack.c.b16 %v883, %v783
        %v984 = vpack.c.b16 %v884, %v784
        %v985 = vpack.c.b16 %v885, %v785
        %v986 = vpack.c.b16 %v886, %v786
        %v987 = vpack.c.b16 %v887, %v787
        %v988 = vpack.c.b16 %v888, %v788
        %v989 = vpack.c.b16 %v889, %v789
        %v990 = vpack.c.b16 %v890, %v790
        %v991 = vpack.c.b16 %v891, %v791
        %v992 = vpack.c.b16 %v892, %v792
        %v993 = vpack.c.b16 %v893, %v793
        %v994 = vpack.c.b16 %v894, %v794
        %v1195 = vunpack.c.l.b16 %v388
        %v1196 = vunpack.c.h.b16 %v388
        %v1197 = vunpack.c.l.b16 %v389
        %v1198 = vunpack.c.h.b16 %v389
        %v1199 = vunpack.c.l.b16 %v390
        %v1200 = vunpack.c.h.b16 %v390
        %v1201 = vunpack.c.l.b16 %v391
        %v1202 = vunpack.c.h.b16 %v391
        %v1203 = vunpack.c.l.b16 %v392
        %v1204 = vunpack.c.h.b16 %v392
        %v1205 = vunpack.c.l.b16 %v393
        %v1206 = vunpack.c.h.b16 %v393
        %v1207 = vunpack.c.l.b16 %v394
        %v1208 = vunpack.c.h.b16 %v394
        %v1209 = vunpack.c.l.b16 %v395
        %v1210 = vunpack.c.h.b16 %v395
        %v1211 = vunpack.c.l.b16 %v396
        %v1212 = vunpack.c.h.b16 %v396
        %v1213 = vunpack.c.l.b16 %v397
        %v1214 = vunpack.c.h.b16 %v397
        %v1215 = vunpack.c.l.b16 %v398
        %v1216 = vunpack.c.h.b16 %v398
        %v1217 = vunpack.c.l.b16 %v399
        %v1218 = vunpack.c.h.b16 %v399
        %v1219 = vunpack.c.l.b16 %v400
        %v1220 = vunpack.c.h.b16 %v400
        %v1221 = vunpack.c.l.b16 %v401
        %v1222 = vunpack.c.h.b16 %v401
        %v1223 = vunpack.c.l.b16 %v402
        %v1224 = vunpack.c.h.b16 %v402
        %v1225 = vunpack.c.l.b16 %v403
        %v1226 = vunpack.c.h.b16 %v403
        %v1227 = vunpack.c.l.b16 %v404
        %v1228 = vunpack.c.h.b16 %v404
        %v1229 = vunpack.c.l.b16 %v405
        %v1230 = vunpack.c.h.b16 %v405
        %v1231 = vunpack.c.l.b16 %v406
        %v1232 = vunpack.c.h.b16 %v406
        %v1233 = vunpack.c.l.b16 %v407
        %v1234 = vunpack.c.h.b16 %v407
        %v1235 = vunpack.c.l.b16 %v408
        %v1236 = vunpack.c.h.b16 %v408
        %v1237 = vunpack.c.l.b16 %v409
        %v1238 = vunpack.c.h.b16 %v409
        %v1239 = vunpack.c.l.b16 %v410
        %v1240 = vunpack.c.h.b16 %v410
        %v1241 = vunpack.c.l.b16 %v411
        %v1242 = vunpack.c.h.b16 %v411
        %v1243 = vunpack.c.l.b16 %v412
        %v1244 = vunpack.c.h.b16 %v412
        %v1245 = vunpack.c.l.b16 %v413
        %v1246 = vunpack.c.h.b16 %v413
        %v1247 = vunpack.c.l.b16 %v414
        %v1248 = vunpack.c.h.b16 %v414
        %v1249 = vunpack.c.l.b16 %v415
        %v1250 = vunpack.c.h.b16 %v415
        %v1251 = vunpack.c.l.b16 %v416
        %v1252 = vunpack.c.h.b16 %v416
        %v1253 = vunpack.c.l.b16 %v417
        %v1254 = vunpack.c.h.b16 %v417
        %v1255 = vunpack.c.l.b16 %v418
        %v1256 = vunpack.c.h.b16 %v418
        %v1257 = vunpack.c.l.b16 %v419
        %v1258 = vunpack.c.h.b16 %v419
        %v1259 = vunpack.c.l.b16 %v420
        %v1260 = vunpack.c.h.b16 %v420
        %v1261 = vunpack.c.l.b16 %v421
        %v1262 = vunpack.c.h.b16 %v421
        %v1263 = vunpack.c.l.b16 %v422
        %v1264 = vunpack.c.h.b16 %v422
        %v1265 = vunpack.c.l.b16 %v423
        %v1266 = vunpack.c.h.b16 %v423
        %v1267 = vunpack.c.l.b16 %v424
        %v1268 = vunpack.c.h.b16 %v424
        %v1269 = vunpack.c.l.b16 %v425
        %v1270 = vunpack.c.h.b16 %v425
        %v1271 = vunpack.c.l.b16 %v426
        %v1272 = vunpack.c.h.b16 %v426
        %v1273 = vunpack.c.l.b16 %v427
        %v1274 = vunpack.c.h.b16 %v427
        %v1275 = vunpack.c.l.b16 %v428
        %v1276 = vunpack.c.h.b16 %v428
        %v1277 = vunpack.c.l.b16 %v429
        %v1278 = vunpack.c.h.b16 %v429
        %v1279 = vunpack.c.l.b16 %v430
        %v1280 = vunpack.c.h.b16 %v430
        %v1281 = vunpack.c.l.b16 %v431
        %v1282 = vunpack.c.h.b16 %v431
        %v1283 = vunpack.c.l.b16 %v432
        %v1284 = vunpack.c.h.b16 %v432
        %v1285 = vunpack.c.l.b16 %v433
        %v1286 = vunpack.c.h.b16 %v433
        %v1287 = vunpack.c.l.b16 %v434
        %v1288 = vunpack.c.h.b16 %v434
        %v1289 = vunpack.c.l.b16 %v435
        %v1290 = vunpack.c.h.b16 %v435
        %v1291 = vunpack.c.l.b16 %v436
        %v1292 = vunpack.c.h.b16 %v436
        %v1293 = vunpack.c.l.b16 %v437
        %v1294 = vunpack.c.h.b16 %v437
        %v1295 = vunpack.c.l.b16 %v438
        %v1296 = vunpack.c.h.b16 %v438
        %v1297 = vunpack.c.l.b16 %v439
        %v1298 = vunpack.c.h.b16 %v439
        %v1299 = vunpack.c.l.b16 %v440
        %v1300 = vunpack.c.h.b16 %v440
        %v1301 = vunpack.c.l.b16 %v441
        %v1302 = vunpack.c.h.b16 %v441
        %v1303 = vunpack.c.l.b16 %v442
        %v1304 = vunpack.c.h.b16 %v442
        %v1305 = vunpack.c.l.b16 %v443
        %v1306 = vunpack.c.h.b16 %v443
        %v1307 = vunpack.c.l.b16 %v444
        %v1308 = vunpack.c.h.b16 %v444
        %v1309 = vunpack.c.l.b16 %v445
        %v1310 = vunpack.c.h.b16 %v445
        %v1311 = vunpack.c.l.b16 %v446
        %v1312 = vunpack.c.h.b16 %v446
        %v1313 = vunpack.c.l.b16 %v447
        %v1314 = vunpack.c.h.b16 %v447
        %v1315 = vunpack.c.l.b16 %v448
        %v1316 = vunpack.c.h.b16 %v448
        %v1317 = vunpack.c.l.b16 %v449
        %v1318 = vunpack.c.h.b16 %v449
        %v1319 = vunpack.c.l.b16 %v450
        %v1320 = vunpack.c.h.b16 %v450
        %v1321 = vunpack.c.l.b16 %v451
        %v1322 = vunpack.c.h.b16 %v451
        %v1323 = vunpack.c.l.b16 %v452
        %v1324 = vunpack.c.h.b16 %v452
        %v1325 = vunpack.c.l.b16 %v453
        %v1326 = vunpack.c.h.b16 %v453
        %v1327 = vunpack.c.l.b16 %v454
        %v1328 = vunpack.c.h.b16 %v454
        %v1329 = vunpack.c.l.b16 %v455
        %v1330 = vunpack.c.h.b16 %v455
        %v1331 = vunpack.c.l.b16 %v456
        %v1332 = vunpack.c.h.b16 %v456
        %v1333 = vunpack.c.l.b16 %v457
        %v1334 = vunpack.c.h.b16 %v457
        %v1335 = vunpack.c.l.b16 %v458
        %v1336 = vunpack.c.h.b16 %v458
        %v1337 = vunpack.c.l.b16 %v459
        %v1338 = vunpack.c.h.b16 %v459
        %v1339 = vunpack.c.l.b16 %v460
        %v1340 = vunpack.c.h.b16 %v460
        %v1341 = vunpack.c.l.b16 %v461
        %v1342 = vunpack.c.h.b16 %v461
        %v1343 = vunpack.c.l.b16 %v462
        %v1344 = vunpack.c.h.b16 %v462
        %v1345 = vunpack.c.l.b16 %v463
        %v1346 = vunpack.c.h.b16 %v463
        %v1347 = vunpack.c.l.b16 %v464
        %v1348 = vunpack.c.h.b16 %v464
        %v1349 = vunpack.c.l.b16 %v465
        %v1350 = vunpack.c.h.b16 %v465
        %v1351 = vunpack.c.l.b16 %v466
        %v1352 = vunpack.c.h.b16 %v466
        %v1353 = vunpack.c.l.b16 %v467
        %v1354 = vunpack.c.h.b16 %v467
        %v1355 = vunpack.c.l.b16 %v468
        %v1356 = vunpack.c.h.b16 %v468
        %v1357 = vunpack.c.l.b16 %v469
        %v1358 = vunpack.c.h.b16 %v469
        %v1359 = vunpack.c.l.b16 %v470
        %v1360 = vunpack.c.h.b16 %v470
        %v1361 = vunpack.c.l.b16 %v471
        %v1362 = vunpack.c.h.b16 %v471
        %v1363 = vunpack.c.l.b16 %v472
        %v1364 = vunpack.c.h.b16 %v472
        %v1365 = vunpack.c.l.b16 %v473
        %v1366 = vunpack.c.h.b16 %v473
        %v1367 = vunpack.c.l.b16 %v474
        %v1368 = vunpack.c.h.b16 %v474
        %v1369 = vunpack.c.l.b16 %v475
        %v1370 = vunpack.c.h.b16 %v475
        %v1371 = vunpack.c.l.b16 %v476
        %v1372 = vunpack.c.h.b16 %v476
        %v1373 = vunpack.c.l.b16 %v477
        %v1374 = vunpack.c.h.b16 %v477
        %v1375 = vunpack.c.l.b16 %v478
        %v1376 = vunpack.c.h.b16 %v478
        %v1377 = vunpack.c.l.b16 %v479
        %v1378 = vunpack.c.h.b16 %v479
        %v1379 = vunpack.c.l.b16 %v480
        %v1380 = vunpack.c.h.b16 %v480
        %v1381 = vunpack.c.l.b16 %v481
        %v1382 = vunpack.c.h.b16 %v481
        %v1383 = vunpack.c.l.b16 %v482
        %v1384 = vunpack.c.h.b16 %v482
        %v1385 = vunpack.c.l.b16 %v483
        %v1386 = vunpack.c.h.b16 %v483
        %v1387 = vunpack.c.l.b16 %v484
        %v1388 = vunpack.c.h.b16 %v484
        %v1389 = vunpack.c.l.b16 %v485
        %v1390 = vunpack.c.h.b16 %v485
        %v1391 = vunpack.c.l.b16 %v486
        %v1392 = vunpack.c.h.b16 %v486
        %v1393 = vunpack.c.l.b16 %v487
        %v1394 = vunpack.c.h.b16 %v487
        %v1395 = vpack.c.b16 %v1295, %v1195
        %v1396 = vpack.c.b16 %v1296, %v1196
        %v1397 = vpack.c.b16 %v1297, %v1197
        %v1398 = vpack.c.b16 %v1298, %v1198
        %v1399 = vpack.c.b16 %v1299, %v1199
        %v1400 = vpack.c.b16 %v1300, %v1200
        %v1401 = vpack.c.b16 %v1301, %v1201
        %v1402 = vpack.c.b16 %v1302, %v1202
        %v1403 = vpack.c.b16 %v1303, %v1203
        %v1404 = vpack.c.b16 %v1304, %v1204
        %v1405 = vpack.c.b16 %v1305, %v1205
        %v1406 = vpack.c.b16 %v1306, %v1206
        %v1407 = vpack.c.b16 %v1307, %v1207
        %v1408 = vpack.c.b16 %v1308, %v1208
        %v1409 = vpack.c.b16 %v1309, %v1209
        %v1410 = vpack.c.b16 %v1310, %v1210
        %v1411 = vpack.c.b16 %v1311, %v1211
        %v1412 = vpack.c.b16 %v1312, %v1212
        %v1413 = vpack.c.b16 %v1313, %v1213
        %v1414 = vpack.c.b16 %v1314, %v1214
        %v1415 = vpack.c.b16 %v1315, %v1215
        %v1416 = vpack.c.b16 %v1316, %v1216
        %v1417 = vpack.c.b16 %v1317, %v1217
        %v1418 = vpack.c.b16 %v1318, %v1218
        %v1419 = vpack.c.b16 %v1319, %v1219
        %v1420 = vpack.c.b16 %v1320, %v1220
        %v1421 = vpack.c.b16 %v1321, %v1221
        %v1422 = vpack.c.b16 %v1322, %v1222
        %v1423 = vpack.c.b16 %v1323, %v1223
        %v1424 = vpack.c.b16 %v1324, %v1224
        %v1425 = vpack.c.b16 %v1325, %v1225
        %v1426 = vpack.c.b16 %v1326, %v1226
        %v1427 = vpack.c.b16 %v1327, %v1227
        %v1428 = vpack.c.b16 %v1328, %v1228
        %v1429 = vpack.c.b16 %v1329, %v1229
        %v1430 = vpack.c.b16 %v1330, %v1230
        %v1431 = vpack.c.b16 %v1331, %v1231
        %v1432 = vpack.c.b16 %v1332, %v1232
        %v1433 = vpack.c.b16 %v1333, %v1233
        %v1434 = vpack.c.b16 %v1334, %v1234
        %v1435 = vpack.c.b16 %v1335, %v1235
        %v1436 = vpack.c.b16 %v1336, %v1236
        %v1437 = vpack.c.b16 %v1337, %v1237
        %v1438 = vpack.c.b16 %v1338, %v1238
        %v1439 = vpack.c.b16 %v1339, %v1239
        %v1440 = vpack.c.b16 %v1340, %v1240
        %v1441 = vpack.c.b16 %v1341, %v1241
        %v1442 = vpack.c.b16 %v1342, %v1242
        %v1443 = vpack.c.b16 %v1343, %v1243
        %v1444 = vpack.c.b16 %v1344, %v1244
        %v1445 = vpack.c.b16 %v1345, %v1245
        %v1446 = vpack.c.b16 %v1346, %v1246
        %v1447 = vpack.c.b16 %v1347, %v1247
        %v1448 = vpack.c.b16 %v1348, %v1248
        %v1449 = vpack.c.b16 %v1349, %v1249
        %v1450 = vpack.c.b16 %v1350, %v1250
        %v1451 = vpack.c.b16 %v1351, %v1251
        %v1452 = vpack.c.b16 %v1352, %v1252
        %v1453 = vpack.c.b16 %v1353, %v1253
        %v1454 = vpack.c.b16 %v1354, %v1254
        %v1455 = vpack.c.b16 %v1355, %v1255
        %v1456 = vpack.c.b16 %v1356, %v1256
        %v1457 = vpack.c.b16 %v1357, %v1257
        %v1458 = vpack.c.b16 %v1358, %v1258
        %v1459 = vpack.c.b16 %v1359, %v1259
        %v1460 = vpack.c.b16 %v1360, %v1260
        %v1461 = vpack.c.b16 %v1361, %v1261
        %v1462 = vpack.c.b16 %v1362, %v1262
        %v1463 = vpack.c.b16 %v1363, %v1263
        %v1464 = vpack.c.b16 %v1364, %v1264
        %v1465 = vpack.c.b16 %v1365, %v1265
        %v1466 = vpack.c.b16 %v1366, %v1266
        %v1467 = vpack.c.b16 %v1367, %v1267
        %v1468 = vpack.c.b16 %v1368, %v1268
        %v1469 = vpack.c.b16 %v1369, %v1269
        %v1470 = vpack.c.b16 %v1370, %v1270
        %v1471 = vpack.c.b16 %v1371, %v1271
        %v1472 = vpack.c.b16 %v1372, %v1272
        %v1473 = vpack.c.b16 %v1373, %v1273
        %v1474 = vpack.c.b16 %v1374, %v1274
        %v1475 = vpack.c.b16 %v1375, %v1275
        %v1476 = vpack.c.b16 %v1376, %v1276
        %v1477 = vpack.c.b16 %v1377, %v1277
        %v1478 = vpack.c.b16 %v1378, %v1278
        %v1479 = vpack.c.b16 %v1379, %v1279
        %v1480 = vpack.c.b16 %v1380, %v1280
        %v1481 = vpack.c.b16 %v1381, %v1281
        %v1482 = vpack.c.b16 %v1382, %v1282
        %v1483 = vpack.c.b16 %v1383, %v1283
        %v1484 = vpack.c.b16 %v1384, %v1284
        %v1485 = vpack.c.b16 %v1385, %v1285
        %v1486 = vpack.c.b16 %v1386, %v1286
        %v1487 = vpack.c.b16 %v1387, %v1287
        %v1488 = vpack.c.b16 %v1388, %v1288
        %v1489 = vpack.c.b16 %v1389, %v1289
        %v1490 = vpack.c.b16 %v1390, %v1290
        %v1491 = vpack.c.b16 %v1391, %v1291
        %v1492 = vpack.c.b16 %v1392, %v1292
        %v1493 = vpack.c.b16 %v1393, %v1293
        %v1494 = vpack.c.b16 %v1394, %v1294
        %1595 = vmatprep.subr.bf16.mxu0 %v1396
        %1596 = vmatpush1.bf16.xpose.msra.mxu0 %v1395
        %1597 = vmatprep.subr.bf16.mxu0 0
        %1598 = vmatpush1.bf16.xpose.msra.mxu0 0
        %1599 = vmatprep.subr.bf16.mxu0 0
        %1600 = vmatpush1.bf16.xpose.msra.mxu0 0
        %1601 = vmatprep.subr.bf16.mxu0 0
        %1602 = vmatpush1.bf16.xpose.msra.mxu0 0
        %1603 = vmatprep.subr.bf16.mxu0 0
        %1604 = vmatpush1.bf16.xpose.msra.mxu0 0
        %1605 = vmatprep.subr.bf16.mxu0 0
        %1606 = vmatpush1.bf16.xpose.msra.mxu0 0
        %1607 = vmatprep.subr.bf16.mxu0 0
        %1608 = vmatpush1.bf16.xpose.msra.mxu0 0
        %1609 = vmatprep.subr.bf16.mxu0 0
        %1610 = vmatpush1.bf16.xpose.msra.mxu0 0
        %1611 = vmatprep.subr.bf16.mxu0 0
        %1612 = vmatpush1.bf16.xpose.msra.mxu0 0
        %1613 = vmatprep.subr.bf16.mxu0 0
        %1614 = vmatpush1.bf16.xpose.msra.mxu0 0
        %1615 = vmatprep.subr.bf16.mxu0 0
        %1616 = vmatpush1.bf16.xpose.msra.mxu0 0
        %1617 = vmatprep.subr.bf16.mxu0 0
        %1618 = vmatpush1.bf16.xpose.msra.mxu0 0
        %1619 = vmatprep.subr.bf16.mxu0 0
        %1620 = vmatpush1.bf16.xpose.msra.mxu0 0
        %1621 = vmatprep.subr.bf16.mxu0 0
        %1622 = vmatpush1.bf16.xpose.msra.mxu0 0
        %1623 = vmatprep.subr.bf16.mxu0 0
        %1624 = vmatpush1.bf16.xpose.msra.mxu0 0
        %1625 = vmatprep.subr.bf16.mxu0 0
        %1626 = vmatpush1.bf16.xpose.msra.mxu0 0
        %1627 = vmatprep.mubr.bf16.mxu0 %v896
        %1628 = vmatmul.mubr.bf16.gmra.mrb[0].mxu0 %v895
        %v1629 = vpop.f32.mrb[0].mxu0
        %v1630 = vadd.f32 0.0, %v1629
        %v1631 = vpop.f32.mrb[0].mxu0
        %v1632 = vpop.f32.mrb[0].mxu0
        %v1633 = vadd.f32 0.0, %v1632
        %v1634 = vpop.f32.mrb[0].mxu0
        %1635 = vdwg.mxu0
        %1636 = vmatprep.subr.bf16.mxu0 %v1398
        %1637 = vmatpush1.bf16.xpose.msra.mxu0 %v1397
        %1638 = vmatprep.subr.bf16.mxu0 0
        %1639 = vmatpush1.bf16.xpose.msra.mxu0 0
        %1640 = vmatprep.subr.bf16.mxu0 0
        %1641 = vmatpush1.bf16.xpose.msra.mxu0 0
        %1642 = vmatprep.subr.bf16.mxu0 0
        %1643 = vmatpush1.bf16.xpose.msra.mxu0 0
        %1644 = vmatprep.subr.bf16.mxu0 0
        %1645 = vmatpush1.bf16.xpose.msra.mxu0 0
        %1646 = vmatprep.subr.bf16.mxu0 0
        %1647 = vmatpush1.bf16.xpose.msra.mxu0 0
        %1648 = vmatprep.subr.bf16.mxu0 0
        %1649 = vmatpush1.bf16.xpose.msra.mxu0 0
        %1650 = vmatprep.subr.bf16.mxu0 0
        %1651 = vmatpush1.bf16.xpose.msra.mxu0 0
        %1652 = vmatprep.subr.bf16.mxu0 0
        %1653 = vmatpush1.bf16.xpose.msra.mxu0 0
        %1654 = vmatprep.subr.bf16.mxu0 0
        %1655 = vmatpush1.bf16.xpose.msra.mxu0 0
        %1656 = vmatprep.subr.bf16.mxu0 0
        %1657 = vmatpush1.bf16.xpose.msra.mxu0 0
        %1658 = vmatprep.subr.bf16.mxu0 0
        %1659 = vmatpush1.bf16.xpose.msra.mxu0 0
        %1660 = vmatprep.subr.bf16.mxu0 0
        %1661 = vmatpush1.bf16.xpose.msra.mxu0 0
        %1662 = vmatprep.subr.bf16.mxu0 0
        %1663 = vmatpush1.bf16.xpose.msra.mxu0 0
        %1664 = vmatprep.subr.bf16.mxu0 0
        %1665 = vmatpush1.bf16.xpose.msra.mxu0 0
        %1666 = vmatprep.subr.bf16.mxu0 0
        %1667 = vmatpush1.bf16.xpose.msra.mxu0 0
        %1668 = vmatprep.mubr.bf16.mxu0 %v898
        %1669 = vmatmul.mubr.bf16.gmra.mrb[0].mxu0 %v897
        %v1670 = vpop.f32.mrb[0].mxu0
        %v1671 = vadd.f32 %v1630, %v1670
        %v1672 = vpop.f32.mrb[0].mxu0
        %v1673 = vpop.f32.mrb[0].mxu0
        %v1674 = vadd.f32 %v1633, %v1673
        %v1675 = vpop.f32.mrb[0].mxu0
        %1676 = vdwg.mxu0
        %1677 = vmatprep.subr.bf16.mxu0 %v1400
        %1678 = vmatpush1.bf16.xpose.msra.mxu0 %v1399
        %1679 = vmatprep.subr.bf16.mxu0 0
        %1680 = vmatpush1.bf16.xpose.msra.mxu0 0
        %1681 = vmatprep.subr.bf16.mxu0 0
        %1682 = vmatpush1.bf16.xpose.msra.mxu0 0
        %1683 = vmatprep.subr.bf16.mxu0 0
        %1684 = vmatpush1.bf16.xpose.msra.mxu0 0
        %1685 = vmatprep.subr.bf16.mxu0 0
        %1686 = vmatpush1.bf16.xpose.msra.mxu0 0
        %1687 = vmatprep.subr.bf16.mxu0 0
        %1688 = vmatpush1.bf16.xpose.msra.mxu0 0
        %1689 = vmatprep.subr.bf16.mxu0 0
        %1690 = vmatpush1.bf16.xpose.msra.mxu0 0
        %1691 = vmatprep.subr.bf16.mxu0 0
        %1692 = vmatpush1.bf16.xpose.msra.mxu0 0
        %1693 = vmatprep.subr.bf16.mxu0 0
        %1694 = vmatpush1.bf16.xpose.msra.mxu0 0
        %1695 = vmatprep.subr.bf16.mxu0 0
        %1696 = vmatpush1.bf16.xpose.msra.mxu0 0
        %1697 = vmatprep.subr.bf16.mxu0 0
        %1698 = vmatpush1.bf16.xpose.msra.mxu0 0
        %1699 = vmatprep.subr.bf16.mxu0 0
        %1700 = vmatpush1.bf16.xpose.msra.mxu0 0
        %1701 = vmatprep.subr.bf16.mxu0 0
        %1702 = vmatpush1.bf16.xpose.msra.mxu0 0
        %1703 = vmatprep.subr.bf16.mxu0 0
        %1704 = vmatpush1.bf16.xpose.msra.mxu0 0
        %1705 = vmatprep.subr.bf16.mxu0 0
        %1706 = vmatpush1.bf16.xpose.msra.mxu0 0
        %1707 = vmatprep.subr.bf16.mxu0 0
        %1708 = vmatpush1.bf16.xpose.msra.mxu0 0
        %1709 = vmatprep.mubr.bf16.mxu0 %v900
        %1710 = vmatmul.mubr.bf16.gmra.mrb[0].mxu0 %v899
        %v1711 = vpop.f32.mrb[0].mxu0
        %v1712 = vadd.f32 %v1671, %v1711
        %v1713 = vpop.f32.mrb[0].mxu0
        %v1714 = vpop.f32.mrb[0].mxu0
        %v1715 = vadd.f32 %v1674, %v1714
        %v1716 = vpop.f32.mrb[0].mxu0
        %1717 = vdwg.mxu0
        %1718 = vmatprep.subr.bf16.mxu0 %v1402
        %1719 = vmatpush1.bf16.xpose.msra.mxu0 %v1401
        %1720 = vmatprep.subr.bf16.mxu0 0
        %1721 = vmatpush1.bf16.xpose.msra.mxu0 0
        %1722 = vmatprep.subr.bf16.mxu0 0
        %1723 = vmatpush1.bf16.xpose.msra.mxu0 0
        %1724 = vmatprep.subr.bf16.mxu0 0
        %1725 = vmatpush1.bf16.xpose.msra.mxu0 0
        %1726 = vmatprep.subr.bf16.mxu0 0
        %1727 = vmatpush1.bf16.xpose.msra.mxu0 0
        %1728 = vmatprep.subr.bf16.mxu0 0
        %1729 = vmatpush1.bf16.xpose.msra.mxu0 0
        %1730 = vmatprep.subr.bf16.mxu0 0
        %1731 = vmatpush1.bf16.xpose.msra.mxu0 0
        %1732 = vmatprep.subr.bf16.mxu0 0
        %1733 = vmatpush1.bf16.xpose.msra.mxu0 0
        %1734 = vmatprep.subr.bf16.mxu0 0
        %1735 = vmatpush1.bf16.xpose.msra.mxu0 0
        %1736 = vmatprep.subr.bf16.mxu0 0
        %1737 = vmatpush1.bf16.xpose.msra.mxu0 0
        %1738 = vmatprep.subr.bf16.mxu0 0
        %1739 = vmatpush1.bf16.xpose.msra.mxu0 0
        %1740 = vmatprep.subr.bf16.mxu0 0
        %1741 = vmatpush1.bf16.xpose.msra.mxu0 0
        %1742 = vmatprep.subr.bf16.mxu0 0
        %1743 = vmatpush1.bf16.xpose.msra.mxu0 0
        %1744 = vmatprep.subr.bf16.mxu0 0
        %1745 = vmatpush1.bf16.xpose.msra.mxu0 0
        %1746 = vmatprep.subr.bf16.mxu0 0
        %1747 = vmatpush1.bf16.xpose.msra.mxu0 0
        %1748 = vmatprep.subr.bf16.mxu0 0
        %1749 = vmatpush1.bf16.xpose.msra.mxu0 0
        %1750 = vmatprep.mubr.bf16.mxu0 %v902
        %1751 = vmatmul.mubr.bf16.gmra.mrb[0].mxu0 %v901
        %v1752 = vpop.f32.mrb[0].mxu0
        %v1753 = vadd.f32 %v1712, %v1752
        %v1754 = vpop.f32.mrb[0].mxu0
        %v1755 = vpop.f32.mrb[0].mxu0
        %v1756 = vadd.f32 %v1715, %v1755
        %v1757 = vpop.f32.mrb[0].mxu0
        %1758 = vdwg.mxu0
        %1759 = vmatprep.subr.bf16.mxu0 %v1404
        %1760 = vmatpush1.bf16.xpose.msra.mxu0 %v1403
        %1761 = vmatprep.subr.bf16.mxu0 0
        %1762 = vmatpush1.bf16.xpose.msra.mxu0 0
        %1763 = vmatprep.subr.bf16.mxu0 0
        %1764 = vmatpush1.bf16.xpose.msra.mxu0 0
        %1765 = vmatprep.subr.bf16.mxu0 0
        %1766 = vmatpush1.bf16.xpose.msra.mxu0 0
        %1767 = vmatprep.subr.bf16.mxu0 0
        %1768 = vmatpush1.bf16.xpose.msra.mxu0 0
        %1769 = vmatprep.subr.bf16.mxu0 0
        %1770 = vmatpush1.bf16.xpose.msra.mxu0 0
        %1771 = vmatprep.subr.bf16.mxu0 0
        %1772 = vmatpush1.bf16.xpose.msra.mxu0 0
        %1773 = vmatprep.subr.bf16.mxu0 0
        %1774 = vmatpush1.bf16.xpose.msra.mxu0 0
        %1775 = vmatprep.subr.bf16.mxu0 0
        %1776 = vmatpush1.bf16.xpose.msra.mxu0 0
        %1777 = vmatprep.subr.bf16.mxu0 0
        %1778 = vmatpush1.bf16.xpose.msra.mxu0 0
        %1779 = vmatprep.subr.bf16.mxu0 0
        %1780 = vmatpush1.bf16.xpose.msra.mxu0 0
        %1781 = vmatprep.subr.bf16.mxu0 0
        %1782 = vmatpush1.bf16.xpose.msra.mxu0 0
        %1783 = vmatprep.subr.bf16.mxu0 0
        %1784 = vmatpush1.bf16.xpose.msra.mxu0 0
        %1785 = vmatprep.subr.bf16.mxu0 0
        %1786 = vmatpush1.bf16.xpose.msra.mxu0 0
        %1787 = vmatprep.subr.bf16.mxu0 0
        %1788 = vmatpush1.bf16.xpose.msra.mxu0 0
        %1789 = vmatprep.subr.bf16.mxu0 0
        %1790 = vmatpush1.bf16.xpose.msra.mxu0 0
        %1791 = vmatprep.mubr.bf16.mxu0 %v904
        %1792 = vmatmul.mubr.bf16.gmra.mrb[0].mxu0 %v903
        %v1793 = vpop.f32.mrb[0].mxu0
        %v1794 = vadd.f32 %v1753, %v1793
        %v1795 = vpop.f32.mrb[0].mxu0
        %v1796 = vpop.f32.mrb[0].mxu0
        %v1797 = vadd.f32 %v1756, %v1796
        %v1798 = vpop.f32.mrb[0].mxu0
        %1799 = vdwg.mxu0
        %1800 = vmatprep.subr.bf16.mxu0 %v1406
        %1801 = vmatpush1.bf16.xpose.msra.mxu0 %v1405
        %1802 = vmatprep.subr.bf16.mxu0 0
        %1803 = vmatpush1.bf16.xpose.msra.mxu0 0
        %1804 = vmatprep.subr.bf16.mxu0 0
        %1805 = vmatpush1.bf16.xpose.msra.mxu0 0
        %1806 = vmatprep.subr.bf16.mxu0 0
        %1807 = vmatpush1.bf16.xpose.msra.mxu0 0
        %1808 = vmatprep.subr.bf16.mxu0 0
        %1809 = vmatpush1.bf16.xpose.msra.mxu0 0
        %1810 = vmatprep.subr.bf16.mxu0 0
        %1811 = vmatpush1.bf16.xpose.msra.mxu0 0
        %1812 = vmatprep.subr.bf16.mxu0 0
        %1813 = vmatpush1.bf16.xpose.msra.mxu0 0
        %1814 = vmatprep.subr.bf16.mxu0 0
        %1815 = vmatpush1.bf16.xpose.msra.mxu0 0
        %1816 = vmatprep.subr.bf16.mxu0 0
        %1817 = vmatpush1.bf16.xpose.msra.mxu0 0
        %1818 = vmatprep.subr.bf16.mxu0 0
        %1819 = vmatpush1.bf16.xpose.msra.mxu0 0
        %1820 = vmatprep.subr.bf16.mxu0 0
        %1821 = vmatpush1.bf16.xpose.msra.mxu0 0
        %1822 = vmatprep.subr.bf16.mxu0 0
        %1823 = vmatpush1.bf16.xpose.msra.mxu0 0
        %1824 = vmatprep.subr.bf16.mxu0 0
        %1825 = vmatpush1.bf16.xpose.msra.mxu0 0
        %1826 = vmatprep.subr.bf16.mxu0 0
        %1827 = vmatpush1.bf16.xpose.msra.mxu0 0
        %1828 = vmatprep.subr.bf16.mxu0 0
        %1829 = vmatpush1.bf16.xpose.msra.mxu0 0
        %1830 = vmatprep.subr.bf16.mxu0 0
        %1831 = vmatpush1.bf16.xpose.msra.mxu0 0
        %1832 = vmatprep.mubr.bf16.mxu0 %v906
        %1833 = vmatmul.mubr.bf16.gmra.mrb[0].mxu0 %v905
        %v1834 = vpop.f32.mrb[0].mxu0
        %v1835 = vadd.f32 %v1794, %v1834
        %v1836 = vpop.f32.mrb[0].mxu0
        %v1837 = vpop.f32.mrb[0].mxu0
        %v1838 = vadd.f32 %v1797, %v1837
        %v1839 = vpop.f32.mrb[0].mxu0
        %1840 = vdwg.mxu0
        %1841 = vmatprep.subr.bf16.mxu0 %v1408
        %1842 = vmatpush1.bf16.xpose.msra.mxu0 %v1407
        %1843 = vmatprep.subr.bf16.mxu0 0
        %1844 = vmatpush1.bf16.xpose.msra.mxu0 0
        %1845 = vmatprep.subr.bf16.mxu0 0
        %1846 = vmatpush1.bf16.xpose.msra.mxu0 0
        %1847 = vmatprep.subr.bf16.mxu0 0
        %1848 = vmatpush1.bf16.xpose.msra.mxu0 0
        %1849 = vmatprep.subr.bf16.mxu0 0
        %1850 = vmatpush1.bf16.xpose.msra.mxu0 0
        %1851 = vmatprep.subr.bf16.mxu0 0
        %1852 = vmatpush1.bf16.xpose.msra.mxu0 0
        %1853 = vmatprep.subr.bf16.mxu0 0
        %1854 = vmatpush1.bf16.xpose.msra.mxu0 0
        %1855 = vmatprep.subr.bf16.mxu0 0
        %1856 = vmatpush1.bf16.xpose.msra.mxu0 0
        %1857 = vmatprep.subr.bf16.mxu0 0
        %1858 = vmatpush1.bf16.xpose.msra.mxu0 0
        %1859 = vmatprep.subr.bf16.mxu0 0
        %1860 = vmatpush1.bf16.xpose.msra.mxu0 0
        %1861 = vmatprep.subr.bf16.mxu0 0
        %1862 = vmatpush1.bf16.xpose.msra.mxu0 0
        %1863 = vmatprep.subr.bf16.mxu0 0
        %1864 = vmatpush1.bf16.xpose.msra.mxu0 0
        %1865 = vmatprep.subr.bf16.mxu0 0
        %1866 = vmatpush1.bf16.xpose.msra.mxu0 0
        %1867 = vmatprep.subr.bf16.mxu0 0
        %1868 = vmatpush1.bf16.xpose.msra.mxu0 0
        %1869 = vmatprep.subr.bf16.mxu0 0
        %1870 = vmatpush1.bf16.xpose.msra.mxu0 0
        %1871 = vmatprep.subr.bf16.mxu0 0
        %1872 = vmatpush1.bf16.xpose.msra.mxu0 0
        %1873 = vmatprep.mubr.bf16.mxu0 %v908
        %1874 = vmatmul.mubr.bf16.gmra.mrb[0].mxu0 %v907
        %v1875 = vpop.f32.mrb[0].mxu0
        %v1876 = vadd.f32 %v1835, %v1875
        %v1877 = vpop.f32.mrb[0].mxu0
        %v1878 = vpop.f32.mrb[0].mxu0
        %v1879 = vadd.f32 %v1838, %v1878
        %v1880 = vpop.f32.mrb[0].mxu0
        %1881 = vdwg.mxu0
        %1882 = vmatprep.subr.bf16.mxu0 %v1410
        %1883 = vmatpush1.bf16.xpose.msra.mxu0 %v1409
        %1884 = vmatprep.subr.bf16.mxu0 0
        %1885 = vmatpush1.bf16.xpose.msra.mxu0 0
        %1886 = vmatprep.subr.bf16.mxu0 0
        %1887 = vmatpush1.bf16.xpose.msra.mxu0 0
        %1888 = vmatprep.subr.bf16.mxu0 0
        %1889 = vmatpush1.bf16.xpose.msra.mxu0 0
        %1890 = vmatprep.subr.bf16.mxu0 0
        %1891 = vmatpush1.bf16.xpose.msra.mxu0 0
        %1892 = vmatprep.subr.bf16.mxu0 0
        %1893 = vmatpush1.bf16.xpose.msra.mxu0 0
        %1894 = vmatprep.subr.bf16.mxu0 0
        %1895 = vmatpush1.bf16.xpose.msra.mxu0 0
        %1896 = vmatprep.subr.bf16.mxu0 0
        %1897 = vmatpush1.bf16.xpose.msra.mxu0 0
        %1898 = vmatprep.subr.bf16.mxu0 0
        %1899 = vmatpush1.bf16.xpose.msra.mxu0 0
        %1900 = vmatprep.subr.bf16.mxu0 0
        %1901 = vmatpush1.bf16.xpose.msra.mxu0 0
        %1902 = vmatprep.subr.bf16.mxu0 0
        %1903 = vmatpush1.bf16.xpose.msra.mxu0 0
        %1904 = vmatprep.subr.bf16.mxu0 0
        %1905 = vmatpush1.bf16.xpose.msra.mxu0 0
        %1906 = vmatprep.subr.bf16.mxu0 0
        %1907 = vmatpush1.bf16.xpose.msra.mxu0 0
        %1908 = vmatprep.subr.bf16.mxu0 0
        %1909 = vmatpush1.bf16.xpose.msra.mxu0 0
        %1910 = vmatprep.subr.bf16.mxu0 0
        %1911 = vmatpush1.bf16.xpose.msra.mxu0 0
        %1912 = vmatprep.subr.bf16.mxu0 0
        %1913 = vmatpush1.bf16.xpose.msra.mxu0 0
        %1914 = vmatprep.mubr.bf16.mxu0 %v910
        %1915 = vmatmul.mubr.bf16.gmra.mrb[0].mxu0 %v909
        %v1916 = vpop.f32.mrb[0].mxu0
        %v1917 = vadd.f32 %v1876, %v1916
        %v1918 = vpop.f32.mrb[0].mxu0
        %v1919 = vpop.f32.mrb[0].mxu0
        %v1920 = vadd.f32 %v1879, %v1919
        %v1921 = vpop.f32.mrb[0].mxu0
        %1922 = vdwg.mxu0
        %1923 = vmatprep.subr.bf16.mxu0 %v1412
        %1924 = vmatpush1.bf16.xpose.msra.mxu0 %v1411
        %1925 = vmatprep.subr.bf16.mxu0 0
        %1926 = vmatpush1.bf16.xpose.msra.mxu0 0
        %1927 = vmatprep.subr.bf16.mxu0 0
        %1928 = vmatpush1.bf16.xpose.msra.mxu0 0
        %1929 = vmatprep.subr.bf16.mxu0 0
        %1930 = vmatpush1.bf16.xpose.msra.mxu0 0
        %1931 = vmatprep.subr.bf16.mxu0 0
        %1932 = vmatpush1.bf16.xpose.msra.mxu0 0
        %1933 = vmatprep.subr.bf16.mxu0 0
        %1934 = vmatpush1.bf16.xpose.msra.mxu0 0
        %1935 = vmatprep.subr.bf16.mxu0 0
        %1936 = vmatpush1.bf16.xpose.msra.mxu0 0
        %1937 = vmatprep.subr.bf16.mxu0 0
        %1938 = vmatpush1.bf16.xpose.msra.mxu0 0
        %1939 = vmatprep.subr.bf16.mxu0 0
        %1940 = vmatpush1.bf16.xpose.msra.mxu0 0
        %1941 = vmatprep.subr.bf16.mxu0 0
        %1942 = vmatpush1.bf16.xpose.msra.mxu0 0
        %1943 = vmatprep.subr.bf16.mxu0 0
        %1944 = vmatpush1.bf16.xpose.msra.mxu0 0
        %1945 = vmatprep.subr.bf16.mxu0 0
        %1946 = vmatpush1.bf16.xpose.msra.mxu0 0
        %1947 = vmatprep.subr.bf16.mxu0 0
        %1948 = vmatpush1.bf16.xpose.msra.mxu0 0
        %1949 = vmatprep.subr.bf16.mxu0 0
        %1950 = vmatpush1.bf16.xpose.msra.mxu0 0
        %1951 = vmatprep.subr.bf16.mxu0 0
        %1952 = vmatpush1.bf16.xpose.msra.mxu0 0
        %1953 = vmatprep.subr.bf16.mxu0 0
        %1954 = vmatpush1.bf16.xpose.msra.mxu0 0
        %1955 = vmatprep.mubr.bf16.mxu0 %v912
        %1956 = vmatmul.mubr.bf16.gmra.mrb[0].mxu0 %v911
        %v1957 = vpop.f32.mrb[0].mxu0
        %v1958 = vadd.f32 %v1917, %v1957
        %v1959 = vpop.f32.mrb[0].mxu0
        %v1960 = vpop.f32.mrb[0].mxu0
        %v1961 = vadd.f32 %v1920, %v1960
        %v1962 = vpop.f32.mrb[0].mxu0
        %1963 = vdwg.mxu0
        %1964 = vmatprep.subr.bf16.mxu0 %v1414
        %1965 = vmatpush1.bf16.xpose.msra.mxu0 %v1413
        %1966 = vmatprep.subr.bf16.mxu0 0
        %1967 = vmatpush1.bf16.xpose.msra.mxu0 0
        %1968 = vmatprep.subr.bf16.mxu0 0
        %1969 = vmatpush1.bf16.xpose.msra.mxu0 0
        %1970 = vmatprep.subr.bf16.mxu0 0
        %1971 = vmatpush1.bf16.xpose.msra.mxu0 0
        %1972 = vmatprep.subr.bf16.mxu0 0
        %1973 = vmatpush1.bf16.xpose.msra.mxu0 0
        %1974 = vmatprep.subr.bf16.mxu0 0
        %1975 = vmatpush1.bf16.xpose.msra.mxu0 0
        %1976 = vmatprep.subr.bf16.mxu0 0
        %1977 = vmatpush1.bf16.xpose.msra.mxu0 0
        %1978 = vmatprep.subr.bf16.mxu0 0
        %1979 = vmatpush1.bf16.xpose.msra.mxu0 0
        %1980 = vmatprep.subr.bf16.mxu0 0
        %1981 = vmatpush1.bf16.xpose.msra.mxu0 0
        %1982 = vmatprep.subr.bf16.mxu0 0
        %1983 = vmatpush1.bf16.xpose.msra.mxu0 0
        %1984 = vmatprep.subr.bf16.mxu0 0
        %1985 = vmatpush1.bf16.xpose.msra.mxu0 0
        %1986 = vmatprep.subr.bf16.mxu0 0
        %1987 = vmatpush1.bf16.xpose.msra.mxu0 0
        %1988 = vmatprep.subr.bf16.mxu0 0
        %1989 = vmatpush1.bf16.xpose.msra.mxu0 0
        %1990 = vmatprep.subr.bf16.mxu0 0
        %1991 = vmatpush1.bf16.xpose.msra.mxu0 0
        %1992 = vmatprep.subr.bf16.mxu0 0
        %1993 = vmatpush1.bf16.xpose.msra.mxu0 0
        %1994 = vmatprep.subr.bf16.mxu0 0
        %1995 = vmatpush1.bf16.xpose.msra.mxu0 0
        %1996 = vmatprep.mubr.bf16.mxu0 %v914
        %1997 = vmatmul.mubr.bf16.gmra.mrb[0].mxu0 %v913
        %v1998 = vpop.f32.mrb[0].mxu0
        %v1999 = vadd.f32 %v1958, %v1998
        %v2000 = vpop.f32.mrb[0].mxu0
        %v2001 = vpop.f32.mrb[0].mxu0
        %v2002 = vadd.f32 %v1961, %v2001
        %v2003 = vpop.f32.mrb[0].mxu0
        %2004 = vdwg.mxu0
        %2005 = vmatprep.subr.bf16.mxu0 %v1416
        %2006 = vmatpush1.bf16.xpose.msra.mxu0 %v1415
        %2007 = vmatprep.subr.bf16.mxu0 0
        %2008 = vmatpush1.bf16.xpose.msra.mxu0 0
        %2009 = vmatprep.subr.bf16.mxu0 0
        %2010 = vmatpush1.bf16.xpose.msra.mxu0 0
        %2011 = vmatprep.subr.bf16.mxu0 0
        %2012 = vmatpush1.bf16.xpose.msra.mxu0 0
        %2013 = vmatprep.subr.bf16.mxu0 0
        %2014 = vmatpush1.bf16.xpose.msra.mxu0 0
        %2015 = vmatprep.subr.bf16.mxu0 0
        %2016 = vmatpush1.bf16.xpose.msra.mxu0 0
        %2017 = vmatprep.subr.bf16.mxu0 0
        %2018 = vmatpush1.bf16.xpose.msra.mxu0 0
        %2019 = vmatprep.subr.bf16.mxu0 0
        %2020 = vmatpush1.bf16.xpose.msra.mxu0 0
        %2021 = vmatprep.subr.bf16.mxu0 0
        %2022 = vmatpush1.bf16.xpose.msra.mxu0 0
        %2023 = vmatprep.subr.bf16.mxu0 0
        %2024 = vmatpush1.bf16.xpose.msra.mxu0 0
        %2025 = vmatprep.subr.bf16.mxu0 0
        %2026 = vmatpush1.bf16.xpose.msra.mxu0 0
        %2027 = vmatprep.subr.bf16.mxu0 0
        %2028 = vmatpush1.bf16.xpose.msra.mxu0 0
        %2029 = vmatprep.subr.bf16.mxu0 0
        %2030 = vmatpush1.bf16.xpose.msra.mxu0 0
        %2031 = vmatprep.subr.bf16.mxu0 0
        %2032 = vmatpush1.bf16.xpose.msra.mxu0 0
        %2033 = vmatprep.subr.bf16.mxu0 0
        %2034 = vmatpush1.bf16.xpose.msra.mxu0 0
        %2035 = vmatprep.subr.bf16.mxu0 0
        %2036 = vmatpush1.bf16.xpose.msra.mxu0 0
        %2037 = vmatprep.mubr.bf16.mxu0 %v916
        %2038 = vmatmul.mubr.bf16.gmra.mrb[0].mxu0 %v915
        %v2039 = vpop.f32.mrb[0].mxu0
        %v2040 = vadd.f32 %v1999, %v2039
        %v2041 = vpop.f32.mrb[0].mxu0
        %v2042 = vpop.f32.mrb[0].mxu0
        %v2043 = vadd.f32 %v2002, %v2042
        %v2044 = vpop.f32.mrb[0].mxu0
        %2045 = vdwg.mxu0
        %2046 = vmatprep.subr.bf16.mxu0 %v1418
        %2047 = vmatpush1.bf16.xpose.msra.mxu0 %v1417
        %2048 = vmatprep.subr.bf16.mxu0 0
        %2049 = vmatpush1.bf16.xpose.msra.mxu0 0
        %2050 = vmatprep.subr.bf16.mxu0 0
        %2051 = vmatpush1.bf16.xpose.msra.mxu0 0
        %2052 = vmatprep.subr.bf16.mxu0 0
        %2053 = vmatpush1.bf16.xpose.msra.mxu0 0
        %2054 = vmatprep.subr.bf16.mxu0 0
        %2055 = vmatpush1.bf16.xpose.msra.mxu0 0
        %2056 = vmatprep.subr.bf16.mxu0 0
        %2057 = vmatpush1.bf16.xpose.msra.mxu0 0
        %2058 = vmatprep.subr.bf16.mxu0 0
        %2059 = vmatpush1.bf16.xpose.msra.mxu0 0
        %2060 = vmatprep.subr.bf16.mxu0 0
        %2061 = vmatpush1.bf16.xpose.msra.mxu0 0
        %2062 = vmatprep.subr.bf16.mxu0 0
        %2063 = vmatpush1.bf16.xpose.msra.mxu0 0
        %2064 = vmatprep.subr.bf16.mxu0 0
        %2065 = vmatpush1.bf16.xpose.msra.mxu0 0
        %2066 = vmatprep.subr.bf16.mxu0 0
        %2067 = vmatpush1.bf16.xpose.msra.mxu0 0
        %2068 = vmatprep.subr.bf16.mxu0 0
        %2069 = vmatpush1.bf16.xpose.msra.mxu0 0
        %2070 = vmatprep.subr.bf16.mxu0 0
        %2071 = vmatpush1.bf16.xpose.msra.mxu0 0
        %2072 = vmatprep.subr.bf16.mxu0 0
        %2073 = vmatpush1.bf16.xpose.msra.mxu0 0
        %2074 = vmatprep.subr.bf16.mxu0 0
        %2075 = vmatpush1.bf16.xpose.msra.mxu0 0
        %2076 = vmatprep.subr.bf16.mxu0 0
        %2077 = vmatpush1.bf16.xpose.msra.mxu0 0
        %2078 = vmatprep.mubr.bf16.mxu0 %v918
        %2079 = vmatmul.mubr.bf16.gmra.mrb[0].mxu0 %v917
        %v2080 = vpop.f32.mrb[0].mxu0
        %v2081 = vadd.f32 %v2040, %v2080
        %v2082 = vpop.f32.mrb[0].mxu0
        %v2083 = vpop.f32.mrb[0].mxu0
        %v2084 = vadd.f32 %v2043, %v2083
        %v2085 = vpop.f32.mrb[0].mxu0
        %2086 = vdwg.mxu0
        %2087 = vmatprep.subr.bf16.mxu0 %v1420
        %2088 = vmatpush1.bf16.xpose.msra.mxu0 %v1419
        %2089 = vmatprep.subr.bf16.mxu0 0
        %2090 = vmatpush1.bf16.xpose.msra.mxu0 0
        %2091 = vmatprep.subr.bf16.mxu0 0
        %2092 = vmatpush1.bf16.xpose.msra.mxu0 0
        %2093 = vmatprep.subr.bf16.mxu0 0
        %2094 = vmatpush1.bf16.xpose.msra.mxu0 0
        %2095 = vmatprep.subr.bf16.mxu0 0
        %2096 = vmatpush1.bf16.xpose.msra.mxu0 0
        %2097 = vmatprep.subr.bf16.mxu0 0
        %2098 = vmatpush1.bf16.xpose.msra.mxu0 0
        %2099 = vmatprep.subr.bf16.mxu0 0
        %2100 = vmatpush1.bf16.xpose.msra.mxu0 0
        %2101 = vmatprep.subr.bf16.mxu0 0
        %2102 = vmatpush1.bf16.xpose.msra.mxu0 0
        %2103 = vmatprep.subr.bf16.mxu0 0
        %2104 = vmatpush1.bf16.xpose.msra.mxu0 0
        %2105 = vmatprep.subr.bf16.mxu0 0
        %2106 = vmatpush1.bf16.xpose.msra.mxu0 0
        %2107 = vmatprep.subr.bf16.mxu0 0
        %2108 = vmatpush1.bf16.xpose.msra.mxu0 0
        %2109 = vmatprep.subr.bf16.mxu0 0
        %2110 = vmatpush1.bf16.xpose.msra.mxu0 0
        %2111 = vmatprep.subr.bf16.mxu0 0
        %2112 = vmatpush1.bf16.xpose.msra.mxu0 0
        %2113 = vmatprep.subr.bf16.mxu0 0
        %2114 = vmatpush1.bf16.xpose.msra.mxu0 0
        %2115 = vmatprep.subr.bf16.mxu0 0
        %2116 = vmatpush1.bf16.xpose.msra.mxu0 0
        %2117 = vmatprep.subr.bf16.mxu0 0
        %2118 = vmatpush1.bf16.xpose.msra.mxu0 0
        %2119 = vmatprep.mubr.bf16.mxu0 %v920
        %2120 = vmatmul.mubr.bf16.gmra.mrb[0].mxu0 %v919
        %v2121 = vpop.f32.mrb[0].mxu0
        %v2122 = vadd.f32 %v2081, %v2121
        %v2123 = vpop.f32.mrb[0].mxu0
        %v2124 = vpop.f32.mrb[0].mxu0
        %v2125 = vadd.f32 %v2084, %v2124
        %v2126 = vpop.f32.mrb[0].mxu0
        %2127 = vdwg.mxu0
        %2128 = vmatprep.subr.bf16.mxu0 %v1422
        %2129 = vmatpush1.bf16.xpose.msra.mxu0 %v1421
        %2130 = vmatprep.subr.bf16.mxu0 0
        %2131 = vmatpush1.bf16.xpose.msra.mxu0 0
        %2132 = vmatprep.subr.bf16.mxu0 0
        %2133 = vmatpush1.bf16.xpose.msra.mxu0 0
        %2134 = vmatprep.subr.bf16.mxu0 0
        %2135 = vmatpush1.bf16.xpose.msra.mxu0 0
        %2136 = vmatprep.subr.bf16.mxu0 0
        %2137 = vmatpush1.bf16.xpose.msra.mxu0 0
        %2138 = vmatprep.subr.bf16.mxu0 0
        %2139 = vmatpush1.bf16.xpose.msra.mxu0 0
        %2140 = vmatprep.subr.bf16.mxu0 0
        %2141 = vmatpush1.bf16.xpose.msra.mxu0 0
        %2142 = vmatprep.subr.bf16.mxu0 0
        %2143 = vmatpush1.bf16.xpose.msra.mxu0 0
        %2144 = vmatprep.subr.bf16.mxu0 0
        %2145 = vmatpush1.bf16.xpose.msra.mxu0 0
        %2146 = vmatprep.subr.bf16.mxu0 0
        %2147 = vmatpush1.bf16.xpose.msra.mxu0 0
        %2148 = vmatprep.subr.bf16.mxu0 0
        %2149 = vmatpush1.bf16.xpose.msra.mxu0 0
        %2150 = vmatprep.subr.bf16.mxu0 0
        %2151 = vmatpush1.bf16.xpose.msra.mxu0 0
        %2152 = vmatprep.subr.bf16.mxu0 0
        %2153 = vmatpush1.bf16.xpose.msra.mxu0 0
        %2154 = vmatprep.subr.bf16.mxu0 0
        %2155 = vmatpush1.bf16.xpose.msra.mxu0 0
        %2156 = vmatprep.subr.bf16.mxu0 0
        %2157 = vmatpush1.bf16.xpose.msra.mxu0 0
        %2158 = vmatprep.subr.bf16.mxu0 0
        %2159 = vmatpush1.bf16.xpose.msra.mxu0 0
        %2160 = vmatprep.mubr.bf16.mxu0 %v922
        %2161 = vmatmul.mubr.bf16.gmra.mrb[0].mxu0 %v921
        %v2162 = vpop.f32.mrb[0].mxu0
        %v2163 = vadd.f32 %v2122, %v2162
        %v2164 = vpop.f32.mrb[0].mxu0
        %v2165 = vpop.f32.mrb[0].mxu0
        %v2166 = vadd.f32 %v2125, %v2165
        %v2167 = vpop.f32.mrb[0].mxu0
        %2168 = vdwg.mxu0
        %2169 = vmatprep.subr.bf16.mxu0 %v1424
        %2170 = vmatpush1.bf16.xpose.msra.mxu0 %v1423
        %2171 = vmatprep.subr.bf16.mxu0 0
        %2172 = vmatpush1.bf16.xpose.msra.mxu0 0
        %2173 = vmatprep.subr.bf16.mxu0 0
        %2174 = vmatpush1.bf16.xpose.msra.mxu0 0
        %2175 = vmatprep.subr.bf16.mxu0 0
        %2176 = vmatpush1.bf16.xpose.msra.mxu0 0
        %2177 = vmatprep.subr.bf16.mxu0 0
        %2178 = vmatpush1.bf16.xpose.msra.mxu0 0
        %2179 = vmatprep.subr.bf16.mxu0 0
        %2180 = vmatpush1.bf16.xpose.msra.mxu0 0
        %2181 = vmatprep.subr.bf16.mxu0 0
        %2182 = vmatpush1.bf16.xpose.msra.mxu0 0
        %2183 = vmatprep.subr.bf16.mxu0 0
        %2184 = vmatpush1.bf16.xpose.msra.mxu0 0
        %2185 = vmatprep.subr.bf16.mxu0 0
        %2186 = vmatpush1.bf16.xpose.msra.mxu0 0
        %2187 = vmatprep.subr.bf16.mxu0 0
        %2188 = vmatpush1.bf16.xpose.msra.mxu0 0
        %2189 = vmatprep.subr.bf16.mxu0 0
        %2190 = vmatpush1.bf16.xpose.msra.mxu0 0
        %2191 = vmatprep.subr.bf16.mxu0 0
        %2192 = vmatpush1.bf16.xpose.msra.mxu0 0
        %2193 = vmatprep.subr.bf16.mxu0 0
        %2194 = vmatpush1.bf16.xpose.msra.mxu0 0
        %2195 = vmatprep.subr.bf16.mxu0 0
        %2196 = vmatpush1.bf16.xpose.msra.mxu0 0
        %2197 = vmatprep.subr.bf16.mxu0 0
        %2198 = vmatpush1.bf16.xpose.msra.mxu0 0
        %2199 = vmatprep.subr.bf16.mxu0 0
        %2200 = vmatpush1.bf16.xpose.msra.mxu0 0
        %2201 = vmatprep.mubr.bf16.mxu0 %v924
        %2202 = vmatmul.mubr.bf16.gmra.mrb[0].mxu0 %v923
        %v2203 = vpop.f32.mrb[0].mxu0
        %v2204 = vadd.f32 %v2163, %v2203
        %v2205 = vpop.f32.mrb[0].mxu0
        %v2206 = vpop.f32.mrb[0].mxu0
        %v2207 = vadd.f32 %v2166, %v2206
        %v2208 = vpop.f32.mrb[0].mxu0
        %2209 = vdwg.mxu0
        %2210 = vmatprep.subr.bf16.mxu0 %v1426
        %2211 = vmatpush1.bf16.xpose.msra.mxu0 %v1425
        %2212 = vmatprep.subr.bf16.mxu0 0
        %2213 = vmatpush1.bf16.xpose.msra.mxu0 0
        %2214 = vmatprep.subr.bf16.mxu0 0
        %2215 = vmatpush1.bf16.xpose.msra.mxu0 0
        %2216 = vmatprep.subr.bf16.mxu0 0
        %2217 = vmatpush1.bf16.xpose.msra.mxu0 0
        %2218 = vmatprep.subr.bf16.mxu0 0
        %2219 = vmatpush1.bf16.xpose.msra.mxu0 0
        %2220 = vmatprep.subr.bf16.mxu0 0
        %2221 = vmatpush1.bf16.xpose.msra.mxu0 0
        %2222 = vmatprep.subr.bf16.mxu0 0
        %2223 = vmatpush1.bf16.xpose.msra.mxu0 0
        %2224 = vmatprep.subr.bf16.mxu0 0
        %2225 = vmatpush1.bf16.xpose.msra.mxu0 0
        %2226 = vmatprep.subr.bf16.mxu0 0
        %2227 = vmatpush1.bf16.xpose.msra.mxu0 0
        %2228 = vmatprep.subr.bf16.mxu0 0
        %2229 = vmatpush1.bf16.xpose.msra.mxu0 0
        %2230 = vmatprep.subr.bf16.mxu0 0
        %2231 = vmatpush1.bf16.xpose.msra.mxu0 0
        %2232 = vmatprep.subr.bf16.mxu0 0
        %2233 = vmatpush1.bf16.xpose.msra.mxu0 0
        %2234 = vmatprep.subr.bf16.mxu0 0
        %2235 = vmatpush1.bf16.xpose.msra.mxu0 0
        %2236 = vmatprep.subr.bf16.mxu0 0
        %2237 = vmatpush1.bf16.xpose.msra.mxu0 0
        %2238 = vmatprep.subr.bf16.mxu0 0
        %2239 = vmatpush1.bf16.xpose.msra.mxu0 0
        %2240 = vmatprep.subr.bf16.mxu0 0
        %2241 = vmatpush1.bf16.xpose.msra.mxu0 0
        %2242 = vmatprep.mubr.bf16.mxu0 %v926
        %2243 = vmatmul.mubr.bf16.gmra.mrb[0].mxu0 %v925
        %v2244 = vpop.f32.mrb[0].mxu0
        %v2245 = vadd.f32 %v2204, %v2244
        %v2246 = vpop.f32.mrb[0].mxu0
        %v2247 = vpop.f32.mrb[0].mxu0
        %v2248 = vadd.f32 %v2207, %v2247
        %v2249 = vpop.f32.mrb[0].mxu0
        %2250 = vdwg.mxu0
        %2251 = vmatprep.subr.bf16.mxu0 %v1428
        %2252 = vmatpush1.bf16.xpose.msra.mxu0 %v1427
        %2253 = vmatprep.subr.bf16.mxu0 0
        %2254 = vmatpush1.bf16.xpose.msra.mxu0 0
        %2255 = vmatprep.subr.bf16.mxu0 0
        %2256 = vmatpush1.bf16.xpose.msra.mxu0 0
        %2257 = vmatprep.subr.bf16.mxu0 0
        %2258 = vmatpush1.bf16.xpose.msra.mxu0 0
        %2259 = vmatprep.subr.bf16.mxu0 0
        %2260 = vmatpush1.bf16.xpose.msra.mxu0 0
        %2261 = vmatprep.subr.bf16.mxu0 0
        %2262 = vmatpush1.bf16.xpose.msra.mxu0 0
        %2263 = vmatprep.subr.bf16.mxu0 0
        %2264 = vmatpush1.bf16.xpose.msra.mxu0 0
        %2265 = vmatprep.subr.bf16.mxu0 0
        %2266 = vmatpush1.bf16.xpose.msra.mxu0 0
        %2267 = vmatprep.subr.bf16.mxu0 0
        %2268 = vmatpush1.bf16.xpose.msra.mxu0 0
        %2269 = vmatprep.subr.bf16.mxu0 0
        %2270 = vmatpush1.bf16.xpose.msra.mxu0 0
        %2271 = vmatprep.subr.bf16.mxu0 0
        %2272 = vmatpush1.bf16.xpose.msra.mxu0 0
        %2273 = vmatprep.subr.bf16.mxu0 0
        %2274 = vmatpush1.bf16.xpose.msra.mxu0 0
        %2275 = vmatprep.subr.bf16.mxu0 0
        %2276 = vmatpush1.bf16.xpose.msra.mxu0 0
        %2277 = vmatprep.subr.bf16.mxu0 0
        %2278 = vmatpush1.bf16.xpose.msra.mxu0 0
        %2279 = vmatprep.subr.bf16.mxu0 0
        %2280 = vmatpush1.bf16.xpose.msra.mxu0 0
        %2281 = vmatprep.subr.bf16.mxu0 0
        %2282 = vmatpush1.bf16.xpose.msra.mxu0 0
        %2283 = vmatprep.mubr.bf16.mxu0 %v928
        %2284 = vmatmul.mubr.bf16.gmra.mrb[0].mxu0 %v927
        %v2285 = vpop.f32.mrb[0].mxu0
        %v2286 = vadd.f32 %v2245, %v2285
        %v2287 = vpop.f32.mrb[0].mxu0
        %v2288 = vpop.f32.mrb[0].mxu0
        %v2289 = vadd.f32 %v2248, %v2288
        %v2290 = vpop.f32.mrb[0].mxu0
        %2291 = vdwg.mxu0
        %2292 = vmatprep.subr.bf16.mxu0 %v1430
        %2293 = vmatpush1.bf16.xpose.msra.mxu0 %v1429
        %2294 = vmatprep.subr.bf16.mxu0 0
        %2295 = vmatpush1.bf16.xpose.msra.mxu0 0
        %2296 = vmatprep.subr.bf16.mxu0 0
        %2297 = vmatpush1.bf16.xpose.msra.mxu0 0
        %2298 = vmatprep.subr.bf16.mxu0 0
        %2299 = vmatpush1.bf16.xpose.msra.mxu0 0
        %2300 = vmatprep.subr.bf16.mxu0 0
        %2301 = vmatpush1.bf16.xpose.msra.mxu0 0
        %2302 = vmatprep.subr.bf16.mxu0 0
        %2303 = vmatpush1.bf16.xpose.msra.mxu0 0
        %2304 = vmatprep.subr.bf16.mxu0 0
        %2305 = vmatpush1.bf16.xpose.msra.mxu0 0
        %2306 = vmatprep.subr.bf16.mxu0 0
        %2307 = vmatpush1.bf16.xpose.msra.mxu0 0
        %2308 = vmatprep.subr.bf16.mxu0 0
        %2309 = vmatpush1.bf16.xpose.msra.mxu0 0
        %2310 = vmatprep.subr.bf16.mxu0 0
        %2311 = vmatpush1.bf16.xpose.msra.mxu0 0
        %2312 = vmatprep.subr.bf16.mxu0 0
        %2313 = vmatpush1.bf16.xpose.msra.mxu0 0
        %2314 = vmatprep.subr.bf16.mxu0 0
        %2315 = vmatpush1.bf16.xpose.msra.mxu0 0
        %2316 = vmatprep.subr.bf16.mxu0 0
        %2317 = vmatpush1.bf16.xpose.msra.mxu0 0
        %2318 = vmatprep.subr.bf16.mxu0 0
        %2319 = vmatpush1.bf16.xpose.msra.mxu0 0
        %2320 = vmatprep.subr.bf16.mxu0 0
        %2321 = vmatpush1.bf16.xpose.msra.mxu0 0
        %2322 = vmatprep.subr.bf16.mxu0 0
        %2323 = vmatpush1.bf16.xpose.msra.mxu0 0
        %2324 = vmatprep.mubr.bf16.mxu0 %v930
        %2325 = vmatmul.mubr.bf16.gmra.mrb[0].mxu0 %v929
        %v2326 = vpop.f32.mrb[0].mxu0
        %v2327 = vadd.f32 %v2286, %v2326
        %v2328 = vpop.f32.mrb[0].mxu0
        %v2329 = vpop.f32.mrb[0].mxu0
        %v2330 = vadd.f32 %v2289, %v2329
        %v2331 = vpop.f32.mrb[0].mxu0
        %2332 = vdwg.mxu0
        %2333 = vmatprep.subr.bf16.mxu0 %v1432
        %2334 = vmatpush1.bf16.xpose.msra.mxu0 %v1431
        %2335 = vmatprep.subr.bf16.mxu0 0
        %2336 = vmatpush1.bf16.xpose.msra.mxu0 0
        %2337 = vmatprep.subr.bf16.mxu0 0
        %2338 = vmatpush1.bf16.xpose.msra.mxu0 0
        %2339 = vmatprep.subr.bf16.mxu0 0
        %2340 = vmatpush1.bf16.xpose.msra.mxu0 0
        %2341 = vmatprep.subr.bf16.mxu0 0
        %2342 = vmatpush1.bf16.xpose.msra.mxu0 0
        %2343 = vmatprep.subr.bf16.mxu0 0
        %2344 = vmatpush1.bf16.xpose.msra.mxu0 0
        %2345 = vmatprep.subr.bf16.mxu0 0
        %2346 = vmatpush1.bf16.xpose.msra.mxu0 0
        %2347 = vmatprep.subr.bf16.mxu0 0
        %2348 = vmatpush1.bf16.xpose.msra.mxu0 0
        %2349 = vmatprep.subr.bf16.mxu0 0
        %2350 = vmatpush1.bf16.xpose.msra.mxu0 0
        %2351 = vmatprep.subr.bf16.mxu0 0
        %2352 = vmatpush1.bf16.xpose.msra.mxu0 0
        %2353 = vmatprep.subr.bf16.mxu0 0
        %2354 = vmatpush1.bf16.xpose.msra.mxu0 0
        %2355 = vmatprep.subr.bf16.mxu0 0
        %2356 = vmatpush1.bf16.xpose.msra.mxu0 0
        %2357 = vmatprep.subr.bf16.mxu0 0
        %2358 = vmatpush1.bf16.xpose.msra.mxu0 0
        %2359 = vmatprep.subr.bf16.mxu0 0
        %2360 = vmatpush1.bf16.xpose.msra.mxu0 0
        %2361 = vmatprep.subr.bf16.mxu0 0
        %2362 = vmatpush1.bf16.xpose.msra.mxu0 0
        %2363 = vmatprep.subr.bf16.mxu0 0
        %2364 = vmatpush1.bf16.xpose.msra.mxu0 0
        %2365 = vmatprep.mubr.bf16.mxu0 %v932
        %2366 = vmatmul.mubr.bf16.gmra.mrb[0].mxu0 %v931
        %v2367 = vpop.f32.mrb[0].mxu0
        %v2368 = vadd.f32 %v2327, %v2367
        %v2369 = vpop.f32.mrb[0].mxu0
        %v2370 = vpop.f32.mrb[0].mxu0
        %v2371 = vadd.f32 %v2330, %v2370
        %v2372 = vpop.f32.mrb[0].mxu0
        %2373 = vdwg.mxu0
        %2374 = vmatprep.subr.bf16.mxu0 %v1434
        %2375 = vmatpush1.bf16.xpose.msra.mxu0 %v1433
        %2376 = vmatprep.subr.bf16.mxu0 0
        %2377 = vmatpush1.bf16.xpose.msra.mxu0 0
        %2378 = vmatprep.subr.bf16.mxu0 0
        %2379 = vmatpush1.bf16.xpose.msra.mxu0 0
        %2380 = vmatprep.subr.bf16.mxu0 0
        %2381 = vmatpush1.bf16.xpose.msra.mxu0 0
        %2382 = vmatprep.subr.bf16.mxu0 0
        %2383 = vmatpush1.bf16.xpose.msra.mxu0 0
        %2384 = vmatprep.subr.bf16.mxu0 0
        %2385 = vmatpush1.bf16.xpose.msra.mxu0 0
        %2386 = vmatprep.subr.bf16.mxu0 0
        %2387 = vmatpush1.bf16.xpose.msra.mxu0 0
        %2388 = vmatprep.subr.bf16.mxu0 0
        %2389 = vmatpush1.bf16.xpose.msra.mxu0 0
        %2390 = vmatprep.subr.bf16.mxu0 0
        %2391 = vmatpush1.bf16.xpose.msra.mxu0 0
        %2392 = vmatprep.subr.bf16.mxu0 0
        %2393 = vmatpush1.bf16.xpose.msra.mxu0 0
        %2394 = vmatprep.subr.bf16.mxu0 0
        %2395 = vmatpush1.bf16.xpose.msra.mxu0 0
        %2396 = vmatprep.subr.bf16.mxu0 0
        %2397 = vmatpush1.bf16.xpose.msra.mxu0 0
        %2398 = vmatprep.subr.bf16.mxu0 0
        %2399 = vmatpush1.bf16.xpose.msra.mxu0 0
        %2400 = vmatprep.subr.bf16.mxu0 0
        %2401 = vmatpush1.bf16.xpose.msra.mxu0 0
        %2402 = vmatprep.subr.bf16.mxu0 0
        %2403 = vmatpush1.bf16.xpose.msra.mxu0 0
        %2404 = vmatprep.subr.bf16.mxu0 0
        %2405 = vmatpush1.bf16.xpose.msra.mxu0 0
        %2406 = vmatprep.mubr.bf16.mxu0 %v934
        %2407 = vmatmul.mubr.bf16.gmra.mrb[0].mxu0 %v933
        %v2408 = vpop.f32.mrb[0].mxu0
        %v2409 = vadd.f32 %v2368, %v2408
        %v2410 = vpop.f32.mrb[0].mxu0
        %v2411 = vpop.f32.mrb[0].mxu0
        %v2412 = vadd.f32 %v2371, %v2411
        %v2413 = vpop.f32.mrb[0].mxu0
        %2414 = vdwg.mxu0
        %2415 = vmatprep.subr.bf16.mxu0 %v1436
        %2416 = vmatpush1.bf16.xpose.msra.mxu0 %v1435
        %2417 = vmatprep.subr.bf16.mxu0 0
        %2418 = vmatpush1.bf16.xpose.msra.mxu0 0
        %2419 = vmatprep.subr.bf16.mxu0 0
        %2420 = vmatpush1.bf16.xpose.msra.mxu0 0
        %2421 = vmatprep.subr.bf16.mxu0 0
        %2422 = vmatpush1.bf16.xpose.msra.mxu0 0
        %2423 = vmatprep.subr.bf16.mxu0 0
        %2424 = vmatpush1.bf16.xpose.msra.mxu0 0
        %2425 = vmatprep.subr.bf16.mxu0 0
        %2426 = vmatpush1.bf16.xpose.msra.mxu0 0
        %2427 = vmatprep.subr.bf16.mxu0 0
        %2428 = vmatpush1.bf16.xpose.msra.mxu0 0
        %2429 = vmatprep.subr.bf16.mxu0 0
        %2430 = vmatpush1.bf16.xpose.msra.mxu0 0
        %2431 = vmatprep.subr.bf16.mxu0 0
        %2432 = vmatpush1.bf16.xpose.msra.mxu0 0
        %2433 = vmatprep.subr.bf16.mxu0 0
        %2434 = vmatpush1.bf16.xpose.msra.mxu0 0
        %2435 = vmatprep.subr.bf16.mxu0 0
        %2436 = vmatpush1.bf16.xpose.msra.mxu0 0
        %2437 = vmatprep.subr.bf16.mxu0 0
        %2438 = vmatpush1.bf16.xpose.msra.mxu0 0
        %2439 = vmatprep.subr.bf16.mxu0 0
        %2440 = vmatpush1.bf16.xpose.msra.mxu0 0
        %2441 = vmatprep.subr.bf16.mxu0 0
        %2442 = vmatpush1.bf16.xpose.msra.mxu0 0
        %2443 = vmatprep.subr.bf16.mxu0 0
        %2444 = vmatpush1.bf16.xpose.msra.mxu0 0
        %2445 = vmatprep.subr.bf16.mxu0 0
        %2446 = vmatpush1.bf16.xpose.msra.mxu0 0
        %2447 = vmatprep.mubr.bf16.mxu0 %v936
        %2448 = vmatmul.mubr.bf16.gmra.mrb[0].mxu0 %v935
        %v2449 = vpop.f32.mrb[0].mxu0
        %v2450 = vadd.f32 %v2409, %v2449
        %v2451 = vpop.f32.mrb[0].mxu0
        %v2452 = vpop.f32.mrb[0].mxu0
        %v2453 = vadd.f32 %v2412, %v2452
        %v2454 = vpop.f32.mrb[0].mxu0
        %2455 = vdwg.mxu0
        %2456 = vmatprep.subr.bf16.mxu0 %v1438
        %2457 = vmatpush1.bf16.xpose.msra.mxu0 %v1437
        %2458 = vmatprep.subr.bf16.mxu0 0
        %2459 = vmatpush1.bf16.xpose.msra.mxu0 0
        %2460 = vmatprep.subr.bf16.mxu0 0
        %2461 = vmatpush1.bf16.xpose.msra.mxu0 0
        %2462 = vmatprep.subr.bf16.mxu0 0
        %2463 = vmatpush1.bf16.xpose.msra.mxu0 0
        %2464 = vmatprep.subr.bf16.mxu0 0
        %2465 = vmatpush1.bf16.xpose.msra.mxu0 0
        %2466 = vmatprep.subr.bf16.mxu0 0
        %2467 = vmatpush1.bf16.xpose.msra.mxu0 0
        %2468 = vmatprep.subr.bf16.mxu0 0
        %2469 = vmatpush1.bf16.xpose.msra.mxu0 0
        %2470 = vmatprep.subr.bf16.mxu0 0
        %2471 = vmatpush1.bf16.xpose.msra.mxu0 0
        %2472 = vmatprep.subr.bf16.mxu0 0
        %2473 = vmatpush1.bf16.xpose.msra.mxu0 0
        %2474 = vmatprep.subr.bf16.mxu0 0
        %2475 = vmatpush1.bf16.xpose.msra.mxu0 0
        %2476 = vmatprep.subr.bf16.mxu0 0
        %2477 = vmatpush1.bf16.xpose.msra.mxu0 0
        %2478 = vmatprep.subr.bf16.mxu0 0
        %2479 = vmatpush1.bf16.xpose.msra.mxu0 0
        %2480 = vmatprep.subr.bf16.mxu0 0
        %2481 = vmatpush1.bf16.xpose.msra.mxu0 0
        %2482 = vmatprep.subr.bf16.mxu0 0
        %2483 = vmatpush1.bf16.xpose.msra.mxu0 0
        %2484 = vmatprep.subr.bf16.mxu0 0
        %2485 = vmatpush1.bf16.xpose.msra.mxu0 0
        %2486 = vmatprep.subr.bf16.mxu0 0
        %2487 = vmatpush1.bf16.xpose.msra.mxu0 0
        %2488 = vmatprep.mubr.bf16.mxu0 %v938
        %2489 = vmatmul.mubr.bf16.gmra.mrb[0].mxu0 %v937
        %v2490 = vpop.f32.mrb[0].mxu0
        %v2491 = vadd.f32 %v2450, %v2490
        %v2492 = vpop.f32.mrb[0].mxu0
        %v2493 = vpop.f32.mrb[0].mxu0
        %v2494 = vadd.f32 %v2453, %v2493
        %v2495 = vpop.f32.mrb[0].mxu0
        %2496 = vdwg.mxu0
        %2497 = vmatprep.subr.bf16.mxu0 %v1440
        %2498 = vmatpush1.bf16.xpose.msra.mxu0 %v1439
        %2499 = vmatprep.subr.bf16.mxu0 0
        %2500 = vmatpush1.bf16.xpose.msra.mxu0 0
        %2501 = vmatprep.subr.bf16.mxu0 0
        %2502 = vmatpush1.bf16.xpose.msra.mxu0 0
        %2503 = vmatprep.subr.bf16.mxu0 0
        %2504 = vmatpush1.bf16.xpose.msra.mxu0 0
        %2505 = vmatprep.subr.bf16.mxu0 0
        %2506 = vmatpush1.bf16.xpose.msra.mxu0 0
        %2507 = vmatprep.subr.bf16.mxu0 0
        %2508 = vmatpush1.bf16.xpose.msra.mxu0 0
        %2509 = vmatprep.subr.bf16.mxu0 0
        %2510 = vmatpush1.bf16.xpose.msra.mxu0 0
        %2511 = vmatprep.subr.bf16.mxu0 0
        %2512 = vmatpush1.bf16.xpose.msra.mxu0 0
        %2513 = vmatprep.subr.bf16.mxu0 0
        %2514 = vmatpush1.bf16.xpose.msra.mxu0 0
        %2515 = vmatprep.subr.bf16.mxu0 0
        %2516 = vmatpush1.bf16.xpose.msra.mxu0 0
        %2517 = vmatprep.subr.bf16.mxu0 0
        %2518 = vmatpush1.bf16.xpose.msra.mxu0 0
        %2519 = vmatprep.subr.bf16.mxu0 0
        %2520 = vmatpush1.bf16.xpose.msra.mxu0 0
        %2521 = vmatprep.subr.bf16.mxu0 0
        %2522 = vmatpush1.bf16.xpose.msra.mxu0 0
        %2523 = vmatprep.subr.bf16.mxu0 0
        %2524 = vmatpush1.bf16.xpose.msra.mxu0 0
        %2525 = vmatprep.subr.bf16.mxu0 0
        %2526 = vmatpush1.bf16.xpose.msra.mxu0 0
        %2527 = vmatprep.subr.bf16.mxu0 0
        %2528 = vmatpush1.bf16.xpose.msra.mxu0 0
        %2529 = vmatprep.mubr.bf16.mxu0 %v940
        %2530 = vmatmul.mubr.bf16.gmra.mrb[0].mxu0 %v939
        %v2531 = vpop.f32.mrb[0].mxu0
        %v2532 = vadd.f32 %v2491, %v2531
        %v2533 = vpop.f32.mrb[0].mxu0
        %v2534 = vpop.f32.mrb[0].mxu0
        %v2535 = vadd.f32 %v2494, %v2534
        %v2536 = vpop.f32.mrb[0].mxu0
        %2537 = vdwg.mxu0
        %2538 = vmatprep.subr.bf16.mxu0 %v1442
        %2539 = vmatpush1.bf16.xpose.msra.mxu0 %v1441
        %2540 = vmatprep.subr.bf16.mxu0 0
        %2541 = vmatpush1.bf16.xpose.msra.mxu0 0
        %2542 = vmatprep.subr.bf16.mxu0 0
        %2543 = vmatpush1.bf16.xpose.msra.mxu0 0
        %2544 = vmatprep.subr.bf16.mxu0 0
        %2545 = vmatpush1.bf16.xpose.msra.mxu0 0
        %2546 = vmatprep.subr.bf16.mxu0 0
        %2547 = vmatpush1.bf16.xpose.msra.mxu0 0
        %2548 = vmatprep.subr.bf16.mxu0 0
        %2549 = vmatpush1.bf16.xpose.msra.mxu0 0
        %2550 = vmatprep.subr.bf16.mxu0 0
        %2551 = vmatpush1.bf16.xpose.msra.mxu0 0
        %2552 = vmatprep.subr.bf16.mxu0 0
        %2553 = vmatpush1.bf16.xpose.msra.mxu0 0
        %2554 = vmatprep.subr.bf16.mxu0 0
        %2555 = vmatpush1.bf16.xpose.msra.mxu0 0
        %2556 = vmatprep.subr.bf16.mxu0 0
        %2557 = vmatpush1.bf16.xpose.msra.mxu0 0
        %2558 = vmatprep.subr.bf16.mxu0 0
        %2559 = vmatpush1.bf16.xpose.msra.mxu0 0
        %2560 = vmatprep.subr.bf16.mxu0 0
        %2561 = vmatpush1.bf16.xpose.msra.mxu0 0
        %2562 = vmatprep.subr.bf16.mxu0 0
        %2563 = vmatpush1.bf16.xpose.msra.mxu0 0
        %2564 = vmatprep.subr.bf16.mxu0 0
        %2565 = vmatpush1.bf16.xpose.msra.mxu0 0
        %2566 = vmatprep.subr.bf16.mxu0 0
        %2567 = vmatpush1.bf16.xpose.msra.mxu0 0
        %2568 = vmatprep.subr.bf16.mxu0 0
        %2569 = vmatpush1.bf16.xpose.msra.mxu0 0
        %2570 = vmatprep.mubr.bf16.mxu0 %v942
        %2571 = vmatmul.mubr.bf16.gmra.mrb[0].mxu0 %v941
        %v2572 = vpop.f32.mrb[0].mxu0
        %v2573 = vadd.f32 %v2532, %v2572
        %v2574 = vpop.f32.mrb[0].mxu0
        %v2575 = vpop.f32.mrb[0].mxu0
        %v2576 = vadd.f32 %v2535, %v2575
        %v2577 = vpop.f32.mrb[0].mxu0
        %2578 = vdwg.mxu0
        %2579 = vmatprep.subr.bf16.mxu0 %v1444
        %2580 = vmatpush1.bf16.xpose.msra.mxu0 %v1443
        %2581 = vmatprep.subr.bf16.mxu0 0
        %2582 = vmatpush1.bf16.xpose.msra.mxu0 0
        %2583 = vmatprep.subr.bf16.mxu0 0
        %2584 = vmatpush1.bf16.xpose.msra.mxu0 0
        %2585 = vmatprep.subr.bf16.mxu0 0
        %2586 = vmatpush1.bf16.xpose.msra.mxu0 0
        %2587 = vmatprep.subr.bf16.mxu0 0
        %2588 = vmatpush1.bf16.xpose.msra.mxu0 0
        %2589 = vmatprep.subr.bf16.mxu0 0
        %2590 = vmatpush1.bf16.xpose.msra.mxu0 0
        %2591 = vmatprep.subr.bf16.mxu0 0
        %2592 = vmatpush1.bf16.xpose.msra.mxu0 0
        %2593 = vmatprep.subr.bf16.mxu0 0
        %2594 = vmatpush1.bf16.xpose.msra.mxu0 0
        %2595 = vmatprep.subr.bf16.mxu0 0
        %2596 = vmatpush1.bf16.xpose.msra.mxu0 0
        %2597 = vmatprep.subr.bf16.mxu0 0
        %2598 = vmatpush1.bf16.xpose.msra.mxu0 0
        %2599 = vmatprep.subr.bf16.mxu0 0
        %2600 = vmatpush1.bf16.xpose.msra.mxu0 0
        %2601 = vmatprep.subr.bf16.mxu0 0
        %2602 = vmatpush1.bf16.xpose.msra.mxu0 0
        %2603 = vmatprep.subr.bf16.mxu0 0
        %2604 = vmatpush1.bf16.xpose.msra.mxu0 0
        %2605 = vmatprep.subr.bf16.mxu0 0
        %2606 = vmatpush1.bf16.xpose.msra.mxu0 0
        %2607 = vmatprep.subr.bf16.mxu0 0
        %2608 = vmatpush1.bf16.xpose.msra.mxu0 0
        %2609 = vmatprep.subr.bf16.mxu0 0
        %2610 = vmatpush1.bf16.xpose.msra.mxu0 0
        %2611 = vmatprep.mubr.bf16.mxu0 %v944
        %2612 = vmatmul.mubr.bf16.gmra.mrb[0].mxu0 %v943
        %v2613 = vpop.f32.mrb[0].mxu0
        %v2614 = vadd.f32 %v2573, %v2613
        %v2615 = vpop.f32.mrb[0].mxu0
        %v2616 = vpop.f32.mrb[0].mxu0
        %v2617 = vadd.f32 %v2576, %v2616
        %v2618 = vpop.f32.mrb[0].mxu0
        %2619 = vdwg.mxu0
        %2620 = vmatprep.subr.bf16.mxu0 %v1446
        %2621 = vmatpush1.bf16.xpose.msra.mxu0 %v1445
        %2622 = vmatprep.subr.bf16.mxu0 0
        %2623 = vmatpush1.bf16.xpose.msra.mxu0 0
        %2624 = vmatprep.subr.bf16.mxu0 0
        %2625 = vmatpush1.bf16.xpose.msra.mxu0 0
        %2626 = vmatprep.subr.bf16.mxu0 0
        %2627 = vmatpush1.bf16.xpose.msra.mxu0 0
        %2628 = vmatprep.subr.bf16.mxu0 0
        %2629 = vmatpush1.bf16.xpose.msra.mxu0 0
        %2630 = vmatprep.subr.bf16.mxu0 0
        %2631 = vmatpush1.bf16.xpose.msra.mxu0 0
        %2632 = vmatprep.subr.bf16.mxu0 0
        %2633 = vmatpush1.bf16.xpose.msra.mxu0 0
        %2634 = vmatprep.subr.bf16.mxu0 0
        %2635 = vmatpush1.bf16.xpose.msra.mxu0 0
        %2636 = vmatprep.subr.bf16.mxu0 0
        %2637 = vmatpush1.bf16.xpose.msra.mxu0 0
        %2638 = vmatprep.subr.bf16.mxu0 0
        %2639 = vmatpush1.bf16.xpose.msra.mxu0 0
        %2640 = vmatprep.subr.bf16.mxu0 0
        %2641 = vmatpush1.bf16.xpose.msra.mxu0 0
        %2642 = vmatprep.subr.bf16.mxu0 0
        %2643 = vmatpush1.bf16.xpose.msra.mxu0 0
        %2644 = vmatprep.subr.bf16.mxu0 0
        %2645 = vmatpush1.bf16.xpose.msra.mxu0 0
        %2646 = vmatprep.subr.bf16.mxu0 0
        %2647 = vmatpush1.bf16.xpose.msra.mxu0 0
        %2648 = vmatprep.subr.bf16.mxu0 0
        %2649 = vmatpush1.bf16.xpose.msra.mxu0 0
        %2650 = vmatprep.subr.bf16.mxu0 0
        %2651 = vmatpush1.bf16.xpose.msra.mxu0 0
        %2652 = vmatprep.mubr.bf16.mxu0 %v946
        %2653 = vmatmul.mubr.bf16.gmra.mrb[0].mxu0 %v945
        %v2654 = vpop.f32.mrb[0].mxu0
        %v2655 = vadd.f32 %v2614, %v2654
        %v2656 = vpop.f32.mrb[0].mxu0
        %v2657 = vpop.f32.mrb[0].mxu0
        %v2658 = vadd.f32 %v2617, %v2657
        %v2659 = vpop.f32.mrb[0].mxu0
        %2660 = vdwg.mxu0
        %2661 = vmatprep.subr.bf16.mxu0 %v1448
        %2662 = vmatpush1.bf16.xpose.msra.mxu0 %v1447
        %2663 = vmatprep.subr.bf16.mxu0 0
        %2664 = vmatpush1.bf16.xpose.msra.mxu0 0
        %2665 = vmatprep.subr.bf16.mxu0 0
        %2666 = vmatpush1.bf16.xpose.msra.mxu0 0
        %2667 = vmatprep.subr.bf16.mxu0 0
        %2668 = vmatpush1.bf16.xpose.msra.mxu0 0
        %2669 = vmatprep.subr.bf16.mxu0 0
        %2670 = vmatpush1.bf16.xpose.msra.mxu0 0
        %2671 = vmatprep.subr.bf16.mxu0 0
        %2672 = vmatpush1.bf16.xpose.msra.mxu0 0
        %2673 = vmatprep.subr.bf16.mxu0 0
        %2674 = vmatpush1.bf16.xpose.msra.mxu0 0
        %2675 = vmatprep.subr.bf16.mxu0 0
        %2676 = vmatpush1.bf16.xpose.msra.mxu0 0
        %2677 = vmatprep.subr.bf16.mxu0 0
        %2678 = vmatpush1.bf16.xpose.msra.mxu0 0
        %2679 = vmatprep.subr.bf16.mxu0 0
        %2680 = vmatpush1.bf16.xpose.msra.mxu0 0
        %2681 = vmatprep.subr.bf16.mxu0 0
        %2682 = vmatpush1.bf16.xpose.msra.mxu0 0
        %2683 = vmatprep.subr.bf16.mxu0 0
        %2684 = vmatpush1.bf16.xpose.msra.mxu0 0
        %2685 = vmatprep.subr.bf16.mxu0 0
        %2686 = vmatpush1.bf16.xpose.msra.mxu0 0
        %2687 = vmatprep.subr.bf16.mxu0 0
        %2688 = vmatpush1.bf16.xpose.msra.mxu0 0
        %2689 = vmatprep.subr.bf16.mxu0 0
        %2690 = vmatpush1.bf16.xpose.msra.mxu0 0
        %2691 = vmatprep.subr.bf16.mxu0 0
        %2692 = vmatpush1.bf16.xpose.msra.mxu0 0
        %2693 = vmatprep.mubr.bf16.mxu0 %v948
        %2694 = vmatmul.mubr.bf16.gmra.mrb[0].mxu0 %v947
        %v2695 = vpop.f32.mrb[0].mxu0
        %v2696 = vadd.f32 %v2655, %v2695
        %v2697 = vpop.f32.mrb[0].mxu0
        %v2698 = vpop.f32.mrb[0].mxu0
        %v2699 = vadd.f32 %v2658, %v2698
        %v2700 = vpop.f32.mrb[0].mxu0
        %2701 = vdwg.mxu0
        %2702 = vmatprep.subr.bf16.mxu0 %v1450
        %2703 = vmatpush1.bf16.xpose.msra.mxu0 %v1449
        %2704 = vmatprep.subr.bf16.mxu0 0
        %2705 = vmatpush1.bf16.xpose.msra.mxu0 0
        %2706 = vmatprep.subr.bf16.mxu0 0
        %2707 = vmatpush1.bf16.xpose.msra.mxu0 0
        %2708 = vmatprep.subr.bf16.mxu0 0
        %2709 = vmatpush1.bf16.xpose.msra.mxu0 0
        %2710 = vmatprep.subr.bf16.mxu0 0
        %2711 = vmatpush1.bf16.xpose.msra.mxu0 0
        %2712 = vmatprep.subr.bf16.mxu0 0
        %2713 = vmatpush1.bf16.xpose.msra.mxu0 0
        %2714 = vmatprep.subr.bf16.mxu0 0
        %2715 = vmatpush1.bf16.xpose.msra.mxu0 0
        %2716 = vmatprep.subr.bf16.mxu0 0
        %2717 = vmatpush1.bf16.xpose.msra.mxu0 0
        %2718 = vmatprep.subr.bf16.mxu0 0
        %2719 = vmatpush1.bf16.xpose.msra.mxu0 0
        %2720 = vmatprep.subr.bf16.mxu0 0
        %2721 = vmatpush1.bf16.xpose.msra.mxu0 0
        %2722 = vmatprep.subr.bf16.mxu0 0
        %2723 = vmatpush1.bf16.xpose.msra.mxu0 0
        %2724 = vmatprep.subr.bf16.mxu0 0
        %2725 = vmatpush1.bf16.xpose.msra.mxu0 0
        %2726 = vmatprep.subr.bf16.mxu0 0
        %2727 = vmatpush1.bf16.xpose.msra.mxu0 0
        %2728 = vmatprep.subr.bf16.mxu0 0
        %2729 = vmatpush1.bf16.xpose.msra.mxu0 0
        %2730 = vmatprep.subr.bf16.mxu0 0
        %2731 = vmatpush1.bf16.xpose.msra.mxu0 0
        %2732 = vmatprep.subr.bf16.mxu0 0
        %2733 = vmatpush1.bf16.xpose.msra.mxu0 0
        %2734 = vmatprep.mubr.bf16.mxu0 %v950
        %2735 = vmatmul.mubr.bf16.gmra.mrb[0].mxu0 %v949
        %v2736 = vpop.f32.mrb[0].mxu0
        %v2737 = vadd.f32 %v2696, %v2736
        %v2738 = vpop.f32.mrb[0].mxu0
        %v2739 = vpop.f32.mrb[0].mxu0
        %v2740 = vadd.f32 %v2699, %v2739
        %v2741 = vpop.f32.mrb[0].mxu0
        %2742 = vdwg.mxu0
        %2743 = vmatprep.subr.bf16.mxu0 %v1452
        %2744 = vmatpush1.bf16.xpose.msra.mxu0 %v1451
        %2745 = vmatprep.subr.bf16.mxu0 0
        %2746 = vmatpush1.bf16.xpose.msra.mxu0 0
        %2747 = vmatprep.subr.bf16.mxu0 0
        %2748 = vmatpush1.bf16.xpose.msra.mxu0 0
        %2749 = vmatprep.subr.bf16.mxu0 0
        %2750 = vmatpush1.bf16.xpose.msra.mxu0 0
        %2751 = vmatprep.subr.bf16.mxu0 0
        %2752 = vmatpush1.bf16.xpose.msra.mxu0 0
        %2753 = vmatprep.subr.bf16.mxu0 0
        %2754 = vmatpush1.bf16.xpose.msra.mxu0 0
        %2755 = vmatprep.subr.bf16.mxu0 0
        %2756 = vmatpush1.bf16.xpose.msra.mxu0 0
        %2757 = vmatprep.subr.bf16.mxu0 0
        %2758 = vmatpush1.bf16.xpose.msra.mxu0 0
        %2759 = vmatprep.subr.bf16.mxu0 0
        %2760 = vmatpush1.bf16.xpose.msra.mxu0 0
        %2761 = vmatprep.subr.bf16.mxu0 0
        %2762 = vmatpush1.bf16.xpose.msra.mxu0 0
        %2763 = vmatprep.subr.bf16.mxu0 0
        %2764 = vmatpush1.bf16.xpose.msra.mxu0 0
        %2765 = vmatprep.subr.bf16.mxu0 0
        %2766 = vmatpush1.bf16.xpose.msra.mxu0 0
        %2767 = vmatprep.subr.bf16.mxu0 0
        %2768 = vmatpush1.bf16.xpose.msra.mxu0 0
        %2769 = vmatprep.subr.bf16.mxu0 0
        %2770 = vmatpush1.bf16.xpose.msra.mxu0 0
        %2771 = vmatprep.subr.bf16.mxu0 0
        %2772 = vmatpush1.bf16.xpose.msra.mxu0 0
        %2773 = vmatprep.subr.bf16.mxu0 0
        %2774 = vmatpush1.bf16.xpose.msra.mxu0 0
        %2775 = vmatprep.mubr.bf16.mxu0 %v952
        %2776 = vmatmul.mubr.bf16.gmra.mrb[0].mxu0 %v951
        %v2777 = vpop.f32.mrb[0].mxu0
        %v2778 = vadd.f32 %v2737, %v2777
        %v2779 = vpop.f32.mrb[0].mxu0
        %v2780 = vpop.f32.mrb[0].mxu0
        %v2781 = vadd.f32 %v2740, %v2780
        %v2782 = vpop.f32.mrb[0].mxu0
        %2783 = vdwg.mxu0
        %2784 = vmatprep.subr.bf16.mxu0 %v1454
        %2785 = vmatpush1.bf16.xpose.msra.mxu0 %v1453
        %2786 = vmatprep.subr.bf16.mxu0 0
        %2787 = vmatpush1.bf16.xpose.msra.mxu0 0
        %2788 = vmatprep.subr.bf16.mxu0 0
        %2789 = vmatpush1.bf16.xpose.msra.mxu0 0
        %2790 = vmatprep.subr.bf16.mxu0 0
        %2791 = vmatpush1.bf16.xpose.msra.mxu0 0
        %2792 = vmatprep.subr.bf16.mxu0 0
        %2793 = vmatpush1.bf16.xpose.msra.mxu0 0
        %2794 = vmatprep.subr.bf16.mxu0 0
        %2795 = vmatpush1.bf16.xpose.msra.mxu0 0
        %2796 = vmatprep.subr.bf16.mxu0 0
        %2797 = vmatpush1.bf16.xpose.msra.mxu0 0
        %2798 = vmatprep.subr.bf16.mxu0 0
        %2799 = vmatpush1.bf16.xpose.msra.mxu0 0
        %2800 = vmatprep.subr.bf16.mxu0 0
        %2801 = vmatpush1.bf16.xpose.msra.mxu0 0
        %2802 = vmatprep.subr.bf16.mxu0 0
        %2803 = vmatpush1.bf16.xpose.msra.mxu0 0
        %2804 = vmatprep.subr.bf16.mxu0 0
        %2805 = vmatpush1.bf16.xpose.msra.mxu0 0
        %2806 = vmatprep.subr.bf16.mxu0 0
        %2807 = vmatpush1.bf16.xpose.msra.mxu0 0
        %2808 = vmatprep.subr.bf16.mxu0 0
        %2809 = vmatpush1.bf16.xpose.msra.mxu0 0
        %2810 = vmatprep.subr.bf16.mxu0 0
        %2811 = vmatpush1.bf16.xpose.msra.mxu0 0
        %2812 = vmatprep.subr.bf16.mxu0 0
        %2813 = vmatpush1.bf16.xpose.msra.mxu0 0
        %2814 = vmatprep.subr.bf16.mxu0 0
        %2815 = vmatpush1.bf16.xpose.msra.mxu0 0
        %2816 = vmatprep.mubr.bf16.mxu0 %v954
        %2817 = vmatmul.mubr.bf16.gmra.mrb[0].mxu0 %v953
        %v2818 = vpop.f32.mrb[0].mxu0
        %v2819 = vadd.f32 %v2778, %v2818
        %v2820 = vpop.f32.mrb[0].mxu0
        %v2821 = vpop.f32.mrb[0].mxu0
        %v2822 = vadd.f32 %v2781, %v2821
        %v2823 = vpop.f32.mrb[0].mxu0
        %2824 = vdwg.mxu0
        %2825 = vmatprep.subr.bf16.mxu0 %v1456
        %2826 = vmatpush1.bf16.xpose.msra.mxu0 %v1455
        %2827 = vmatprep.subr.bf16.mxu0 0
        %2828 = vmatpush1.bf16.xpose.msra.mxu0 0
        %2829 = vmatprep.subr.bf16.mxu0 0
        %2830 = vmatpush1.bf16.xpose.msra.mxu0 0
        %2831 = vmatprep.subr.bf16.mxu0 0
        %2832 = vmatpush1.bf16.xpose.msra.mxu0 0
        %2833 = vmatprep.subr.bf16.mxu0 0
        %2834 = vmatpush1.bf16.xpose.msra.mxu0 0
        %2835 = vmatprep.subr.bf16.mxu0 0
        %2836 = vmatpush1.bf16.xpose.msra.mxu0 0
        %2837 = vmatprep.subr.bf16.mxu0 0
        %2838 = vmatpush1.bf16.xpose.msra.mxu0 0
        %2839 = vmatprep.subr.bf16.mxu0 0
        %2840 = vmatpush1.bf16.xpose.msra.mxu0 0
        %2841 = vmatprep.subr.bf16.mxu0 0
        %2842 = vmatpush1.bf16.xpose.msra.mxu0 0
        %2843 = vmatprep.subr.bf16.mxu0 0
        %2844 = vmatpush1.bf16.xpose.msra.mxu0 0
        %2845 = vmatprep.subr.bf16.mxu0 0
        %2846 = vmatpush1.bf16.xpose.msra.mxu0 0
        %2847 = vmatprep.subr.bf16.mxu0 0
        %2848 = vmatpush1.bf16.xpose.msra.mxu0 0
        %2849 = vmatprep.subr.bf16.mxu0 0
        %2850 = vmatpush1.bf16.xpose.msra.mxu0 0
        %2851 = vmatprep.subr.bf16.mxu0 0
        %2852 = vmatpush1.bf16.xpose.msra.mxu0 0
        %2853 = vmatprep.subr.bf16.mxu0 0
        %2854 = vmatpush1.bf16.xpose.msra.mxu0 0
        %2855 = vmatprep.subr.bf16.mxu0 0
        %2856 = vmatpush1.bf16.xpose.msra.mxu0 0
        %2857 = vmatprep.mubr.bf16.mxu0 %v956
        %2858 = vmatmul.mubr.bf16.gmra.mrb[0].mxu0 %v955
        %v2859 = vpop.f32.mrb[0].mxu0
        %v2860 = vadd.f32 %v2819, %v2859
        %v2861 = vpop.f32.mrb[0].mxu0
        %v2862 = vpop.f32.mrb[0].mxu0
        %v2863 = vadd.f32 %v2822, %v2862
        %v2864 = vpop.f32.mrb[0].mxu0
        %2865 = vdwg.mxu0
        %2866 = vmatprep.subr.bf16.mxu0 %v1458
        %2867 = vmatpush1.bf16.xpose.msra.mxu0 %v1457
        %2868 = vmatprep.subr.bf16.mxu0 0
        %2869 = vmatpush1.bf16.xpose.msra.mxu0 0
        %2870 = vmatprep.subr.bf16.mxu0 0
        %2871 = vmatpush1.bf16.xpose.msra.mxu0 0
        %2872 = vmatprep.subr.bf16.mxu0 0
        %2873 = vmatpush1.bf16.xpose.msra.mxu0 0
        %2874 = vmatprep.subr.bf16.mxu0 0
        %2875 = vmatpush1.bf16.xpose.msra.mxu0 0
        %2876 = vmatprep.subr.bf16.mxu0 0
        %2877 = vmatpush1.bf16.xpose.msra.mxu0 0
        %2878 = vmatprep.subr.bf16.mxu0 0
        %2879 = vmatpush1.bf16.xpose.msra.mxu0 0
        %2880 = vmatprep.subr.bf16.mxu0 0
        %2881 = vmatpush1.bf16.xpose.msra.mxu0 0
        %2882 = vmatprep.subr.bf16.mxu0 0
        %2883 = vmatpush1.bf16.xpose.msra.mxu0 0
        %2884 = vmatprep.subr.bf16.mxu0 0
        %2885 = vmatpush1.bf16.xpose.msra.mxu0 0
        %2886 = vmatprep.subr.bf16.mxu0 0
        %2887 = vmatpush1.bf16.xpose.msra.mxu0 0
        %2888 = vmatprep.subr.bf16.mxu0 0
        %2889 = vmatpush1.bf16.xpose.msra.mxu0 0
        %2890 = vmatprep.subr.bf16.mxu0 0
        %2891 = vmatpush1.bf16.xpose.msra.mxu0 0
        %2892 = vmatprep.subr.bf16.mxu0 0
        %2893 = vmatpush1.bf16.xpose.msra.mxu0 0
        %2894 = vmatprep.subr.bf16.mxu0 0
        %2895 = vmatpush1.bf16.xpose.msra.mxu0 0
        %2896 = vmatprep.subr.bf16.mxu0 0
        %2897 = vmatpush1.bf16.xpose.msra.mxu0 0
        %2898 = vmatprep.mubr.bf16.mxu0 %v958
        %2899 = vmatmul.mubr.bf16.gmra.mrb[0].mxu0 %v957
        %v2900 = vpop.f32.mrb[0].mxu0
        %v2901 = vadd.f32 %v2860, %v2900
        %v2902 = vpop.f32.mrb[0].mxu0
        %v2903 = vpop.f32.mrb[0].mxu0
        %v2904 = vadd.f32 %v2863, %v2903
        %v2905 = vpop.f32.mrb[0].mxu0
        %2906 = vdwg.mxu0
        %2907 = vmatprep.subr.bf16.mxu0 %v1460
        %2908 = vmatpush1.bf16.xpose.msra.mxu0 %v1459
        %2909 = vmatprep.subr.bf16.mxu0 0
        %2910 = vmatpush1.bf16.xpose.msra.mxu0 0
        %2911 = vmatprep.subr.bf16.mxu0 0
        %2912 = vmatpush1.bf16.xpose.msra.mxu0 0
        %2913 = vmatprep.subr.bf16.mxu0 0
        %2914 = vmatpush1.bf16.xpose.msra.mxu0 0
        %2915 = vmatprep.subr.bf16.mxu0 0
        %2916 = vmatpush1.bf16.xpose.msra.mxu0 0
        %2917 = vmatprep.subr.bf16.mxu0 0
        %2918 = vmatpush1.bf16.xpose.msra.mxu0 0
        %2919 = vmatprep.subr.bf16.mxu0 0
        %2920 = vmatpush1.bf16.xpose.msra.mxu0 0
        %2921 = vmatprep.subr.bf16.mxu0 0
        %2922 = vmatpush1.bf16.xpose.msra.mxu0 0
        %2923 = vmatprep.subr.bf16.mxu0 0
        %2924 = vmatpush1.bf16.xpose.msra.mxu0 0
        %2925 = vmatprep.subr.bf16.mxu0 0
        %2926 = vmatpush1.bf16.xpose.msra.mxu0 0
        %2927 = vmatprep.subr.bf16.mxu0 0
        %2928 = vmatpush1.bf16.xpose.msra.mxu0 0
        %2929 = vmatprep.subr.bf16.mxu0 0
        %2930 = vmatpush1.bf16.xpose.msra.mxu0 0
        %2931 = vmatprep.subr.bf16.mxu0 0
        %2932 = vmatpush1.bf16.xpose.msra.mxu0 0
        %2933 = vmatprep.subr.bf16.mxu0 0
        %2934 = vmatpush1.bf16.xpose.msra.mxu0 0
        %2935 = vmatprep.subr.bf16.mxu0 0
        %2936 = vmatpush1.bf16.xpose.msra.mxu0 0
        %2937 = vmatprep.subr.bf16.mxu0 0
        %2938 = vmatpush1.bf16.xpose.msra.mxu0 0
        %2939 = vmatprep.mubr.bf16.mxu0 %v960
        %2940 = vmatmul.mubr.bf16.gmra.mrb[0].mxu0 %v959
        %v2941 = vpop.f32.mrb[0].mxu0
        %v2942 = vadd.f32 %v2901, %v2941
        %v2943 = vpop.f32.mrb[0].mxu0
        %v2944 = vpop.f32.mrb[0].mxu0
        %v2945 = vadd.f32 %v2904, %v2944
        %v2946 = vpop.f32.mrb[0].mxu0
        %2947 = vdwg.mxu0
        %2948 = vmatprep.subr.bf16.mxu0 %v1462
        %2949 = vmatpush1.bf16.xpose.msra.mxu0 %v1461
        %2950 = vmatprep.subr.bf16.mxu0 0
        %2951 = vmatpush1.bf16.xpose.msra.mxu0 0
        %2952 = vmatprep.subr.bf16.mxu0 0
        %2953 = vmatpush1.bf16.xpose.msra.mxu0 0
        %2954 = vmatprep.subr.bf16.mxu0 0
        %2955 = vmatpush1.bf16.xpose.msra.mxu0 0
        %2956 = vmatprep.subr.bf16.mxu0 0
        %2957 = vmatpush1.bf16.xpose.msra.mxu0 0
        %2958 = vmatprep.subr.bf16.mxu0 0
        %2959 = vmatpush1.bf16.xpose.msra.mxu0 0
        %2960 = vmatprep.subr.bf16.mxu0 0
        %2961 = vmatpush1.bf16.xpose.msra.mxu0 0
        %2962 = vmatprep.subr.bf16.mxu0 0
        %2963 = vmatpush1.bf16.xpose.msra.mxu0 0
        %2964 = vmatprep.subr.bf16.mxu0 0
        %2965 = vmatpush1.bf16.xpose.msra.mxu0 0
        %2966 = vmatprep.subr.bf16.mxu0 0
        %2967 = vmatpush1.bf16.xpose.msra.mxu0 0
        %2968 = vmatprep.subr.bf16.mxu0 0
        %2969 = vmatpush1.bf16.xpose.msra.mxu0 0
        %2970 = vmatprep.subr.bf16.mxu0 0
        %2971 = vmatpush1.bf16.xpose.msra.mxu0 0
        %2972 = vmatprep.subr.bf16.mxu0 0
        %2973 = vmatpush1.bf16.xpose.msra.mxu0 0
        %2974 = vmatprep.subr.bf16.mxu0 0
        %2975 = vmatpush1.bf16.xpose.msra.mxu0 0
        %2976 = vmatprep.subr.bf16.mxu0 0
        %2977 = vmatpush1.bf16.xpose.msra.mxu0 0
        %2978 = vmatprep.subr.bf16.mxu0 0
        %2979 = vmatpush1.bf16.xpose.msra.mxu0 0
        %2980 = vmatprep.mubr.bf16.mxu0 %v962
        %2981 = vmatmul.mubr.bf16.gmra.mrb[0].mxu0 %v961
        %v2982 = vpop.f32.mrb[0].mxu0
        %v2983 = vadd.f32 %v2942, %v2982
        %v2984 = vpop.f32.mrb[0].mxu0
        %v2985 = vpop.f32.mrb[0].mxu0
        %v2986 = vadd.f32 %v2945, %v2985
        %v2987 = vpop.f32.mrb[0].mxu0
        %2988 = vdwg.mxu0
        %2989 = vmatprep.subr.bf16.mxu0 %v1464
        %2990 = vmatpush1.bf16.xpose.msra.mxu0 %v1463
        %2991 = vmatprep.subr.bf16.mxu0 0
        %2992 = vmatpush1.bf16.xpose.msra.mxu0 0
        %2993 = vmatprep.subr.bf16.mxu0 0
        %2994 = vmatpush1.bf16.xpose.msra.mxu0 0
        %2995 = vmatprep.subr.bf16.mxu0 0
        %2996 = vmatpush1.bf16.xpose.msra.mxu0 0
        %2997 = vmatprep.subr.bf16.mxu0 0
        %2998 = vmatpush1.bf16.xpose.msra.mxu0 0
        %2999 = vmatprep.subr.bf16.mxu0 0
        %3000 = vmatpush1.bf16.xpose.msra.mxu0 0
        %3001 = vmatprep.subr.bf16.mxu0 0
        %3002 = vmatpush1.bf16.xpose.msra.mxu0 0
        %3003 = vmatprep.subr.bf16.mxu0 0
        %3004 = vmatpush1.bf16.xpose.msra.mxu0 0
        %3005 = vmatprep.subr.bf16.mxu0 0
        %3006 = vmatpush1.bf16.xpose.msra.mxu0 0
        %3007 = vmatprep.subr.bf16.mxu0 0
        %3008 = vmatpush1.bf16.xpose.msra.mxu0 0
        %3009 = vmatprep.subr.bf16.mxu0 0
        %3010 = vmatpush1.bf16.xpose.msra.mxu0 0
        %3011 = vmatprep.subr.bf16.mxu0 0
        %3012 = vmatpush1.bf16.xpose.msra.mxu0 0
        %3013 = vmatprep.subr.bf16.mxu0 0
        %3014 = vmatpush1.bf16.xpose.msra.mxu0 0
        %3015 = vmatprep.subr.bf16.mxu0 0
        %3016 = vmatpush1.bf16.xpose.msra.mxu0 0
        %3017 = vmatprep.subr.bf16.mxu0 0
        %3018 = vmatpush1.bf16.xpose.msra.mxu0 0
        %3019 = vmatprep.subr.bf16.mxu0 0
        %3020 = vmatpush1.bf16.xpose.msra.mxu0 0
        %3021 = vmatprep.mubr.bf16.mxu0 %v964
        %3022 = vmatmul.mubr.bf16.gmra.mrb[0].mxu0 %v963
        %v3023 = vpop.f32.mrb[0].mxu0
        %v3024 = vadd.f32 %v2983, %v3023
        %v3025 = vpop.f32.mrb[0].mxu0
        %v3026 = vpop.f32.mrb[0].mxu0
        %v3027 = vadd.f32 %v2986, %v3026
        %v3028 = vpop.f32.mrb[0].mxu0
        %3029 = vdwg.mxu0
        %3030 = vmatprep.subr.bf16.mxu0 %v1466
        %3031 = vmatpush1.bf16.xpose.msra.mxu0 %v1465
        %3032 = vmatprep.subr.bf16.mxu0 0
        %3033 = vmatpush1.bf16.xpose.msra.mxu0 0
        %3034 = vmatprep.subr.bf16.mxu0 0
        %3035 = vmatpush1.bf16.xpose.msra.mxu0 0
        %3036 = vmatprep.subr.bf16.mxu0 0
        %3037 = vmatpush1.bf16.xpose.msra.mxu0 0
        %3038 = vmatprep.subr.bf16.mxu0 0
        %3039 = vmatpush1.bf16.xpose.msra.mxu0 0
        %3040 = vmatprep.subr.bf16.mxu0 0
        %3041 = vmatpush1.bf16.xpose.msra.mxu0 0
        %3042 = vmatprep.subr.bf16.mxu0 0
        %3043 = vmatpush1.bf16.xpose.msra.mxu0 0
        %3044 = vmatprep.subr.bf16.mxu0 0
        %3045 = vmatpush1.bf16.xpose.msra.mxu0 0
        %3046 = vmatprep.subr.bf16.mxu0 0
        %3047 = vmatpush1.bf16.xpose.msra.mxu0 0
        %3048 = vmatprep.subr.bf16.mxu0 0
        %3049 = vmatpush1.bf16.xpose.msra.mxu0 0
        %3050 = vmatprep.subr.bf16.mxu0 0
        %3051 = vmatpush1.bf16.xpose.msra.mxu0 0
        %3052 = vmatprep.subr.bf16.mxu0 0
        %3053 = vmatpush1.bf16.xpose.msra.mxu0 0
        %3054 = vmatprep.subr.bf16.mxu0 0
        %3055 = vmatpush1.bf16.xpose.msra.mxu0 0
        %3056 = vmatprep.subr.bf16.mxu0 0
        %3057 = vmatpush1.bf16.xpose.msra.mxu0 0
        %3058 = vmatprep.subr.bf16.mxu0 0
        %3059 = vmatpush1.bf16.xpose.msra.mxu0 0
        %3060 = vmatprep.subr.bf16.mxu0 0
        %3061 = vmatpush1.bf16.xpose.msra.mxu0 0
        %3062 = vmatprep.mubr.bf16.mxu0 %v966
        %3063 = vmatmul.mubr.bf16.gmra.mrb[0].mxu0 %v965
        %v3064 = vpop.f32.mrb[0].mxu0
        %v3065 = vadd.f32 %v3024, %v3064
        %v3066 = vpop.f32.mrb[0].mxu0
        %v3067 = vpop.f32.mrb[0].mxu0
        %v3068 = vadd.f32 %v3027, %v3067
        %v3069 = vpop.f32.mrb[0].mxu0
        %3070 = vdwg.mxu0
        %3071 = vmatprep.subr.bf16.mxu0 %v1468
        %3072 = vmatpush1.bf16.xpose.msra.mxu0 %v1467
        %3073 = vmatprep.subr.bf16.mxu0 0
        %3074 = vmatpush1.bf16.xpose.msra.mxu0 0
        %3075 = vmatprep.subr.bf16.mxu0 0
        %3076 = vmatpush1.bf16.xpose.msra.mxu0 0
        %3077 = vmatprep.subr.bf16.mxu0 0
        %3078 = vmatpush1.bf16.xpose.msra.mxu0 0
        %3079 = vmatprep.subr.bf16.mxu0 0
        %3080 = vmatpush1.bf16.xpose.msra.mxu0 0
        %3081 = vmatprep.subr.bf16.mxu0 0
        %3082 = vmatpush1.bf16.xpose.msra.mxu0 0
        %3083 = vmatprep.subr.bf16.mxu0 0
        %3084 = vmatpush1.bf16.xpose.msra.mxu0 0
        %3085 = vmatprep.subr.bf16.mxu0 0
        %3086 = vmatpush1.bf16.xpose.msra.mxu0 0
        %3087 = vmatprep.subr.bf16.mxu0 0
        %3088 = vmatpush1.bf16.xpose.msra.mxu0 0
        %3089 = vmatprep.subr.bf16.mxu0 0
        %3090 = vmatpush1.bf16.xpose.msra.mxu0 0
        %3091 = vmatprep.subr.bf16.mxu0 0
        %3092 = vmatpush1.bf16.xpose.msra.mxu0 0
        %3093 = vmatprep.subr.bf16.mxu0 0
        %3094 = vmatpush1.bf16.xpose.msra.mxu0 0
        %3095 = vmatprep.subr.bf16.mxu0 0
        %3096 = vmatpush1.bf16.xpose.msra.mxu0 0
        %3097 = vmatprep.subr.bf16.mxu0 0
        %3098 = vmatpush1.bf16.xpose.msra.mxu0 0
        %3099 = vmatprep.subr.bf16.mxu0 0
        %3100 = vmatpush1.bf16.xpose.msra.mxu0 0
        %3101 = vmatprep.subr.bf16.mxu0 0
        %3102 = vmatpush1.bf16.xpose.msra.mxu0 0
        %3103 = vmatprep.mubr.bf16.mxu0 %v968
        %3104 = vmatmul.mubr.bf16.gmra.mrb[0].mxu0 %v967
        %v3105 = vpop.f32.mrb[0].mxu0
        %v3106 = vadd.f32 %v3065, %v3105
        %v3107 = vpop.f32.mrb[0].mxu0
        %v3108 = vpop.f32.mrb[0].mxu0
        %v3109 = vadd.f32 %v3068, %v3108
        %v3110 = vpop.f32.mrb[0].mxu0
        %3111 = vdwg.mxu0
        %3112 = vmatprep.subr.bf16.mxu0 %v1470
        %3113 = vmatpush1.bf16.xpose.msra.mxu0 %v1469
        %3114 = vmatprep.subr.bf16.mxu0 0
        %3115 = vmatpush1.bf16.xpose.msra.mxu0 0
        %3116 = vmatprep.subr.bf16.mxu0 0
        %3117 = vmatpush1.bf16.xpose.msra.mxu0 0
        %3118 = vmatprep.subr.bf16.mxu0 0
        %3119 = vmatpush1.bf16.xpose.msra.mxu0 0
        %3120 = vmatprep.subr.bf16.mxu0 0
        %3121 = vmatpush1.bf16.xpose.msra.mxu0 0
        %3122 = vmatprep.subr.bf16.mxu0 0
        %3123 = vmatpush1.bf16.xpose.msra.mxu0 0
        %3124 = vmatprep.subr.bf16.mxu0 0
        %3125 = vmatpush1.bf16.xpose.msra.mxu0 0
        %3126 = vmatprep.subr.bf16.mxu0 0
        %3127 = vmatpush1.bf16.xpose.msra.mxu0 0
        %3128 = vmatprep.subr.bf16.mxu0 0
        %3129 = vmatpush1.bf16.xpose.msra.mxu0 0
        %3130 = vmatprep.subr.bf16.mxu0 0
        %3131 = vmatpush1.bf16.xpose.msra.mxu0 0
        %3132 = vmatprep.subr.bf16.mxu0 0
        %3133 = vmatpush1.bf16.xpose.msra.mxu0 0
        %3134 = vmatprep.subr.bf16.mxu0 0
        %3135 = vmatpush1.bf16.xpose.msra.mxu0 0
        %3136 = vmatprep.subr.bf16.mxu0 0
        %3137 = vmatpush1.bf16.xpose.msra.mxu0 0
        %3138 = vmatprep.subr.bf16.mxu0 0
        %3139 = vmatpush1.bf16.xpose.msra.mxu0 0
        %3140 = vmatprep.subr.bf16.mxu0 0
        %3141 = vmatpush1.bf16.xpose.msra.mxu0 0
        %3142 = vmatprep.subr.bf16.mxu0 0
        %3143 = vmatpush1.bf16.xpose.msra.mxu0 0
        %3144 = vmatprep.mubr.bf16.mxu0 %v970
        %3145 = vmatmul.mubr.bf16.gmra.mrb[0].mxu0 %v969
        %v3146 = vpop.f32.mrb[0].mxu0
        %v3147 = vadd.f32 %v3106, %v3146
        %v3148 = vpop.f32.mrb[0].mxu0
        %v3149 = vpop.f32.mrb[0].mxu0
        %v3150 = vadd.f32 %v3109, %v3149
        %v3151 = vpop.f32.mrb[0].mxu0
        %3152 = vdwg.mxu0
        %3153 = vmatprep.subr.bf16.mxu0 %v1472
        %3154 = vmatpush1.bf16.xpose.msra.mxu0 %v1471
        %3155 = vmatprep.subr.bf16.mxu0 0
        %3156 = vmatpush1.bf16.xpose.msra.mxu0 0
        %3157 = vmatprep.subr.bf16.mxu0 0
        %3158 = vmatpush1.bf16.xpose.msra.mxu0 0
        %3159 = vmatprep.subr.bf16.mxu0 0
        %3160 = vmatpush1.bf16.xpose.msra.mxu0 0
        %3161 = vmatprep.subr.bf16.mxu0 0
        %3162 = vmatpush1.bf16.xpose.msra.mxu0 0
        %3163 = vmatprep.subr.bf16.mxu0 0
        %3164 = vmatpush1.bf16.xpose.msra.mxu0 0
        %3165 = vmatprep.subr.bf16.mxu0 0
        %3166 = vmatpush1.bf16.xpose.msra.mxu0 0
        %3167 = vmatprep.subr.bf16.mxu0 0
        %3168 = vmatpush1.bf16.xpose.msra.mxu0 0
        %3169 = vmatprep.subr.bf16.mxu0 0
        %3170 = vmatpush1.bf16.xpose.msra.mxu0 0
        %3171 = vmatprep.subr.bf16.mxu0 0
        %3172 = vmatpush1.bf16.xpose.msra.mxu0 0
        %3173 = vmatprep.subr.bf16.mxu0 0
        %3174 = vmatpush1.bf16.xpose.msra.mxu0 0
        %3175 = vmatprep.subr.bf16.mxu0 0
        %3176 = vmatpush1.bf16.xpose.msra.mxu0 0
        %3177 = vmatprep.subr.bf16.mxu0 0
        %3178 = vmatpush1.bf16.xpose.msra.mxu0 0
        %3179 = vmatprep.subr.bf16.mxu0 0
        %3180 = vmatpush1.bf16.xpose.msra.mxu0 0
        %3181 = vmatprep.subr.bf16.mxu0 0
        %3182 = vmatpush1.bf16.xpose.msra.mxu0 0
        %3183 = vmatprep.subr.bf16.mxu0 0
        %3184 = vmatpush1.bf16.xpose.msra.mxu0 0
        %3185 = vmatprep.mubr.bf16.mxu0 %v972
        %3186 = vmatmul.mubr.bf16.gmra.mrb[0].mxu0 %v971
        %v3187 = vpop.f32.mrb[0].mxu0
        %v3188 = vadd.f32 %v3147, %v3187
        %v3189 = vpop.f32.mrb[0].mxu0
        %v3190 = vpop.f32.mrb[0].mxu0
        %v3191 = vadd.f32 %v3150, %v3190
        %v3192 = vpop.f32.mrb[0].mxu0
        %3193 = vdwg.mxu0
        %3194 = vmatprep.subr.bf16.mxu0 %v1474
        %3195 = vmatpush1.bf16.xpose.msra.mxu0 %v1473
        %3196 = vmatprep.subr.bf16.mxu0 0
        %3197 = vmatpush1.bf16.xpose.msra.mxu0 0
        %3198 = vmatprep.subr.bf16.mxu0 0
        %3199 = vmatpush1.bf16.xpose.msra.mxu0 0
        %3200 = vmatprep.subr.bf16.mxu0 0
        %3201 = vmatpush1.bf16.xpose.msra.mxu0 0
        %3202 = vmatprep.subr.bf16.mxu0 0
        %3203 = vmatpush1.bf16.xpose.msra.mxu0 0
        %3204 = vmatprep.subr.bf16.mxu0 0
        %3205 = vmatpush1.bf16.xpose.msra.mxu0 0
        %3206 = vmatprep.subr.bf16.mxu0 0
        %3207 = vmatpush1.bf16.xpose.msra.mxu0 0
        %3208 = vmatprep.subr.bf16.mxu0 0
        %3209 = vmatpush1.bf16.xpose.msra.mxu0 0
        %3210 = vmatprep.subr.bf16.mxu0 0
        %3211 = vmatpush1.bf16.xpose.msra.mxu0 0
        %3212 = vmatprep.subr.bf16.mxu0 0
        %3213 = vmatpush1.bf16.xpose.msra.mxu0 0
        %3214 = vmatprep.subr.bf16.mxu0 0
        %3215 = vmatpush1.bf16.xpose.msra.mxu0 0
        %3216 = vmatprep.subr.bf16.mxu0 0
        %3217 = vmatpush1.bf16.xpose.msra.mxu0 0
        %3218 = vmatprep.subr.bf16.mxu0 0
        %3219 = vmatpush1.bf16.xpose.msra.mxu0 0
        %3220 = vmatprep.subr.bf16.mxu0 0
        %3221 = vmatpush1.bf16.xpose.msra.mxu0 0
        %3222 = vmatprep.subr.bf16.mxu0 0
        %3223 = vmatpush1.bf16.xpose.msra.mxu0 0
        %3224 = vmatprep.subr.bf16.mxu0 0
        %3225 = vmatpush1.bf16.xpose.msra.mxu0 0
        %3226 = vmatprep.mubr.bf16.mxu0 %v974
        %3227 = vmatmul.mubr.bf16.gmra.mrb[0].mxu0 %v973
        %v3228 = vpop.f32.mrb[0].mxu0
        %v3229 = vadd.f32 %v3188, %v3228
        %v3230 = vpop.f32.mrb[0].mxu0
        %v3231 = vpop.f32.mrb[0].mxu0
        %v3232 = vadd.f32 %v3191, %v3231
        %v3233 = vpop.f32.mrb[0].mxu0
        %3234 = vdwg.mxu0
        %3235 = vmatprep.subr.bf16.mxu0 %v1476
        %3236 = vmatpush1.bf16.xpose.msra.mxu0 %v1475
        %3237 = vmatprep.subr.bf16.mxu0 0
        %3238 = vmatpush1.bf16.xpose.msra.mxu0 0
        %3239 = vmatprep.subr.bf16.mxu0 0
        %3240 = vmatpush1.bf16.xpose.msra.mxu0 0
        %3241 = vmatprep.subr.bf16.mxu0 0
        %3242 = vmatpush1.bf16.xpose.msra.mxu0 0
        %3243 = vmatprep.subr.bf16.mxu0 0
        %3244 = vmatpush1.bf16.xpose.msra.mxu0 0
        %3245 = vmatprep.subr.bf16.mxu0 0
        %3246 = vmatpush1.bf16.xpose.msra.mxu0 0
        %3247 = vmatprep.subr.bf16.mxu0 0
        %3248 = vmatpush1.bf16.xpose.msra.mxu0 0
        %3249 = vmatprep.subr.bf16.mxu0 0
        %3250 = vmatpush1.bf16.xpose.msra.mxu0 0
        %3251 = vmatprep.subr.bf16.mxu0 0
        %3252 = vmatpush1.bf16.xpose.msra.mxu0 0
        %3253 = vmatprep.subr.bf16.mxu0 0
        %3254 = vmatpush1.bf16.xpose.msra.mxu0 0
        %3255 = vmatprep.subr.bf16.mxu0 0
        %3256 = vmatpush1.bf16.xpose.msra.mxu0 0
        %3257 = vmatprep.subr.bf16.mxu0 0
        %3258 = vmatpush1.bf16.xpose.msra.mxu0 0
        %3259 = vmatprep.subr.bf16.mxu0 0
        %3260 = vmatpush1.bf16.xpose.msra.mxu0 0
        %3261 = vmatprep.subr.bf16.mxu0 0
        %3262 = vmatpush1.bf16.xpose.msra.mxu0 0
        %3263 = vmatprep.subr.bf16.mxu0 0
        %3264 = vmatpush1.bf16.xpose.msra.mxu0 0
        %3265 = vmatprep.subr.bf16.mxu0 0
        %3266 = vmatpush1.bf16.xpose.msra.mxu0 0
        %3267 = vmatprep.mubr.bf16.mxu0 %v976
        %3268 = vmatmul.mubr.bf16.gmra.mrb[0].mxu0 %v975
        %v3269 = vpop.f32.mrb[0].mxu0
        %v3270 = vadd.f32 %v3229, %v3269
        %v3271 = vpop.f32.mrb[0].mxu0
        %v3272 = vpop.f32.mrb[0].mxu0
        %v3273 = vadd.f32 %v3232, %v3272
        %v3274 = vpop.f32.mrb[0].mxu0
        %3275 = vdwg.mxu0
        %3276 = vmatprep.subr.bf16.mxu0 %v1478
        %3277 = vmatpush1.bf16.xpose.msra.mxu0 %v1477
        %3278 = vmatprep.subr.bf16.mxu0 0
        %3279 = vmatpush1.bf16.xpose.msra.mxu0 0
        %3280 = vmatprep.subr.bf16.mxu0 0
        %3281 = vmatpush1.bf16.xpose.msra.mxu0 0
        %3282 = vmatprep.subr.bf16.mxu0 0
        %3283 = vmatpush1.bf16.xpose.msra.mxu0 0
        %3284 = vmatprep.subr.bf16.mxu0 0
        %3285 = vmatpush1.bf16.xpose.msra.mxu0 0
        %3286 = vmatprep.subr.bf16.mxu0 0
        %3287 = vmatpush1.bf16.xpose.msra.mxu0 0
        %3288 = vmatprep.subr.bf16.mxu0 0
        %3289 = vmatpush1.bf16.xpose.msra.mxu0 0
        %3290 = vmatprep.subr.bf16.mxu0 0
        %3291 = vmatpush1.bf16.xpose.msra.mxu0 0
        %3292 = vmatprep.subr.bf16.mxu0 0
        %3293 = vmatpush1.bf16.xpose.msra.mxu0 0
        %3294 = vmatprep.subr.bf16.mxu0 0
        %3295 = vmatpush1.bf16.xpose.msra.mxu0 0
        %3296 = vmatprep.subr.bf16.mxu0 0
        %3297 = vmatpush1.bf16.xpose.msra.mxu0 0
        %3298 = vmatprep.subr.bf16.mxu0 0
        %3299 = vmatpush1.bf16.xpose.msra.mxu0 0
        %3300 = vmatprep.subr.bf16.mxu0 0
        %3301 = vmatpush1.bf16.xpose.msra.mxu0 0
        %3302 = vmatprep.subr.bf16.mxu0 0
        %3303 = vmatpush1.bf16.xpose.msra.mxu0 0
        %3304 = vmatprep.subr.bf16.mxu0 0
        %3305 = vmatpush1.bf16.xpose.msra.mxu0 0
        %3306 = vmatprep.subr.bf16.mxu0 0
        %3307 = vmatpush1.bf16.xpose.msra.mxu0 0
        %3308 = vmatprep.mubr.bf16.mxu0 %v978
        %3309 = vmatmul.mubr.bf16.gmra.mrb[0].mxu0 %v977
        %v3310 = vpop.f32.mrb[0].mxu0
        %v3311 = vadd.f32 %v3270, %v3310
        %v3312 = vpop.f32.mrb[0].mxu0
        %v3313 = vpop.f32.mrb[0].mxu0
        %v3314 = vadd.f32 %v3273, %v3313
        %v3315 = vpop.f32.mrb[0].mxu0
        %3316 = vdwg.mxu0
        %3317 = vmatprep.subr.bf16.mxu0 %v1480
        %3318 = vmatpush1.bf16.xpose.msra.mxu0 %v1479
        %3319 = vmatprep.subr.bf16.mxu0 0
        %3320 = vmatpush1.bf16.xpose.msra.mxu0 0
        %3321 = vmatprep.subr.bf16.mxu0 0
        %3322 = vmatpush1.bf16.xpose.msra.mxu0 0
        %3323 = vmatprep.subr.bf16.mxu0 0
        %3324 = vmatpush1.bf16.xpose.msra.mxu0 0
        %3325 = vmatprep.subr.bf16.mxu0 0
        %3326 = vmatpush1.bf16.xpose.msra.mxu0 0
        %3327 = vmatprep.subr.bf16.mxu0 0
        %3328 = vmatpush1.bf16.xpose.msra.mxu0 0
        %3329 = vmatprep.subr.bf16.mxu0 0
        %3330 = vmatpush1.bf16.xpose.msra.mxu0 0
        %3331 = vmatprep.subr.bf16.mxu0 0
        %3332 = vmatpush1.bf16.xpose.msra.mxu0 0
        %3333 = vmatprep.subr.bf16.mxu0 0
        %3334 = vmatpush1.bf16.xpose.msra.mxu0 0
        %3335 = vmatprep.subr.bf16.mxu0 0
        %3336 = vmatpush1.bf16.xpose.msra.mxu0 0
        %3337 = vmatprep.subr.bf16.mxu0 0
        %3338 = vmatpush1.bf16.xpose.msra.mxu0 0
        %3339 = vmatprep.subr.bf16.mxu0 0
        %3340 = vmatpush1.bf16.xpose.msra.mxu0 0
        %3341 = vmatprep.subr.bf16.mxu0 0
        %3342 = vmatpush1.bf16.xpose.msra.mxu0 0
        %3343 = vmatprep.subr.bf16.mxu0 0
        %3344 = vmatpush1.bf16.xpose.msra.mxu0 0
        %3345 = vmatprep.subr.bf16.mxu0 0
        %3346 = vmatpush1.bf16.xpose.msra.mxu0 0
        %3347 = vmatprep.subr.bf16.mxu0 0
        %3348 = vmatpush1.bf16.xpose.msra.mxu0 0
        %3349 = vmatprep.mubr.bf16.mxu0 %v980
        %3350 = vmatmul.mubr.bf16.gmra.mrb[0].mxu0 %v979
        %v3351 = vpop.f32.mrb[0].mxu0
        %v3352 = vadd.f32 %v3311, %v3351
        %v3353 = vpop.f32.mrb[0].mxu0
        %v3354 = vpop.f32.mrb[0].mxu0
        %v3355 = vadd.f32 %v3314, %v3354
        %v3356 = vpop.f32.mrb[0].mxu0
        %3357 = vdwg.mxu0
        %3358 = vmatprep.subr.bf16.mxu0 %v1482
        %3359 = vmatpush1.bf16.xpose.msra.mxu0 %v1481
        %3360 = vmatprep.subr.bf16.mxu0 0
        %3361 = vmatpush1.bf16.xpose.msra.mxu0 0
        %3362 = vmatprep.subr.bf16.mxu0 0
        %3363 = vmatpush1.bf16.xpose.msra.mxu0 0
        %3364 = vmatprep.subr.bf16.mxu0 0
        %3365 = vmatpush1.bf16.xpose.msra.mxu0 0
        %3366 = vmatprep.subr.bf16.mxu0 0
        %3367 = vmatpush1.bf16.xpose.msra.mxu0 0
        %3368 = vmatprep.subr.bf16.mxu0 0
        %3369 = vmatpush1.bf16.xpose.msra.mxu0 0
        %3370 = vmatprep.subr.bf16.mxu0 0
        %3371 = vmatpush1.bf16.xpose.msra.mxu0 0
        %3372 = vmatprep.subr.bf16.mxu0 0
        %3373 = vmatpush1.bf16.xpose.msra.mxu0 0
        %3374 = vmatprep.subr.bf16.mxu0 0
        %3375 = vmatpush1.bf16.xpose.msra.mxu0 0
        %3376 = vmatprep.subr.bf16.mxu0 0
        %3377 = vmatpush1.bf16.xpose.msra.mxu0 0
        %3378 = vmatprep.subr.bf16.mxu0 0
        %3379 = vmatpush1.bf16.xpose.msra.mxu0 0
        %3380 = vmatprep.subr.bf16.mxu0 0
        %3381 = vmatpush1.bf16.xpose.msra.mxu0 0
        %3382 = vmatprep.subr.bf16.mxu0 0
        %3383 = vmatpush1.bf16.xpose.msra.mxu0 0
        %3384 = vmatprep.subr.bf16.mxu0 0
        %3385 = vmatpush1.bf16.xpose.msra.mxu0 0
        %3386 = vmatprep.subr.bf16.mxu0 0
        %3387 = vmatpush1.bf16.xpose.msra.mxu0 0
        %3388 = vmatprep.subr.bf16.mxu0 0
        %3389 = vmatpush1.bf16.xpose.msra.mxu0 0
        %3390 = vmatprep.mubr.bf16.mxu0 %v982
        %3391 = vmatmul.mubr.bf16.gmra.mrb[0].mxu0 %v981
        %v3392 = vpop.f32.mrb[0].mxu0
        %v3393 = vadd.f32 %v3352, %v3392
        %v3394 = vpop.f32.mrb[0].mxu0
        %v3395 = vpop.f32.mrb[0].mxu0
        %v3396 = vadd.f32 %v3355, %v3395
        %v3397 = vpop.f32.mrb[0].mxu0
        %3398 = vdwg.mxu0
        %3399 = vmatprep.subr.bf16.mxu0 %v1484
        %3400 = vmatpush1.bf16.xpose.msra.mxu0 %v1483
        %3401 = vmatprep.subr.bf16.mxu0 0
        %3402 = vmatpush1.bf16.xpose.msra.mxu0 0
        %3403 = vmatprep.subr.bf16.mxu0 0
        %3404 = vmatpush1.bf16.xpose.msra.mxu0 0
        %3405 = vmatprep.subr.bf16.mxu0 0
        %3406 = vmatpush1.bf16.xpose.msra.mxu0 0
        %3407 = vmatprep.subr.bf16.mxu0 0
        %3408 = vmatpush1.bf16.xpose.msra.mxu0 0
        %3409 = vmatprep.subr.bf16.mxu0 0
        %3410 = vmatpush1.bf16.xpose.msra.mxu0 0
        %3411 = vmatprep.subr.bf16.mxu0 0
        %3412 = vmatpush1.bf16.xpose.msra.mxu0 0
        %3413 = vmatprep.subr.bf16.mxu0 0
        %3414 = vmatpush1.bf16.xpose.msra.mxu0 0
        %3415 = vmatprep.subr.bf16.mxu0 0
        %3416 = vmatpush1.bf16.xpose.msra.mxu0 0
        %3417 = vmatprep.subr.bf16.mxu0 0
        %3418 = vmatpush1.bf16.xpose.msra.mxu0 0
        %3419 = vmatprep.subr.bf16.mxu0 0
        %3420 = vmatpush1.bf16.xpose.msra.mxu0 0
        %3421 = vmatprep.subr.bf16.mxu0 0
        %3422 = vmatpush1.bf16.xpose.msra.mxu0 0
        %3423 = vmatprep.subr.bf16.mxu0 0
        %3424 = vmatpush1.bf16.xpose.msra.mxu0 0
        %3425 = vmatprep.subr.bf16.mxu0 0
        %3426 = vmatpush1.bf16.xpose.msra.mxu0 0
        %3427 = vmatprep.subr.bf16.mxu0 0
        %3428 = vmatpush1.bf16.xpose.msra.mxu0 0
        %3429 = vmatprep.subr.bf16.mxu0 0
        %3430 = vmatpush1.bf16.xpose.msra.mxu0 0
        %3431 = vmatprep.mubr.bf16.mxu0 %v984
        %3432 = vmatmul.mubr.bf16.gmra.mrb[0].mxu0 %v983
        %v3433 = vpop.f32.mrb[0].mxu0
        %v3434 = vadd.f32 %v3393, %v3433
        %v3435 = vpop.f32.mrb[0].mxu0
        %v3436 = vpop.f32.mrb[0].mxu0
        %v3437 = vadd.f32 %v3396, %v3436
        %v3438 = vpop.f32.mrb[0].mxu0
        %3439 = vdwg.mxu0
        %3440 = vmatprep.subr.bf16.mxu0 %v1486
        %3441 = vmatpush1.bf16.xpose.msra.mxu0 %v1485
        %3442 = vmatprep.subr.bf16.mxu0 0
        %3443 = vmatpush1.bf16.xpose.msra.mxu0 0
        %3444 = vmatprep.subr.bf16.mxu0 0
        %3445 = vmatpush1.bf16.xpose.msra.mxu0 0
        %3446 = vmatprep.subr.bf16.mxu0 0
        %3447 = vmatpush1.bf16.xpose.msra.mxu0 0
        %3448 = vmatprep.subr.bf16.mxu0 0
        %3449 = vmatpush1.bf16.xpose.msra.mxu0 0
        %3450 = vmatprep.subr.bf16.mxu0 0
        %3451 = vmatpush1.bf16.xpose.msra.mxu0 0
        %3452 = vmatprep.subr.bf16.mxu0 0
        %3453 = vmatpush1.bf16.xpose.msra.mxu0 0
        %3454 = vmatprep.subr.bf16.mxu0 0
        %3455 = vmatpush1.bf16.xpose.msra.mxu0 0
        %3456 = vmatprep.subr.bf16.mxu0 0
        %3457 = vmatpush1.bf16.xpose.msra.mxu0 0
        %3458 = vmatprep.subr.bf16.mxu0 0
        %3459 = vmatpush1.bf16.xpose.msra.mxu0 0
        %3460 = vmatprep.subr.bf16.mxu0 0
        %3461 = vmatpush1.bf16.xpose.msra.mxu0 0
        %3462 = vmatprep.subr.bf16.mxu0 0
        %3463 = vmatpush1.bf16.xpose.msra.mxu0 0
        %3464 = vmatprep.subr.bf16.mxu0 0
        %3465 = vmatpush1.bf16.xpose.msra.mxu0 0
        %3466 = vmatprep.subr.bf16.mxu0 0
        %3467 = vmatpush1.bf16.xpose.msra.mxu0 0
        %3468 = vmatprep.subr.bf16.mxu0 0
        %3469 = vmatpush1.bf16.xpose.msra.mxu0 0
        %3470 = vmatprep.subr.bf16.mxu0 0
        %3471 = vmatpush1.bf16.xpose.msra.mxu0 0
        %3472 = vmatprep.mubr.bf16.mxu0 %v986
        %3473 = vmatmul.mubr.bf16.gmra.mrb[0].mxu0 %v985
        %v3474 = vpop.f32.mrb[0].mxu0
        %v3475 = vadd.f32 %v3434, %v3474
        %v3476 = vpop.f32.mrb[0].mxu0
        %v3477 = vpop.f32.mrb[0].mxu0
        %v3478 = vadd.f32 %v3437, %v3477
        %v3479 = vpop.f32.mrb[0].mxu0
        %3480 = vdwg.mxu0
        %3481 = vmatprep.subr.bf16.mxu0 %v1488
        %3482 = vmatpush1.bf16.xpose.msra.mxu0 %v1487
        %3483 = vmatprep.subr.bf16.mxu0 0
        %3484 = vmatpush1.bf16.xpose.msra.mxu0 0
        %3485 = vmatprep.subr.bf16.mxu0 0
        %3486 = vmatpush1.bf16.xpose.msra.mxu0 0
        %3487 = vmatprep.subr.bf16.mxu0 0
        %3488 = vmatpush1.bf16.xpose.msra.mxu0 0
        %3489 = vmatprep.subr.bf16.mxu0 0
        %3490 = vmatpush1.bf16.xpose.msra.mxu0 0
        %3491 = vmatprep.subr.bf16.mxu0 0
        %3492 = vmatpush1.bf16.xpose.msra.mxu0 0
        %3493 = vmatprep.subr.bf16.mxu0 0
        %3494 = vmatpush1.bf16.xpose.msra.mxu0 0
        %3495 = vmatprep.subr.bf16.mxu0 0
        %3496 = vmatpush1.bf16.xpose.msra.mxu0 0
        %3497 = vmatprep.subr.bf16.mxu0 0
        %3498 = vmatpush1.bf16.xpose.msra.mxu0 0
        %3499 = vmatprep.subr.bf16.mxu0 0
        %3500 = vmatpush1.bf16.xpose.msra.mxu0 0
        %3501 = vmatprep.subr.bf16.mxu0 0
        %3502 = vmatpush1.bf16.xpose.msra.mxu0 0
        %3503 = vmatprep.subr.bf16.mxu0 0
        %3504 = vmatpush1.bf16.xpose.msra.mxu0 0
        %3505 = vmatprep.subr.bf16.mxu0 0
        %3506 = vmatpush1.bf16.xpose.msra.mxu0 0
        %3507 = vmatprep.subr.bf16.mxu0 0
        %3508 = vmatpush1.bf16.xpose.msra.mxu0 0
        %3509 = vmatprep.subr.bf16.mxu0 0
        %3510 = vmatpush1.bf16.xpose.msra.mxu0 0
        %3511 = vmatprep.subr.bf16.mxu0 0
        %3512 = vmatpush1.bf16.xpose.msra.mxu0 0
        %3513 = vmatprep.mubr.bf16.mxu0 %v988
        %3514 = vmatmul.mubr.bf16.gmra.mrb[0].mxu0 %v987
        %v3515 = vpop.f32.mrb[0].mxu0
        %v3516 = vadd.f32 %v3475, %v3515
        %v3517 = vpop.f32.mrb[0].mxu0
        %v3518 = vpop.f32.mrb[0].mxu0
        %v3519 = vadd.f32 %v3478, %v3518
        %v3520 = vpop.f32.mrb[0].mxu0
        %3521 = vdwg.mxu0
        %3522 = vmatprep.subr.bf16.mxu0 %v1490
        %3523 = vmatpush1.bf16.xpose.msra.mxu0 %v1489
        %3524 = vmatprep.subr.bf16.mxu0 0
        %3525 = vmatpush1.bf16.xpose.msra.mxu0 0
        %3526 = vmatprep.subr.bf16.mxu0 0
        %3527 = vmatpush1.bf16.xpose.msra.mxu0 0
        %3528 = vmatprep.subr.bf16.mxu0 0
        %3529 = vmatpush1.bf16.xpose.msra.mxu0 0
        %3530 = vmatprep.subr.bf16.mxu0 0
        %3531 = vmatpush1.bf16.xpose.msra.mxu0 0
        %3532 = vmatprep.subr.bf16.mxu0 0
        %3533 = vmatpush1.bf16.xpose.msra.mxu0 0
        %3534 = vmatprep.subr.bf16.mxu0 0
        %3535 = vmatpush1.bf16.xpose.msra.mxu0 0
        %3536 = vmatprep.subr.bf16.mxu0 0
        %3537 = vmatpush1.bf16.xpose.msra.mxu0 0
        %3538 = vmatprep.subr.bf16.mxu0 0
        %3539 = vmatpush1.bf16.xpose.msra.mxu0 0
        %3540 = vmatprep.subr.bf16.mxu0 0
        %3541 = vmatpush1.bf16.xpose.msra.mxu0 0
        %3542 = vmatprep.subr.bf16.mxu0 0
        %3543 = vmatpush1.bf16.xpose.msra.mxu0 0
        %3544 = vmatprep.subr.bf16.mxu0 0
        %3545 = vmatpush1.bf16.xpose.msra.mxu0 0
        %3546 = vmatprep.subr.bf16.mxu0 0
        %3547 = vmatpush1.bf16.xpose.msra.mxu0 0
        %3548 = vmatprep.subr.bf16.mxu0 0
        %3549 = vmatpush1.bf16.xpose.msra.mxu0 0
        %3550 = vmatprep.subr.bf16.mxu0 0
        %3551 = vmatpush1.bf16.xpose.msra.mxu0 0
        %3552 = vmatprep.subr.bf16.mxu0 0
        %3553 = vmatpush1.bf16.xpose.msra.mxu0 0
        %3554 = vmatprep.mubr.bf16.mxu0 %v990
        %3555 = vmatmul.mubr.bf16.gmra.mrb[0].mxu0 %v989
        %v3556 = vpop.f32.mrb[0].mxu0
        %v3557 = vadd.f32 %v3516, %v3556
        %v3558 = vpop.f32.mrb[0].mxu0
        %v3559 = vpop.f32.mrb[0].mxu0
        %v3560 = vadd.f32 %v3519, %v3559
        %v3561 = vpop.f32.mrb[0].mxu0
        %3562 = vdwg.mxu0
        %3563 = vmatprep.subr.bf16.mxu0 %v1492
        %3564 = vmatpush1.bf16.xpose.msra.mxu0 %v1491
        %3565 = vmatprep.subr.bf16.mxu0 0
        %3566 = vmatpush1.bf16.xpose.msra.mxu0 0
        %3567 = vmatprep.subr.bf16.mxu0 0
        %3568 = vmatpush1.bf16.xpose.msra.mxu0 0
        %3569 = vmatprep.subr.bf16.mxu0 0
        %3570 = vmatpush1.bf16.xpose.msra.mxu0 0
        %3571 = vmatprep.subr.bf16.mxu0 0
        %3572 = vmatpush1.bf16.xpose.msra.mxu0 0
        %3573 = vmatprep.subr.bf16.mxu0 0
        %3574 = vmatpush1.bf16.xpose.msra.mxu0 0
        %3575 = vmatprep.subr.bf16.mxu0 0
        %3576 = vmatpush1.bf16.xpose.msra.mxu0 0
        %3577 = vmatprep.subr.bf16.mxu0 0
        %3578 = vmatpush1.bf16.xpose.msra.mxu0 0
        %3579 = vmatprep.subr.bf16.mxu0 0
        %3580 = vmatpush1.bf16.xpose.msra.mxu0 0
        %3581 = vmatprep.subr.bf16.mxu0 0
        %3582 = vmatpush1.bf16.xpose.msra.mxu0 0
        %3583 = vmatprep.subr.bf16.mxu0 0
        %3584 = vmatpush1.bf16.xpose.msra.mxu0 0
        %3585 = vmatprep.subr.bf16.mxu0 0
        %3586 = vmatpush1.bf16.xpose.msra.mxu0 0
        %3587 = vmatprep.subr.bf16.mxu0 0
        %3588 = vmatpush1.bf16.xpose.msra.mxu0 0
        %3589 = vmatprep.subr.bf16.mxu0 0
        %3590 = vmatpush1.bf16.xpose.msra.mxu0 0
        %3591 = vmatprep.subr.bf16.mxu0 0
        %3592 = vmatpush1.bf16.xpose.msra.mxu0 0
        %3593 = vmatprep.subr.bf16.mxu0 0
        %3594 = vmatpush1.bf16.xpose.msra.mxu0 0
        %3595 = vmatprep.mubr.bf16.mxu0 %v992
        %3596 = vmatmul.mubr.bf16.gmra.mrb[0].mxu0 %v991
        %v3597 = vpop.f32.mrb[0].mxu0
        %v3598 = vadd.f32 %v3557, %v3597
        %v3599 = vpop.f32.mrb[0].mxu0
        %v3600 = vpop.f32.mrb[0].mxu0
        %v3601 = vadd.f32 %v3560, %v3600
        %v3602 = vpop.f32.mrb[0].mxu0
        %3603 = vdwg.mxu0
        %3604 = vmatprep.subr.bf16.mxu0 %v1494
        %3605 = vmatpush1.bf16.xpose.msra.mxu0 %v1493
        %3606 = vmatprep.subr.bf16.mxu0 0
        %3607 = vmatpush1.bf16.xpose.msra.mxu0 0
        %3608 = vmatprep.subr.bf16.mxu0 0
        %3609 = vmatpush1.bf16.xpose.msra.mxu0 0
        %3610 = vmatprep.subr.bf16.mxu0 0
        %3611 = vmatpush1.bf16.xpose.msra.mxu0 0
        %3612 = vmatprep.subr.bf16.mxu0 0
        %3613 = vmatpush1.bf16.xpose.msra.mxu0 0
        %3614 = vmatprep.subr.bf16.mxu0 0
        %3615 = vmatpush1.bf16.xpose.msra.mxu0 0
        %3616 = vmatprep.subr.bf16.mxu0 0
        %3617 = vmatpush1.bf16.xpose.msra.mxu0 0
        %3618 = vmatprep.subr.bf16.mxu0 0
        %3619 = vmatpush1.bf16.xpose.msra.mxu0 0
        %3620 = vmatprep.subr.bf16.mxu0 0
        %3621 = vmatpush1.bf16.xpose.msra.mxu0 0
        %3622 = vmatprep.subr.bf16.mxu0 0
        %3623 = vmatpush1.bf16.xpose.msra.mxu0 0
        %3624 = vmatprep.subr.bf16.mxu0 0
        %3625 = vmatpush1.bf16.xpose.msra.mxu0 0
        %3626 = vmatprep.subr.bf16.mxu0 0
        %3627 = vmatpush1.bf16.xpose.msra.mxu0 0
        %3628 = vmatprep.subr.bf16.mxu0 0
        %3629 = vmatpush1.bf16.xpose.msra.mxu0 0
        %3630 = vmatprep.subr.bf16.mxu0 0
        %3631 = vmatpush1.bf16.xpose.msra.mxu0 0
        %3632 = vmatprep.subr.bf16.mxu0 0
        %3633 = vmatpush1.bf16.xpose.msra.mxu0 0
        %3634 = vmatprep.subr.bf16.mxu0 0
        %3635 = vmatpush1.bf16.xpose.msra.mxu0 0
        %3636 = vmatprep.mubr.bf16.mxu0 %v994
        %3637 = vmatmul.mubr.bf16.gmra.mrb[0].mxu0 %v993
        %v3638 = vpop.f32.mrb[0].mxu0
        %v3639 = vadd.f32 %v3598, %v3638
        %v3640 = vpop.f32.mrb[0].mxu0
        %v3641 = vpop.f32.mrb[0].mxu0
        %v3642 = vadd.f32 %v3601, %v3641
        %v3643 = vpop.f32.mrb[0].mxu0
        %3644 = vdwg.mxu0
        %v3645 = vadd.f32 %v593, %v3639
        %v3646 = vadd.f32 %v594, %v3642
        %vm3647 = vcmask 130048
        %3648 = vst.msk [vmem:[%s3] sm:$0xff] %vm3647, %v3645
        %vm3649 = vcmask 128000
        %3650 = vst.msk [vmem:[%s3 + $0x8] sm:$0x3f] %vm3649, %v3646
        %s3651 = sadd.s32 %s488, 1280
        %s3652 = sshra.s32 %s3651, 7
        %s3653 = sand.u32 %s3651, 127
        %s3654 = smul.addr %s3652, 4
        %s3655 = scalar_lea.vmem %s0, %s3654
        %v3656 = vld [vmem:[%s3655] sm:$0xff]
        %v3657 = vld [vmem:[%s3655 + $0x8] sm:$0xff]
        %v3658 = vld [vmem:[%s3655 + $0x10] sm:$0xff]
        %v3659 = vld [vmem:[%s3655 + $0x18] sm:$0xff]
        %v3660 = vld [vmem:[%s3655 + $0x20] sm:$0xff]
        %v3661 = vld [vmem:[%s3655 + $0x28] sm:$0xff]
        %v3662 = vld [vmem:[%s3655 + $0x30] sm:$0xff]
        %v3663 = vld [vmem:[%s3655 + $0x38] sm:$0xff]
        %v3664 = vld [vmem:[%s3655 + $0x40] sm:$0xff]
        %v3665 = vld [vmem:[%s3655 + $0x48] sm:$0xff]
        %v3666 = vld [vmem:[%s3655 + $0x50] sm:$0xff]
        %v3667 = vld [vmem:[%s3655 + $0x58] sm:$0xff]
        %v3668 = vld [vmem:[%s3655 + $0x60] sm:$0xff]
        %v3669 = vld [vmem:[%s3655 + $0x68] sm:$0xff]
        %v3670 = vld [vmem:[%s3655 + $0x70] sm:$0xff]
        %v3671 = vld [vmem:[%s3655 + $0x78] sm:$0xff]
        %v3672 = vld [vmem:[%s3655 + $0x80] sm:$0xff]
        %v3673 = vld [vmem:[%s3655 + $0x88] sm:$0xff]
        %v3674 = vld [vmem:[%s3655 + $0x90] sm:$0xff]
        %v3675 = vld [vmem:[%s3655 + $0x98] sm:$0xff]
        %v3676 = vld [vmem:[%s3655 + $0xa0] sm:$0xff]
        %v3677 = vld [vmem:[%s3655 + $0xa8] sm:$0xff]
        %v3678 = vld [vmem:[%s3655 + $0xb0] sm:$0xff]
        %v3679 = vld [vmem:[%s3655 + $0xb8] sm:$0xff]
        %v3680 = vld [vmem:[%s3655 + $0xc0] sm:$0xff]
        %v3681 = vld [vmem:[%s3655 + $0xc8] sm:$0xff]
        %v3682 = vld [vmem:[%s3655 + $0xd0] sm:$0xff]
        %v3683 = vld [vmem:[%s3655 + $0xd8] sm:$0xff]
        %v3684 = vld [vmem:[%s3655 + $0xe0] sm:$0xff]
        %v3685 = vld [vmem:[%s3655 + $0xe8] sm:$0xff]
        %v3686 = vld [vmem:[%s3655 + $0xf0] sm:$0xff]
        %v3687 = vld [vmem:[%s3655 + $0xf8] sm:$0xff]
        %v3688 = vld [vmem:[%s3655 + $0x100] sm:$0xff]
        %v3689 = vld [vmem:[%s3655 + $0x108] sm:$0xff]
        %v3690 = vld [vmem:[%s3655 + $0x110] sm:$0xff]
        %v3691 = vld [vmem:[%s3655 + $0x118] sm:$0xff]
        %v3692 = vld [vmem:[%s3655 + $0x120] sm:$0xff]
        %v3693 = vld [vmem:[%s3655 + $0x128] sm:$0xff]
        %v3694 = vld [vmem:[%s3655 + $0x130] sm:$0xff]
        %v3695 = vld [vmem:[%s3655 + $0x138] sm:$0xff]
        %v3696 = vld [vmem:[%s3655 + $0x140] sm:$0xff]
        %v3697 = vld [vmem:[%s3655 + $0x148] sm:$0xff]
        %v3698 = vld [vmem:[%s3655 + $0x150] sm:$0xff]
        %v3699 = vld [vmem:[%s3655 + $0x158] sm:$0xff]
        %v3700 = vld [vmem:[%s3655 + $0x160] sm:$0xff]
        %v3701 = vld [vmem:[%s3655 + $0x168] sm:$0xff]
        %v3702 = vld [vmem:[%s3655 + $0x170] sm:$0xff]
        %v3703 = vld [vmem:[%s3655 + $0x178] sm:$0xff]
        %v3704 = vld [vmem:[%s3655 + $0x180] sm:$0xff]
        %v3705 = vld [vmem:[%s3655 + $0x188] sm:$0xff]
        %v3706 = vld [vmem:[%s3655 + $0x500] sm:$0x77]
        %v3707 = vld [vmem:[%s3655 + $0x508] sm:$0x77]
        %v3708 = vld [vmem:[%s3655 + $0x510] sm:$0x77]
        %v3709 = vld [vmem:[%s3655 + $0x518] sm:$0x77]
        %v3710 = vld [vmem:[%s3655 + $0x520] sm:$0x77]
        %v3711 = vld [vmem:[%s3655 + $0x528] sm:$0x77]
        %v3712 = vld [vmem:[%s3655 + $0x530] sm:$0x77]
        %v3713 = vld [vmem:[%s3655 + $0x538] sm:$0x77]
        %v3714 = vld [vmem:[%s3655 + $0x540] sm:$0x77]
        %v3715 = vld [vmem:[%s3655 + $0x548] sm:$0x77]
        %v3716 = vld [vmem:[%s3655 + $0x550] sm:$0x77]
        %v3717 = vld [vmem:[%s3655 + $0x558] sm:$0x77]
        %v3718 = vld [vmem:[%s3655 + $0x560] sm:$0x77]
        %v3719 = vld [vmem:[%s3655 + $0x568] sm:$0x77]
        %v3720 = vld [vmem:[%s3655 + $0x570] sm:$0x77]
        %v3721 = vld [vmem:[%s3655 + $0x578] sm:$0x77]
        %v3722 = vld [vmem:[%s3655 + $0x580] sm:$0x77]
        %v3723 = vld [vmem:[%s3655 + $0x588] sm:$0x77]
        %v3724 = vld [vmem:[%s3655 + $0x590] sm:$0x77]
        %v3725 = vld [vmem:[%s3655 + $0x598] sm:$0x77]
        %v3726 = vld [vmem:[%s3655 + $0x5a0] sm:$0x77]
        %v3727 = vld [vmem:[%s3655 + $0x5a8] sm:$0x77]
        %v3728 = vld [vmem:[%s3655 + $0x5b0] sm:$0x77]
        %v3729 = vld [vmem:[%s3655 + $0x5b8] sm:$0x77]
        %v3730 = vld [vmem:[%s3655 + $0x5c0] sm:$0x77]
        %v3731 = vld [vmem:[%s3655 + $0x5c8] sm:$0x77]
        %v3732 = vld [vmem:[%s3655 + $0x5d0] sm:$0x77]
        %v3733 = vld [vmem:[%s3655 + $0x5d8] sm:$0x77]
        %v3734 = vld [vmem:[%s3655 + $0x5e0] sm:$0x77]
        %v3735 = vld [vmem:[%s3655 + $0x5e8] sm:$0x77]
        %v3736 = vld [vmem:[%s3655 + $0x5f0] sm:$0x77]
        %v3737 = vld [vmem:[%s3655 + $0x5f8] sm:$0x77]
        %v3738 = vld [vmem:[%s3655 + $0x600] sm:$0x77]
        %v3739 = vld [vmem:[%s3655 + $0x608] sm:$0x77]
        %v3740 = vld [vmem:[%s3655 + $0x610] sm:$0x77]
        %v3741 = vld [vmem:[%s3655 + $0x618] sm:$0x77]
        %v3742 = vld [vmem:[%s3655 + $0x620] sm:$0x77]
        %v3743 = vld [vmem:[%s3655 + $0x628] sm:$0x77]
        %v3744 = vld [vmem:[%s3655 + $0x630] sm:$0x77]
        %v3745 = vld [vmem:[%s3655 + $0x638] sm:$0x77]
        %v3746 = vld [vmem:[%s3655 + $0x640] sm:$0x77]
        %v3747 = vld [vmem:[%s3655 + $0x648] sm:$0x77]
        %v3748 = vld [vmem:[%s3655 + $0x650] sm:$0x77]
        %v3749 = vld [vmem:[%s3655 + $0x658] sm:$0x77]
        %v3750 = vld [vmem:[%s3655 + $0x660] sm:$0x77]
        %v3751 = vld [vmem:[%s3655 + $0x668] sm:$0x77]
        %v3752 = vld [vmem:[%s3655 + $0x670] sm:$0x77]
        %v3753 = vld [vmem:[%s3655 + $0x678] sm:$0x77]
        %v3754 = vld [vmem:[%s3655 + $0x680] sm:$0x77]
        %v3755 = vld [vmem:[%s3655 + $0x688] sm:$0x77]
        %s3756 = scalar_lea.vmem %s3, 16
        %v3757 = vld [vmem:[%s3756] sm:$0xff]
        %v3758 = vld [vmem:[%s3756 + $0x8] sm:$0x3f]
        %v3859 = vunpack.c.l.b16 %v3656
        %v3860 = vunpack.c.h.b16 %v3656
        %v3861 = vunpack.c.l.b16 %v3657
        %v3862 = vunpack.c.h.b16 %v3657
        %v3863 = vunpack.c.l.b16 %v3658
        %v3864 = vunpack.c.h.b16 %v3658
        %v3865 = vunpack.c.l.b16 %v3659
        %v3866 = vunpack.c.h.b16 %v3659
        %v3867 = vunpack.c.l.b16 %v3660
        %v3868 = vunpack.c.h.b16 %v3660
        %v3869 = vunpack.c.l.b16 %v3661
        %v3870 = vunpack.c.h.b16 %v3661
        %v3871 = vunpack.c.l.b16 %v3662
        %v3872 = vunpack.c.h.b16 %v3662
        %v3873 = vunpack.c.l.b16 %v3663
        %v3874 = vunpack.c.h.b16 %v3663
        %v3875 = vunpack.c.l.b16 %v3664
        %v3876 = vunpack.c.h.b16 %v3664
        %v3877 = vunpack.c.l.b16 %v3665
        %v3878 = vunpack.c.h.b16 %v3665
        %v3879 = vunpack.c.l.b16 %v3666
        %v3880 = vunpack.c.h.b16 %v3666
        %v3881 = vunpack.c.l.b16 %v3667
        %v3882 = vunpack.c.h.b16 %v3667
        %v3883 = vunpack.c.l.b16 %v3668
        %v3884 = vunpack.c.h.b16 %v3668
        %v3885 = vunpack.c.l.b16 %v3669
        %v3886 = vunpack.c.h.b16 %v3669
        %v3887 = vunpack.c.l.b16 %v3670
        %v3888 = vunpack.c.h.b16 %v3670
        %v3889 = vunpack.c.l.b16 %v3671
        %v3890 = vunpack.c.h.b16 %v3671
        %v3891 = vunpack.c.l.b16 %v3672
        %v3892 = vunpack.c.h.b16 %v3672
        %v3893 = vunpack.c.l.b16 %v3673
        %v3894 = vunpack.c.h.b16 %v3673
        %v3895 = vunpack.c.l.b16 %v3674
        %v3896 = vunpack.c.h.b16 %v3674
        %v3897 = vunpack.c.l.b16 %v3675
        %v3898 = vunpack.c.h.b16 %v3675
        %v3899 = vunpack.c.l.b16 %v3676
        %v3900 = vunpack.c.h.b16 %v3676
        %v3901 = vunpack.c.l.b16 %v3677
        %v3902 = vunpack.c.h.b16 %v3677
        %v3903 = vunpack.c.l.b16 %v3678
        %v3904 = vunpack.c.h.b16 %v3678
        %v3905 = vunpack.c.l.b16 %v3679
        %v3906 = vunpack.c.h.b16 %v3679
        %v3907 = vunpack.c.l.b16 %v3680
        %v3908 = vunpack.c.h.b16 %v3680
        %v3909 = vunpack.c.l.b16 %v3681
        %v3910 = vunpack.c.h.b16 %v3681
        %v3911 = vunpack.c.l.b16 %v3682
        %v3912 = vunpack.c.h.b16 %v3682
        %v3913 = vunpack.c.l.b16 %v3683
        %v3914 = vunpack.c.h.b16 %v3683
        %v3915 = vunpack.c.l.b16 %v3684
        %v3916 = vunpack.c.h.b16 %v3684
        %v3917 = vunpack.c.l.b16 %v3685
        %v3918 = vunpack.c.h.b16 %v3685
        %v3919 = vunpack.c.l.b16 %v3686
        %v3920 = vunpack.c.h.b16 %v3686
        %v3921 = vunpack.c.l.b16 %v3687
        %v3922 = vunpack.c.h.b16 %v3687
        %v3923 = vunpack.c.l.b16 %v3688
        %v3924 = vunpack.c.h.b16 %v3688
        %v3925 = vunpack.c.l.b16 %v3689
        %v3926 = vunpack.c.h.b16 %v3689
        %v3927 = vunpack.c.l.b16 %v3690
        %v3928 = vunpack.c.h.b16 %v3690
        %v3929 = vunpack.c.l.b16 %v3691
        %v3930 = vunpack.c.h.b16 %v3691
        %v3931 = vunpack.c.l.b16 %v3692
        %v3932 = vunpack.c.h.b16 %v3692
        %v3933 = vunpack.c.l.b16 %v3693
        %v3934 = vunpack.c.h.b16 %v3693
        %v3935 = vunpack.c.l.b16 %v3694
        %v3936 = vunpack.c.h.b16 %v3694
        %v3937 = vunpack.c.l.b16 %v3695
        %v3938 = vunpack.c.h.b16 %v3695
        %v3939 = vunpack.c.l.b16 %v3696
        %v3940 = vunpack.c.h.b16 %v3696
        %v3941 = vunpack.c.l.b16 %v3697
        %v3942 = vunpack.c.h.b16 %v3697
        %v3943 = vunpack.c.l.b16 %v3698
        %v3944 = vunpack.c.h.b16 %v3698
        %v3945 = vunpack.c.l.b16 %v3699
        %v3946 = vunpack.c.h.b16 %v3699
        %v3947 = vunpack.c.l.b16 %v3700
        %v3948 = vunpack.c.h.b16 %v3700
        %v3949 = vunpack.c.l.b16 %v3701
        %v3950 = vunpack.c.h.b16 %v3701
        %v3951 = vunpack.c.l.b16 %v3702
        %v3952 = vunpack.c.h.b16 %v3702
        %v3953 = vunpack.c.l.b16 %v3703
        %v3954 = vunpack.c.h.b16 %v3703
        %v3955 = vunpack.c.l.b16 %v3704
        %v3956 = vunpack.c.h.b16 %v3704
        %v3957 = vunpack.c.l.b16 %v3705
        %v3958 = vunpack.c.h.b16 %v3705
        %v3959 = vunpack.c.l.b16 %v3706
        %v3960 = vunpack.c.h.b16 %v3706
        %v3961 = vunpack.c.l.b16 %v3707
        %v3962 = vunpack.c.h.b16 %v3707
        %v3963 = vunpack.c.l.b16 %v3708
        %v3964 = vunpack.c.h.b16 %v3708
        %v3965 = vunpack.c.l.b16 %v3709
        %v3966 = vunpack.c.h.b16 %v3709
        %v3967 = vunpack.c.l.b16 %v3710
        %v3968 = vunpack.c.h.b16 %v3710
        %v3969 = vunpack.c.l.b16 %v3711
        %v3970 = vunpack.c.h.b16 %v3711
        %v3971 = vunpack.c.l.b16 %v3712
        %v3972 = vunpack.c.h.b16 %v3712
        %v3973 = vunpack.c.l.b16 %v3713
        %v3974 = vunpack.c.h.b16 %v3713
        %v3975 = vunpack.c.l.b16 %v3714
        %v3976 = vunpack.c.h.b16 %v3714
        %v3977 = vunpack.c.l.b16 %v3715
        %v3978 = vunpack.c.h.b16 %v3715
        %v3979 = vunpack.c.l.b16 %v3716
        %v3980 = vunpack.c.h.b16 %v3716
        %v3981 = vunpack.c.l.b16 %v3717
        %v3982 = vunpack.c.h.b16 %v3717
        %v3983 = vunpack.c.l.b16 %v3718
        %v3984 = vunpack.c.h.b16 %v3718
        %v3985 = vunpack.c.l.b16 %v3719
        %v3986 = vunpack.c.h.b16 %v3719
        %v3987 = vunpack.c.l.b16 %v3720
        %v3988 = vunpack.c.h.b16 %v3720
        %v3989 = vunpack.c.l.b16 %v3721
        %v3990 = vunpack.c.h.b16 %v3721
        %v3991 = vunpack.c.l.b16 %v3722
        %v3992 = vunpack.c.h.b16 %v3722
        %v3993 = vunpack.c.l.b16 %v3723
        %v3994 = vunpack.c.h.b16 %v3723
        %v3995 = vunpack.c.l.b16 %v3724
        %v3996 = vunpack.c.h.b16 %v3724
        %v3997 = vunpack.c.l.b16 %v3725
        %v3998 = vunpack.c.h.b16 %v3725
        %v3999 = vunpack.c.l.b16 %v3726
        %v4000 = vunpack.c.h.b16 %v3726
        %v4001 = vunpack.c.l.b16 %v3727
        %v4002 = vunpack.c.h.b16 %v3727
        %v4003 = vunpack.c.l.b16 %v3728
        %v4004 = vunpack.c.h.b16 %v3728
        %v4005 = vunpack.c.l.b16 %v3729
        %v4006 = vunpack.c.h.b16 %v3729
        %v4007 = vunpack.c.l.b16 %v3730
        %v4008 = vunpack.c.h.b16 %v3730
        %v4009 = vunpack.c.l.b16 %v3731
        %v4010 = vunpack.c.h.b16 %v3731
        %v4011 = vunpack.c.l.b16 %v3732
        %v4012 = vunpack.c.h.b16 %v3732
        %v4013 = vunpack.c.l.b16 %v3733
        %v4014 = vunpack.c.h.b16 %v3733
        %v4015 = vunpack.c.l.b16 %v3734
        %v4016 = vunpack.c.h.b16 %v3734
        %v4017 = vunpack.c.l.b16 %v3735
        %v4018 = vunpack.c.h.b16 %v3735
        %v4019 = vunpack.c.l.b16 %v3736
        %v4020 = vunpack.c.h.b16 %v3736
        %v4021 = vunpack.c.l.b16 %v3737
        %v4022 = vunpack.c.h.b16 %v3737
        %v4023 = vunpack.c.l.b16 %v3738
        %v4024 = vunpack.c.h.b16 %v3738
        %v4025 = vunpack.c.l.b16 %v3739
        %v4026 = vunpack.c.h.b16 %v3739
        %v4027 = vunpack.c.l.b16 %v3740
        %v4028 = vunpack.c.h.b16 %v3740
        %v4029 = vunpack.c.l.b16 %v3741
        %v4030 = vunpack.c.h.b16 %v3741
        %v4031 = vunpack.c.l.b16 %v3742
        %v4032 = vunpack.c.h.b16 %v3742
        %v4033 = vunpack.c.l.b16 %v3743
        %v4034 = vunpack.c.h.b16 %v3743
        %v4035 = vunpack.c.l.b16 %v3744
        %v4036 = vunpack.c.h.b16 %v3744
        %v4037 = vunpack.c.l.b16 %v3745
        %v4038 = vunpack.c.h.b16 %v3745
        %v4039 = vunpack.c.l.b16 %v3746
        %v4040 = vunpack.c.h.b16 %v3746
        %v4041 = vunpack.c.l.b16 %v3747
        %v4042 = vunpack.c.h.b16 %v3747
        %v4043 = vunpack.c.l.b16 %v3748
        %v4044 = vunpack.c.h.b16 %v3748
        %v4045 = vunpack.c.l.b16 %v3749
        %v4046 = vunpack.c.h.b16 %v3749
        %v4047 = vunpack.c.l.b16 %v3750
        %v4048 = vunpack.c.h.b16 %v3750
        %v4049 = vunpack.c.l.b16 %v3751
        %v4050 = vunpack.c.h.b16 %v3751
        %v4051 = vunpack.c.l.b16 %v3752
        %v4052 = vunpack.c.h.b16 %v3752
        %v4053 = vunpack.c.l.b16 %v3753
        %v4054 = vunpack.c.h.b16 %v3753
        %v4055 = vunpack.c.l.b16 %v3754
        %v4056 = vunpack.c.h.b16 %v3754
        %v4057 = vunpack.c.l.b16 %v3755
        %v4058 = vunpack.c.h.b16 %v3755
        %v4059 = vpack.c.b16 %v3959, %v3859
        %v4060 = vpack.c.b16 %v3960, %v3860
        %v4061 = vpack.c.b16 %v3961, %v3861
        %v4062 = vpack.c.b16 %v3962, %v3862
        %v4063 = vpack.c.b16 %v3963, %v3863
        %v4064 = vpack.c.b16 %v3964, %v3864
        %v4065 = vpack.c.b16 %v3965, %v3865
        %v4066 = vpack.c.b16 %v3966, %v3866
        %v4067 = vpack.c.b16 %v3967, %v3867
        %v4068 = vpack.c.b16 %v3968, %v3868
        %v4069 = vpack.c.b16 %v3969, %v3869
        %v4070 = vpack.c.b16 %v3970, %v3870
        %v4071 = vpack.c.b16 %v3971, %v3871
        %v4072 = vpack.c.b16 %v3972, %v3872
        %v4073 = vpack.c.b16 %v3973, %v3873
        %v4074 = vpack.c.b16 %v3974, %v3874
        %v4075 = vpack.c.b16 %v3975, %v3875
        %v4076 = vpack.c.b16 %v3976, %v3876
        %v4077 = vpack.c.b16 %v3977, %v3877
        %v4078 = vpack.c.b16 %v3978, %v3878
        %v4079 = vpack.c.b16 %v3979, %v3879
        %v4080 = vpack.c.b16 %v3980, %v3880
        %v4081 = vpack.c.b16 %v3981, %v3881
        %v4082 = vpack.c.b16 %v3982, %v3882
        %v4083 = vpack.c.b16 %v3983, %v3883
        %v4084 = vpack.c.b16 %v3984, %v3884
        %v4085 = vpack.c.b16 %v3985, %v3885
        %v4086 = vpack.c.b16 %v3986, %v3886
        %v4087 = vpack.c.b16 %v3987, %v3887
        %v4088 = vpack.c.b16 %v3988, %v3888
        %v4089 = vpack.c.b16 %v3989, %v3889
        %v4090 = vpack.c.b16 %v3990, %v3890
        %v4091 = vpack.c.b16 %v3991, %v3891
        %v4092 = vpack.c.b16 %v3992, %v3892
        %v4093 = vpack.c.b16 %v3993, %v3893
        %v4094 = vpack.c.b16 %v3994, %v3894
        %v4095 = vpack.c.b16 %v3995, %v3895
        %v4096 = vpack.c.b16 %v3996, %v3896
        %v4097 = vpack.c.b16 %v3997, %v3897
        %v4098 = vpack.c.b16 %v3998, %v3898
        %v4099 = vpack.c.b16 %v3999, %v3899
        %v4100 = vpack.c.b16 %v4000, %v3900
        %v4101 = vpack.c.b16 %v4001, %v3901
        %v4102 = vpack.c.b16 %v4002, %v3902
        %v4103 = vpack.c.b16 %v4003, %v3903
        %v4104 = vpack.c.b16 %v4004, %v3904
        %v4105 = vpack.c.b16 %v4005, %v3905
        %v4106 = vpack.c.b16 %v4006, %v3906
        %v4107 = vpack.c.b16 %v4007, %v3907
        %v4108 = vpack.c.b16 %v4008, %v3908
        %v4109 = vpack.c.b16 %v4009, %v3909
        %v4110 = vpack.c.b16 %v4010, %v3910
        %v4111 = vpack.c.b16 %v4011, %v3911
        %v4112 = vpack.c.b16 %v4012, %v3912
        %v4113 = vpack.c.b16 %v4013, %v3913
        %v4114 = vpack.c.b16 %v4014, %v3914
        %v4115 = vpack.c.b16 %v4015, %v3915
        %v4116 = vpack.c.b16 %v4016, %v3916
        %v4117 = vpack.c.b16 %v4017, %v3917
        %v4118 = vpack.c.b16 %v4018, %v3918
        %v4119 = vpack.c.b16 %v4019, %v3919
        %v4120 = vpack.c.b16 %v4020, %v3920
        %v4121 = vpack.c.b16 %v4021, %v3921
        %v4122 = vpack.c.b16 %v4022, %v3922
        %v4123 = vpack.c.b16 %v4023, %v3923
        %v4124 = vpack.c.b16 %v4024, %v3924
        %v4125 = vpack.c.b16 %v4025, %v3925
        %v4126 = vpack.c.b16 %v4026, %v3926
        %v4127 = vpack.c.b16 %v4027, %v3927
        %v4128 = vpack.c.b16 %v4028, %v3928
        %v4129 = vpack.c.b16 %v4029, %v3929
        %v4130 = vpack.c.b16 %v4030, %v3930
        %v4131 = vpack.c.b16 %v4031, %v3931
        %v4132 = vpack.c.b16 %v4032, %v3932
        %v4133 = vpack.c.b16 %v4033, %v3933
        %v4134 = vpack.c.b16 %v4034, %v3934
        %v4135 = vpack.c.b16 %v4035, %v3935
        %v4136 = vpack.c.b16 %v4036, %v3936
        %v4137 = vpack.c.b16 %v4037, %v3937
        %v4138 = vpack.c.b16 %v4038, %v3938
        %v4139 = vpack.c.b16 %v4039, %v3939
        %v4140 = vpack.c.b16 %v4040, %v3940
        %v4141 = vpack.c.b16 %v4041, %v3941
        %v4142 = vpack.c.b16 %v4042, %v3942
        %v4143 = vpack.c.b16 %v4043, %v3943
        %v4144 = vpack.c.b16 %v4044, %v3944
        %v4145 = vpack.c.b16 %v4045, %v3945
        %v4146 = vpack.c.b16 %v4046, %v3946
        %v4147 = vpack.c.b16 %v4047, %v3947
        %v4148 = vpack.c.b16 %v4048, %v3948
        %v4149 = vpack.c.b16 %v4049, %v3949
        %v4150 = vpack.c.b16 %v4050, %v3950
        %v4151 = vpack.c.b16 %v4051, %v3951
        %v4152 = vpack.c.b16 %v4052, %v3952
        %v4153 = vpack.c.b16 %v4053, %v3953
        %v4154 = vpack.c.b16 %v4054, %v3954
        %v4155 = vpack.c.b16 %v4055, %v3955
        %v4156 = vpack.c.b16 %v4056, %v3956
        %v4157 = vpack.c.b16 %v4057, %v3957
        %v4158 = vpack.c.b16 %v4058, %v3958
        %4259 = vmatprep.subr.bf16.mxu0 %v1396
        %4260 = vmatpush1.bf16.xpose.msra.mxu0 %v1395
        %4261 = vmatprep.subr.bf16.mxu0 0
        %4262 = vmatpush1.bf16.xpose.msra.mxu0 0
        %4263 = vmatprep.subr.bf16.mxu0 0
        %4264 = vmatpush1.bf16.xpose.msra.mxu0 0
        %4265 = vmatprep.subr.bf16.mxu0 0
        %4266 = vmatpush1.bf16.xpose.msra.mxu0 0
        %4267 = vmatprep.subr.bf16.mxu0 0
        %4268 = vmatpush1.bf16.xpose.msra.mxu0 0
        %4269 = vmatprep.subr.bf16.mxu0 0
        %4270 = vmatpush1.bf16.xpose.msra.mxu0 0
        %4271 = vmatprep.subr.bf16.mxu0 0
        %4272 = vmatpush1.bf16.xpose.msra.mxu0 0
        %4273 = vmatprep.subr.bf16.mxu0 0
        %4274 = vmatpush1.bf16.xpose.msra.mxu0 0
        %4275 = vmatprep.subr.bf16.mxu0 0
        %4276 = vmatpush1.bf16.xpose.msra.mxu0 0
        %4277 = vmatprep.subr.bf16.mxu0 0
        %4278 = vmatpush1.bf16.xpose.msra.mxu0 0
        %4279 = vmatprep.subr.bf16.mxu0 0
        %4280 = vmatpush1.bf16.xpose.msra.mxu0 0
        %4281 = vmatprep.subr.bf16.mxu0 0
        %4282 = vmatpush1.bf16.xpose.msra.mxu0 0
        %4283 = vmatprep.subr.bf16.mxu0 0
        %4284 = vmatpush1.bf16.xpose.msra.mxu0 0
        %4285 = vmatprep.subr.bf16.mxu0 0
        %4286 = vmatpush1.bf16.xpose.msra.mxu0 0
        %4287 = vmatprep.subr.bf16.mxu0 0
        %4288 = vmatpush1.bf16.xpose.msra.mxu0 0
        %4289 = vmatprep.subr.bf16.mxu0 0
        %4290 = vmatpush1.bf16.xpose.msra.mxu0 0
        %4291 = vmatprep.mubr.bf16.mxu0 %v4060
        %4292 = vmatmul.mubr.bf16.gmra.mrb[0].mxu0 %v4059
        %v4293 = vpop.f32.mrb[0].mxu0
        %v4294 = vadd.f32 0.0, %v4293
        %v4295 = vpop.f32.mrb[0].mxu0
        %v4296 = vpop.f32.mrb[0].mxu0
        %v4297 = vadd.f32 0.0, %v4296
        %v4298 = vpop.f32.mrb[0].mxu0
        %4299 = vdwg.mxu0
        %4300 = vmatprep.subr.bf16.mxu0 %v1398
        %4301 = vmatpush1.bf16.xpose.msra.mxu0 %v1397
        %4302 = vmatprep.subr.bf16.mxu0 0
        %4303 = vmatpush1.bf16.xpose.msra.mxu0 0
        %4304 = vmatprep.subr.bf16.mxu0 0
        %4305 = vmatpush1.bf16.xpose.msra.mxu0 0
        %4306 = vmatprep.subr.bf16.mxu0 0
        %4307 = vmatpush1.bf16.xpose.msra.mxu0 0
        %4308 = vmatprep.subr.bf16.mxu0 0
        %4309 = vmatpush1.bf16.xpose.msra.mxu0 0
        %4310 = vmatprep.subr.bf16.mxu0 0
        %4311 = vmatpush1.bf16.xpose.msra.mxu0 0
        %4312 = vmatprep.subr.bf16.mxu0 0
        %4313 = vmatpush1.bf16.xpose.msra.mxu0 0
        %4314 = vmatprep.subr.bf16.mxu0 0
        %4315 = vmatpush1.bf16.xpose.msra.mxu0 0
        %4316 = vmatprep.subr.bf16.mxu0 0
        %4317 = vmatpush1.bf16.xpose.msra.mxu0 0
        %4318 = vmatprep.subr.bf16.mxu0 0
        %4319 = vmatpush1.bf16.xpose.msra.mxu0 0
        %4320 = vmatprep.subr.bf16.mxu0 0
        %4321 = vmatpush1.bf16.xpose.msra.mxu0 0
        %4322 = vmatprep.subr.bf16.mxu0 0
        %4323 = vmatpush1.bf16.xpose.msra.mxu0 0
        %4324 = vmatprep.subr.bf16.mxu0 0
        %4325 = vmatpush1.bf16.xpose.msra.mxu0 0
        %4326 = vmatprep.subr.bf16.mxu0 0
        %4327 = vmatpush1.bf16.xpose.msra.mxu0 0
        %4328 = vmatprep.subr.bf16.mxu0 0
        %4329 = vmatpush1.bf16.xpose.msra.mxu0 0
        %4330 = vmatprep.subr.bf16.mxu0 0
        %4331 = vmatpush1.bf16.xpose.msra.mxu0 0
        %4332 = vmatprep.mubr.bf16.mxu0 %v4062
        %4333 = vmatmul.mubr.bf16.gmra.mrb[0].mxu0 %v4061
        %v4334 = vpop.f32.mrb[0].mxu0
        %v4335 = vadd.f32 %v4294, %v4334
        %v4336 = vpop.f32.mrb[0].mxu0
        %v4337 = vpop.f32.mrb[0].mxu0
        %v4338 = vadd.f32 %v4297, %v4337
        %v4339 = vpop.f32.mrb[0].mxu0
        %4340 = vdwg.mxu0
        %4341 = vmatprep.subr.bf16.mxu0 %v1400
        %4342 = vmatpush1.bf16.xpose.msra.mxu0 %v1399
        %4343 = vmatprep.subr.bf16.mxu0 0
        %4344 = vmatpush1.bf16.xpose.msra.mxu0 0
        %4345 = vmatprep.subr.bf16.mxu0 0
        %4346 = vmatpush1.bf16.xpose.msra.mxu0 0
        %4347 = vmatprep.subr.bf16.mxu0 0
        %4348 = vmatpush1.bf16.xpose.msra.mxu0 0
        %4349 = vmatprep.subr.bf16.mxu0 0
        %4350 = vmatpush1.bf16.xpose.msra.mxu0 0
        %4351 = vmatprep.subr.bf16.mxu0 0
        %4352 = vmatpush1.bf16.xpose.msra.mxu0 0
        %4353 = vmatprep.subr.bf16.mxu0 0
        %4354 = vmatpush1.bf16.xpose.msra.mxu0 0
        %4355 = vmatprep.subr.bf16.mxu0 0
        %4356 = vmatpush1.bf16.xpose.msra.mxu0 0
        %4357 = vmatprep.subr.bf16.mxu0 0
        %4358 = vmatpush1.bf16.xpose.msra.mxu0 0
        %4359 = vmatprep.subr.bf16.mxu0 0
        %4360 = vmatpush1.bf16.xpose.msra.mxu0 0
        %4361 = vmatprep.subr.bf16.mxu0 0
        %4362 = vmatpush1.bf16.xpose.msra.mxu0 0
        %4363 = vmatprep.subr.bf16.mxu0 0
        %4364 = vmatpush1.bf16.xpose.msra.mxu0 0
        %4365 = vmatprep.subr.bf16.mxu0 0
        %4366 = vmatpush1.bf16.xpose.msra.mxu0 0
        %4367 = vmatprep.subr.bf16.mxu0 0
        %4368 = vmatpush1.bf16.xpose.msra.mxu0 0
        %4369 = vmatprep.subr.bf16.mxu0 0
        %4370 = vmatpush1.bf16.xpose.msra.mxu0 0
        %4371 = vmatprep.subr.bf16.mxu0 0
        %4372 = vmatpush1.bf16.xpose.msra.mxu0 0
        %4373 = vmatprep.mubr.bf16.mxu0 %v4064
        %4374 = vmatmul.mubr.bf16.gmra.mrb[0].mxu0 %v4063
        %v4375 = vpop.f32.mrb[0].mxu0
        %v4376 = vadd.f32 %v4335, %v4375
        %v4377 = vpop.f32.mrb[0].mxu0
        %v4378 = vpop.f32.mrb[0].mxu0
        %v4379 = vadd.f32 %v4338, %v4378
        %v4380 = vpop.f32.mrb[0].mxu0
        %4381 = vdwg.mxu0
        %4382 = vmatprep.subr.bf16.mxu0 %v1402
        %4383 = vmatpush1.bf16.xpose.msra.mxu0 %v1401
        %4384 = vmatprep.subr.bf16.mxu0 0
        %4385 = vmatpush1.bf16.xpose.msra.mxu0 0
        %4386 = vmatprep.subr.bf16.mxu0 0
        %4387 = vmatpush1.bf16.xpose.msra.mxu0 0
        %4388 = vmatprep.subr.bf16.mxu0 0
        %4389 = vmatpush1.bf16.xpose.msra.mxu0 0
        %4390 = vmatprep.subr.bf16.mxu0 0
        %4391 = vmatpush1.bf16.xpose.msra.mxu0 0
        %4392 = vmatprep.subr.bf16.mxu0 0
        %4393 = vmatpush1.bf16.xpose.msra.mxu0 0
        %4394 = vmatprep.subr.bf16.mxu0 0
        %4395 = vmatpush1.bf16.xpose.msra.mxu0 0
        %4396 = vmatprep.subr.bf16.mxu0 0
        %4397 = vmatpush1.bf16.xpose.msra.mxu0 0
        %4398 = vmatprep.subr.bf16.mxu0 0
        %4399 = vmatpush1.bf16.xpose.msra.mxu0 0
        %4400 = vmatprep.subr.bf16.mxu0 0
        %4401 = vmatpush1.bf16.xpose.msra.mxu0 0
        %4402 = vmatprep.subr.bf16.mxu0 0
        %4403 = vmatpush1.bf16.xpose.msra.mxu0 0
        %4404 = vmatprep.subr.bf16.mxu0 0
        %4405 = vmatpush1.bf16.xpose.msra.mxu0 0
        %4406 = vmatprep.subr.bf16.mxu0 0
        %4407 = vmatpush1.bf16.xpose.msra.mxu0 0
        %4408 = vmatprep.subr.bf16.mxu0 0
        %4409 = vmatpush1.bf16.xpose.msra.mxu0 0
        %4410 = vmatprep.subr.bf16.mxu0 0
        %4411 = vmatpush1.bf16.xpose.msra.mxu0 0
        %4412 = vmatprep.subr.bf16.mxu0 0
        %4413 = vmatpush1.bf16.xpose.msra.mxu0 0
        %4414 = vmatprep.mubr.bf16.mxu0 %v4066
        %4415 = vmatmul.mubr.bf16.gmra.mrb[0].mxu0 %v4065
        %v4416 = vpop.f32.mrb[0].mxu0
        %v4417 = vadd.f32 %v4376, %v4416
        %v4418 = vpop.f32.mrb[0].mxu0
        %v4419 = vpop.f32.mrb[0].mxu0
        %v4420 = vadd.f32 %v4379, %v4419
        %v4421 = vpop.f32.mrb[0].mxu0
        %4422 = vdwg.mxu0
        %4423 = vmatprep.subr.bf16.mxu0 %v1404
        %4424 = vmatpush1.bf16.xpose.msra.mxu0 %v1403
        %4425 = vmatprep.subr.bf16.mxu0 0
        %4426 = vmatpush1.bf16.xpose.msra.mxu0 0
        %4427 = vmatprep.subr.bf16.mxu0 0
        %4428 = vmatpush1.bf16.xpose.msra.mxu0 0
        %4429 = vmatprep.subr.bf16.mxu0 0
        %4430 = vmatpush1.bf16.xpose.msra.mxu0 0
        %4431 = vmatprep.subr.bf16.mxu0 0
        %4432 = vmatpush1.bf16.xpose.msra.mxu0 0
        %4433 = vmatprep.subr.bf16.mxu0 0
        %4434 = vmatpush1.bf16.xpose.msra.mxu0 0
        %4435 = vmatprep.subr.bf16.mxu0 0
        %4436 = vmatpush1.bf16.xpose.msra.mxu0 0
        %4437 = vmatprep.subr.bf16.mxu0 0
        %4438 = vmatpush1.bf16.xpose.msra.mxu0 0
        %4439 = vmatprep.subr.bf16.mxu0 0
        %4440 = vmatpush1.bf16.xpose.msra.mxu0 0
        %4441 = vmatprep.subr.bf16.mxu0 0
        %4442 = vmatpush1.bf16.xpose.msra.mxu0 0
        %4443 = vmatprep.subr.bf16.mxu0 0
        %4444 = vmatpush1.bf16.xpose.msra.mxu0 0
        %4445 = vmatprep.subr.bf16.mxu0 0
        %4446 = vmatpush1.bf16.xpose.msra.mxu0 0
        %4447 = vmatprep.subr.bf16.mxu0 0
        %4448 = vmatpush1.bf16.xpose.msra.mxu0 0
        %4449 = vmatprep.subr.bf16.mxu0 0
        %4450 = vmatpush1.bf16.xpose.msra.mxu0 0
        %4451 = vmatprep.subr.bf16.mxu0 0
        %4452 = vmatpush1.bf16.xpose.msra.mxu0 0
        %4453 = vmatprep.subr.bf16.mxu0 0
        %4454 = vmatpush1.bf16.xpose.msra.mxu0 0
        %4455 = vmatprep.mubr.bf16.mxu0 %v4068
        %4456 = vmatmul.mubr.bf16.gmra.mrb[0].mxu0 %v4067
        %v4457 = vpop.f32.mrb[0].mxu0
        %v4458 = vadd.f32 %v4417, %v4457
        %v4459 = vpop.f32.mrb[0].mxu0
        %v4460 = vpop.f32.mrb[0].mxu0
        %v4461 = vadd.f32 %v4420, %v4460
        %v4462 = vpop.f32.mrb[0].mxu0
        %4463 = vdwg.mxu0
        %4464 = vmatprep.subr.bf16.mxu0 %v1406
        %4465 = vmatpush1.bf16.xpose.msra.mxu0 %v1405
        %4466 = vmatprep.subr.bf16.mxu0 0
        %4467 = vmatpush1.bf16.xpose.msra.mxu0 0
        %4468 = vmatprep.subr.bf16.mxu0 0
        %4469 = vmatpush1.bf16.xpose.msra.mxu0 0
        %4470 = vmatprep.subr.bf16.mxu0 0
        %4471 = vmatpush1.bf16.xpose.msra.mxu0 0
        %4472 = vmatprep.subr.bf16.mxu0 0
        %4473 = vmatpush1.bf16.xpose.msra.mxu0 0
        %4474 = vmatprep.subr.bf16.mxu0 0
        %4475 = vmatpush1.bf16.xpose.msra.mxu0 0
        %4476 = vmatprep.subr.bf16.mxu0 0
        %4477 = vmatpush1.bf16.xpose.msra.mxu0 0
        %4478 = vmatprep.subr.bf16.mxu0 0
        %4479 = vmatpush1.bf16.xpose.msra.mxu0 0
        %4480 = vmatprep.subr.bf16.mxu0 0
        %4481 = vmatpush1.bf16.xpose.msra.mxu0 0
        %4482 = vmatprep.subr.bf16.mxu0 0
        %4483 = vmatpush1.bf16.xpose.msra.mxu0 0
        %4484 = vmatprep.subr.bf16.mxu0 0
        %4485 = vmatpush1.bf16.xpose.msra.mxu0 0
        %4486 = vmatprep.subr.bf16.mxu0 0
        %4487 = vmatpush1.bf16.xpose.msra.mxu0 0
        %4488 = vmatprep.subr.bf16.mxu0 0
        %4489 = vmatpush1.bf16.xpose.msra.mxu0 0
        %4490 = vmatprep.subr.bf16.mxu0 0
        %4491 = vmatpush1.bf16.xpose.msra.mxu0 0
        %4492 = vmatprep.subr.bf16.mxu0 0
        %4493 = vmatpush1.bf16.xpose.msra.mxu0 0
        %4494 = vmatprep.subr.bf16.mxu0 0
        %4495 = vmatpush1.bf16.xpose.msra.mxu0 0
        %4496 = vmatprep.mubr.bf16.mxu0 %v4070
        %4497 = vmatmul.mubr.bf16.gmra.mrb[0].mxu0 %v4069
        %v4498 = vpop.f32.mrb[0].mxu0
        %v4499 = vadd.f32 %v4458, %v4498
        %v4500 = vpop.f32.mrb[0].mxu0
        %v4501 = vpop.f32.mrb[0].mxu0
        %v4502 = vadd.f32 %v4461, %v4501
        %v4503 = vpop.f32.mrb[0].mxu0
        %4504 = vdwg.mxu0
        %4505 = vmatprep.subr.bf16.mxu0 %v1408
        %4506 = vmatpush1.bf16.xpose.msra.mxu0 %v1407
        %4507 = vmatprep.subr.bf16.mxu0 0
        %4508 = vmatpush1.bf16.xpose.msra.mxu0 0
        %4509 = vmatprep.subr.bf16.mxu0 0
        %4510 = vmatpush1.bf16.xpose.msra.mxu0 0
        %4511 = vmatprep.subr.bf16.mxu0 0
        %4512 = vmatpush1.bf16.xpose.msra.mxu0 0
        %4513 = vmatprep.subr.bf16.mxu0 0
        %4514 = vmatpush1.bf16.xpose.msra.mxu0 0
        %4515 = vmatprep.subr.bf16.mxu0 0
        %4516 = vmatpush1.bf16.xpose.msra.mxu0 0
        %4517 = vmatprep.subr.bf16.mxu0 0
        %4518 = vmatpush1.bf16.xpose.msra.mxu0 0
        %4519 = vmatprep.subr.bf16.mxu0 0
        %4520 = vmatpush1.bf16.xpose.msra.mxu0 0
        %4521 = vmatprep.subr.bf16.mxu0 0
        %4522 = vmatpush1.bf16.xpose.msra.mxu0 0
        %4523 = vmatprep.subr.bf16.mxu0 0
        %4524 = vmatpush1.bf16.xpose.msra.mxu0 0
        %4525 = vmatprep.subr.bf16.mxu0 0
        %4526 = vmatpush1.bf16.xpose.msra.mxu0 0
        %4527 = vmatprep.subr.bf16.mxu0 0
        %4528 = vmatpush1.bf16.xpose.msra.mxu0 0
        %4529 = vmatprep.subr.bf16.mxu0 0
        %4530 = vmatpush1.bf16.xpose.msra.mxu0 0
        %4531 = vmatprep.subr.bf16.mxu0 0
        %4532 = vmatpush1.bf16.xpose.msra.mxu0 0
        %4533 = vmatprep.subr.bf16.mxu0 0
        %4534 = vmatpush1.bf16.xpose.msra.mxu0 0
        %4535 = vmatprep.subr.bf16.mxu0 0
        %4536 = vmatpush1.bf16.xpose.msra.mxu0 0
        %4537 = vmatprep.mubr.bf16.mxu0 %v4072
        %4538 = vmatmul.mubr.bf16.gmra.mrb[0].mxu0 %v4071
        %v4539 = vpop.f32.mrb[0].mxu0
        %v4540 = vadd.f32 %v4499, %v4539
        %v4541 = vpop.f32.mrb[0].mxu0
        %v4542 = vpop.f32.mrb[0].mxu0
        %v4543 = vadd.f32 %v4502, %v4542
        %v4544 = vpop.f32.mrb[0].mxu0
        %4545 = vdwg.mxu0
        %4546 = vmatprep.subr.bf16.mxu0 %v1410
        %4547 = vmatpush1.bf16.xpose.msra.mxu0 %v1409
        %4548 = vmatprep.subr.bf16.mxu0 0
        %4549 = vmatpush1.bf16.xpose.msra.mxu0 0
        %4550 = vmatprep.subr.bf16.mxu0 0
        %4551 = vmatpush1.bf16.xpose.msra.mxu0 0
        %4552 = vmatprep.subr.bf16.mxu0 0
        %4553 = vmatpush1.bf16.xpose.msra.mxu0 0
        %4554 = vmatprep.subr.bf16.mxu0 0
        %4555 = vmatpush1.bf16.xpose.msra.mxu0 0
        %4556 = vmatprep.subr.bf16.mxu0 0
        %4557 = vmatpush1.bf16.xpose.msra.mxu0 0
        %4558 = vmatprep.subr.bf16.mxu0 0
        %4559 = vmatpush1.bf16.xpose.msra.mxu0 0
        %4560 = vmatprep.subr.bf16.mxu0 0
        %4561 = vmatpush1.bf16.xpose.msra.mxu0 0
        %4562 = vmatprep.subr.bf16.mxu0 0
        %4563 = vmatpush1.bf16.xpose.msra.mxu0 0
        %4564 = vmatprep.subr.bf16.mxu0 0
        %4565 = vmatpush1.bf16.xpose.msra.mxu0 0
        %4566 = vmatprep.subr.bf16.mxu0 0
        %4567 = vmatpush1.bf16.xpose.msra.mxu0 0
        %4568 = vmatprep.subr.bf16.mxu0 0
        %4569 = vmatpush1.bf16.xpose.msra.mxu0 0
        %4570 = vmatprep.subr.bf16.mxu0 0
        %4571 = vmatpush1.bf16.xpose.msra.mxu0 0
        %4572 = vmatprep.subr.bf16.mxu0 0
        %4573 = vmatpush1.bf16.xpose.msra.mxu0 0
        %4574 = vmatprep.subr.bf16.mxu0 0
        %4575 = vmatpush1.bf16.xpose.msra.mxu0 0
        %4576 = vmatprep.subr.bf16.mxu0 0
        %4577 = vmatpush1.bf16.xpose.msra.mxu0 0
        %4578 = vmatprep.mubr.bf16.mxu0 %v4074
        %4579 = vmatmul.mubr.bf16.gmra.mrb[0].mxu0 %v4073
        %v4580 = vpop.f32.mrb[0].mxu0
        %v4581 = vadd.f32 %v4540, %v4580
        %v4582 = vpop.f32.mrb[0].mxu0
        %v4583 = vpop.f32.mrb[0].mxu0
        %v4584 = vadd.f32 %v4543, %v4583
        %v4585 = vpop.f32.mrb[0].mxu0
        %4586 = vdwg.mxu0
        %4587 = vmatprep.subr.bf16.mxu0 %v1412
        %4588 = vmatpush1.bf16.xpose.msra.mxu0 %v1411
        %4589 = vmatprep.subr.bf16.mxu0 0
        %4590 = vmatpush1.bf16.xpose.msra.mxu0 0
        %4591 = vmatprep.subr.bf16.mxu0 0
        %4592 = vmatpush1.bf16.xpose.msra.mxu0 0
        %4593 = vmatprep.subr.bf16.mxu0 0
        %4594 = vmatpush1.bf16.xpose.msra.mxu0 0
        %4595 = vmatprep.subr.bf16.mxu0 0
        %4596 = vmatpush1.bf16.xpose.msra.mxu0 0
        %4597 = vmatprep.subr.bf16.mxu0 0
        %4598 = vmatpush1.bf16.xpose.msra.mxu0 0
        %4599 = vmatprep.subr.bf16.mxu0 0
        %4600 = vmatpush1.bf16.xpose.msra.mxu0 0
        %4601 = vmatprep.subr.bf16.mxu0 0
        %4602 = vmatpush1.bf16.xpose.msra.mxu0 0
        %4603 = vmatprep.subr.bf16.mxu0 0
        %4604 = vmatpush1.bf16.xpose.msra.mxu0 0
        %4605 = vmatprep.subr.bf16.mxu0 0
        %4606 = vmatpush1.bf16.xpose.msra.mxu0 0
        %4607 = vmatprep.subr.bf16.mxu0 0
        %4608 = vmatpush1.bf16.xpose.msra.mxu0 0
        %4609 = vmatprep.subr.bf16.mxu0 0
        %4610 = vmatpush1.bf16.xpose.msra.mxu0 0
        %4611 = vmatprep.subr.bf16.mxu0 0
        %4612 = vmatpush1.bf16.xpose.msra.mxu0 0
        %4613 = vmatprep.subr.bf16.mxu0 0
        %4614 = vmatpush1.bf16.xpose.msra.mxu0 0
        %4615 = vmatprep.subr.bf16.mxu0 0
        %4616 = vmatpush1.bf16.xpose.msra.mxu0 0
        %4617 = vmatprep.subr.bf16.mxu0 0
        %4618 = vmatpush1.bf16.xpose.msra.mxu0 0
        %4619 = vmatprep.mubr.bf16.mxu0 %v4076
        %4620 = vmatmul.mubr.bf16.gmra.mrb[0].mxu0 %v4075
        %v4621 = vpop.f32.mrb[0].mxu0
        %v4622 = vadd.f32 %v4581, %v4621
        %v4623 = vpop.f32.mrb[0].mxu0
        %v4624 = vpop.f32.mrb[0].mxu0
        %v4625 = vadd.f32 %v4584, %v4624
        %v4626 = vpop.f32.mrb[0].mxu0
        %4627 = vdwg.mxu0
        %4628 = vmatprep.subr.bf16.mxu0 %v1414
        %4629 = vmatpush1.bf16.xpose.msra.mxu0 %v1413
        %4630 = vmatprep.subr.bf16.mxu0 0
        %4631 = vmatpush1.bf16.xpose.msra.mxu0 0
        %4632 = vmatprep.subr.bf16.mxu0 0
        %4633 = vmatpush1.bf16.xpose.msra.mxu0 0
        %4634 = vmatprep.subr.bf16.mxu0 0
        %4635 = vmatpush1.bf16.xpose.msra.mxu0 0
        %4636 = vmatprep.subr.bf16.mxu0 0
        %4637 = vmatpush1.bf16.xpose.msra.mxu0 0
        %4638 = vmatprep.subr.bf16.mxu0 0
        %4639 = vmatpush1.bf16.xpose.msra.mxu0 0
        %4640 = vmatprep.subr.bf16.mxu0 0
        %4641 = vmatpush1.bf16.xpose.msra.mxu0 0
        %4642 = vmatprep.subr.bf16.mxu0 0
        %4643 = vmatpush1.bf16.xpose.msra.mxu0 0
        %4644 = vmatprep.subr.bf16.mxu0 0
        %4645 = vmatpush1.bf16.xpose.msra.mxu0 0
        %4646 = vmatprep.subr.bf16.mxu0 0
        %4647 = vmatpush1.bf16.xpose.msra.mxu0 0
        %4648 = vmatprep.subr.bf16.mxu0 0
        %4649 = vmatpush1.bf16.xpose.msra.mxu0 0
        %4650 = vmatprep.subr.bf16.mxu0 0
        %4651 = vmatpush1.bf16.xpose.msra.mxu0 0
        %4652 = vmatprep.subr.bf16.mxu0 0
        %4653 = vmatpush1.bf16.xpose.msra.mxu0 0
        %4654 = vmatprep.subr.bf16.mxu0 0
        %4655 = vmatpush1.bf16.xpose.msra.mxu0 0
        %4656 = vmatprep.subr.bf16.mxu0 0
        %4657 = vmatpush1.bf16.xpose.msra.mxu0 0
        %4658 = vmatprep.subr.bf16.mxu0 0
        %4659 = vmatpush1.bf16.xpose.msra.mxu0 0
        %4660 = vmatprep.mubr.bf16.mxu0 %v4078
        %4661 = vmatmul.mubr.bf16.gmra.mrb[0].mxu0 %v4077
        %v4662 = vpop.f32.mrb[0].mxu0
        %v4663 = vadd.f32 %v4622, %v4662
        %v4664 = vpop.f32.mrb[0].mxu0
        %v4665 = vpop.f32.mrb[0].mxu0
        %v4666 = vadd.f32 %v4625, %v4665
        %v4667 = vpop.f32.mrb[0].mxu0
        %4668 = vdwg.mxu0
        %4669 = vmatprep.subr.bf16.mxu0 %v1416
        %4670 = vmatpush1.bf16.xpose.msra.mxu0 %v1415
        %4671 = vmatprep.subr.bf16.mxu0 0
        %4672 = vmatpush1.bf16.xpose.msra.mxu0 0
        %4673 = vmatprep.subr.bf16.mxu0 0
        %4674 = vmatpush1.bf16.xpose.msra.mxu0 0
        %4675 = vmatprep.subr.bf16.mxu0 0
        %4676 = vmatpush1.bf16.xpose.msra.mxu0 0
        %4677 = vmatprep.subr.bf16.mxu0 0
        %4678 = vmatpush1.bf16.xpose.msra.mxu0 0
        %4679 = vmatprep.subr.bf16.mxu0 0
        %4680 = vmatpush1.bf16.xpose.msra.mxu0 0
        %4681 = vmatprep.subr.bf16.mxu0 0
        %4682 = vmatpush1.bf16.xpose.msra.mxu0 0
        %4683 = vmatprep.subr.bf16.mxu0 0
        %4684 = vmatpush1.bf16.xpose.msra.mxu0 0
        %4685 = vmatprep.subr.bf16.mxu0 0
        %4686 = vmatpush1.bf16.xpose.msra.mxu0 0
        %4687 = vmatprep.subr.bf16.mxu0 0
        %4688 = vmatpush1.bf16.xpose.msra.mxu0 0
        %4689 = vmatprep.subr.bf16.mxu0 0
        %4690 = vmatpush1.bf16.xpose.msra.mxu0 0
        %4691 = vmatprep.subr.bf16.mxu0 0
        %4692 = vmatpush1.bf16.xpose.msra.mxu0 0
        %4693 = vmatprep.subr.bf16.mxu0 0
        %4694 = vmatpush1.bf16.xpose.msra.mxu0 0
        %4695 = vmatprep.subr.bf16.mxu0 0
        %4696 = vmatpush1.bf16.xpose.msra.mxu0 0
        %4697 = vmatprep.subr.bf16.mxu0 0
        %4698 = vmatpush1.bf16.xpose.msra.mxu0 0
        %4699 = vmatprep.subr.bf16.mxu0 0
        %4700 = vmatpush1.bf16.xpose.msra.mxu0 0
        %4701 = vmatprep.mubr.bf16.mxu0 %v4080
        %4702 = vmatmul.mubr.bf16.gmra.mrb[0].mxu0 %v4079
        %v4703 = vpop.f32.mrb[0].mxu0
        %v4704 = vadd.f32 %v4663, %v4703
        %v4705 = vpop.f32.mrb[0].mxu0
        %v4706 = vpop.f32.mrb[0].mxu0
        %v4707 = vadd.f32 %v4666, %v4706
        %v4708 = vpop.f32.mrb[0].mxu0
        %4709 = vdwg.mxu0
        %4710 = vmatprep.subr.bf16.mxu0 %v1418
        %4711 = vmatpush1.bf16.xpose.msra.mxu0 %v1417
        %4712 = vmatprep.subr.bf16.mxu0 0
        %4713 = vmatpush1.bf16.xpose.msra.mxu0 0
        %4714 = vmatprep.subr.bf16.mxu0 0
        %4715 = vmatpush1.bf16.xpose.msra.mxu0 0
        %4716 = vmatprep.subr.bf16.mxu0 0
        %4717 = vmatpush1.bf16.xpose.msra.mxu0 0
        %4718 = vmatprep.subr.bf16.mxu0 0
        %4719 = vmatpush1.bf16.xpose.msra.mxu0 0
        %4720 = vmatprep.subr.bf16.mxu0 0
        %4721 = vmatpush1.bf16.xpose.msra.mxu0 0
        %4722 = vmatprep.subr.bf16.mxu0 0
        %4723 = vmatpush1.bf16.xpose.msra.mxu0 0
        %4724 = vmatprep.subr.bf16.mxu0 0
        %4725 = vmatpush1.bf16.xpose.msra.mxu0 0
        %4726 = vmatprep.subr.bf16.mxu0 0
        %4727 = vmatpush1.bf16.xpose.msra.mxu0 0
        %4728 = vmatprep.subr.bf16.mxu0 0
        %4729 = vmatpush1.bf16.xpose.msra.mxu0 0
        %4730 = vmatprep.subr.bf16.mxu0 0
        %4731 = vmatpush1.bf16.xpose.msra.mxu0 0
        %4732 = vmatprep.subr.bf16.mxu0 0
        %4733 = vmatpush1.bf16.xpose.msra.mxu0 0
        %4734 = vmatprep.subr.bf16.mxu0 0
        %4735 = vmatpush1.bf16.xpose.msra.mxu0 0
        %4736 = vmatprep.subr.bf16.mxu0 0
        %4737 = vmatpush1.bf16.xpose.msra.mxu0 0
        %4738 = vmatprep.subr.bf16.mxu0 0
        %4739 = vmatpush1.bf16.xpose.msra.mxu0 0
        %4740 = vmatprep.subr.bf16.mxu0 0
        %4741 = vmatpush1.bf16.xpose.msra.mxu0 0
        %4742 = vmatprep.mubr.bf16.mxu0 %v4082
        %4743 = vmatmul.mubr.bf16.gmra.mrb[0].mxu0 %v4081
        %v4744 = vpop.f32.mrb[0].mxu0
        %v4745 = vadd.f32 %v4704, %v4744
        %v4746 = vpop.f32.mrb[0].mxu0
        %v4747 = vpop.f32.mrb[0].mxu0
        %v4748 = vadd.f32 %v4707, %v4747
        %v4749 = vpop.f32.mrb[0].mxu0
        %4750 = vdwg.mxu0
        %4751 = vmatprep.subr.bf16.mxu0 %v1420
        %4752 = vmatpush1.bf16.xpose.msra.mxu0 %v1419
        %4753 = vmatprep.subr.bf16.mxu0 0
        %4754 = vmatpush1.bf16.xpose.msra.mxu0 0
        %4755 = vmatprep.subr.bf16.mxu0 0
        %4756 = vmatpush1.bf16.xpose.msra.mxu0 0
        %4757 = vmatprep.subr.bf16.mxu0 0
        %4758 = vmatpush1.bf16.xpose.msra.mxu0 0
        %4759 = vmatprep.subr.bf16.mxu0 0
        %4760 = vmatpush1.bf16.xpose.msra.mxu0 0
        %4761 = vmatprep.subr.bf16.mxu0 0
        %4762 = vmatpush1.bf16.xpose.msra.mxu0 0
        %4763 = vmatprep.subr.bf16.mxu0 0
        %4764 = vmatpush1.bf16.xpose.msra.mxu0 0
        %4765 = vmatprep.subr.bf16.mxu0 0
        %4766 = vmatpush1.bf16.xpose.msra.mxu0 0
        %4767 = vmatprep.subr.bf16.mxu0 0
        %4768 = vmatpush1.bf16.xpose.msra.mxu0 0
        %4769 = vmatprep.subr.bf16.mxu0 0
        %4770 = vmatpush1.bf16.xpose.msra.mxu0 0
        %4771 = vmatprep.subr.bf16.mxu0 0
        %4772 = vmatpush1.bf16.xpose.msra.mxu0 0
        %4773 = vmatprep.subr.bf16.mxu0 0
        %4774 = vmatpush1.bf16.xpose.msra.mxu0 0
        %4775 = vmatprep.subr.bf16.mxu0 0
        %4776 = vmatpush1.bf16.xpose.msra.mxu0 0
        %4777 = vmatprep.subr.bf16.mxu0 0
        %4778 = vmatpush1.bf16.xpose.msra.mxu0 0
        %4779 = vmatprep.subr.bf16.mxu0 0
        %4780 = vmatpush1.bf16.xpose.msra.mxu0 0
        %4781 = vmatprep.subr.bf16.mxu0 0
        %4782 = vmatpush1.bf16.xpose.msra.mxu0 0
        %4783 = vmatprep.mubr.bf16.mxu0 %v4084
        %4784 = vmatmul.mubr.bf16.gmra.mrb[0].mxu0 %v4083
        %v4785 = vpop.f32.mrb[0].mxu0
        %v4786 = vadd.f32 %v4745, %v4785
        %v4787 = vpop.f32.mrb[0].mxu0
        %v4788 = vpop.f32.mrb[0].mxu0
        %v4789 = vadd.f32 %v4748, %v4788
        %v4790 = vpop.f32.mrb[0].mxu0
        %4791 = vdwg.mxu0
        %4792 = vmatprep.subr.bf16.mxu0 %v1422
        %4793 = vmatpush1.bf16.xpose.msra.mxu0 %v1421
        %4794 = vmatprep.subr.bf16.mxu0 0
        %4795 = vmatpush1.bf16.xpose.msra.mxu0 0
        %4796 = vmatprep.subr.bf16.mxu0 0
        %4797 = vmatpush1.bf16.xpose.msra.mxu0 0
        %4798 = vmatprep.subr.bf16.mxu0 0
        %4799 = vmatpush1.bf16.xpose.msra.mxu0 0
        %4800 = vmatprep.subr.bf16.mxu0 0
        %4801 = vmatpush1.bf16.xpose.msra.mxu0 0
        %4802 = vmatprep.subr.bf16.mxu0 0
        %4803 = vmatpush1.bf16.xpose.msra.mxu0 0
        %4804 = vmatprep.subr.bf16.mxu0 0
        %4805 = vmatpush1.bf16.xpose.msra.mxu0 0
        %4806 = vmatprep.subr.bf16.mxu0 0
        %4807 = vmatpush1.bf16.xpose.msra.mxu0 0
        %4808 = vmatprep.subr.bf16.mxu0 0
        %4809 = vmatpush1.bf16.xpose.msra.mxu0 0
        %4810 = vmatprep.subr.bf16.mxu0 0
        %4811 = vmatpush1.bf16.xpose.msra.mxu0 0
        %4812 = vmatprep.subr.bf16.mxu0 0
        %4813 = vmatpush1.bf16.xpose.msra.mxu0 0
        %4814 = vmatprep.subr.bf16.mxu0 0
        %4815 = vmatpush1.bf16.xpose.msra.mxu0 0
        %4816 = vmatprep.subr.bf16.mxu0 0
        %4817 = vmatpush1.bf16.xpose.msra.mxu0 0
        %4818 = vmatprep.subr.bf16.mxu0 0
        %4819 = vmatpush1.bf16.xpose.msra.mxu0 0
        %4820 = vmatprep.subr.bf16.mxu0 0
        %4821 = vmatpush1.bf16.xpose.msra.mxu0 0
        %4822 = vmatprep.subr.bf16.mxu0 0
        %4823 = vmatpush1.bf16.xpose.msra.mxu0 0
        %4824 = vmatprep.mubr.bf16.mxu0 %v4086
        %4825 = vmatmul.mubr.bf16.gmra.mrb[0].mxu0 %v4085
        %v4826 = vpop.f32.mrb[0].mxu0
        %v4827 = vadd.f32 %v4786, %v4826
        %v4828 = vpop.f32.mrb[0].mxu0
        %v4829 = vpop.f32.mrb[0].mxu0
        %v4830 = vadd.f32 %v4789, %v4829
        %v4831 = vpop.f32.mrb[0].mxu0
        %4832 = vdwg.mxu0
        %4833 = vmatprep.subr.bf16.mxu0 %v1424
        %4834 = vmatpush1.bf16.xpose.msra.mxu0 %v1423
        %4835 = vmatprep.subr.bf16.mxu0 0
        %4836 = vmatpush1.bf16.xpose.msra.mxu0 0
        %4837 = vmatprep.subr.bf16.mxu0 0
        %4838 = vmatpush1.bf16.xpose.msra.mxu0 0
        %4839 = vmatprep.subr.bf16.mxu0 0
        %4840 = vmatpush1.bf16.xpose.msra.mxu0 0
        %4841 = vmatprep.subr.bf16.mxu0 0
        %4842 = vmatpush1.bf16.xpose.msra.mxu0 0
        %4843 = vmatprep.subr.bf16.mxu0 0
        %4844 = vmatpush1.bf16.xpose.msra.mxu0 0
        %4845 = vmatprep.subr.bf16.mxu0 0
        %4846 = vmatpush1.bf16.xpose.msra.mxu0 0
        %4847 = vmatprep.subr.bf16.mxu0 0
        %4848 = vmatpush1.bf16.xpose.msra.mxu0 0
        %4849 = vmatprep.subr.bf16.mxu0 0
        %4850 = vmatpush1.bf16.xpose.msra.mxu0 0
        %4851 = vmatprep.subr.bf16.mxu0 0
        %4852 = vmatpush1.bf16.xpose.msra.mxu0 0
        %4853 = vmatprep.subr.bf16.mxu0 0
        %4854 = vmatpush1.bf16.xpose.msra.mxu0 0
        %4855 = vmatprep.subr.bf16.mxu0 0
        %4856 = vmatpush1.bf16.xpose.msra.mxu0 0
        %4857 = vmatprep.subr.bf16.mxu0 0
        %4858 = vmatpush1.bf16.xpose.msra.mxu0 0
        %4859 = vmatprep.subr.bf16.mxu0 0
        %4860 = vmatpush1.bf16.xpose.msra.mxu0 0
        %4861 = vmatprep.subr.bf16.mxu0 0
        %4862 = vmatpush1.bf16.xpose.msra.mxu0 0
        %4863 = vmatprep.subr.bf16.mxu0 0
        %4864 = vmatpush1.bf16.xpose.msra.mxu0 0
        %4865 = vmatprep.mubr.bf16.mxu0 %v4088
        %4866 = vmatmul.mubr.bf16.gmra.mrb[0].mxu0 %v4087
        %v4867 = vpop.f32.mrb[0].mxu0
        %v4868 = vadd.f32 %v4827, %v4867
        %v4869 = vpop.f32.mrb[0].mxu0
        %v4870 = vpop.f32.mrb[0].mxu0
        %v4871 = vadd.f32 %v4830, %v4870
        %v4872 = vpop.f32.mrb[0].mxu0
        %4873 = vdwg.mxu0
        %4874 = vmatprep.subr.bf16.mxu0 %v1426
        %4875 = vmatpush1.bf16.xpose.msra.mxu0 %v1425
        %4876 = vmatprep.subr.bf16.mxu0 0
        %4877 = vmatpush1.bf16.xpose.msra.mxu0 0
        %4878 = vmatprep.subr.bf16.mxu0 0
        %4879 = vmatpush1.bf16.xpose.msra.mxu0 0
        %4880 = vmatprep.subr.bf16.mxu0 0
        %4881 = vmatpush1.bf16.xpose.msra.mxu0 0
        %4882 = vmatprep.subr.bf16.mxu0 0
        %4883 = vmatpush1.bf16.xpose.msra.mxu0 0
        %4884 = vmatprep.subr.bf16.mxu0 0
        %4885 = vmatpush1.bf16.xpose.msra.mxu0 0
        %4886 = vmatprep.subr.bf16.mxu0 0
        %4887 = vmatpush1.bf16.xpose.msra.mxu0 0
        %4888 = vmatprep.subr.bf16.mxu0 0
        %4889 = vmatpush1.bf16.xpose.msra.mxu0 0
        %4890 = vmatprep.subr.bf16.mxu0 0
        %4891 = vmatpush1.bf16.xpose.msra.mxu0 0
        %4892 = vmatprep.subr.bf16.mxu0 0
        %4893 = vmatpush1.bf16.xpose.msra.mxu0 0
        %4894 = vmatprep.subr.bf16.mxu0 0
        %4895 = vmatpush1.bf16.xpose.msra.mxu0 0
        %4896 = vmatprep.subr.bf16.mxu0 0
        %4897 = vmatpush1.bf16.xpose.msra.mxu0 0
        %4898 = vmatprep.subr.bf16.mxu0 0
        %4899 = vmatpush1.bf16.xpose.msra.mxu0 0
        %4900 = vmatprep.subr.bf16.mxu0 0
        %4901 = vmatpush1.bf16.xpose.msra.mxu0 0
        %4902 = vmatprep.subr.bf16.mxu0 0
        %4903 = vmatpush1.bf16.xpose.msra.mxu0 0
        %4904 = vmatprep.subr.bf16.mxu0 0
        %4905 = vmatpush1.bf16.xpose.msra.mxu0 0
        %4906 = vmatprep.mubr.bf16.mxu0 %v4090
        %4907 = vmatmul.mubr.bf16.gmra.mrb[0].mxu0 %v4089
        %v4908 = vpop.f32.mrb[0].mxu0
        %v4909 = vadd.f32 %v4868, %v4908
        %v4910 = vpop.f32.mrb[0].mxu0
        %v4911 = vpop.f32.mrb[0].mxu0
        %v4912 = vadd.f32 %v4871, %v4911
        %v4913 = vpop.f32.mrb[0].mxu0
        %4914 = vdwg.mxu0
        %4915 = vmatprep.subr.bf16.mxu0 %v1428
        %4916 = vmatpush1.bf16.xpose.msra.mxu0 %v1427
        %4917 = vmatprep.subr.bf16.mxu0 0
        %4918 = vmatpush1.bf16.xpose.msra.mxu0 0
        %4919 = vmatprep.subr.bf16.mxu0 0
        %4920 = vmatpush1.bf16.xpose.msra.mxu0 0
        %4921 = vmatprep.subr.bf16.mxu0 0
        %4922 = vmatpush1.bf16.xpose.msra.mxu0 0
        %4923 = vmatprep.subr.bf16.mxu0 0
        %4924 = vmatpush1.bf16.xpose.msra.mxu0 0
        %4925 = vmatprep.subr.bf16.mxu0 0
        %4926 = vmatpush1.bf16.xpose.msra.mxu0 0
        %4927 = vmatprep.subr.bf16.mxu0 0
        %4928 = vmatpush1.bf16.xpose.msra.mxu0 0
        %4929 = vmatprep.subr.bf16.mxu0 0
        %4930 = vmatpush1.bf16.xpose.msra.mxu0 0
        %4931 = vmatprep.subr.bf16.mxu0 0
        %4932 = vmatpush1.bf16.xpose.msra.mxu0 0
        %4933 = vmatprep.subr.bf16.mxu0 0
        %4934 = vmatpush1.bf16.xpose.msra.mxu0 0
        %4935 = vmatprep.subr.bf16.mxu0 0
        %4936 = vmatpush1.bf16.xpose.msra.mxu0 0
        %4937 = vmatprep.subr.bf16.mxu0 0
        %4938 = vmatpush1.bf16.xpose.msra.mxu0 0
        %4939 = vmatprep.subr.bf16.mxu0 0
        %4940 = vmatpush1.bf16.xpose.msra.mxu0 0
        %4941 = vmatprep.subr.bf16.mxu0 0
        %4942 = vmatpush1.bf16.xpose.msra.mxu0 0
        %4943 = vmatprep.subr.bf16.mxu0 0
        %4944 = vmatpush1.bf16.xpose.msra.mxu0 0
        %4945 = vmatprep.subr.bf16.mxu0 0
        %4946 = vmatpush1.bf16.xpose.msra.mxu0 0
        %4947 = vmatprep.mubr.bf16.mxu0 %v4092
        %4948 = vmatmul.mubr.bf16.gmra.mrb[0].mxu0 %v4091
        %v4949 = vpop.f32.mrb[0].mxu0
        %v4950 = vadd.f32 %v4909, %v4949
        %v4951 = vpop.f32.mrb[0].mxu0
        %v4952 = vpop.f32.mrb[0].mxu0
        %v4953 = vadd.f32 %v4912, %v4952
        %v4954 = vpop.f32.mrb[0].mxu0
        %4955 = vdwg.mxu0
        %4956 = vmatprep.subr.bf16.mxu0 %v1430
        %4957 = vmatpush1.bf16.xpose.msra.mxu0 %v1429
        %4958 = vmatprep.subr.bf16.mxu0 0
        %4959 = vmatpush1.bf16.xpose.msra.mxu0 0
        %4960 = vmatprep.subr.bf16.mxu0 0
        %4961 = vmatpush1.bf16.xpose.msra.mxu0 0
        %4962 = vmatprep.subr.bf16.mxu0 0
        %4963 = vmatpush1.bf16.xpose.msra.mxu0 0
        %4964 = vmatprep.subr.bf16.mxu0 0
        %4965 = vmatpush1.bf16.xpose.msra.mxu0 0
        %4966 = vmatprep.subr.bf16.mxu0 0
        %4967 = vmatpush1.bf16.xpose.msra.mxu0 0
        %4968 = vmatprep.subr.bf16.mxu0 0
        %4969 = vmatpush1.bf16.xpose.msra.mxu0 0
        %4970 = vmatprep.subr.bf16.mxu0 0
        %4971 = vmatpush1.bf16.xpose.msra.mxu0 0
        %4972 = vmatprep.subr.bf16.mxu0 0
        %4973 = vmatpush1.bf16.xpose.msra.mxu0 0
        %4974 = vmatprep.subr.bf16.mxu0 0
        %4975 = vmatpush1.bf16.xpose.msra.mxu0 0
        %4976 = vmatprep.subr.bf16.mxu0 0
        %4977 = vmatpush1.bf16.xpose.msra.mxu0 0
        %4978 = vmatprep.subr.bf16.mxu0 0
        %4979 = vmatpush1.bf16.xpose.msra.mxu0 0
        %4980 = vmatprep.subr.bf16.mxu0 0
        %4981 = vmatpush1.bf16.xpose.msra.mxu0 0
        %4982 = vmatprep.subr.bf16.mxu0 0
        %4983 = vmatpush1.bf16.xpose.msra.mxu0 0
        %4984 = vmatprep.subr.bf16.mxu0 0
        %4985 = vmatpush1.bf16.xpose.msra.mxu0 0
        %4986 = vmatprep.subr.bf16.mxu0 0
        %4987 = vmatpush1.bf16.xpose.msra.mxu0 0
        %4988 = vmatprep.mubr.bf16.mxu0 %v4094
        %4989 = vmatmul.mubr.bf16.gmra.mrb[0].mxu0 %v4093
        %v4990 = vpop.f32.mrb[0].mxu0
        %v4991 = vadd.f32 %v4950, %v4990
        %v4992 = vpop.f32.mrb[0].mxu0
        %v4993 = vpop.f32.mrb[0].mxu0
        %v4994 = vadd.f32 %v4953, %v4993
        %v4995 = vpop.f32.mrb[0].mxu0
        %4996 = vdwg.mxu0
        %4997 = vmatprep.subr.bf16.mxu0 %v1432
        %4998 = vmatpush1.bf16.xpose.msra.mxu0 %v1431
        %4999 = vmatprep.subr.bf16.mxu0 0
        %5000 = vmatpush1.bf16.xpose.msra.mxu0 0
        %5001 = vmatprep.subr.bf16.mxu0 0
        %5002 = vmatpush1.bf16.xpose.msra.mxu0 0
        %5003 = vmatprep.subr.bf16.mxu0 0
        %5004 = vmatpush1.bf16.xpose.msra.mxu0 0
        %5005 = vmatprep.subr.bf16.mxu0 0
        %5006 = vmatpush1.bf16.xpose.msra.mxu0 0
        %5007 = vmatprep.subr.bf16.mxu0 0
        %5008 = vmatpush1.bf16.xpose.msra.mxu0 0
        %5009 = vmatprep.subr.bf16.mxu0 0
        %5010 = vmatpush1.bf16.xpose.msra.mxu0 0
        %5011 = vmatprep.subr.bf16.mxu0 0
        %5012 = vmatpush1.bf16.xpose.msra.mxu0 0
        %5013 = vmatprep.subr.bf16.mxu0 0
        %5014 = vmatpush1.bf16.xpose.msra.mxu0 0
        %5015 = vmatprep.subr.bf16.mxu0 0
        %5016 = vmatpush1.bf16.xpose.msra.mxu0 0
        %5017 = vmatprep.subr.bf16.mxu0 0
        %5018 = vmatpush1.bf16.xpose.msra.mxu0 0
        %5019 = vmatprep.subr.bf16.mxu0 0
        %5020 = vmatpush1.bf16.xpose.msra.mxu0 0
        %5021 = vmatprep.subr.bf16.mxu0 0
        %5022 = vmatpush1.bf16.xpose.msra.mxu0 0
        %5023 = vmatprep.subr.bf16.mxu0 0
        %5024 = vmatpush1.bf16.xpose.msra.mxu0 0
        %5025 = vmatprep.subr.bf16.mxu0 0
        %5026 = vmatpush1.bf16.xpose.msra.mxu0 0
        %5027 = vmatprep.subr.bf16.mxu0 0
        %5028 = vmatpush1.bf16.xpose.msra.mxu0 0
        %5029 = vmatprep.mubr.bf16.mxu0 %v4096
        %5030 = vmatmul.mubr.bf16.gmra.mrb[0].mxu0 %v4095
        %v5031 = vpop.f32.mrb[0].mxu0
        %v5032 = vadd.f32 %v4991, %v5031
        %v5033 = vpop.f32.mrb[0].mxu0
        %v5034 = vpop.f32.mrb[0].mxu0
        %v5035 = vadd.f32 %v4994, %v5034
        %v5036 = vpop.f32.mrb[0].mxu0
        %5037 = vdwg.mxu0
        %5038 = vmatprep.subr.bf16.mxu0 %v1434
        %5039 = vmatpush1.bf16.xpose.msra.mxu0 %v1433
        %5040 = vmatprep.subr.bf16.mxu0 0
        %5041 = vmatpush1.bf16.xpose.msra.mxu0 0
        %5042 = vmatprep.subr.bf16.mxu0 0
        %5043 = vmatpush1.bf16.xpose.msra.mxu0 0
        %5044 = vmatprep.subr.bf16.mxu0 0
        %5045 = vmatpush1.bf16.xpose.msra.mxu0 0
        %5046 = vmatprep.subr.bf16.mxu0 0
        %5047 = vmatpush1.bf16.xpose.msra.mxu0 0
        %5048 = vmatprep.subr.bf16.mxu0 0
        %5049 = vmatpush1.bf16.xpose.msra.mxu0 0
        %5050 = vmatprep.subr.bf16.mxu0 0
        %5051 = vmatpush1.bf16.xpose.msra.mxu0 0
        %5052 = vmatprep.subr.bf16.mxu0 0
        %5053 = vmatpush1.bf16.xpose.msra.mxu0 0
        %5054 = vmatprep.subr.bf16.mxu0 0
        %5055 = vmatpush1.bf16.xpose.msra.mxu0 0
        %5056 = vmatprep.subr.bf16.mxu0 0
        %5057 = vmatpush1.bf16.xpose.msra.mxu0 0
        %5058 = vmatprep.subr.bf16.mxu0 0
        %5059 = vmatpush1.bf16.xpose.msra.mxu0 0
        %5060 = vmatprep.subr.bf16.mxu0 0
        %5061 = vmatpush1.bf16.xpose.msra.mxu0 0
        %5062 = vmatprep.subr.bf16.mxu0 0
        %5063 = vmatpush1.bf16.xpose.msra.mxu0 0
        %5064 = vmatprep.subr.bf16.mxu0 0
        %5065 = vmatpush1.bf16.xpose.msra.mxu0 0
        %5066 = vmatprep.subr.bf16.mxu0 0
        %5067 = vmatpush1.bf16.xpose.msra.mxu0 0
        %5068 = vmatprep.subr.bf16.mxu0 0
        %5069 = vmatpush1.bf16.xpose.msra.mxu0 0
        %5070 = vmatprep.mubr.bf16.mxu0 %v4098
        %5071 = vmatmul.mubr.bf16.gmra.mrb[0].mxu0 %v4097
        %v5072 = vpop.f32.mrb[0].mxu0
        %v5073 = vadd.f32 %v5032, %v5072
        %v5074 = vpop.f32.mrb[0].mxu0
        %v5075 = vpop.f32.mrb[0].mxu0
        %v5076 = vadd.f32 %v5035, %v5075
        %v5077 = vpop.f32.mrb[0].mxu0
        %5078 = vdwg.mxu0
        %5079 = vmatprep.subr.bf16.mxu0 %v1436
        %5080 = vmatpush1.bf16.xpose.msra.mxu0 %v1435
        %5081 = vmatprep.subr.bf16.mxu0 0
        %5082 = vmatpush1.bf16.xpose.msra.mxu0 0
        %5083 = vmatprep.subr.bf16.mxu0 0
        %5084 = vmatpush1.bf16.xpose.msra.mxu0 0
        %5085 = vmatprep.subr.bf16.mxu0 0
        %5086 = vmatpush1.bf16.xpose.msra.mxu0 0
        %5087 = vmatprep.subr.bf16.mxu0 0
        %5088 = vmatpush1.bf16.xpose.msra.mxu0 0
        %5089 = vmatprep.subr.bf16.mxu0 0
        %5090 = vmatpush1.bf16.xpose.msra.mxu0 0
        %5091 = vmatprep.subr.bf16.mxu0 0
        %5092 = vmatpush1.bf16.xpose.msra.mxu0 0
        %5093 = vmatprep.subr.bf16.mxu0 0
        %5094 = vmatpush1.bf16.xpose.msra.mxu0 0
        %5095 = vmatprep.subr.bf16.mxu0 0
        %5096 = vmatpush1.bf16.xpose.msra.mxu0 0
        %5097 = vmatprep.subr.bf16.mxu0 0
        %5098 = vmatpush1.bf16.xpose.msra.mxu0 0
        %5099 = vmatprep.subr.bf16.mxu0 0
        %5100 = vmatpush1.bf16.xpose.msra.mxu0 0
        %5101 = vmatprep.subr.bf16.mxu0 0
        %5102 = vmatpush1.bf16.xpose.msra.mxu0 0
        %5103 = vmatprep.subr.bf16.mxu0 0
        %5104 = vmatpush1.bf16.xpose.msra.mxu0 0
        %5105 = vmatprep.subr.bf16.mxu0 0
        %5106 = vmatpush1.bf16.xpose.msra.mxu0 0
        %5107 = vmatprep.subr.bf16.mxu0 0
        %5108 = vmatpush1.bf16.xpose.msra.mxu0 0
        %5109 = vmatprep.subr.bf16.mxu0 0
        %5110 = vmatpush1.bf16.xpose.msra.mxu0 0
        %5111 = vmatprep.mubr.bf16.mxu0 %v4100
        %5112 = vmatmul.mubr.bf16.gmra.mrb[0].mxu0 %v4099
        %v5113 = vpop.f32.mrb[0].mxu0
        %v5114 = vadd.f32 %v5073, %v5113
        %v5115 = vpop.f32.mrb[0].mxu0
        %v5116 = vpop.f32.mrb[0].mxu0
        %v5117 = vadd.f32 %v5076, %v5116
        %v5118 = vpop.f32.mrb[0].mxu0
        %5119 = vdwg.mxu0
        %5120 = vmatprep.subr.bf16.mxu0 %v1438
        %5121 = vmatpush1.bf16.xpose.msra.mxu0 %v1437
        %5122 = vmatprep.subr.bf16.mxu0 0
        %5123 = vmatpush1.bf16.xpose.msra.mxu0 0
        %5124 = vmatprep.subr.bf16.mxu0 0
        %5125 = vmatpush1.bf16.xpose.msra.mxu0 0
        %5126 = vmatprep.subr.bf16.mxu0 0
        %5127 = vmatpush1.bf16.xpose.msra.mxu0 0
        %5128 = vmatprep.subr.bf16.mxu0 0
        %5129 = vmatpush1.bf16.xpose.msra.mxu0 0
        %5130 = vmatprep.subr.bf16.mxu0 0
        %5131 = vmatpush1.bf16.xpose.msra.mxu0 0
        %5132 = vmatprep.subr.bf16.mxu0 0
        %5133 = vmatpush1.bf16.xpose.msra.mxu0 0
        %5134 = vmatprep.subr.bf16.mxu0 0
        %5135 = vmatpush1.bf16.xpose.msra.mxu0 0
        %5136 = vmatprep.subr.bf16.mxu0 0
        %5137 = vmatpush1.bf16.xpose.msra.mxu0 0
        %5138 = vmatprep.subr.bf16.mxu0 0
        %5139 = vmatpush1.bf16.xpose.msra.mxu0 0
        %5140 = vmatprep.subr.bf16.mxu0 0
        %5141 = vmatpush1.bf16.xpose.msra.mxu0 0
        %5142 = vmatprep.subr.bf16.mxu0 0
        %5143 = vmatpush1.bf16.xpose.msra.mxu0 0
        %5144 = vmatprep.subr.bf16.mxu0 0
        %5145 = vmatpush1.bf16.xpose.msra.mxu0 0
        %5146 = vmatprep.subr.bf16.mxu0 0
        %5147 = vmatpush1.bf16.xpose.msra.mxu0 0
        %5148 = vmatprep.subr.bf16.mxu0 0
        %5149 = vmatpush1.bf16.xpose.msra.mxu0 0
        %5150 = vmatprep.subr.bf16.mxu0 0
        %5151 = vmatpush1.bf16.xpose.msra.mxu0 0
        %5152 = vmatprep.mubr.bf16.mxu0 %v4102
        %5153 = vmatmul.mubr.bf16.gmra.mrb[0].mxu0 %v4101
        %v5154 = vpop.f32.mrb[0].mxu0
        %v5155 = vadd.f32 %v5114, %v5154
        %v5156 = vpop.f32.mrb[0].mxu0
        %v5157 = vpop.f32.mrb[0].mxu0
        %v5158 = vadd.f32 %v5117, %v5157
        %v5159 = vpop.f32.mrb[0].mxu0
        %5160 = vdwg.mxu0
        %5161 = vmatprep.subr.bf16.mxu0 %v1440
        %5162 = vmatpush1.bf16.xpose.msra.mxu0 %v1439
        %5163 = vmatprep.subr.bf16.mxu0 0
        %5164 = vmatpush1.bf16.xpose.msra.mxu0 0
        %5165 = vmatprep.subr.bf16.mxu0 0
        %5166 = vmatpush1.bf16.xpose.msra.mxu0 0
        %5167 = vmatprep.subr.bf16.mxu0 0
        %5168 = vmatpush1.bf16.xpose.msra.mxu0 0
        %5169 = vmatprep.subr.bf16.mxu0 0
        %5170 = vmatpush1.bf16.xpose.msra.mxu0 0
        %5171 = vmatprep.subr.bf16.mxu0 0
        %5172 = vmatpush1.bf16.xpose.msra.mxu0 0
        %5173 = vmatprep.subr.bf16.mxu0 0
        %5174 = vmatpush1.bf16.xpose.msra.mxu0 0
        %5175 = vmatprep.subr.bf16.mxu0 0
        %5176 = vmatpush1.bf16.xpose.msra.mxu0 0
        %5177 = vmatprep.subr.bf16.mxu0 0
        %5178 = vmatpush1.bf16.xpose.msra.mxu0 0
        %5179 = vmatprep.subr.bf16.mxu0 0
        %5180 = vmatpush1.bf16.xpose.msra.mxu0 0
        %5181 = vmatprep.subr.bf16.mxu0 0
        %5182 = vmatpush1.bf16.xpose.msra.mxu0 0
        %5183 = vmatprep.subr.bf16.mxu0 0
        %5184 = vmatpush1.bf16.xpose.msra.mxu0 0
        %5185 = vmatprep.subr.bf16.mxu0 0
        %5186 = vmatpush1.bf16.xpose.msra.mxu0 0
        %5187 = vmatprep.subr.bf16.mxu0 0
        %5188 = vmatpush1.bf16.xpose.msra.mxu0 0
        %5189 = vmatprep.subr.bf16.mxu0 0
        %5190 = vmatpush1.bf16.xpose.msra.mxu0 0
        %5191 = vmatprep.subr.bf16.mxu0 0
        %5192 = vmatpush1.bf16.xpose.msra.mxu0 0
        %5193 = vmatprep.mubr.bf16.mxu0 %v4104
        %5194 = vmatmul.mubr.bf16.gmra.mrb[0].mxu0 %v4103
        %v5195 = vpop.f32.mrb[0].mxu0
        %v5196 = vadd.f32 %v5155, %v5195
        %v5197 = vpop.f32.mrb[0].mxu0
        %v5198 = vpop.f32.mrb[0].mxu0
        %v5199 = vadd.f32 %v5158, %v5198
        %v5200 = vpop.f32.mrb[0].mxu0
        %5201 = vdwg.mxu0
        %5202 = vmatprep.subr.bf16.mxu0 %v1442
        %5203 = vmatpush1.bf16.xpose.msra.mxu0 %v1441
        %5204 = vmatprep.subr.bf16.mxu0 0
        %5205 = vmatpush1.bf16.xpose.msra.mxu0 0
        %5206 = vmatprep.subr.bf16.mxu0 0
        %5207 = vmatpush1.bf16.xpose.msra.mxu0 0
        %5208 = vmatprep.subr.bf16.mxu0 0
        %5209 = vmatpush1.bf16.xpose.msra.mxu0 0
        %5210 = vmatprep.subr.bf16.mxu0 0
        %5211 = vmatpush1.bf16.xpose.msra.mxu0 0
        %5212 = vmatprep.subr.bf16.mxu0 0
        %5213 = vmatpush1.bf16.xpose.msra.mxu0 0
        %5214 = vmatprep.subr.bf16.mxu0 0
        %5215 = vmatpush1.bf16.xpose.msra.mxu0 0
        %5216 = vmatprep.subr.bf16.mxu0 0
        %5217 = vmatpush1.bf16.xpose.msra.mxu0 0
        %5218 = vmatprep.subr.bf16.mxu0 0
        %5219 = vmatpush1.bf16.xpose.msra.mxu0 0
        %5220 = vmatprep.subr.bf16.mxu0 0
        %5221 = vmatpush1.bf16.xpose.msra.mxu0 0
        %5222 = vmatprep.subr.bf16.mxu0 0
        %5223 = vmatpush1.bf16.xpose.msra.mxu0 0
        %5224 = vmatprep.subr.bf16.mxu0 0
        %5225 = vmatpush1.bf16.xpose.msra.mxu0 0
        %5226 = vmatprep.subr.bf16.mxu0 0
        %5227 = vmatpush1.bf16.xpose.msra.mxu0 0
        %5228 = vmatprep.subr.bf16.mxu0 0
        %5229 = vmatpush1.bf16.xpose.msra.mxu0 0
        %5230 = vmatprep.subr.bf16.mxu0 0
        %5231 = vmatpush1.bf16.xpose.msra.mxu0 0
        %5232 = vmatprep.subr.bf16.mxu0 0
        %5233 = vmatpush1.bf16.xpose.msra.mxu0 0
        %5234 = vmatprep.mubr.bf16.mxu0 %v4106
        %5235 = vmatmul.mubr.bf16.gmra.mrb[0].mxu0 %v4105
        %v5236 = vpop.f32.mrb[0].mxu0
        %v5237 = vadd.f32 %v5196, %v5236
        %v5238 = vpop.f32.mrb[0].mxu0
        %v5239 = vpop.f32.mrb[0].mxu0
        %v5240 = vadd.f32 %v5199, %v5239
        %v5241 = vpop.f32.mrb[0].mxu0
        %5242 = vdwg.mxu0
        %5243 = vmatprep.subr.bf16.mxu0 %v1444
        %5244 = vmatpush1.bf16.xpose.msra.mxu0 %v1443
        %5245 = vmatprep.subr.bf16.mxu0 0
        %5246 = vmatpush1.bf16.xpose.msra.mxu0 0
        %5247 = vmatprep.subr.bf16.mxu0 0
        %5248 = vmatpush1.bf16.xpose.msra.mxu0 0
        %5249 = vmatprep.subr.bf16.mxu0 0
        %5250 = vmatpush1.bf16.xpose.msra.mxu0 0
        %5251 = vmatprep.subr.bf16.mxu0 0
        %5252 = vmatpush1.bf16.xpose.msra.mxu0 0
        %5253 = vmatprep.subr.bf16.mxu0 0
        %5254 = vmatpush1.bf16.xpose.msra.mxu0 0
        %5255 = vmatprep.subr.bf16.mxu0 0
        %5256 = vmatpush1.bf16.xpose.msra.mxu0 0
        %5257 = vmatprep.subr.bf16.mxu0 0
        %5258 = vmatpush1.bf16.xpose.msra.mxu0 0
        %5259 = vmatprep.subr.bf16.mxu0 0
        %5260 = vmatpush1.bf16.xpose.msra.mxu0 0
        %5261 = vmatprep.subr.bf16.mxu0 0
        %5262 = vmatpush1.bf16.xpose.msra.mxu0 0
        %5263 = vmatprep.subr.bf16.mxu0 0
        %5264 = vmatpush1.bf16.xpose.msra.mxu0 0
        %5265 = vmatprep.subr.bf16.mxu0 0
        %5266 = vmatpush1.bf16.xpose.msra.mxu0 0
        %5267 = vmatprep.subr.bf16.mxu0 0
        %5268 = vmatpush1.bf16.xpose.msra.mxu0 0
        %5269 = vmatprep.subr.bf16.mxu0 0
        %5270 = vmatpush1.bf16.xpose.msra.mxu0 0
        %5271 = vmatprep.subr.bf16.mxu0 0
        %5272 = vmatpush1.bf16.xpose.msra.mxu0 0
        %5273 = vmatprep.subr.bf16.mxu0 0
        %5274 = vmatpush1.bf16.xpose.msra.mxu0 0
        %5275 = vmatprep.mubr.bf16.mxu0 %v4108
        %5276 = vmatmul.mubr.bf16.gmra.mrb[0].mxu0 %v4107
        %v5277 = vpop.f32.mrb[0].mxu0
        %v5278 = vadd.f32 %v5237, %v5277
        %v5279 = vpop.f32.mrb[0].mxu0
        %v5280 = vpop.f32.mrb[0].mxu0
        %v5281 = vadd.f32 %v5240, %v5280
        %v5282 = vpop.f32.mrb[0].mxu0
        %5283 = vdwg.mxu0
        %5284 = vmatprep.subr.bf16.mxu0 %v1446
        %5285 = vmatpush1.bf16.xpose.msra.mxu0 %v1445
        %5286 = vmatprep.subr.bf16.mxu0 0
        %5287 = vmatpush1.bf16.xpose.msra.mxu0 0
        %5288 = vmatprep.subr.bf16.mxu0 0
        %5289 = vmatpush1.bf16.xpose.msra.mxu0 0
        %5290 = vmatprep.subr.bf16.mxu0 0
        %5291 = vmatpush1.bf16.xpose.msra.mxu0 0
        %5292 = vmatprep.subr.bf16.mxu0 0
        %5293 = vmatpush1.bf16.xpose.msra.mxu0 0
        %5294 = vmatprep.subr.bf16.mxu0 0
        %5295 = vmatpush1.bf16.xpose.msra.mxu0 0
        %5296 = vmatprep.subr.bf16.mxu0 0
        %5297 = vmatpush1.bf16.xpose.msra.mxu0 0
        %5298 = vmatprep.subr.bf16.mxu0 0
        %5299 = vmatpush1.bf16.xpose.msra.mxu0 0
        %5300 = vmatprep.subr.bf16.mxu0 0
        %5301 = vmatpush1.bf16.xpose.msra.mxu0 0
        %5302 = vmatprep.subr.bf16.mxu0 0
        %5303 = vmatpush1.bf16.xpose.msra.mxu0 0
        %5304 = vmatprep.subr.bf16.mxu0 0
        %5305 = vmatpush1.bf16.xpose.msra.mxu0 0
        %5306 = vmatprep.subr.bf16.mxu0 0
        %5307 = vmatpush1.bf16.xpose.msra.mxu0 0
        %5308 = vmatprep.subr.bf16.mxu0 0
        %5309 = vmatpush1.bf16.xpose.msra.mxu0 0
        %5310 = vmatprep.subr.bf16.mxu0 0
        %5311 = vmatpush1.bf16.xpose.msra.mxu0 0
        %5312 = vmatprep.subr.bf16.mxu0 0
        %5313 = vmatpush1.bf16.xpose.msra.mxu0 0
        %5314 = vmatprep.subr.bf16.mxu0 0
        %5315 = vmatpush1.bf16.xpose.msra.mxu0 0
        %5316 = vmatprep.mubr.bf16.mxu0 %v4110
        %5317 = vmatmul.mubr.bf16.gmra.mrb[0].mxu0 %v4109
        %v5318 = vpop.f32.mrb[0].mxu0
        %v5319 = vadd.f32 %v5278, %v5318
        %v5320 = vpop.f32.mrb[0].mxu0
        %v5321 = vpop.f32.mrb[0].mxu0
        %v5322 = vadd.f32 %v5281, %v5321
        %v5323 = vpop.f32.mrb[0].mxu0
        %5324 = vdwg.mxu0
        %5325 = vmatprep.subr.bf16.mxu0 %v1448
        %5326 = vmatpush1.bf16.xpose.msra.mxu0 %v1447
        %5327 = vmatprep.subr.bf16.mxu0 0
        %5328 = vmatpush1.bf16.xpose.msra.mxu0 0
        %5329 = vmatprep.subr.bf16.mxu0 0
        %5330 = vmatpush1.bf16.xpose.msra.mxu0 0
        %5331 = vmatprep.subr.bf16.mxu0 0
        %5332 = vmatpush1.bf16.xpose.msra.mxu0 0
        %5333 = vmatprep.subr.bf16.mxu0 0
        %5334 = vmatpush1.bf16.xpose.msra.mxu0 0
        %5335 = vmatprep.subr.bf16.mxu0 0
        %5336 = vmatpush1.bf16.xpose.msra.mxu0 0
        %5337 = vmatprep.subr.bf16.mxu0 0
        %5338 = vmatpush1.bf16.xpose.msra.mxu0 0
        %5339 = vmatprep.subr.bf16.mxu0 0
        %5340 = vmatpush1.bf16.xpose.msra.mxu0 0
        %5341 = vmatprep.subr.bf16.mxu0 0
        %5342 = vmatpush1.bf16.xpose.msra.mxu0 0
        %5343 = vmatprep.subr.bf16.mxu0 0
        %5344 = vmatpush1.bf16.xpose.msra.mxu0 0
        %5345 = vmatprep.subr.bf16.mxu0 0
        %5346 = vmatpush1.bf16.xpose.msra.mxu0 0
        %5347 = vmatprep.subr.bf16.mxu0 0
        %5348 = vmatpush1.bf16.xpose.msra.mxu0 0
        %5349 = vmatprep.subr.bf16.mxu0 0
        %5350 = vmatpush1.bf16.xpose.msra.mxu0 0
        %5351 = vmatprep.subr.bf16.mxu0 0
        %5352 = vmatpush1.bf16.xpose.msra.mxu0 0
        %5353 = vmatprep.subr.bf16.mxu0 0
        %5354 = vmatpush1.bf16.xpose.msra.mxu0 0
        %5355 = vmatprep.subr.bf16.mxu0 0
        %5356 = vmatpush1.bf16.xpose.msra.mxu0 0
        %5357 = vmatprep.mubr.bf16.mxu0 %v4112
        %5358 = vmatmul.mubr.bf16.gmra.mrb[0].mxu0 %v4111
        %v5359 = vpop.f32.mrb[0].mxu0
        %v5360 = vadd.f32 %v5319, %v5359
        %v5361 = vpop.f32.mrb[0].mxu0
        %v5362 = vpop.f32.mrb[0].mxu0
        %v5363 = vadd.f32 %v5322, %v5362
        %v5364 = vpop.f32.mrb[0].mxu0
        %5365 = vdwg.mxu0
        %5366 = vmatprep.subr.bf16.mxu0 %v1450
        %5367 = vmatpush1.bf16.xpose.msra.mxu0 %v1449
        %5368 = vmatprep.subr.bf16.mxu0 0
        %5369 = vmatpush1.bf16.xpose.msra.mxu0 0
        %5370 = vmatprep.subr.bf16.mxu0 0
        %5371 = vmatpush1.bf16.xpose.msra.mxu0 0
        %5372 = vmatprep.subr.bf16.mxu0 0
        %5373 = vmatpush1.bf16.xpose.msra.mxu0 0
        %5374 = vmatprep.subr.bf16.mxu0 0
        %5375 = vmatpush1.bf16.xpose.msra.mxu0 0
        %5376 = vmatprep.subr.bf16.mxu0 0
        %5377 = vmatpush1.bf16.xpose.msra.mxu0 0
        %5378 = vmatprep.subr.bf16.mxu0 0
        %5379 = vmatpush1.bf16.xpose.msra.mxu0 0
        %5380 = vmatprep.subr.bf16.mxu0 0
        %5381 = vmatpush1.bf16.xpose.msra.mxu0 0
        %5382 = vmatprep.subr.bf16.mxu0 0
        %5383 = vmatpush1.bf16.xpose.msra.mxu0 0
        %5384 = vmatprep.subr.bf16.mxu0 0
        %5385 = vmatpush1.bf16.xpose.msra.mxu0 0
        %5386 = vmatprep.subr.bf16.mxu0 0
        %5387 = vmatpush1.bf16.xpose.msra.mxu0 0
        %5388 = vmatprep.subr.bf16.mxu0 0
        %5389 = vmatpush1.bf16.xpose.msra.mxu0 0
        %5390 = vmatprep.subr.bf16.mxu0 0
        %5391 = vmatpush1.bf16.xpose.msra.mxu0 0
        %5392 = vmatprep.subr.bf16.mxu0 0
        %5393 = vmatpush1.bf16.xpose.msra.mxu0 0
        %5394 = vmatprep.subr.bf16.mxu0 0
        %5395 = vmatpush1.bf16.xpose.msra.mxu0 0
        %5396 = vmatprep.subr.bf16.mxu0 0
        %5397 = vmatpush1.bf16.xpose.msra.mxu0 0
        %5398 = vmatprep.mubr.bf16.mxu0 %v4114
        %5399 = vmatmul.mubr.bf16.gmra.mrb[0].mxu0 %v4113
        %v5400 = vpop.f32.mrb[0].mxu0
        %v5401 = vadd.f32 %v5360, %v5400
        %v5402 = vpop.f32.mrb[0].mxu0
        %v5403 = vpop.f32.mrb[0].mxu0
        %v5404 = vadd.f32 %v5363, %v5403
        %v5405 = vpop.f32.mrb[0].mxu0
        %5406 = vdwg.mxu0
        %5407 = vmatprep.subr.bf16.mxu0 %v1452
        %5408 = vmatpush1.bf16.xpose.msra.mxu0 %v1451
        %5409 = vmatprep.subr.bf16.mxu0 0
        %5410 = vmatpush1.bf16.xpose.msra.mxu0 0
        %5411 = vmatprep.subr.bf16.mxu0 0
        %5412 = vmatpush1.bf16.xpose.msra.mxu0 0
        %5413 = vmatprep.subr.bf16.mxu0 0
        %5414 = vmatpush1.bf16.xpose.msra.mxu0 0
        %5415 = vmatprep.subr.bf16.mxu0 0
        %5416 = vmatpush1.bf16.xpose.msra.mxu0 0
        %5417 = vmatprep.subr.bf16.mxu0 0
        %5418 = vmatpush1.bf16.xpose.msra.mxu0 0
        %5419 = vmatprep.subr.bf16.mxu0 0
        %5420 = vmatpush1.bf16.xpose.msra.mxu0 0
        %5421 = vmatprep.subr.bf16.mxu0 0
        %5422 = vmatpush1.bf16.xpose.msra.mxu0 0
        %5423 = vmatprep.subr.bf16.mxu0 0
        %5424 = vmatpush1.bf16.xpose.msra.mxu0 0
        %5425 = vmatprep.subr.bf16.mxu0 0
        %5426 = vmatpush1.bf16.xpose.msra.mxu0 0
        %5427 = vmatprep.subr.bf16.mxu0 0
        %5428 = vmatpush1.bf16.xpose.msra.mxu0 0
        %5429 = vmatprep.subr.bf16.mxu0 0
        %5430 = vmatpush1.bf16.xpose.msra.mxu0 0
        %5431 = vmatprep.subr.bf16.mxu0 0
        %5432 = vmatpush1.bf16.xpose.msra.mxu0 0
        %5433 = vmatprep.subr.bf16.mxu0 0
        %5434 = vmatpush1.bf16.xpose.msra.mxu0 0
        %5435 = vmatprep.subr.bf16.mxu0 0
        %5436 = vmatpush1.bf16.xpose.msra.mxu0 0
        %5437 = vmatprep.subr.bf16.mxu0 0
        %5438 = vmatpush1.bf16.xpose.msra.mxu0 0
        %5439 = vmatprep.mubr.bf16.mxu0 %v4116
        %5440 = vmatmul.mubr.bf16.gmra.mrb[0].mxu0 %v4115
        %v5441 = vpop.f32.mrb[0].mxu0
        %v5442 = vadd.f32 %v5401, %v5441
        %v5443 = vpop.f32.mrb[0].mxu0
        %v5444 = vpop.f32.mrb[0].mxu0
        %v5445 = vadd.f32 %v5404, %v5444
        %v5446 = vpop.f32.mrb[0].mxu0
        %5447 = vdwg.mxu0
        %5448 = vmatprep.subr.bf16.mxu0 %v1454
        %5449 = vmatpush1.bf16.xpose.msra.mxu0 %v1453
        %5450 = vmatprep.subr.bf16.mxu0 0
        %5451 = vmatpush1.bf16.xpose.msra.mxu0 0
        %5452 = vmatprep.subr.bf16.mxu0 0
        %5453 = vmatpush1.bf16.xpose.msra.mxu0 0
        %5454 = vmatprep.subr.bf16.mxu0 0
        %5455 = vmatpush1.bf16.xpose.msra.mxu0 0
        %5456 = vmatprep.subr.bf16.mxu0 0
        %5457 = vmatpush1.bf16.xpose.msra.mxu0 0
        %5458 = vmatprep.subr.bf16.mxu0 0
        %5459 = vmatpush1.bf16.xpose.msra.mxu0 0
        %5460 = vmatprep.subr.bf16.mxu0 0
        %5461 = vmatpush1.bf16.xpose.msra.mxu0 0
        %5462 = vmatprep.subr.bf16.mxu0 0
        %5463 = vmatpush1.bf16.xpose.msra.mxu0 0
        %5464 = vmatprep.subr.bf16.mxu0 0
        %5465 = vmatpush1.bf16.xpose.msra.mxu0 0
        %5466 = vmatprep.subr.bf16.mxu0 0
        %5467 = vmatpush1.bf16.xpose.msra.mxu0 0
        %5468 = vmatprep.subr.bf16.mxu0 0
        %5469 = vmatpush1.bf16.xpose.msra.mxu0 0
        %5470 = vmatprep.subr.bf16.mxu0 0
        %5471 = vmatpush1.bf16.xpose.msra.mxu0 0
        %5472 = vmatprep.subr.bf16.mxu0 0
        %5473 = vmatpush1.bf16.xpose.msra.mxu0 0
        %5474 = vmatprep.subr.bf16.mxu0 0
        %5475 = vmatpush1.bf16.xpose.msra.mxu0 0
        %5476 = vmatprep.subr.bf16.mxu0 0
        %5477 = vmatpush1.bf16.xpose.msra.mxu0 0
        %5478 = vmatprep.subr.bf16.mxu0 0
        %5479 = vmatpush1.bf16.xpose.msra.mxu0 0
        %5480 = vmatprep.mubr.bf16.mxu0 %v4118
        %5481 = vmatmul.mubr.bf16.gmra.mrb[0].mxu0 %v4117
        %v5482 = vpop.f32.mrb[0].mxu0
        %v5483 = vadd.f32 %v5442, %v5482
        %v5484 = vpop.f32.mrb[0].mxu0
        %v5485 = vpop.f32.mrb[0].mxu0
        %v5486 = vadd.f32 %v5445, %v5485
        %v5487 = vpop.f32.mrb[0].mxu0
        %5488 = vdwg.mxu0
        %5489 = vmatprep.subr.bf16.mxu0 %v1456
        %5490 = vmatpush1.bf16.xpose.msra.mxu0 %v1455
        %5491 = vmatprep.subr.bf16.mxu0 0
        %5492 = vmatpush1.bf16.xpose.msra.mxu0 0
        %5493 = vmatprep.subr.bf16.mxu0 0
        %5494 = vmatpush1.bf16.xpose.msra.mxu0 0
        %5495 = vmatprep.subr.bf16.mxu0 0
        %5496 = vmatpush1.bf16.xpose.msra.mxu0 0
        %5497 = vmatprep.subr.bf16.mxu0 0
        %5498 = vmatpush1.bf16.xpose.msra.mxu0 0
        %5499 = vmatprep.subr.bf16.mxu0 0
        %5500 = vmatpush1.bf16.xpose.msra.mxu0 0
        %5501 = vmatprep.subr.bf16.mxu0 0
        %5502 = vmatpush1.bf16.xpose.msra.mxu0 0
        %5503 = vmatprep.subr.bf16.mxu0 0
        %5504 = vmatpush1.bf16.xpose.msra.mxu0 0
        %5505 = vmatprep.subr.bf16.mxu0 0
        %5506 = vmatpush1.bf16.xpose.msra.mxu0 0
        %5507 = vmatprep.subr.bf16.mxu0 0
        %5508 = vmatpush1.bf16.xpose.msra.mxu0 0
        %5509 = vmatprep.subr.bf16.mxu0 0
        %5510 = vmatpush1.bf16.xpose.msra.mxu0 0
        %5511 = vmatprep.subr.bf16.mxu0 0
        %5512 = vmatpush1.bf16.xpose.msra.mxu0 0
        %5513 = vmatprep.subr.bf16.mxu0 0
        %5514 = vmatpush1.bf16.xpose.msra.mxu0 0
        %5515 = vmatprep.subr.bf16.mxu0 0
        %5516 = vmatpush1.bf16.xpose.msra.mxu0 0
        %5517 = vmatprep.subr.bf16.mxu0 0
        %5518 = vmatpush1.bf16.xpose.msra.mxu0 0
        %5519 = vmatprep.subr.bf16.mxu0 0
        %5520 = vmatpush1.bf16.xpose.msra.mxu0 0
        %5521 = vmatprep.mubr.bf16.mxu0 %v4120
        %5522 = vmatmul.mubr.bf16.gmra.mrb[0].mxu0 %v4119
        %v5523 = vpop.f32.mrb[0].mxu0
        %v5524 = vadd.f32 %v5483, %v5523
        %v5525 = vpop.f32.mrb[0].mxu0
        %v5526 = vpop.f32.mrb[0].mxu0
        %v5527 = vadd.f32 %v5486, %v5526
        %v5528 = vpop.f32.mrb[0].mxu0
        %5529 = vdwg.mxu0
        %5530 = vmatprep.subr.bf16.mxu0 %v1458
        %5531 = vmatpush1.bf16.xpose.msra.mxu0 %v1457
        %5532 = vmatprep.subr.bf16.mxu0 0
        %5533 = vmatpush1.bf16.xpose.msra.mxu0 0
        %5534 = vmatprep.subr.bf16.mxu0 0
        %5535 = vmatpush1.bf16.xpose.msra.mxu0 0
        %5536 = vmatprep.subr.bf16.mxu0 0
        %5537 = vmatpush1.bf16.xpose.msra.mxu0 0
        %5538 = vmatprep.subr.bf16.mxu0 0
        %5539 = vmatpush1.bf16.xpose.msra.mxu0 0
        %5540 = vmatprep.subr.bf16.mxu0 0
        %5541 = vmatpush1.bf16.xpose.msra.mxu0 0
        %5542 = vmatprep.subr.bf16.mxu0 0
        %5543 = vmatpush1.bf16.xpose.msra.mxu0 0
        %5544 = vmatprep.subr.bf16.mxu0 0
        %5545 = vmatpush1.bf16.xpose.msra.mxu0 0
        %5546 = vmatprep.subr.bf16.mxu0 0
        %5547 = vmatpush1.bf16.xpose.msra.mxu0 0
        %5548 = vmatprep.subr.bf16.mxu0 0
        %5549 = vmatpush1.bf16.xpose.msra.mxu0 0
        %5550 = vmatprep.subr.bf16.mxu0 0
        %5551 = vmatpush1.bf16.xpose.msra.mxu0 0
        %5552 = vmatprep.subr.bf16.mxu0 0
        %5553 = vmatpush1.bf16.xpose.msra.mxu0 0
        %5554 = vmatprep.subr.bf16.mxu0 0
        %5555 = vmatpush1.bf16.xpose.msra.mxu0 0
        %5556 = vmatprep.subr.bf16.mxu0 0
        %5557 = vmatpush1.bf16.xpose.msra.mxu0 0
        %5558 = vmatprep.subr.bf16.mxu0 0
        %5559 = vmatpush1.bf16.xpose.msra.mxu0 0
        %5560 = vmatprep.subr.bf16.mxu0 0
        %5561 = vmatpush1.bf16.xpose.msra.mxu0 0
        %5562 = vmatprep.mubr.bf16.mxu0 %v4122
        %5563 = vmatmul.mubr.bf16.gmra.mrb[0].mxu0 %v4121
        %v5564 = vpop.f32.mrb[0].mxu0
        %v5565 = vadd.f32 %v5524, %v5564
        %v5566 = vpop.f32.mrb[0].mxu0
        %v5567 = vpop.f32.mrb[0].mxu0
        %v5568 = vadd.f32 %v5527, %v5567
        %v5569 = vpop.f32.mrb[0].mxu0
        %5570 = vdwg.mxu0
        %5571 = vmatprep.subr.bf16.mxu0 %v1460
        %5572 = vmatpush1.bf16.xpose.msra.mxu0 %v1459
        %5573 = vmatprep.subr.bf16.mxu0 0
        %5574 = vmatpush1.bf16.xpose.msra.mxu0 0
        %5575 = vmatprep.subr.bf16.mxu0 0
        %5576 = vmatpush1.bf16.xpose.msra.mxu0 0
        %5577 = vmatprep.subr.bf16.mxu0 0
        %5578 = vmatpush1.bf16.xpose.msra.mxu0 0
        %5579 = vmatprep.subr.bf16.mxu0 0
        %5580 = vmatpush1.bf16.xpose.msra.mxu0 0
        %5581 = vmatprep.subr.bf16.mxu0 0
        %5582 = vmatpush1.bf16.xpose.msra.mxu0 0
        %5583 = vmatprep.subr.bf16.mxu0 0
        %5584 = vmatpush1.bf16.xpose.msra.mxu0 0
        %5585 = vmatprep.subr.bf16.mxu0 0
        %5586 = vmatpush1.bf16.xpose.msra.mxu0 0
        %5587 = vmatprep.subr.bf16.mxu0 0
        %5588 = vmatpush1.bf16.xpose.msra.mxu0 0
        %5589 = vmatprep.subr.bf16.mxu0 0
        %5590 = vmatpush1.bf16.xpose.msra.mxu0 0
        %5591 = vmatprep.subr.bf16.mxu0 0
        %5592 = vmatpush1.bf16.xpose.msra.mxu0 0
        %5593 = vmatprep.subr.bf16.mxu0 0
        %5594 = vmatpush1.bf16.xpose.msra.mxu0 0
        %5595 = vmatprep.subr.bf16.mxu0 0
        %5596 = vmatpush1.bf16.xpose.msra.mxu0 0
        %5597 = vmatprep.subr.bf16.mxu0 0
        %5598 = vmatpush1.bf16.xpose.msra.mxu0 0
        %5599 = vmatprep.subr.bf16.mxu0 0
        %5600 = vmatpush1.bf16.xpose.msra.mxu0 0
        %5601 = vmatprep.subr.bf16.mxu0 0
        %5602 = vmatpush1.bf16.xpose.msra.mxu0 0
        %5603 = vmatprep.mubr.bf16.mxu0 %v4124
        %5604 = vmatmul.mubr.bf16.gmra.mrb[0].mxu0 %v4123
        %v5605 = vpop.f32.mrb[0].mxu0
        %v5606 = vadd.f32 %v5565, %v5605
        %v5607 = vpop.f32.mrb[0].mxu0
        %v5608 = vpop.f32.mrb[0].mxu0
        %v5609 = vadd.f32 %v5568, %v5608
        %v5610 = vpop.f32.mrb[0].mxu0
        %5611 = vdwg.mxu0
        %5612 = vmatprep.subr.bf16.mxu0 %v1462
        %5613 = vmatpush1.bf16.xpose.msra.mxu0 %v1461
        %5614 = vmatprep.subr.bf16.mxu0 0
        %5615 = vmatpush1.bf16.xpose.msra.mxu0 0
        %5616 = vmatprep.subr.bf16.mxu0 0
        %5617 = vmatpush1.bf16.xpose.msra.mxu0 0
        %5618 = vmatprep.subr.bf16.mxu0 0
        %5619 = vmatpush1.bf16.xpose.msra.mxu0 0
        %5620 = vmatprep.subr.bf16.mxu0 0
        %5621 = vmatpush1.bf16.xpose.msra.mxu0 0
        %5622 = vmatprep.subr.bf16.mxu0 0
        %5623 = vmatpush1.bf16.xpose.msra.mxu0 0
        %5624 = vmatprep.subr.bf16.mxu0 0
        %5625 = vmatpush1.bf16.xpose.msra.mxu0 0
        %5626 = vmatprep.subr.bf16.mxu0 0
        %5627 = vmatpush1.bf16.xpose.msra.mxu0 0
        %5628 = vmatprep.subr.bf16.mxu0 0
        %5629 = vmatpush1.bf16.xpose.msra.mxu0 0
        %5630 = vmatprep.subr.bf16.mxu0 0
        %5631 = vmatpush1.bf16.xpose.msra.mxu0 0
        %5632 = vmatprep.subr.bf16.mxu0 0
        %5633 = vmatpush1.bf16.xpose.msra.mxu0 0
        %5634 = vmatprep.subr.bf16.mxu0 0
        %5635 = vmatpush1.bf16.xpose.msra.mxu0 0
        %5636 = vmatprep.subr.bf16.mxu0 0
        %5637 = vmatpush1.bf16.xpose.msra.mxu0 0
        %5638 = vmatprep.subr.bf16.mxu0 0
        %5639 = vmatpush1.bf16.xpose.msra.mxu0 0
        %5640 = vmatprep.subr.bf16.mxu0 0
        %5641 = vmatpush1.bf16.xpose.msra.mxu0 0
        %5642 = vmatprep.subr.bf16.mxu0 0
        %5643 = vmatpush1.bf16.xpose.msra.mxu0 0
        %5644 = vmatprep.mubr.bf16.mxu0 %v4126
        %5645 = vmatmul.mubr.bf16.gmra.mrb[0].mxu0 %v4125
        %v5646 = vpop.f32.mrb[0].mxu0
        %v5647 = vadd.f32 %v5606, %v5646
        %v5648 = vpop.f32.mrb[0].mxu0
        %v5649 = vpop.f32.mrb[0].mxu0
        %v5650 = vadd.f32 %v5609, %v5649
        %v5651 = vpop.f32.mrb[0].mxu0
        %5652 = vdwg.mxu0
        %5653 = vmatprep.subr.bf16.mxu0 %v1464
        %5654 = vmatpush1.bf16.xpose.msra.mxu0 %v1463
        %5655 = vmatprep.subr.bf16.mxu0 0
        %5656 = vmatpush1.bf16.xpose.msra.mxu0 0
        %5657 = vmatprep.subr.bf16.mxu0 0
        %5658 = vmatpush1.bf16.xpose.msra.mxu0 0
        %5659 = vmatprep.subr.bf16.mxu0 0
        %5660 = vmatpush1.bf16.xpose.msra.mxu0 0
        %5661 = vmatprep.subr.bf16.mxu0 0
        %5662 = vmatpush1.bf16.xpose.msra.mxu0 0
        %5663 = vmatprep.subr.bf16.mxu0 0
        %5664 = vmatpush1.bf16.xpose.msra.mxu0 0
        %5665 = vmatprep.subr.bf16.mxu0 0
        %5666 = vmatpush1.bf16.xpose.msra.mxu0 0
        %5667 = vmatprep.subr.bf16.mxu0 0
        %5668 = vmatpush1.bf16.xpose.msra.mxu0 0
        %5669 = vmatprep.subr.bf16.mxu0 0
        %5670 = vmatpush1.bf16.xpose.msra.mxu0 0
        %5671 = vmatprep.subr.bf16.mxu0 0
        %5672 = vmatpush1.bf16.xpose.msra.mxu0 0
        %5673 = vmatprep.subr.bf16.mxu0 0
        %5674 = vmatpush1.bf16.xpose.msra.mxu0 0
        %5675 = vmatprep.subr.bf16.mxu0 0
        %5676 = vmatpush1.bf16.xpose.msra.mxu0 0
        %5677 = vmatprep.subr.bf16.mxu0 0
        %5678 = vmatpush1.bf16.xpose.msra.mxu0 0
        %5679 = vmatprep.subr.bf16.mxu0 0
        %5680 = vmatpush1.bf16.xpose.msra.mxu0 0
        %5681 = vmatprep.subr.bf16.mxu0 0
        %5682 = vmatpush1.bf16.xpose.msra.mxu0 0
        %5683 = vmatprep.subr.bf16.mxu0 0
        %5684 = vmatpush1.bf16.xpose.msra.mxu0 0
        %5685 = vmatprep.mubr.bf16.mxu0 %v4128
        %5686 = vmatmul.mubr.bf16.gmra.mrb[0].mxu0 %v4127
        %v5687 = vpop.f32.mrb[0].mxu0
        %v5688 = vadd.f32 %v5647, %v5687
        %v5689 = vpop.f32.mrb[0].mxu0
        %v5690 = vpop.f32.mrb[0].mxu0
        %v5691 = vadd.f32 %v5650, %v5690
        %v5692 = vpop.f32.mrb[0].mxu0
        %5693 = vdwg.mxu0
        %5694 = vmatprep.subr.bf16.mxu0 %v1466
        %5695 = vmatpush1.bf16.xpose.msra.mxu0 %v1465
        %5696 = vmatprep.subr.bf16.mxu0 0
        %5697 = vmatpush1.bf16.xpose.msra.mxu0 0
        %5698 = vmatprep.subr.bf16.mxu0 0
        %5699 = vmatpush1.bf16.xpose.msra.mxu0 0
        %5700 = vmatprep.subr.bf16.mxu0 0
        %5701 = vmatpush1.bf16.xpose.msra.mxu0 0
        %5702 = vmatprep.subr.bf16.mxu0 0
        %5703 = vmatpush1.bf16.xpose.msra.mxu0 0
        %5704 = vmatprep.subr.bf16.mxu0 0
        %5705 = vmatpush1.bf16.xpose.msra.mxu0 0
        %5706 = vmatprep.subr.bf16.mxu0 0
        %5707 = vmatpush1.bf16.xpose.msra.mxu0 0
        %5708 = vmatprep.subr.bf16.mxu0 0
        %5709 = vmatpush1.bf16.xpose.msra.mxu0 0
        %5710 = vmatprep.subr.bf16.mxu0 0
        %5711 = vmatpush1.bf16.xpose.msra.mxu0 0
        %5712 = vmatprep.subr.bf16.mxu0 0
        %5713 = vmatpush1.bf16.xpose.msra.mxu0 0
        %5714 = vmatprep.subr.bf16.mxu0 0
        %5715 = vmatpush1.bf16.xpose.msra.mxu0 0
        %5716 = vmatprep.subr.bf16.mxu0 0
        %5717 = vmatpush1.bf16.xpose.msra.mxu0 0
        %5718 = vmatprep.subr.bf16.mxu0 0
        %5719 = vmatpush1.bf16.xpose.msra.mxu0 0
        %5720 = vmatprep.subr.bf16.mxu0 0
        %5721 = vmatpush1.bf16.xpose.msra.mxu0 0
        %5722 = vmatprep.subr.bf16.mxu0 0
        %5723 = vmatpush1.bf16.xpose.msra.mxu0 0
        %5724 = vmatprep.subr.bf16.mxu0 0
        %5725 = vmatpush1.bf16.xpose.msra.mxu0 0
        %5726 = vmatprep.mubr.bf16.mxu0 %v4130
        %5727 = vmatmul.mubr.bf16.gmra.mrb[0].mxu0 %v4129
        %v5728 = vpop.f32.mrb[0].mxu0
        %v5729 = vadd.f32 %v5688, %v5728
        %v5730 = vpop.f32.mrb[0].mxu0
        %v5731 = vpop.f32.mrb[0].mxu0
        %v5732 = vadd.f32 %v5691, %v5731
        %v5733 = vpop.f32.mrb[0].mxu0
        %5734 = vdwg.mxu0
        %5735 = vmatprep.subr.bf16.mxu0 %v1468
        %5736 = vmatpush1.bf16.xpose.msra.mxu0 %v1467
        %5737 = vmatprep.subr.bf16.mxu0 0
        %5738 = vmatpush1.bf16.xpose.msra.mxu0 0
        %5739 = vmatprep.subr.bf16.mxu0 0
        %5740 = vmatpush1.bf16.xpose.msra.mxu0 0
        %5741 = vmatprep.subr.bf16.mxu0 0
        %5742 = vmatpush1.bf16.xpose.msra.mxu0 0
        %5743 = vmatprep.subr.bf16.mxu0 0
        %5744 = vmatpush1.bf16.xpose.msra.mxu0 0
        %5745 = vmatprep.subr.bf16.mxu0 0
        %5746 = vmatpush1.bf16.xpose.msra.mxu0 0
        %5747 = vmatprep.subr.bf16.mxu0 0
        %5748 = vmatpush1.bf16.xpose.msra.mxu0 0
        %5749 = vmatprep.subr.bf16.mxu0 0
        %5750 = vmatpush1.bf16.xpose.msra.mxu0 0
        %5751 = vmatprep.subr.bf16.mxu0 0
        %5752 = vmatpush1.bf16.xpose.msra.mxu0 0
        %5753 = vmatprep.subr.bf16.mxu0 0
        %5754 = vmatpush1.bf16.xpose.msra.mxu0 0
        %5755 = vmatprep.subr.bf16.mxu0 0
        %5756 = vmatpush1.bf16.xpose.msra.mxu0 0
        %5757 = vmatprep.subr.bf16.mxu0 0
        %5758 = vmatpush1.bf16.xpose.msra.mxu0 0
        %5759 = vmatprep.subr.bf16.mxu0 0
        %5760 = vmatpush1.bf16.xpose.msra.mxu0 0
        %5761 = vmatprep.subr.bf16.mxu0 0
        %5762 = vmatpush1.bf16.xpose.msra.mxu0 0
        %5763 = vmatprep.subr.bf16.mxu0 0
        %5764 = vmatpush1.bf16.xpose.msra.mxu0 0
        %5765 = vmatprep.subr.bf16.mxu0 0
        %5766 = vmatpush1.bf16.xpose.msra.mxu0 0
        %5767 = vmatprep.mubr.bf16.mxu0 %v4132
        %5768 = vmatmul.mubr.bf16.gmra.mrb[0].mxu0 %v4131
        %v5769 = vpop.f32.mrb[0].mxu0
        %v5770 = vadd.f32 %v5729, %v5769
        %v5771 = vpop.f32.mrb[0].mxu0
        %v5772 = vpop.f32.mrb[0].mxu0
        %v5773 = vadd.f32 %v5732, %v5772
        %v5774 = vpop.f32.mrb[0].mxu0
        %5775 = vdwg.mxu0
        %5776 = vmatprep.subr.bf16.mxu0 %v1470
        %5777 = vmatpush1.bf16.xpose.msra.mxu0 %v1469
        %5778 = vmatprep.subr.bf16.mxu0 0
        %5779 = vmatpush1.bf16.xpose.msra.mxu0 0
        %5780 = vmatprep.subr.bf16.mxu0 0
        %5781 = vmatpush1.bf16.xpose.msra.mxu0 0
        %5782 = vmatprep.subr.bf16.mxu0 0
        %5783 = vmatpush1.bf16.xpose.msra.mxu0 0
        %5784 = vmatprep.subr.bf16.mxu0 0
        %5785 = vmatpush1.bf16.xpose.msra.mxu0 0
        %5786 = vmatprep.subr.bf16.mxu0 0
        %5787 = vmatpush1.bf16.xpose.msra.mxu0 0
        %5788 = vmatprep.subr.bf16.mxu0 0
        %5789 = vmatpush1.bf16.xpose.msra.mxu0 0
        %5790 = vmatprep.subr.bf16.mxu0 0
        %5791 = vmatpush1.bf16.xpose.msra.mxu0 0
        %5792 = vmatprep.subr.bf16.mxu0 0
        %5793 = vmatpush1.bf16.xpose.msra.mxu0 0
        %5794 = vmatprep.subr.bf16.mxu0 0
        %5795 = vmatpush1.bf16.xpose.msra.mxu0 0
        %5796 = vmatprep.subr.bf16.mxu0 0
        %5797 = vmatpush1.bf16.xpose.msra.mxu0 0
        %5798 = vmatprep.subr.bf16.mxu0 0
        %5799 = vmatpush1.bf16.xpose.msra.mxu0 0
        %5800 = vmatprep.subr.bf16.mxu0 0
        %5801 = vmatpush1.bf16.xpose.msra.mxu0 0
        %5802 = vmatprep.subr.bf16.mxu0 0
        %5803 = vmatpush1.bf16.xpose.msra.mxu0 0
        %5804 = vmatprep.subr.bf16.mxu0 0
        %5805 = vmatpush1.bf16.xpose.msra.mxu0 0
        %5806 = vmatprep.subr.bf16.mxu0 0
        %5807 = vmatpush1.bf16.xpose.msra.mxu0 0
        %5808 = vmatprep.mubr.bf16.mxu0 %v4134
        %5809 = vmatmul.mubr.bf16.gmra.mrb[0].mxu0 %v4133
        %v5810 = vpop.f32.mrb[0].mxu0
        %v5811 = vadd.f32 %v5770, %v5810
        %v5812 = vpop.f32.mrb[0].mxu0
        %v5813 = vpop.f32.mrb[0].mxu0
        %v5814 = vadd.f32 %v5773, %v5813
        %v5815 = vpop.f32.mrb[0].mxu0
        %5816 = vdwg.mxu0
        %5817 = vmatprep.subr.bf16.mxu0 %v1472
        %5818 = vmatpush1.bf16.xpose.msra.mxu0 %v1471
        %5819 = vmatprep.subr.bf16.mxu0 0
        %5820 = vmatpush1.bf16.xpose.msra.mxu0 0
        %5821 = vmatprep.subr.bf16.mxu0 0
        %5822 = vmatpush1.bf16.xpose.msra.mxu0 0
        %5823 = vmatprep.subr.bf16.mxu0 0
        %5824 = vmatpush1.bf16.xpose.msra.mxu0 0
        %5825 = vmatprep.subr.bf16.mxu0 0
        %5826 = vmatpush1.bf16.xpose.msra.mxu0 0
        %5827 = vmatprep.subr.bf16.mxu0 0
        %5828 = vmatpush1.bf16.xpose.msra.mxu0 0
        %5829 = vmatprep.subr.bf16.mxu0 0
        %5830 = vmatpush1.bf16.xpose.msra.mxu0 0
        %5831 = vmatprep.subr.bf16.mxu0 0
        %5832 = vmatpush1.bf16.xpose.msra.mxu0 0
        %5833 = vmatprep.subr.bf16.mxu0 0
        %5834 = vmatpush1.bf16.xpose.msra.mxu0 0
        %5835 = vmatprep.subr.bf16.mxu0 0
        %5836 = vmatpush1.bf16.xpose.msra.mxu0 0
        %5837 = vmatprep.subr.bf16.mxu0 0
        %5838 = vmatpush1.bf16.xpose.msra.mxu0 0
        %5839 = vmatprep.subr.bf16.mxu0 0
        %5840 = vmatpush1.bf16.xpose.msra.mxu0 0
        %5841 = vmatprep.subr.bf16.mxu0 0
        %5842 = vmatpush1.bf16.xpose.msra.mxu0 0
        %5843 = vmatprep.subr.bf16.mxu0 0
        %5844 = vmatpush1.bf16.xpose.msra.mxu0 0
        %5845 = vmatprep.subr.bf16.mxu0 0
        %5846 = vmatpush1.bf16.xpose.msra.mxu0 0
        %5847 = vmatprep.subr.bf16.mxu0 0
        %5848 = vmatpush1.bf16.xpose.msra.mxu0 0
        %5849 = vmatprep.mubr.bf16.mxu0 %v4136
        %5850 = vmatmul.mubr.bf16.gmra.mrb[0].mxu0 %v4135
        %v5851 = vpop.f32.mrb[0].mxu0
        %v5852 = vadd.f32 %v5811, %v5851
        %v5853 = vpop.f32.mrb[0].mxu0
        %v5854 = vpop.f32.mrb[0].mxu0
        %v5855 = vadd.f32 %v5814, %v5854
        %v5856 = vpop.f32.mrb[0].mxu0
        %5857 = vdwg.mxu0
        %5858 = vmatprep.subr.bf16.mxu0 %v1474
        %5859 = vmatpush1.bf16.xpose.msra.mxu0 %v1473
        %5860 = vmatprep.subr.bf16.mxu0 0
        %5861 = vmatpush1.bf16.xpose.msra.mxu0 0
        %5862 = vmatprep.subr.bf16.mxu0 0
        %5863 = vmatpush1.bf16.xpose.msra.mxu0 0
        %5864 = vmatprep.subr.bf16.mxu0 0
        %5865 = vmatpush1.bf16.xpose.msra.mxu0 0
        %5866 = vmatprep.subr.bf16.mxu0 0
        %5867 = vmatpush1.bf16.xpose.msra.mxu0 0
        %5868 = vmatprep.subr.bf16.mxu0 0
        %5869 = vmatpush1.bf16.xpose.msra.mxu0 0
        %5870 = vmatprep.subr.bf16.mxu0 0
        %5871 = vmatpush1.bf16.xpose.msra.mxu0 0
        %5872 = vmatprep.subr.bf16.mxu0 0
        %5873 = vmatpush1.bf16.xpose.msra.mxu0 0
        %5874 = vmatprep.subr.bf16.mxu0 0
        %5875 = vmatpush1.bf16.xpose.msra.mxu0 0
        %5876 = vmatprep.subr.bf16.mxu0 0
        %5877 = vmatpush1.bf16.xpose.msra.mxu0 0
        %5878 = vmatprep.subr.bf16.mxu0 0
        %5879 = vmatpush1.bf16.xpose.msra.mxu0 0
        %5880 = vmatprep.subr.bf16.mxu0 0
        %5881 = vmatpush1.bf16.xpose.msra.mxu0 0
        %5882 = vmatprep.subr.bf16.mxu0 0
        %5883 = vmatpush1.bf16.xpose.msra.mxu0 0
        %5884 = vmatprep.subr.bf16.mxu0 0
        %5885 = vmatpush1.bf16.xpose.msra.mxu0 0
        %5886 = vmatprep.subr.bf16.mxu0 0
        %5887 = vmatpush1.bf16.xpose.msra.mxu0 0
        %5888 = vmatprep.subr.bf16.mxu0 0
        %5889 = vmatpush1.bf16.xpose.msra.mxu0 0
        %5890 = vmatprep.mubr.bf16.mxu0 %v4138
        %5891 = vmatmul.mubr.bf16.gmra.mrb[0].mxu0 %v4137
        %v5892 = vpop.f32.mrb[0].mxu0
        %v5893 = vadd.f32 %v5852, %v5892
        %v5894 = vpop.f32.mrb[0].mxu0
        %v5895 = vpop.f32.mrb[0].mxu0
        %v5896 = vadd.f32 %v5855, %v5895
        %v5897 = vpop.f32.mrb[0].mxu0
        %5898 = vdwg.mxu0
        %5899 = vmatprep.subr.bf16.mxu0 %v1476
        %5900 = vmatpush1.bf16.xpose.msra.mxu0 %v1475
        %5901 = vmatprep.subr.bf16.mxu0 0
        %5902 = vmatpush1.bf16.xpose.msra.mxu0 0
        %5903 = vmatprep.subr.bf16.mxu0 0
        %5904 = vmatpush1.bf16.xpose.msra.mxu0 0
        %5905 = vmatprep.subr.bf16.mxu0 0
        %5906 = vmatpush1.bf16.xpose.msra.mxu0 0
        %5907 = vmatprep.subr.bf16.mxu0 0
        %5908 = vmatpush1.bf16.xpose.msra.mxu0 0
        %5909 = vmatprep.subr.bf16.mxu0 0
        %5910 = vmatpush1.bf16.xpose.msra.mxu0 0
        %5911 = vmatprep.subr.bf16.mxu0 0
        %5912 = vmatpush1.bf16.xpose.msra.mxu0 0
        %5913 = vmatprep.subr.bf16.mxu0 0
        %5914 = vmatpush1.bf16.xpose.msra.mxu0 0
        %5915 = vmatprep.subr.bf16.mxu0 0
        %5916 = vmatpush1.bf16.xpose.msra.mxu0 0
        %5917 = vmatprep.subr.bf16.mxu0 0
        %5918 = vmatpush1.bf16.xpose.msra.mxu0 0
        %5919 = vmatprep.subr.bf16.mxu0 0
        %5920 = vmatpush1.bf16.xpose.msra.mxu0 0
        %5921 = vmatprep.subr.bf16.mxu0 0
        %5922 = vmatpush1.bf16.xpose.msra.mxu0 0
        %5923 = vmatprep.subr.bf16.mxu0 0
        %5924 = vmatpush1.bf16.xpose.msra.mxu0 0
        %5925 = vmatprep.subr.bf16.mxu0 0
        %5926 = vmatpush1.bf16.xpose.msra.mxu0 0
        %5927 = vmatprep.subr.bf16.mxu0 0
        %5928 = vmatpush1.bf16.xpose.msra.mxu0 0
        %5929 = vmatprep.subr.bf16.mxu0 0
        %5930 = vmatpush1.bf16.xpose.msra.mxu0 0
        %5931 = vmatprep.mubr.bf16.mxu0 %v4140
        %5932 = vmatmul.mubr.bf16.gmra.mrb[0].mxu0 %v4139
        %v5933 = vpop.f32.mrb[0].mxu0
        %v5934 = vadd.f32 %v5893, %v5933
        %v5935 = vpop.f32.mrb[0].mxu0
        %v5936 = vpop.f32.mrb[0].mxu0
        %v5937 = vadd.f32 %v5896, %v5936
        %v5938 = vpop.f32.mrb[0].mxu0
        %5939 = vdwg.mxu0
        %5940 = vmatprep.subr.bf16.mxu0 %v1478
        %5941 = vmatpush1.bf16.xpose.msra.mxu0 %v1477
        %5942 = vmatprep.subr.bf16.mxu0 0
        %5943 = vmatpush1.bf16.xpose.msra.mxu0 0
        %5944 = vmatprep.subr.bf16.mxu0 0
        %5945 = vmatpush1.bf16.xpose.msra.mxu0 0
        %5946 = vmatprep.subr.bf16.mxu0 0
        %5947 = vmatpush1.bf16.xpose.msra.mxu0 0
        %5948 = vmatprep.subr.bf16.mxu0 0
        %5949 = vmatpush1.bf16.xpose.msra.mxu0 0
        %5950 = vmatprep.subr.bf16.mxu0 0
        %5951 = vmatpush1.bf16.xpose.msra.mxu0 0
        %5952 = vmatprep.subr.bf16.mxu0 0
        %5953 = vmatpush1.bf16.xpose.msra.mxu0 0
        %5954 = vmatprep.subr.bf16.mxu0 0
        %5955 = vmatpush1.bf16.xpose.msra.mxu0 0
        %5956 = vmatprep.subr.bf16.mxu0 0
        %5957 = vmatpush1.bf16.xpose.msra.mxu0 0
        %5958 = vmatprep.subr.bf16.mxu0 0
        %5959 = vmatpush1.bf16.xpose.msra.mxu0 0
        %5960 = vmatprep.subr.bf16.mxu0 0
        %5961 = vmatpush1.bf16.xpose.msra.mxu0 0
        %5962 = vmatprep.subr.bf16.mxu0 0
        %5963 = vmatpush1.bf16.xpose.msra.mxu0 0
        %5964 = vmatprep.subr.bf16.mxu0 0
        %5965 = vmatpush1.bf16.xpose.msra.mxu0 0
        %5966 = vmatprep.subr.bf16.mxu0 0
        %5967 = vmatpush1.bf16.xpose.msra.mxu0 0
        %5968 = vmatprep.subr.bf16.mxu0 0
        %5969 = vmatpush1.bf16.xpose.msra.mxu0 0
        %5970 = vmatprep.subr.bf16.mxu0 0
        %5971 = vmatpush1.bf16.xpose.msra.mxu0 0
        %5972 = vmatprep.mubr.bf16.mxu0 %v4142
        %5973 = vmatmul.mubr.bf16.gmra.mrb[0].mxu0 %v4141
        %v5974 = vpop.f32.mrb[0].mxu0
        %v5975 = vadd.f32 %v5934, %v5974
        %v5976 = vpop.f32.mrb[0].mxu0
        %v5977 = vpop.f32.mrb[0].mxu0
        %v5978 = vadd.f32 %v5937, %v5977
        %v5979 = vpop.f32.mrb[0].mxu0
        %5980 = vdwg.mxu0
        %5981 = vmatprep.subr.bf16.mxu0 %v1480
        %5982 = vmatpush1.bf16.xpose.msra.mxu0 %v1479
        %5983 = vmatprep.subr.bf16.mxu0 0
        %5984 = vmatpush1.bf16.xpose.msra.mxu0 0
        %5985 = vmatprep.subr.bf16.mxu0 0
        %5986 = vmatpush1.bf16.xpose.msra.mxu0 0
        %5987 = vmatprep.subr.bf16.mxu0 0
        %5988 = vmatpush1.bf16.xpose.msra.mxu0 0
        %5989 = vmatprep.subr.bf16.mxu0 0
        %5990 = vmatpush1.bf16.xpose.msra.mxu0 0
        %5991 = vmatprep.subr.bf16.mxu0 0
        %5992 = vmatpush1.bf16.xpose.msra.mxu0 0
        %5993 = vmatprep.subr.bf16.mxu0 0
        %5994 = vmatpush1.bf16.xpose.msra.mxu0 0
        %5995 = vmatprep.subr.bf16.mxu0 0
        %5996 = vmatpush1.bf16.xpose.msra.mxu0 0
        %5997 = vmatprep.subr.bf16.mxu0 0
        %5998 = vmatpush1.bf16.xpose.msra.mxu0 0
        %5999 = vmatprep.subr.bf16.mxu0 0
        %6000 = vmatpush1.bf16.xpose.msra.mxu0 0
        %6001 = vmatprep.subr.bf16.mxu0 0
        %6002 = vmatpush1.bf16.xpose.msra.mxu0 0
        %6003 = vmatprep.subr.bf16.mxu0 0
        %6004 = vmatpush1.bf16.xpose.msra.mxu0 0
        %6005 = vmatprep.subr.bf16.mxu0 0
        %6006 = vmatpush1.bf16.xpose.msra.mxu0 0
        %6007 = vmatprep.subr.bf16.mxu0 0
        %6008 = vmatpush1.bf16.xpose.msra.mxu0 0
        %6009 = vmatprep.subr.bf16.mxu0 0
        %6010 = vmatpush1.bf16.xpose.msra.mxu0 0
        %6011 = vmatprep.subr.bf16.mxu0 0
        %6012 = vmatpush1.bf16.xpose.msra.mxu0 0
        %6013 = vmatprep.mubr.bf16.mxu0 %v4144
        %6014 = vmatmul.mubr.bf16.gmra.mrb[0].mxu0 %v4143
        %v6015 = vpop.f32.mrb[0].mxu0
        %v6016 = vadd.f32 %v5975, %v6015
        %v6017 = vpop.f32.mrb[0].mxu0
        %v6018 = vpop.f32.mrb[0].mxu0
        %v6019 = vadd.f32 %v5978, %v6018
        %v6020 = vpop.f32.mrb[0].mxu0
        %6021 = vdwg.mxu0
        %6022 = vmatprep.subr.bf16.mxu0 %v1482
        %6023 = vmatpush1.bf16.xpose.msra.mxu0 %v1481
        %6024 = vmatprep.subr.bf16.mxu0 0
        %6025 = vmatpush1.bf16.xpose.msra.mxu0 0
        %6026 = vmatprep.subr.bf16.mxu0 0
        %6027 = vmatpush1.bf16.xpose.msra.mxu0 0
        %6028 = vmatprep.subr.bf16.mxu0 0
        %6029 = vmatpush1.bf16.xpose.msra.mxu0 0
        %6030 = vmatprep.subr.bf16.mxu0 0
        %6031 = vmatpush1.bf16.xpose.msra.mxu0 0
        %6032 = vmatprep.subr.bf16.mxu0 0
        %6033 = vmatpush1.bf16.xpose.msra.mxu0 0
        %6034 = vmatprep.subr.bf16.mxu0 0
        %6035 = vmatpush1.bf16.xpose.msra.mxu0 0
        %6036 = vmatprep.subr.bf16.mxu0 0
        %6037 = vmatpush1.bf16.xpose.msra.mxu0 0
        %6038 = vmatprep.subr.bf16.mxu0 0
        %6039 = vmatpush1.bf16.xpose.msra.mxu0 0
        %6040 = vmatprep.subr.bf16.mxu0 0
        %6041 = vmatpush1.bf16.xpose.msra.mxu0 0
        %6042 = vmatprep.subr.bf16.mxu0 0
        %6043 = vmatpush1.bf16.xpose.msra.mxu0 0
        %6044 = vmatprep.subr.bf16.mxu0 0
        %6045 = vmatpush1.bf16.xpose.msra.mxu0 0
        %6046 = vmatprep.subr.bf16.mxu0 0
        %6047 = vmatpush1.bf16.xpose.msra.mxu0 0
        %6048 = vmatprep.subr.bf16.mxu0 0
        %6049 = vmatpush1.bf16.xpose.msra.mxu0 0
        %6050 = vmatprep.subr.bf16.mxu0 0
        %6051 = vmatpush1.bf16.xpose.msra.mxu0 0
        %6052 = vmatprep.subr.bf16.mxu0 0
        %6053 = vmatpush1.bf16.xpose.msra.mxu0 0
        %6054 = vmatprep.mubr.bf16.mxu0 %v4146
        %6055 = vmatmul.mubr.bf16.gmra.mrb[0].mxu0 %v4145
        %v6056 = vpop.f32.mrb[0].mxu0
        %v6057 = vadd.f32 %v6016, %v6056
        %v6058 = vpop.f32.mrb[0].mxu0
        %v6059 = vpop.f32.mrb[0].mxu0
        %v6060 = vadd.f32 %v6019, %v6059
        %v6061 = vpop.f32.mrb[0].mxu0
        %6062 = vdwg.mxu0
        %6063 = vmatprep.subr.bf16.mxu0 %v1484
        %6064 = vmatpush1.bf16.xpose.msra.mxu0 %v1483
        %6065 = vmatprep.subr.bf16.mxu0 0
        %6066 = vmatpush1.bf16.xpose.msra.mxu0 0
        %6067 = vmatprep.subr.bf16.mxu0 0
        %6068 = vmatpush1.bf16.xpose.msra.mxu0 0
        %6069 = vmatprep.subr.bf16.mxu0 0
        %6070 = vmatpush1.bf16.xpose.msra.mxu0 0
        %6071 = vmatprep.subr.bf16.mxu0 0
        %6072 = vmatpush1.bf16.xpose.msra.mxu0 0
        %6073 = vmatprep.subr.bf16.mxu0 0
        %6074 = vmatpush1.bf16.xpose.msra.mxu0 0
        %6075 = vmatprep.subr.bf16.mxu0 0
        %6076 = vmatpush1.bf16.xpose.msra.mxu0 0
        %6077 = vmatprep.subr.bf16.mxu0 0
        %6078 = vmatpush1.bf16.xpose.msra.mxu0 0
        %6079 = vmatprep.subr.bf16.mxu0 0
        %6080 = vmatpush1.bf16.xpose.msra.mxu0 0
        %6081 = vmatprep.subr.bf16.mxu0 0
        %6082 = vmatpush1.bf16.xpose.msra.mxu0 0
        %6083 = vmatprep.subr.bf16.mxu0 0
        %6084 = vmatpush1.bf16.xpose.msra.mxu0 0
        %6085 = vmatprep.subr.bf16.mxu0 0
        %6086 = vmatpush1.bf16.xpose.msra.mxu0 0
        %6087 = vmatprep.subr.bf16.mxu0 0
        %6088 = vmatpush1.bf16.xpose.msra.mxu0 0
        %6089 = vmatprep.subr.bf16.mxu0 0
        %6090 = vmatpush1.bf16.xpose.msra.mxu0 0
        %6091 = vmatprep.subr.bf16.mxu0 0
        %6092 = vmatpush1.bf16.xpose.msra.mxu0 0
        %6093 = vmatprep.subr.bf16.mxu0 0
        %6094 = vmatpush1.bf16.xpose.msra.mxu0 0
        %6095 = vmatprep.mubr.bf16.mxu0 %v4148
        %6096 = vmatmul.mubr.bf16.gmra.mrb[0].mxu0 %v4147
        %v6097 = vpop.f32.mrb[0].mxu0
        %v6098 = vadd.f32 %v6057, %v6097
        %v6099 = vpop.f32.mrb[0].mxu0
        %v6100 = vpop.f32.mrb[0].mxu0
        %v6101 = vadd.f32 %v6060, %v6100
        %v6102 = vpop.f32.mrb[0].mxu0
        %6103 = vdwg.mxu0
        %6104 = vmatprep.subr.bf16.mxu0 %v1486
        %6105 = vmatpush1.bf16.xpose.msra.mxu0 %v1485
        %6106 = vmatprep.subr.bf16.mxu0 0
        %6107 = vmatpush1.bf16.xpose.msra.mxu0 0
        %6108 = vmatprep.subr.bf16.mxu0 0
        %6109 = vmatpush1.bf16.xpose.msra.mxu0 0
        %6110 = vmatprep.subr.bf16.mxu0 0
        %6111 = vmatpush1.bf16.xpose.msra.mxu0 0
        %6112 = vmatprep.subr.bf16.mxu0 0
        %6113 = vmatpush1.bf16.xpose.msra.mxu0 0
        %6114 = vmatprep.subr.bf16.mxu0 0
        %6115 = vmatpush1.bf16.xpose.msra.mxu0 0
        %6116 = vmatprep.subr.bf16.mxu0 0
        %6117 = vmatpush1.bf16.xpose.msra.mxu0 0
        %6118 = vmatprep.subr.bf16.mxu0 0
        %6119 = vmatpush1.bf16.xpose.msra.mxu0 0
        %6120 = vmatprep.subr.bf16.mxu0 0
        %6121 = vmatpush1.bf16.xpose.msra.mxu0 0
        %6122 = vmatprep.subr.bf16.mxu0 0
        %6123 = vmatpush1.bf16.xpose.msra.mxu0 0
        %6124 = vmatprep.subr.bf16.mxu0 0
        %6125 = vmatpush1.bf16.xpose.msra.mxu0 0
        %6126 = vmatprep.subr.bf16.mxu0 0
        %6127 = vmatpush1.bf16.xpose.msra.mxu0 0
        %6128 = vmatprep.subr.bf16.mxu0 0
        %6129 = vmatpush1.bf16.xpose.msra.mxu0 0
        %6130 = vmatprep.subr.bf16.mxu0 0
        %6131 = vmatpush1.bf16.xpose.msra.mxu0 0
        %6132 = vmatprep.subr.bf16.mxu0 0
        %6133 = vmatpush1.bf16.xpose.msra.mxu0 0
        %6134 = vmatprep.subr.bf16.mxu0 0
        %6135 = vmatpush1.bf16.xpose.msra.mxu0 0
        %6136 = vmatprep.mubr.bf16.mxu0 %v4150
        %6137 = vmatmul.mubr.bf16.gmra.mrb[0].mxu0 %v4149
        %v6138 = vpop.f32.mrb[0].mxu0
        %v6139 = vadd.f32 %v6098, %v6138
        %v6140 = vpop.f32.mrb[0].mxu0
        %v6141 = vpop.f32.mrb[0].mxu0
        %v6142 = vadd.f32 %v6101, %v6141
        %v6143 = vpop.f32.mrb[0].mxu0
        %6144 = vdwg.mxu0
        %6145 = vmatprep.subr.bf16.mxu0 %v1488
        %6146 = vmatpush1.bf16.xpose.msra.mxu0 %v1487
        %6147 = vmatprep.subr.bf16.mxu0 0
        %6148 = vmatpush1.bf16.xpose.msra.mxu0 0
        %6149 = vmatprep.subr.bf16.mxu0 0
        %6150 = vmatpush1.bf16.xpose.msra.mxu0 0
        %6151 = vmatprep.subr.bf16.mxu0 0
        %6152 = vmatpush1.bf16.xpose.msra.mxu0 0
        %6153 = vmatprep.subr.bf16.mxu0 0
        %6154 = vmatpush1.bf16.xpose.msra.mxu0 0
        %6155 = vmatprep.subr.bf16.mxu0 0
        %6156 = vmatpush1.bf16.xpose.msra.mxu0 0
        %6157 = vmatprep.subr.bf16.mxu0 0
        %6158 = vmatpush1.bf16.xpose.msra.mxu0 0
        %6159 = vmatprep.subr.bf16.mxu0 0
        %6160 = vmatpush1.bf16.xpose.msra.mxu0 0
        %6161 = vmatprep.subr.bf16.mxu0 0
        %6162 = vmatpush1.bf16.xpose.msra.mxu0 0
        %6163 = vmatprep.subr.bf16.mxu0 0
        %6164 = vmatpush1.bf16.xpose.msra.mxu0 0
        %6165 = vmatprep.subr.bf16.mxu0 0
        %6166 = vmatpush1.bf16.xpose.msra.mxu0 0
        %6167 = vmatprep.subr.bf16.mxu0 0
        %6168 = vmatpush1.bf16.xpose.msra.mxu0 0
        %6169 = vmatprep.subr.bf16.mxu0 0
        %6170 = vmatpush1.bf16.xpose.msra.mxu0 0
        %6171 = vmatprep.subr.bf16.mxu0 0
        %6172 = vmatpush1.bf16.xpose.msra.mxu0 0
        %6173 = vmatprep.subr.bf16.mxu0 0
        %6174 = vmatpush1.bf16.xpose.msra.mxu0 0
        %6175 = vmatprep.subr.bf16.mxu0 0
        %6176 = vmatpush1.bf16.xpose.msra.mxu0 0
        %6177 = vmatprep.mubr.bf16.mxu0 %v4152
        %6178 = vmatmul.mubr.bf16.gmra.mrb[0].mxu0 %v4151
        %v6179 = vpop.f32.mrb[0].mxu0
        %v6180 = vadd.f32 %v6139, %v6179
        %v6181 = vpop.f32.mrb[0].mxu0
        %v6182 = vpop.f32.mrb[0].mxu0
        %v6183 = vadd.f32 %v6142, %v6182
        %v6184 = vpop.f32.mrb[0].mxu0
        %6185 = vdwg.mxu0
        %6186 = vmatprep.subr.bf16.mxu0 %v1490
        %6187 = vmatpush1.bf16.xpose.msra.mxu0 %v1489
        %6188 = vmatprep.subr.bf16.mxu0 0
        %6189 = vmatpush1.bf16.xpose.msra.mxu0 0
        %6190 = vmatprep.subr.bf16.mxu0 0
        %6191 = vmatpush1.bf16.xpose.msra.mxu0 0
        %6192 = vmatprep.subr.bf16.mxu0 0
        %6193 = vmatpush1.bf16.xpose.msra.mxu0 0
        %6194 = vmatprep.subr.bf16.mxu0 0
        %6195 = vmatpush1.bf16.xpose.msra.mxu0 0
        %6196 = vmatprep.subr.bf16.mxu0 0
        %6197 = vmatpush1.bf16.xpose.msra.mxu0 0
        %6198 = vmatprep.subr.bf16.mxu0 0
        %6199 = vmatpush1.bf16.xpose.msra.mxu0 0
        %6200 = vmatprep.subr.bf16.mxu0 0
        %6201 = vmatpush1.bf16.xpose.msra.mxu0 0
        %6202 = vmatprep.subr.bf16.mxu0 0
        %6203 = vmatpush1.bf16.xpose.msra.mxu0 0
        %6204 = vmatprep.subr.bf16.mxu0 0
        %6205 = vmatpush1.bf16.xpose.msra.mxu0 0
        %6206 = vmatprep.subr.bf16.mxu0 0
        %6207 = vmatpush1.bf16.xpose.msra.mxu0 0
        %6208 = vmatprep.subr.bf16.mxu0 0
        %6209 = vmatpush1.bf16.xpose.msra.mxu0 0
        %6210 = vmatprep.subr.bf16.mxu0 0
        %6211 = vmatpush1.bf16.xpose.msra.mxu0 0
        %6212 = vmatprep.subr.bf16.mxu0 0
        %6213 = vmatpush1.bf16.xpose.msra.mxu0 0
        %6214 = vmatprep.subr.bf16.mxu0 0
        %6215 = vmatpush1.bf16.xpose.msra.mxu0 0
        %6216 = vmatprep.subr.bf16.mxu0 0
        %6217 = vmatpush1.bf16.xpose.msra.mxu0 0
        %6218 = vmatprep.mubr.bf16.mxu0 %v4154
        %6219 = vmatmul.mubr.bf16.gmra.mrb[0].mxu0 %v4153
        %v6220 = vpop.f32.mrb[0].mxu0
        %v6221 = vadd.f32 %v6180, %v6220
        %v6222 = vpop.f32.mrb[0].mxu0
        %v6223 = vpop.f32.mrb[0].mxu0
        %v6224 = vadd.f32 %v6183, %v6223
        %v6225 = vpop.f32.mrb[0].mxu0
        %6226 = vdwg.mxu0
        %6227 = vmatprep.subr.bf16.mxu0 %v1492
        %6228 = vmatpush1.bf16.xpose.msra.mxu0 %v1491
        %6229 = vmatprep.subr.bf16.mxu0 0
        %6230 = vmatpush1.bf16.xpose.msra.mxu0 0
        %6231 = vmatprep.subr.bf16.mxu0 0
        %6232 = vmatpush1.bf16.xpose.msra.mxu0 0
        %6233 = vmatprep.subr.bf16.mxu0 0
        %6234 = vmatpush1.bf16.xpose.msra.mxu0 0
        %6235 = vmatprep.subr.bf16.mxu0 0
        %6236 = vmatpush1.bf16.xpose.msra.mxu0 0
        %6237 = vmatprep.subr.bf16.mxu0 0
        %6238 = vmatpush1.bf16.xpose.msra.mxu0 0
        %6239 = vmatprep.subr.bf16.mxu0 0
        %6240 = vmatpush1.bf16.xpose.msra.mxu0 0
        %6241 = vmatprep.subr.bf16.mxu0 0
        %6242 = vmatpush1.bf16.xpose.msra.mxu0 0
        %6243 = vmatprep.subr.bf16.mxu0 0
        %6244 = vmatpush1.bf16.xpose.msra.mxu0 0
        %6245 = vmatprep.subr.bf16.mxu0 0
        %6246 = vmatpush1.bf16.xpose.msra.mxu0 0
        %6247 = vmatprep.subr.bf16.mxu0 0
        %6248 = vmatpush1.bf16.xpose.msra.mxu0 0
        %6249 = vmatprep.subr.bf16.mxu0 0
        %6250 = vmatpush1.bf16.xpose.msra.mxu0 0
        %6251 = vmatprep.subr.bf16.mxu0 0
        %6252 = vmatpush1.bf16.xpose.msra.mxu0 0
        %6253 = vmatprep.subr.bf16.mxu0 0
        %6254 = vmatpush1.bf16.xpose.msra.mxu0 0
        %6255 = vmatprep.subr.bf16.mxu0 0
        %6256 = vmatpush1.bf16.xpose.msra.mxu0 0
        %6257 = vmatprep.subr.bf16.mxu0 0
        %6258 = vmatpush1.bf16.xpose.msra.mxu0 0
        %6259 = vmatprep.mubr.bf16.mxu0 %v4156
        %6260 = vmatmul.mubr.bf16.gmra.mrb[0].mxu0 %v4155
        %v6261 = vpop.f32.mrb[0].mxu0
        %v6262 = vadd.f32 %v6221, %v6261
        %v6263 = vpop.f32.mrb[0].mxu0
        %v6264 = vpop.f32.mrb[0].mxu0
        %v6265 = vadd.f32 %v6224, %v6264
        %v6266 = vpop.f32.mrb[0].mxu0
        %6267 = vdwg.mxu0
        %6268 = vmatprep.subr.bf16.mxu0 %v1494
        %6269 = vmatpush1.bf16.xpose.msra.mxu0 %v1493
        %6270 = vmatprep.subr.bf16.mxu0 0
        %6271 = vmatpush1.bf16.xpose.msra.mxu0 0
        %6272 = vmatprep.subr.bf16.mxu0 0
        %6273 = vmatpush1.bf16.xpose.msra.mxu0 0
        %6274 = vmatprep.subr.bf16.mxu0 0
        %6275 = vmatpush1.bf16.xpose.msra.mxu0 0
        %6276 = vmatprep.subr.bf16.mxu0 0
        %6277 = vmatpush1.bf16.xpose.msra.mxu0 0
        %6278 = vmatprep.subr.bf16.mxu0 0
        %6279 = vmatpush1.bf16.xpose.msra.mxu0 0
        %6280 = vmatprep.subr.bf16.mxu0 0
        %6281 = vmatpush1.bf16.xpose.msra.mxu0 0
        %6282 = vmatprep.subr.bf16.mxu0 0
        %6283 = vmatpush1.bf16.xpose.msra.mxu0 0
        %6284 = vmatprep.subr.bf16.mxu0 0
        %6285 = vmatpush1.bf16.xpose.msra.mxu0 0
        %6286 = vmatprep.subr.bf16.mxu0 0
        %6287 = vmatpush1.bf16.xpose.msra.mxu0 0
        %6288 = vmatprep.subr.bf16.mxu0 0
        %6289 = vmatpush1.bf16.xpose.msra.mxu0 0
        %6290 = vmatprep.subr.bf16.mxu0 0
        %6291 = vmatpush1.bf16.xpose.msra.mxu0 0
        %6292 = vmatprep.subr.bf16.mxu0 0
        %6293 = vmatpush1.bf16.xpose.msra.mxu0 0
        %6294 = vmatprep.subr.bf16.mxu0 0
        %6295 = vmatpush1.bf16.xpose.msra.mxu0 0
        %6296 = vmatprep.subr.bf16.mxu0 0
        %6297 = vmatpush1.bf16.xpose.msra.mxu0 0
        %6298 = vmatprep.subr.bf16.mxu0 0
        %6299 = vmatpush1.bf16.xpose.msra.mxu0 0
        %6300 = vmatprep.mubr.bf16.mxu0 %v4158
        %6301 = vmatmul.mubr.bf16.gmra.mrb[0].mxu0 %v4157
        %v6302 = vpop.f32.mrb[0].mxu0
        %v6303 = vadd.f32 %v6262, %v6302
        %v6304 = vpop.f32.mrb[0].mxu0
        %v6305 = vpop.f32.mrb[0].mxu0
        %v6306 = vadd.f32 %v6265, %v6305
        %v6307 = vpop.f32.mrb[0].mxu0
        %6308 = vdwg.mxu0
        %v6309 = vadd.f32 %v3757, %v6303
        %v6310 = vadd.f32 %v3758, %v6306
        %6311 = vst.msk [vmem:[%s3756] sm:$0xff] %vm3647, %v6309
        %6312 = vst.msk [vmem:[%s3756 + $0x8] sm:$0x3f] %vm3649, %v6310
        %s6313 = sadd.s32 %s488, 2560
        %s6314 = sshra.s32 %s6313, 7
        %s6315 = sand.u32 %s6313, 127
        %s6316 = smul.addr %s6314, 4
        %s6317 = scalar_lea.vmem %s0, %s6316
        %v6318 = vld [vmem:[%s6317] sm:$0xff]
        %v6319 = vld [vmem:[%s6317 + $0x8] sm:$0xff]
        %v6320 = vld [vmem:[%s6317 + $0x10] sm:$0xff]
        %v6321 = vld [vmem:[%s6317 + $0x18] sm:$0xff]
        %v6322 = vld [vmem:[%s6317 + $0x20] sm:$0xff]
        %v6323 = vld [vmem:[%s6317 + $0x28] sm:$0xff]
        %v6324 = vld [vmem:[%s6317 + $0x30] sm:$0xff]
        %v6325 = vld [vmem:[%s6317 + $0x38] sm:$0xff]
        %v6326 = vld [vmem:[%s6317 + $0x40] sm:$0xff]
        %v6327 = vld [vmem:[%s6317 + $0x48] sm:$0xff]
        %v6328 = vld [vmem:[%s6317 + $0x50] sm:$0xff]
        %v6329 = vld [vmem:[%s6317 + $0x58] sm:$0xff]
        %v6330 = vld [vmem:[%s6317 + $0x60] sm:$0xff]
        %v6331 = vld [vmem:[%s6317 + $0x68] sm:$0xff]
        %v6332 = vld [vmem:[%s6317 + $0x70] sm:$0xff]
        %v6333 = vld [vmem:[%s6317 + $0x78] sm:$0xff]
        %v6334 = vld [vmem:[%s6317 + $0x80] sm:$0xff]
        %v6335 = vld [vmem:[%s6317 + $0x88] sm:$0xff]
        %v6336 = vld [vmem:[%s6317 + $0x90] sm:$0xff]
        %v6337 = vld [vmem:[%s6317 + $0x98] sm:$0xff]
        %v6338 = vld [vmem:[%s6317 + $0xa0] sm:$0xff]
        %v6339 = vld [vmem:[%s6317 + $0xa8] sm:$0xff]
        %v6340 = vld [vmem:[%s6317 + $0xb0] sm:$0xff]
        %v6341 = vld [vmem:[%s6317 + $0xb8] sm:$0xff]
        %v6342 = vld [vmem:[%s6317 + $0xc0] sm:$0xff]
        %v6343 = vld [vmem:[%s6317 + $0xc8] sm:$0xff]
        %v6344 = vld [vmem:[%s6317 + $0xd0] sm:$0xff]
        %v6345 = vld [vmem:[%s6317 + $0xd8] sm:$0xff]
        %v6346 = vld [vmem:[%s6317 + $0xe0] sm:$0xff]
        %v6347 = vld [vmem:[%s6317 + $0xe8] sm:$0xff]
        %v6348 = vld [vmem:[%s6317 + $0xf0] sm:$0xff]
        %v6349 = vld [vmem:[%s6317 + $0xf8] sm:$0xff]
        %v6350 = vld [vmem:[%s6317 + $0x100] sm:$0xff]
        %v6351 = vld [vmem:[%s6317 + $0x108] sm:$0xff]
        %v6352 = vld [vmem:[%s6317 + $0x110] sm:$0xff]
        %v6353 = vld [vmem:[%s6317 + $0x118] sm:$0xff]
        %v6354 = vld [vmem:[%s6317 + $0x120] sm:$0xff]
        %v6355 = vld [vmem:[%s6317 + $0x128] sm:$0xff]
        %v6356 = vld [vmem:[%s6317 + $0x130] sm:$0xff]
        %v6357 = vld [vmem:[%s6317 + $0x138] sm:$0xff]
        %v6358 = vld [vmem:[%s6317 + $0x140] sm:$0xff]
        %v6359 = vld [vmem:[%s6317 + $0x148] sm:$0xff]
        %v6360 = vld [vmem:[%s6317 + $0x150] sm:$0xff]
        %v6361 = vld [vmem:[%s6317 + $0x158] sm:$0xff]
        %v6362 = vld [vmem:[%s6317 + $0x160] sm:$0xff]
        %v6363 = vld [vmem:[%s6317 + $0x168] sm:$0xff]
        %v6364 = vld [vmem:[%s6317 + $0x170] sm:$0xff]
        %v6365 = vld [vmem:[%s6317 + $0x178] sm:$0xff]
        %v6366 = vld [vmem:[%s6317 + $0x180] sm:$0xff]
        %v6367 = vld [vmem:[%s6317 + $0x188] sm:$0xff]
        %v6368 = vld [vmem:[%s6317 + $0x500] sm:$0x77]
        %v6369 = vld [vmem:[%s6317 + $0x508] sm:$0x77]
        %v6370 = vld [vmem:[%s6317 + $0x510] sm:$0x77]
        %v6371 = vld [vmem:[%s6317 + $0x518] sm:$0x77]
        %v6372 = vld [vmem:[%s6317 + $0x520] sm:$0x77]
        %v6373 = vld [vmem:[%s6317 + $0x528] sm:$0x77]
        %v6374 = vld [vmem:[%s6317 + $0x530] sm:$0x77]
        %v6375 = vld [vmem:[%s6317 + $0x538] sm:$0x77]
        %v6376 = vld [vmem:[%s6317 + $0x540] sm:$0x77]
        %v6377 = vld [vmem:[%s6317 + $0x548] sm:$0x77]
        %v6378 = vld [vmem:[%s6317 + $0x550] sm:$0x77]
        %v6379 = vld [vmem:[%s6317 + $0x558] sm:$0x77]
        %v6380 = vld [vmem:[%s6317 + $0x560] sm:$0x77]
        %v6381 = vld [vmem:[%s6317 + $0x568] sm:$0x77]
        %v6382 = vld [vmem:[%s6317 + $0x570] sm:$0x77]
        %v6383 = vld [vmem:[%s6317 + $0x578] sm:$0x77]
        %v6384 = vld [vmem:[%s6317 + $0x580] sm:$0x77]
        %v6385 = vld [vmem:[%s6317 + $0x588] sm:$0x77]
        %v6386 = vld [vmem:[%s6317 + $0x590] sm:$0x77]
        %v6387 = vld [vmem:[%s6317 + $0x598] sm:$0x77]
        %v6388 = vld [vmem:[%s6317 + $0x5a0] sm:$0x77]
        %v6389 = vld [vmem:[%s6317 + $0x5a8] sm:$0x77]
        %v6390 = vld [vmem:[%s6317 + $0x5b0] sm:$0x77]
        %v6391 = vld [vmem:[%s6317 + $0x5b8] sm:$0x77]
        %v6392 = vld [vmem:[%s6317 + $0x5c0] sm:$0x77]
        %v6393 = vld [vmem:[%s6317 + $0x5c8] sm:$0x77]
        %v6394 = vld [vmem:[%s6317 + $0x5d0] sm:$0x77]
        %v6395 = vld [vmem:[%s6317 + $0x5d8] sm:$0x77]
        %v6396 = vld [vmem:[%s6317 + $0x5e0] sm:$0x77]
        %v6397 = vld [vmem:[%s6317 + $0x5e8] sm:$0x77]
        %v6398 = vld [vmem:[%s6317 + $0x5f0] sm:$0x77]
        %v6399 = vld [vmem:[%s6317 + $0x5f8] sm:$0x77]
        %v6400 = vld [vmem:[%s6317 + $0x600] sm:$0x77]
        %v6401 = vld [vmem:[%s6317 + $0x608] sm:$0x77]
        %v6402 = vld [vmem:[%s6317 + $0x610] sm:$0x77]
        %v6403 = vld [vmem:[%s6317 + $0x618] sm:$0x77]
        %v6404 = vld [vmem:[%s6317 + $0x620] sm:$0x77]
        %v6405 = vld [vmem:[%s6317 + $0x628] sm:$0x77]
        %v6406 = vld [vmem:[%s6317 + $0x630] sm:$0x77]
        %v6407 = vld [vmem:[%s6317 + $0x638] sm:$0x77]
        %v6408 = vld [vmem:[%s6317 + $0x640] sm:$0x77]
        %v6409 = vld [vmem:[%s6317 + $0x648] sm:$0x77]
        %v6410 = vld [vmem:[%s6317 + $0x650] sm:$0x77]
        %v6411 = vld [vmem:[%s6317 + $0x658] sm:$0x77]
        %v6412 = vld [vmem:[%s6317 + $0x660] sm:$0x77]
        %v6413 = vld [vmem:[%s6317 + $0x668] sm:$0x77]
        %v6414 = vld [vmem:[%s6317 + $0x670] sm:$0x77]
        %v6415 = vld [vmem:[%s6317 + $0x678] sm:$0x77]
        %v6416 = vld [vmem:[%s6317 + $0x680] sm:$0x77]
        %v6417 = vld [vmem:[%s6317 + $0x688] sm:$0x77]
        %s6418 = scalar_lea.vmem %s3, 32
        %v6419 = vld [vmem:[%s6418] sm:$0xff]
        %v6420 = vld [vmem:[%s6418 + $0x8] sm:$0x3f]
        %v6521 = vunpack.c.l.b16 %v6318
        %v6522 = vunpack.c.h.b16 %v6318
        %v6523 = vunpack.c.l.b16 %v6319
        %v6524 = vunpack.c.h.b16 %v6319
        %v6525 = vunpack.c.l.b16 %v6320
        %v6526 = vunpack.c.h.b16 %v6320
        %v6527 = vunpack.c.l.b16 %v6321
        %v6528 = vunpack.c.h.b16 %v6321
        %v6529 = vunpack.c.l.b16 %v6322
        %v6530 = vunpack.c.h.b16 %v6322
        %v6531 = vunpack.c.l.b16 %v6323
        %v6532 = vunpack.c.h.b16 %v6323
        %v6533 = vunpack.c.l.b16 %v6324
        %v6534 = vunpack.c.h.b16 %v6324
        %v6535 = vunpack.c.l.b16 %v6325
        %v6536 = vunpack.c.h.b16 %v6325
        %v6537 = vunpack.c.l.b16 %v6326
        %v6538 = vunpack.c.h.b16 %v6326
        %v6539 = vunpack.c.l.b16 %v6327
        %v6540 = vunpack.c.h.b16 %v6327
        %v6541 = vunpack.c.l.b16 %v6328
        %v6542 = vunpack.c.h.b16 %v6328
        %v6543 = vunpack.c.l.b16 %v6329
        %v6544 = vunpack.c.h.b16 %v6329
        %v6545 = vunpack.c.l.b16 %v6330
        %v6546 = vunpack.c.h.b16 %v6330
        %v6547 = vunpack.c.l.b16 %v6331
        %v6548 = vunpack.c.h.b16 %v6331
        %v6549 = vunpack.c.l.b16 %v6332
        %v6550 = vunpack.c.h.b16 %v6332
        %v6551 = vunpack.c.l.b16 %v6333
        %v6552 = vunpack.c.h.b16 %v6333
        %v6553 = vunpack.c.l.b16 %v6334
        %v6554 = vunpack.c.h.b16 %v6334
        %v6555 = vunpack.c.l.b16 %v6335
        %v6556 = vunpack.c.h.b16 %v6335
        %v6557 = vunpack.c.l.b16 %v6336
        %v6558 = vunpack.c.h.b16 %v6336
        %v6559 = vunpack.c.l.b16 %v6337
        %v6560 = vunpack.c.h.b16 %v6337
        %v6561 = vunpack.c.l.b16 %v6338
        %v6562 = vunpack.c.h.b16 %v6338
        %v6563 = vunpack.c.l.b16 %v6339
        %v6564 = vunpack.c.h.b16 %v6339
        %v6565 = vunpack.c.l.b16 %v6340
        %v6566 = vunpack.c.h.b16 %v6340
        %v6567 = vunpack.c.l.b16 %v6341
        %v6568 = vunpack.c.h.b16 %v6341
        %v6569 = vunpack.c.l.b16 %v6342
        %v6570 = vunpack.c.h.b16 %v6342
        %v6571 = vunpack.c.l.b16 %v6343
        %v6572 = vunpack.c.h.b16 %v6343
        %v6573 = vunpack.c.l.b16 %v6344
        %v6574 = vunpack.c.h.b16 %v6344
        %v6575 = vunpack.c.l.b16 %v6345
        %v6576 = vunpack.c.h.b16 %v6345
        %v6577 = vunpack.c.l.b16 %v6346
        %v6578 = vunpack.c.h.b16 %v6346
        %v6579 = vunpack.c.l.b16 %v6347
        %v6580 = vunpack.c.h.b16 %v6347
        %v6581 = vunpack.c.l.b16 %v6348
        %v6582 = vunpack.c.h.b16 %v6348
        %v6583 = vunpack.c.l.b16 %v6349
        %v6584 = vunpack.c.h.b16 %v6349
        %v6585 = vunpack.c.l.b16 %v6350
        %v6586 = vunpack.c.h.b16 %v6350
        %v6587 = vunpack.c.l.b16 %v6351
        %v6588 = vunpack.c.h.b16 %v6351
        %v6589 = vunpack.c.l.b16 %v6352
        %v6590 = vunpack.c.h.b16 %v6352
        %v6591 = vunpack.c.l.b16 %v6353
        %v6592 = vunpack.c.h.b16 %v6353
        %v6593 = vunpack.c.l.b16 %v6354
        %v6594 = vunpack.c.h.b16 %v6354
        %v6595 = vunpack.c.l.b16 %v6355
        %v6596 = vunpack.c.h.b16 %v6355
        %v6597 = vunpack.c.l.b16 %v6356
        %v6598 = vunpack.c.h.b16 %v6356
        %v6599 = vunpack.c.l.b16 %v6357
        %v6600 = vunpack.c.h.b16 %v6357
        %v6601 = vunpack.c.l.b16 %v6358
        %v6602 = vunpack.c.h.b16 %v6358
        %v6603 = vunpack.c.l.b16 %v6359
        %v6604 = vunpack.c.h.b16 %v6359
        %v6605 = vunpack.c.l.b16 %v6360
        %v6606 = vunpack.c.h.b16 %v6360
        %v6607 = vunpack.c.l.b16 %v6361
        %v6608 = vunpack.c.h.b16 %v6361
        %v6609 = vunpack.c.l.b16 %v6362
        %v6610 = vunpack.c.h.b16 %v6362
        %v6611 = vunpack.c.l.b16 %v6363
        %v6612 = vunpack.c.h.b16 %v6363
        %v6613 = vunpack.c.l.b16 %v6364
        %v6614 = vunpack.c.h.b16 %v6364
        %v6615 = vunpack.c.l.b16 %v6365
        %v6616 = vunpack.c.h.b16 %v6365
        %v6617 = vunpack.c.l.b16 %v6366
        %v6618 = vunpack.c.h.b16 %v6366
        %v6619 = vunpack.c.l.b16 %v6367
        %v6620 = vunpack.c.h.b16 %v6367
        %v6621 = vunpack.c.l.b16 %v6368
        %v6622 = vunpack.c.h.b16 %v6368
        %v6623 = vunpack.c.l.b16 %v6369
        %v6624 = vunpack.c.h.b16 %v6369
        %v6625 = vunpack.c.l.b16 %v6370
        %v6626 = vunpack.c.h.b16 %v6370
        %v6627 = vunpack.c.l.b16 %v6371
        %v6628 = vunpack.c.h.b16 %v6371
        %v6629 = vunpack.c.l.b16 %v6372
        %v6630 = vunpack.c.h.b16 %v6372
        %v6631 = vunpack.c.l.b16 %v6373
        %v6632 = vunpack.c.h.b16 %v6373
        %v6633 = vunpack.c.l.b16 %v6374
        %v6634 = vunpack.c.h.b16 %v6374
        %v6635 = vunpack.c.l.b16 %v6375
        %v6636 = vunpack.c.h.b16 %v6375
        %v6637 = vunpack.c.l.b16 %v6376
        %v6638 = vunpack.c.h.b16 %v6376
        %v6639 = vunpack.c.l.b16 %v6377
        %v6640 = vunpack.c.h.b16 %v6377
        %v6641 = vunpack.c.l.b16 %v6378
        %v6642 = vunpack.c.h.b16 %v6378
        %v6643 = vunpack.c.l.b16 %v6379
        %v6644 = vunpack.c.h.b16 %v6379
        %v6645 = vunpack.c.l.b16 %v6380
        %v6646 = vunpack.c.h.b16 %v6380
        %v6647 = vunpack.c.l.b16 %v6381
        %v6648 = vunpack.c.h.b16 %v6381
        %v6649 = vunpack.c.l.b16 %v6382
        %v6650 = vunpack.c.h.b16 %v6382
        %v6651 = vunpack.c.l.b16 %v6383
        %v6652 = vunpack.c.h.b16 %v6383
        %v6653 = vunpack.c.l.b16 %v6384
        %v6654 = vunpack.c.h.b16 %v6384
        %v6655 = vunpack.c.l.b16 %v6385
        %v6656 = vunpack.c.h.b16 %v6385
        %v6657 = vunpack.c.l.b16 %v6386
        %v6658 = vunpack.c.h.b16 %v6386
        %v6659 = vunpack.c.l.b16 %v6387
        %v6660 = vunpack.c.h.b16 %v6387
        %v6661 = vunpack.c.l.b16 %v6388
        %v6662 = vunpack.c.h.b16 %v6388
        %v6663 = vunpack.c.l.b16 %v6389
        %v6664 = vunpack.c.h.b16 %v6389
        %v6665 = vunpack.c.l.b16 %v6390
        %v6666 = vunpack.c.h.b16 %v6390
        %v6667 = vunpack.c.l.b16 %v6391
        %v6668 = vunpack.c.h.b16 %v6391
        %v6669 = vunpack.c.l.b16 %v6392
        %v6670 = vunpack.c.h.b16 %v6392
        %v6671 = vunpack.c.l.b16 %v6393
        %v6672 = vunpack.c.h.b16 %v6393
        %v6673 = vunpack.c.l.b16 %v6394
        %v6674 = vunpack.c.h.b16 %v6394
        %v6675 = vunpack.c.l.b16 %v6395
        %v6676 = vunpack.c.h.b16 %v6395
        %v6677 = vunpack.c.l.b16 %v6396
        %v6678 = vunpack.c.h.b16 %v6396
        %v6679 = vunpack.c.l.b16 %v6397
        %v6680 = vunpack.c.h.b16 %v6397
        %v6681 = vunpack.c.l.b16 %v6398
        %v6682 = vunpack.c.h.b16 %v6398
        %v6683 = vunpack.c.l.b16 %v6399
        %v6684 = vunpack.c.h.b16 %v6399
        %v6685 = vunpack.c.l.b16 %v6400
        %v6686 = vunpack.c.h.b16 %v6400
        %v6687 = vunpack.c.l.b16 %v6401
        %v6688 = vunpack.c.h.b16 %v6401
        %v6689 = vunpack.c.l.b16 %v6402
        %v6690 = vunpack.c.h.b16 %v6402
        %v6691 = vunpack.c.l.b16 %v6403
        %v6692 = vunpack.c.h.b16 %v6403
        %v6693 = vunpack.c.l.b16 %v6404
        %v6694 = vunpack.c.h.b16 %v6404
        %v6695 = vunpack.c.l.b16 %v6405
        %v6696 = vunpack.c.h.b16 %v6405
        %v6697 = vunpack.c.l.b16 %v6406
        %v6698 = vunpack.c.h.b16 %v6406
        %v6699 = vunpack.c.l.b16 %v6407
        %v6700 = vunpack.c.h.b16 %v6407
        %v6701 = vunpack.c.l.b16 %v6408
        %v6702 = vunpack.c.h.b16 %v6408
        %v6703 = vunpack.c.l.b16 %v6409
        %v6704 = vunpack.c.h.b16 %v6409
        %v6705 = vunpack.c.l.b16 %v6410
        %v6706 = vunpack.c.h.b16 %v6410
        %v6707 = vunpack.c.l.b16 %v6411
        %v6708 = vunpack.c.h.b16 %v6411
        %v6709 = vunpack.c.l.b16 %v6412
        %v6710 = vunpack.c.h.b16 %v6412
        %v6711 = vunpack.c.l.b16 %v6413
        %v6712 = vunpack.c.h.b16 %v6413
        %v6713 = vunpack.c.l.b16 %v6414
        %v6714 = vunpack.c.h.b16 %v6414
        %v6715 = vunpack.c.l.b16 %v6415
        %v6716 = vunpack.c.h.b16 %v6415
        %v6717 = vunpack.c.l.b16 %v6416
        %v6718 = vunpack.c.h.b16 %v6416
        %v6719 = vunpack.c.l.b16 %v6417
        %v6720 = vunpack.c.h.b16 %v6417
        %v6721 = vpack.c.b16 %v6621, %v6521
        %v6722 = vpack.c.b16 %v6622, %v6522
        %v6723 = vpack.c.b16 %v6623, %v6523
        %v6724 = vpack.c.b16 %v6624, %v6524
        %v6725 = vpack.c.b16 %v6625, %v6525
        %v6726 = vpack.c.b16 %v6626, %v6526
        %v6727 = vpack.c.b16 %v6627, %v6527
        %v6728 = vpack.c.b16 %v6628, %v6528
        %v6729 = vpack.c.b16 %v6629, %v6529
        %v6730 = vpack.c.b16 %v6630, %v6530
        %v6731 = vpack.c.b16 %v6631, %v6531
        %v6732 = vpack.c.b16 %v6632, %v6532
        %v6733 = vpack.c.b16 %v6633, %v6533
        %v6734 = vpack.c.b16 %v6634, %v6534
        %v6735 = vpack.c.b16 %v6635, %v6535
        %v6736 = vpack.c.b16 %v6636, %v6536
        %v6737 = vpack.c.b16 %v6637, %v6537
        %v6738 = vpack.c.b16 %v6638, %v6538
        %v6739 = vpack.c.b16 %v6639, %v6539
        %v6740 = vpack.c.b16 %v6640, %v6540
        %v6741 = vpack.c.b16 %v6641, %v6541
        %v6742 = vpack.c.b16 %v6642, %v6542
        %v6743 = vpack.c.b16 %v6643, %v6543
        %v6744 = vpack.c.b16 %v6644, %v6544
        %v6745 = vpack.c.b16 %v6645, %v6545
        %v6746 = vpack.c.b16 %v6646, %v6546
        %v6747 = vpack.c.b16 %v6647, %v6547
        %v6748 = vpack.c.b16 %v6648, %v6548
        %v6749 = vpack.c.b16 %v6649, %v6549
        %v6750 = vpack.c.b16 %v6650, %v6550
        %v6751 = vpack.c.b16 %v6651, %v6551
        %v6752 = vpack.c.b16 %v6652, %v6552
        %v6753 = vpack.c.b16 %v6653, %v6553
        %v6754 = vpack.c.b16 %v6654, %v6554
        %v6755 = vpack.c.b16 %v6655, %v6555
        %v6756 = vpack.c.b16 %v6656, %v6556
        %v6757 = vpack.c.b16 %v6657, %v6557
        %v6758 = vpack.c.b16 %v6658, %v6558
        %v6759 = vpack.c.b16 %v6659, %v6559
        %v6760 = vpack.c.b16 %v6660, %v6560
        %v6761 = vpack.c.b16 %v6661, %v6561
        %v6762 = vpack.c.b16 %v6662, %v6562
        %v6763 = vpack.c.b16 %v6663, %v6563
        %v6764 = vpack.c.b16 %v6664, %v6564
        %v6765 = vpack.c.b16 %v6665, %v6565
        %v6766 = vpack.c.b16 %v6666, %v6566
        %v6767 = vpack.c.b16 %v6667, %v6567
        %v6768 = vpack.c.b16 %v6668, %v6568
        %v6769 = vpack.c.b16 %v6669, %v6569
        %v6770 = vpack.c.b16 %v6670, %v6570
        %v6771 = vpack.c.b16 %v6671, %v6571
        %v6772 = vpack.c.b16 %v6672, %v6572
        %v6773 = vpack.c.b16 %v6673, %v6573
        %v6774 = vpack.c.b16 %v6674, %v6574
        %v6775 = vpack.c.b16 %v6675, %v6575
        %v6776 = vpack.c.b16 %v6676, %v6576
        %v6777 = vpack.c.b16 %v6677, %v6577
        %v6778 = vpack.c.b16 %v6678, %v6578
        %v6779 = vpack.c.b16 %v6679, %v6579
        %v6780 = vpack.c.b16 %v6680, %v6580
        %v6781 = vpack.c.b16 %v6681, %v6581
        %v6782 = vpack.c.b16 %v6682, %v6582
        %v6783 = vpack.c.b16 %v6683, %v6583
        %v6784 = vpack.c.b16 %v6684, %v6584
        %v6785 = vpack.c.b16 %v6685, %v6585
        %v6786 = vpack.c.b16 %v6686, %v6586
        %v6787 = vpack.c.b16 %v6687, %v6587
        %v6788 = vpack.c.b16 %v6688, %v6588
        %v6789 = vpack.c.b16 %v6689, %v6589
        %v6790 = vpack.c.b16 %v6690, %v6590
        %v6791 = vpack.c.b16 %v6691, %v6591
        %v6792 = vpack.c.b16 %v6692, %v6592
        %v6793 = vpack.c.b16 %v6693, %v6593
        %v6794 = vpack.c.b16 %v6694, %v6594
        %v6795 = vpack.c.b16 %v6695, %v6595
        %v6796 = vpack.c.b16 %v6696, %v6596
        %v6797 = vpack.c.b16 %v6697, %v6597
        %v6798 = vpack.c.b16 %v6698, %v6598
        %v6799 = vpack.c.b16 %v6699, %v6599
        %v6800 = vpack.c.b16 %v6700, %v6600
        %v6801 = vpack.c.b16 %v6701, %v6601
        %v6802 = vpack.c.b16 %v6702, %v6602
        %v6803 = vpack.c.b16 %v6703, %v6603
        %v6804 = vpack.c.b16 %v6704, %v6604
        %v6805 = vpack.c.b16 %v6705, %v6605
        %v6806 = vpack.c.b16 %v6706, %v6606
        %v6807 = vpack.c.b16 %v6707, %v6607
        %v6808 = vpack.c.b16 %v6708, %v6608
        %v6809 = vpack.c.b16 %v6709, %v6609
        %v6810 = vpack.c.b16 %v6710, %v6610
        %v6811 = vpack.c.b16 %v6711, %v6611
        %v6812 = vpack.c.b16 %v6712, %v6612
        %v6813 = vpack.c.b16 %v6713, %v6613
        %v6814 = vpack.c.b16 %v6714, %v6614
        %v6815 = vpack.c.b16 %v6715, %v6615
        %v6816 = vpack.c.b16 %v6716, %v6616
        %v6817 = vpack.c.b16 %v6717, %v6617
        %v6818 = vpack.c.b16 %v6718, %v6618
        %v6819 = vpack.c.b16 %v6719, %v6619
        %v6820 = vpack.c.b16 %v6720, %v6620
        %6921 = vmatprep.subr.bf16.mxu0 %v1396
        %6922 = vmatpush1.bf16.xpose.msra.mxu0 %v1395
        %6923 = vmatprep.subr.bf16.mxu0 0
        %6924 = vmatpush1.bf16.xpose.msra.mxu0 0
        %6925 = vmatprep.subr.bf16.mxu0 0
        %6926 = vmatpush1.bf16.xpose.msra.mxu0 0
        %6927 = vmatprep.subr.bf16.mxu0 0
        %6928 = vmatpush1.bf16.xpose.msra.mxu0 0
        %6929 = vmatprep.subr.bf16.mxu0 0
        %6930 = vmatpush1.bf16.xpose.msra.mxu0 0
        %6931 = vmatprep.subr.bf16.mxu0 0
        %6932 = vmatpush1.bf16.xpose.msra.mxu0 0
        %6933 = vmatprep.subr.bf16.mxu0 0
        %6934 = vmatpush1.bf16.xpose.msra.mxu0 0
        %6935 = vmatprep.subr.bf16.mxu0 0
        %6936 = vmatpush1.bf16.xpose.msra.mxu0 0
        %6937 = vmatprep.subr.bf16.mxu0 0
        %6938 = vmatpush1.bf16.xpose.msra.mxu0 0
        %6939 = vmatprep.subr.bf16.mxu0 0
        %6940 = vmatpush1.bf16.xpose.msra.mxu0 0
        %6941 = vmatprep.subr.bf16.mxu0 0
        %6942 = vmatpush1.bf16.xpose.msra.mxu0 0
        %6943 = vmatprep.subr.bf16.mxu0 0
        %6944 = vmatpush1.bf16.xpose.msra.mxu0 0
        %6945 = vmatprep.subr.bf16.mxu0 0
        %6946 = vmatpush1.bf16.xpose.msra.mxu0 0
        %6947 = vmatprep.subr.bf16.mxu0 0
        %6948 = vmatpush1.bf16.xpose.msra.mxu0 0
        %6949 = vmatprep.subr.bf16.mxu0 0
        %6950 = vmatpush1.bf16.xpose.msra.mxu0 0
        %6951 = vmatprep.subr.bf16.mxu0 0
        %6952 = vmatpush1.bf16.xpose.msra.mxu0 0
        %6953 = vmatprep.mubr.bf16.mxu0 %v6722
        %6954 = vmatmul.mubr.bf16.gmra.mrb[0].mxu0 %v6721
        %v6955 = vpop.f32.mrb[0].mxu0
        %v6956 = vadd.f32 0.0, %v6955
        %v6957 = vpop.f32.mrb[0].mxu0
        %v6958 = vpop.f32.mrb[0].mxu0
        %v6959 = vadd.f32 0.0, %v6958
        %v6960 = vpop.f32.mrb[0].mxu0
        %6961 = vdwg.mxu0
        %6962 = vmatprep.subr.bf16.mxu0 %v1398
        %6963 = vmatpush1.bf16.xpose.msra.mxu0 %v1397
        %6964 = vmatprep.subr.bf16.mxu0 0
        %6965 = vmatpush1.bf16.xpose.msra.mxu0 0
        %6966 = vmatprep.subr.bf16.mxu0 0
        %6967 = vmatpush1.bf16.xpose.msra.mxu0 0
        %6968 = vmatprep.subr.bf16.mxu0 0
        %6969 = vmatpush1.bf16.xpose.msra.mxu0 0
        %6970 = vmatprep.subr.bf16.mxu0 0
        %6971 = vmatpush1.bf16.xpose.msra.mxu0 0
        %6972 = vmatprep.subr.bf16.mxu0 0
        %6973 = vmatpush1.bf16.xpose.msra.mxu0 0
        %6974 = vmatprep.subr.bf16.mxu0 0
        %6975 = vmatpush1.bf16.xpose.msra.mxu0 0
        %6976 = vmatprep.subr.bf16.mxu0 0
        %6977 = vmatpush1.bf16.xpose.msra.mxu0 0
        %6978 = vmatprep.subr.bf16.mxu0 0
        %6979 = vmatpush1.bf16.xpose.msra.mxu0 0
        %6980 = vmatprep.subr.bf16.mxu0 0
        %6981 = vmatpush1.bf16.xpose.msra.mxu0 0
        %6982 = vmatprep.subr.bf16.mxu0 0
        %6983 = vmatpush1.bf16.xpose.msra.mxu0 0
        %6984 = vmatprep.subr.bf16.mxu0 0
        %6985 = vmatpush1.bf16.xpose.msra.mxu0 0
        %6986 = vmatprep.subr.bf16.mxu0 0
        %6987 = vmatpush1.bf16.xpose.msra.mxu0 0
        %6988 = vmatprep.subr.bf16.mxu0 0
        %6989 = vmatpush1.bf16.xpose.msra.mxu0 0
        %6990 = vmatprep.subr.bf16.mxu0 0
        %6991 = vmatpush1.bf16.xpose.msra.mxu0 0
        %6992 = vmatprep.subr.bf16.mxu0 0
        %6993 = vmatpush1.bf16.xpose.msra.mxu0 0
        %6994 = vmatprep.mubr.bf16.mxu0 %v6724
        %6995 = vmatmul.mubr.bf16.gmra.mrb[0].mxu0 %v6723
        %v6996 = vpop.f32.mrb[0].mxu0
        %v6997 = vadd.f32 %v6956, %v6996
        %v6998 = vpop.f32.mrb[0].mxu0
        %v6999 = vpop.f32.mrb[0].mxu0
        %v7000 = vadd.f32 %v6959, %v6999
        %v7001 = vpop.f32.mrb[0].mxu0
        %7002 = vdwg.mxu0
        %7003 = vmatprep.subr.bf16.mxu0 %v1400
        %7004 = vmatpush1.bf16.xpose.msra.mxu0 %v1399
        %7005 = vmatprep.subr.bf16.mxu0 0
        %7006 = vmatpush1.bf16.xpose.msra.mxu0 0
        %7007 = vmatprep.subr.bf16.mxu0 0
        %7008 = vmatpush1.bf16.xpose.msra.mxu0 0
        %7009 = vmatprep.subr.bf16.mxu0 0
        %7010 = vmatpush1.bf16.xpose.msra.mxu0 0
        %7011 = vmatprep.subr.bf16.mxu0 0
        %7012 = vmatpush1.bf16.xpose.msra.mxu0 0
        %7013 = vmatprep.subr.bf16.mxu0 0
        %7014 = vmatpush1.bf16.xpose.msra.mxu0 0
        %7015 = vmatprep.subr.bf16.mxu0 0
        %7016 = vmatpush1.bf16.xpose.msra.mxu0 0
        %7017 = vmatprep.subr.bf16.mxu0 0
        %7018 = vmatpush1.bf16.xpose.msra.mxu0 0
        %7019 = vmatprep.subr.bf16.mxu0 0
        %7020 = vmatpush1.bf16.xpose.msra.mxu0 0
        %7021 = vmatprep.subr.bf16.mxu0 0
        %7022 = vmatpush1.bf16.xpose.msra.mxu0 0
        %7023 = vmatprep.subr.bf16.mxu0 0
        %7024 = vmatpush1.bf16.xpose.msra.mxu0 0
        %7025 = vmatprep.subr.bf16.mxu0 0
        %7026 = vmatpush1.bf16.xpose.msra.mxu0 0
        %7027 = vmatprep.subr.bf16.mxu0 0
        %7028 = vmatpush1.bf16.xpose.msra.mxu0 0
        %7029 = vmatprep.subr.bf16.mxu0 0
        %7030 = vmatpush1.bf16.xpose.msra.mxu0 0
        %7031 = vmatprep.subr.bf16.mxu0 0
        %7032 = vmatpush1.bf16.xpose.msra.mxu0 0
        %7033 = vmatprep.subr.bf16.mxu0 0
        %7034 = vmatpush1.bf16.xpose.msra.mxu0 0
        %7035 = vmatprep.mubr.bf16.mxu0 %v6726
        %7036 = vmatmul.mubr.bf16.gmra.mrb[0].mxu0 %v6725
        %v7037 = vpop.f32.mrb[0].mxu0
        %v7038 = vadd.f32 %v6997, %v7037
        %v7039 = vpop.f32.mrb[0].mxu0
        %v7040 = vpop.f32.mrb[0].mxu0
        %v7041 = vadd.f32 %v7000, %v7040
        %v7042 = vpop.f32.mrb[0].mxu0
        %7043 = vdwg.mxu0
        %7044 = vmatprep.subr.bf16.mxu0 %v1402
        %7045 = vmatpush1.bf16.xpose.msra.mxu0 %v1401
        %7046 = vmatprep.subr.bf16.mxu0 0
        %7047 = vmatpush1.bf16.xpose.msra.mxu0 0
        %7048 = vmatprep.subr.bf16.mxu0 0
        %7049 = vmatpush1.bf16.xpose.msra.mxu0 0
        %7050 = vmatprep.subr.bf16.mxu0 0
        %7051 = vmatpush1.bf16.xpose.msra.mxu0 0
        %7052 = vmatprep.subr.bf16.mxu0 0
        %7053 = vmatpush1.bf16.xpose.msra.mxu0 0
        %7054 = vmatprep.subr.bf16.mxu0 0
        %7055 = vmatpush1.bf16.xpose.msra.mxu0 0
        %7056 = vmatprep.subr.bf16.mxu0 0
        %7057 = vmatpush1.bf16.xpose.msra.mxu0 0
        %7058 = vmatprep.subr.bf16.mxu0 0
        %7059 = vmatpush1.bf16.xpose.msra.mxu0 0
        %7060 = vmatprep.subr.bf16.mxu0 0
        %7061 = vmatpush1.bf16.xpose.msra.mxu0 0
        %7062 = vmatprep.subr.bf16.mxu0 0
        %7063 = vmatpush1.bf16.xpose.msra.mxu0 0
        %7064 = vmatprep.subr.bf16.mxu0 0
        %7065 = vmatpush1.bf16.xpose.msra.mxu0 0
        %7066 = vmatprep.subr.bf16.mxu0 0
        %7067 = vmatpush1.bf16.xpose.msra.mxu0 0
        %7068 = vmatprep.subr.bf16.mxu0 0
        %7069 = vmatpush1.bf16.xpose.msra.mxu0 0
        %7070 = vmatprep.subr.bf16.mxu0 0
        %7071 = vmatpush1.bf16.xpose.msra.mxu0 0
        %7072 = vmatprep.subr.bf16.mxu0 0
        %7073 = vmatpush1.bf16.xpose.msra.mxu0 0
        %7074 = vmatprep.subr.bf16.mxu0 0
        %7075 = vmatpush1.bf16.xpose.msra.mxu0 0
        %7076 = vmatprep.mubr.bf16.mxu0 %v6728
        %7077 = vmatmul.mubr.bf16.gmra.mrb[0].mxu0 %v6727
        %v7078 = vpop.f32.mrb[0].mxu0
        %v7079 = vadd.f32 %v7038, %v7078
        %v7080 = vpop.f32.mrb[0].mxu0
        %v7081 = vpop.f32.mrb[0].mxu0
        %v7082 = vadd.f32 %v7041, %v7081
        %v7083 = vpop.f32.mrb[0].mxu0
        %7084 = vdwg.mxu0
        %7085 = vmatprep.subr.bf16.mxu0 %v1404
        %7086 = vmatpush1.bf16.xpose.msra.mxu0 %v1403
        %7087 = vmatprep.subr.bf16.mxu0 0
        %7088 = vmatpush1.bf16.xpose.msra.mxu0 0
        %7089 = vmatprep.subr.bf16.mxu0 0
        %7090 = vmatpush1.bf16.xpose.msra.mxu0 0
        %7091 = vmatprep.subr.bf16.mxu0 0
        %7092 = vmatpush1.bf16.xpose.msra.mxu0 0
        %7093 = vmatprep.subr.bf16.mxu0 0
        %7094 = vmatpush1.bf16.xpose.msra.mxu0 0
        %7095 = vmatprep.subr.bf16.mxu0 0
        %7096 = vmatpush1.bf16.xpose.msra.mxu0 0
        %7097 = vmatprep.subr.bf16.mxu0 0
        %7098 = vmatpush1.bf16.xpose.msra.mxu0 0
        %7099 = vmatprep.subr.bf16.mxu0 0
        %7100 = vmatpush1.bf16.xpose.msra.mxu0 0
        %7101 = vmatprep.subr.bf16.mxu0 0
        %7102 = vmatpush1.bf16.xpose.msra.mxu0 0
        %7103 = vmatprep.subr.bf16.mxu0 0
        %7104 = vmatpush1.bf16.xpose.msra.mxu0 0
        %7105 = vmatprep.subr.bf16.mxu0 0
        %7106 = vmatpush1.bf16.xpose.msra.mxu0 0
        %7107 = vmatprep.subr.bf16.mxu0 0
        %7108 = vmatpush1.bf16.xpose.msra.mxu0 0
        %7109 = vmatprep.subr.bf16.mxu0 0
        %7110 = vmatpush1.bf16.xpose.msra.mxu0 0
        %7111 = vmatprep.subr.bf16.mxu0 0
        %7112 = vmatpush1.bf16.xpose.msra.mxu0 0
        %7113 = vmatprep.subr.bf16.mxu0 0
        %7114 = vmatpush1.bf16.xpose.msra.mxu0 0
        %7115 = vmatprep.subr.bf16.mxu0 0
        %7116 = vmatpush1.bf16.xpose.msra.mxu0 0
        %7117 = vmatprep.mubr.bf16.mxu0 %v6730
        %7118 = vmatmul.mubr.bf16.gmra.mrb[0].mxu0 %v6729
        %v7119 = vpop.f32.mrb[0].mxu0
        %v7120 = vadd.f32 %v7079, %v7119
        %v7121 = vpop.f32.mrb[0].mxu0
        %v7122 = vpop.f32.mrb[0].mxu0
        %v7123 = vadd.f32 %v7082, %v7122
        %v7124 = vpop.f32.mrb[0].mxu0
        %7125 = vdwg.mxu0
        %7126 = vmatprep.subr.bf16.mxu0 %v1406
        %7127 = vmatpush1.bf16.xpose.msra.mxu0 %v1405
        %7128 = vmatprep.subr.bf16.mxu0 0
        %7129 = vmatpush1.bf16.xpose.msra.mxu0 0
        %7130 = vmatprep.subr.bf16.mxu0 0
        %7131 = vmatpush1.bf16.xpose.msra.mxu0 0
        %7132 = vmatprep.subr.bf16.mxu0 0
        %7133 = vmatpush1.bf16.xpose.msra.mxu0 0
        %7134 = vmatprep.subr.bf16.mxu0 0
        %7135 = vmatpush1.bf16.xpose.msra.mxu0 0
        %7136 = vmatprep.subr.bf16.mxu0 0
        %7137 = vmatpush1.bf16.xpose.msra.mxu0 0
        %7138 = vmatprep.subr.bf16.mxu0 0
        %7139 = vmatpush1.bf16.xpose.msra.mxu0 0
        %7140 = vmatprep.subr.bf16.mxu0 0
        %7141 = vmatpush1.bf16.xpose.msra.mxu0 0
        %7142 = vmatprep.subr.bf16.mxu0 0
        %7143 = vmatpush1.bf16.xpose.msra.mxu0 0
        %7144 = vmatprep.subr.bf16.mxu0 0
        %7145 = vmatpush1.bf16.xpose.msra.mxu0 0
        %7146 = vmatprep.subr.bf16.mxu0 0
        %7147 = vmatpush1.bf16.xpose.msra.mxu0 0
        %7148 = vmatprep.subr.bf16.mxu0 0
        %7149 = vmatpush1.bf16.xpose.msra.mxu0 0
        %7150 = vmatprep.subr.bf16.mxu0 0
        %7151 = vmatpush1.bf16.xpose.msra.mxu0 0
        %7152 = vmatprep.subr.bf16.mxu0 0
        %7153 = vmatpush1.bf16.xpose.msra.mxu0 0
        %7154 = vmatprep.subr.bf16.mxu0 0
        %7155 = vmatpush1.bf16.xpose.msra.mxu0 0
        %7156 = vmatprep.subr.bf16.mxu0 0
        %7157 = vmatpush1.bf16.xpose.msra.mxu0 0
        %7158 = vmatprep.mubr.bf16.mxu0 %v6732
        %7159 = vmatmul.mubr.bf16.gmra.mrb[0].mxu0 %v6731
        %v7160 = vpop.f32.mrb[0].mxu0
        %v7161 = vadd.f32 %v7120, %v7160
        %v7162 = vpop.f32.mrb[0].mxu0
        %v7163 = vpop.f32.mrb[0].mxu0
        %v7164 = vadd.f32 %v7123, %v7163
        %v7165 = vpop.f32.mrb[0].mxu0
        %7166 = vdwg.mxu0
        %7167 = vmatprep.subr.bf16.mxu0 %v1408
        %7168 = vmatpush1.bf16.xpose.msra.mxu0 %v1407
        %7169 = vmatprep.subr.bf16.mxu0 0
        %7170 = vmatpush1.bf16.xpose.msra.mxu0 0
        %7171 = vmatprep.subr.bf16.mxu0 0
        %7172 = vmatpush1.bf16.xpose.msra.mxu0 0
        %7173 = vmatprep.subr.bf16.mxu0 0
        %7174 = vmatpush1.bf16.xpose.msra.mxu0 0
        %7175 = vmatprep.subr.bf16.mxu0 0
        %7176 = vmatpush1.bf16.xpose.msra.mxu0 0
        %7177 = vmatprep.subr.bf16.mxu0 0
        %7178 = vmatpush1.bf16.xpose.msra.mxu0 0
        %7179 = vmatprep.subr.bf16.mxu0 0
        %7180 = vmatpush1.bf16.xpose.msra.mxu0 0
        %7181 = vmatprep.subr.bf16.mxu0 0
        %7182 = vmatpush1.bf16.xpose.msra.mxu0 0
        %7183 = vmatprep.subr.bf16.mxu0 0
        %7184 = vmatpush1.bf16.xpose.msra.mxu0 0
        %7185 = vmatprep.subr.bf16.mxu0 0
        %7186 = vmatpush1.bf16.xpose.msra.mxu0 0
        %7187 = vmatprep.subr.bf16.mxu0 0
        %7188 = vmatpush1.bf16.xpose.msra.mxu0 0
        %7189 = vmatprep.subr.bf16.mxu0 0
        %7190 = vmatpush1.bf16.xpose.msra.mxu0 0
        %7191 = vmatprep.subr.bf16.mxu0 0
        %7192 = vmatpush1.bf16.xpose.msra.mxu0 0
        %7193 = vmatprep.subr.bf16.mxu0 0
        %7194 = vmatpush1.bf16.xpose.msra.mxu0 0
        %7195 = vmatprep.subr.bf16.mxu0 0
        %7196 = vmatpush1.bf16.xpose.msra.mxu0 0
        %7197 = vmatprep.subr.bf16.mxu0 0
        %7198 = vmatpush1.bf16.xpose.msra.mxu0 0
        %7199 = vmatprep.mubr.bf16.mxu0 %v6734
        %7200 = vmatmul.mubr.bf16.gmra.mrb[0].mxu0 %v6733
        %v7201 = vpop.f32.mrb[0].mxu0
        %v7202 = vadd.f32 %v7161, %v7201
        %v7203 = vpop.f32.mrb[0].mxu0
        %v7204 = vpop.f32.mrb[0].mxu0
        %v7205 = vadd.f32 %v7164, %v7204
        %v7206 = vpop.f32.mrb[0].mxu0
        %7207 = vdwg.mxu0
        %7208 = vmatprep.subr.bf16.mxu0 %v1410
        %7209 = vmatpush1.bf16.xpose.msra.mxu0 %v1409
        %7210 = vmatprep.subr.bf16.mxu0 0
        %7211 = vmatpush1.bf16.xpose.msra.mxu0 0
        %7212 = vmatprep.subr.bf16.mxu0 0
        %7213 = vmatpush1.bf16.xpose.msra.mxu0 0
        %7214 = vmatprep.subr.bf16.mxu0 0
        %7215 = vmatpush1.bf16.xpose.msra.mxu0 0
        %7216 = vmatprep.subr.bf16.mxu0 0
        %7217 = vmatpush1.bf16.xpose.msra.mxu0 0
        %7218 = vmatprep.subr.bf16.mxu0 0
        %7219 = vmatpush1.bf16.xpose.msra.mxu0 0
        %7220 = vmatprep.subr.bf16.mxu0 0
        %7221 = vmatpush1.bf16.xpose.msra.mxu0 0
        %7222 = vmatprep.subr.bf16.mxu0 0
        %7223 = vmatpush1.bf16.xpose.msra.mxu0 0
        %7224 = vmatprep.subr.bf16.mxu0 0
        %7225 = vmatpush1.bf16.xpose.msra.mxu0 0
        %7226 = vmatprep.subr.bf16.mxu0 0
        %7227 = vmatpush1.bf16.xpose.msra.mxu0 0
        %7228 = vmatprep.subr.bf16.mxu0 0
        %7229 = vmatpush1.bf16.xpose.msra.mxu0 0
        %7230 = vmatprep.subr.bf16.mxu0 0
        %7231 = vmatpush1.bf16.xpose.msra.mxu0 0
        %7232 = vmatprep.subr.bf16.mxu0 0
        %7233 = vmatpush1.bf16.xpose.msra.mxu0 0
        %7234 = vmatprep.subr.bf16.mxu0 0
        %7235 = vmatpush1.bf16.xpose.msra.mxu0 0
        %7236 = vmatprep.subr.bf16.mxu0 0
        %7237 = vmatpush1.bf16.xpose.msra.mxu0 0
        %7238 = vmatprep.subr.bf16.mxu0 0
        %7239 = vmatpush1.bf16.xpose.msra.mxu0 0
        %7240 = vmatprep.mubr.bf16.mxu0 %v6736
        %7241 = vmatmul.mubr.bf16.gmra.mrb[0].mxu0 %v6735
        %v7242 = vpop.f32.mrb[0].mxu0
        %v7243 = vadd.f32 %v7202, %v7242
        %v7244 = vpop.f32.mrb[0].mxu0
        %v7245 = vpop.f32.mrb[0].mxu0
        %v7246 = vadd.f32 %v7205, %v7245
        %v7247 = vpop.f32.mrb[0].mxu0
        %7248 = vdwg.mxu0
        %7249 = vmatprep.subr.bf16.mxu0 %v1412
        %7250 = vmatpush1.bf16.xpose.msra.mxu0 %v1411
        %7251 = vmatprep.subr.bf16.mxu0 0
        %7252 = vmatpush1.bf16.xpose.msra.mxu0 0
        %7253 = vmatprep.subr.bf16.mxu0 0
        %7254 = vmatpush1.bf16.xpose.msra.mxu0 0
        %7255 = vmatprep.subr.bf16.mxu0 0
        %7256 = vmatpush1.bf16.xpose.msra.mxu0 0
        %7257 = vmatprep.subr.bf16.mxu0 0
        %7258 = vmatpush1.bf16.xpose.msra.mxu0 0
        %7259 = vmatprep.subr.bf16.mxu0 0
        %7260 = vmatpush1.bf16.xpose.msra.mxu0 0
        %7261 = vmatprep.subr.bf16.mxu0 0
        %7262 = vmatpush1.bf16.xpose.msra.mxu0 0
        %7263 = vmatprep.subr.bf16.mxu0 0
        %7264 = vmatpush1.bf16.xpose.msra.mxu0 0
        %7265 = vmatprep.subr.bf16.mxu0 0
        %7266 = vmatpush1.bf16.xpose.msra.mxu0 0
        %7267 = vmatprep.subr.bf16.mxu0 0
        %7268 = vmatpush1.bf16.xpose.msra.mxu0 0
        %7269 = vmatprep.subr.bf16.mxu0 0
        %7270 = vmatpush1.bf16.xpose.msra.mxu0 0
        %7271 = vmatprep.subr.bf16.mxu0 0
        %7272 = vmatpush1.bf16.xpose.msra.mxu0 0
        %7273 = vmatprep.subr.bf16.mxu0 0
        %7274 = vmatpush1.bf16.xpose.msra.mxu0 0
        %7275 = vmatprep.subr.bf16.mxu0 0
        %7276 = vmatpush1.bf16.xpose.msra.mxu0 0
        %7277 = vmatprep.subr.bf16.mxu0 0
        %7278 = vmatpush1.bf16.xpose.msra.mxu0 0
        %7279 = vmatprep.subr.bf16.mxu0 0
        %7280 = vmatpush1.bf16.xpose.msra.mxu0 0
        %7281 = vmatprep.mubr.bf16.mxu0 %v6738
        %7282 = vmatmul.mubr.bf16.gmra.mrb[0].mxu0 %v6737
        %v7283 = vpop.f32.mrb[0].mxu0
        %v7284 = vadd.f32 %v7243, %v7283
        %v7285 = vpop.f32.mrb[0].mxu0
        %v7286 = vpop.f32.mrb[0].mxu0
        %v7287 = vadd.f32 %v7246, %v7286
        %v7288 = vpop.f32.mrb[0].mxu0
        %7289 = vdwg.mxu0
        %7290 = vmatprep.subr.bf16.mxu0 %v1414
        %7291 = vmatpush1.bf16.xpose.msra.mxu0 %v1413
        %7292 = vmatprep.subr.bf16.mxu0 0
        %7293 = vmatpush1.bf16.xpose.msra.mxu0 0
        %7294 = vmatprep.subr.bf16.mxu0 0
        %7295 = vmatpush1.bf16.xpose.msra.mxu0 0
        %7296 = vmatprep.subr.bf16.mxu0 0
        %7297 = vmatpush1.bf16.xpose.msra.mxu0 0
        %7298 = vmatprep.subr.bf16.mxu0 0
        %7299 = vmatpush1.bf16.xpose.msra.mxu0 0
        %7300 = vmatprep.subr.bf16.mxu0 0
        %7301 = vmatpush1.bf16.xpose.msra.mxu0 0
        %7302 = vmatprep.subr.bf16.mxu0 0
        %7303 = vmatpush1.bf16.xpose.msra.mxu0 0
        %7304 = vmatprep.subr.bf16.mxu0 0
        %7305 = vmatpush1.bf16.xpose.msra.mxu0 0
        %7306 = vmatprep.subr.bf16.mxu0 0
        %7307 = vmatpush1.bf16.xpose.msra.mxu0 0
        %7308 = vmatprep.subr.bf16.mxu0 0
        %7309 = vmatpush1.bf16.xpose.msra.mxu0 0
        %7310 = vmatprep.subr.bf16.mxu0 0
        %7311 = vmatpush1.bf16.xpose.msra.mxu0 0
        %7312 = vmatprep.subr.bf16.mxu0 0
        %7313 = vmatpush1.bf16.xpose.msra.mxu0 0
        %7314 = vmatprep.subr.bf16.mxu0 0
        %7315 = vmatpush1.bf16.xpose.msra.mxu0 0
        %7316 = vmatprep.subr.bf16.mxu0 0
        %7317 = vmatpush1.bf16.xpose.msra.mxu0 0
        %7318 = vmatprep.subr.bf16.mxu0 0
        %7319 = vmatpush1.bf16.xpose.msra.mxu0 0
        %7320 = vmatprep.subr.bf16.mxu0 0
        %7321 = vmatpush1.bf16.xpose.msra.mxu0 0
        %7322 = vmatprep.mubr.bf16.mxu0 %v6740
        %7323 = vmatmul.mubr.bf16.gmra.mrb[0].mxu0 %v6739
        %v7324 = vpop.f32.mrb[0].mxu0
        %v7325 = vadd.f32 %v7284, %v7324
        %v7326 = vpop.f32.mrb[0].mxu0
        %v7327 = vpop.f32.mrb[0].mxu0
        %v7328 = vadd.f32 %v7287, %v7327
        %v7329 = vpop.f32.mrb[0].mxu0
        %7330 = vdwg.mxu0
        %7331 = vmatprep.subr.bf16.mxu0 %v1416
        %7332 = vmatpush1.bf16.xpose.msra.mxu0 %v1415
        %7333 = vmatprep.subr.bf16.mxu0 0
        %7334 = vmatpush1.bf16.xpose.msra.mxu0 0
        %7335 = vmatprep.subr.bf16.mxu0 0
        %7336 = vmatpush1.bf16.xpose.msra.mxu0 0
        %7337 = vmatprep.subr.bf16.mxu0 0
        %7338 = vmatpush1.bf16.xpose.msra.mxu0 0
        %7339 = vmatprep.subr.bf16.mxu0 0
        %7340 = vmatpush1.bf16.xpose.msra.mxu0 0
        %7341 = vmatprep.subr.bf16.mxu0 0
        %7342 = vmatpush1.bf16.xpose.msra.mxu0 0
        %7343 = vmatprep.subr.bf16.mxu0 0
        %7344 = vmatpush1.bf16.xpose.msra.mxu0 0
        %7345 = vmatprep.subr.bf16.mxu0 0
        %7346 = vmatpush1.bf16.xpose.msra.mxu0 0
        %7347 = vmatprep.subr.bf16.mxu0 0
        %7348 = vmatpush1.bf16.xpose.msra.mxu0 0
        %7349 = vmatprep.subr.bf16.mxu0 0
        %7350 = vmatpush1.bf16.xpose.msra.mxu0 0
        %7351 = vmatprep.subr.bf16.mxu0 0
        %7352 = vmatpush1.bf16.xpose.msra.mxu0 0
        %7353 = vmatprep.subr.bf16.mxu0 0
        %7354 = vmatpush1.bf16.xpose.msra.mxu0 0
        %7355 = vmatprep.subr.bf16.mxu0 0
        %7356 = vmatpush1.bf16.xpose.msra.mxu0 0
        %7357 = vmatprep.subr.bf16.mxu0 0
        %7358 = vmatpush1.bf16.xpose.msra.mxu0 0
        %7359 = vmatprep.subr.bf16.mxu0 0
        %7360 = vmatpush1.bf16.xpose.msra.mxu0 0
        %7361 = vmatprep.subr.bf16.mxu0 0
        %7362 = vmatpush1.bf16.xpose.msra.mxu0 0
        %7363 = vmatprep.mubr.bf16.mxu0 %v6742
        %7364 = vmatmul.mubr.bf16.gmra.mrb[0].mxu0 %v6741
        %v7365 = vpop.f32.mrb[0].mxu0
        %v7366 = vadd.f32 %v7325, %v7365
        %v7367 = vpop.f32.mrb[0].mxu0
        %v7368 = vpop.f32.mrb[0].mxu0
        %v7369 = vadd.f32 %v7328, %v7368
        %v7370 = vpop.f32.mrb[0].mxu0
        %7371 = vdwg.mxu0
        %7372 = vmatprep.subr.bf16.mxu0 %v1418
        %7373 = vmatpush1.bf16.xpose.msra.mxu0 %v1417
        %7374 = vmatprep.subr.bf16.mxu0 0
        %7375 = vmatpush1.bf16.xpose.msra.mxu0 0
        %7376 = vmatprep.subr.bf16.mxu0 0
        %7377 = vmatpush1.bf16.xpose.msra.mxu0 0
        %7378 = vmatprep.subr.bf16.mxu0 0
        %7379 = vmatpush1.bf16.xpose.msra.mxu0 0
        %7380 = vmatprep.subr.bf16.mxu0 0
        %7381 = vmatpush1.bf16.xpose.msra.mxu0 0
        %7382 = vmatprep.subr.bf16.mxu0 0
        %7383 = vmatpush1.bf16.xpose.msra.mxu0 0
        %7384 = vmatprep.subr.bf16.mxu0 0
        %7385 = vmatpush1.bf16.xpose.msra.mxu0 0
        %7386 = vmatprep.subr.bf16.mxu0 0
        %7387 = vmatpush1.bf16.xpose.msra.mxu0 0
        %7388 = vmatprep.subr.bf16.mxu0 0
        %7389 = vmatpush1.bf16.xpose.msra.mxu0 0
        %7390 = vmatprep.subr.bf16.mxu0 0
        %7391 = vmatpush1.bf16.xpose.msra.mxu0 0
        %7392 = vmatprep.subr.bf16.mxu0 0
        %7393 = vmatpush1.bf16.xpose.msra.mxu0 0
        %7394 = vmatprep.subr.bf16.mxu0 0
        %7395 = vmatpush1.bf16.xpose.msra.mxu0 0
        %7396 = vmatprep.subr.bf16.mxu0 0
        %7397 = vmatpush1.bf16.xpose.msra.mxu0 0
        %7398 = vmatprep.subr.bf16.mxu0 0
        %7399 = vmatpush1.bf16.xpose.msra.mxu0 0
        %7400 = vmatprep.subr.bf16.mxu0 0
        %7401 = vmatpush1.bf16.xpose.msra.mxu0 0
        %7402 = vmatprep.subr.bf16.mxu0 0
        %7403 = vmatpush1.bf16.xpose.msra.mxu0 0
        %7404 = vmatprep.mubr.bf16.mxu0 %v6744
        %7405 = vmatmul.mubr.bf16.gmra.mrb[0].mxu0 %v6743
        %v7406 = vpop.f32.mrb[0].mxu0
        %v7407 = vadd.f32 %v7366, %v7406
        %v7408 = vpop.f32.mrb[0].mxu0
        %v7409 = vpop.f32.mrb[0].mxu0
        %v7410 = vadd.f32 %v7369, %v7409
        %v7411 = vpop.f32.mrb[0].mxu0
        %7412 = vdwg.mxu0
        %7413 = vmatprep.subr.bf16.mxu0 %v1420
        %7414 = vmatpush1.bf16.xpose.msra.mxu0 %v1419
        %7415 = vmatprep.subr.bf16.mxu0 0
        %7416 = vmatpush1.bf16.xpose.msra.mxu0 0
        %7417 = vmatprep.subr.bf16.mxu0 0
        %7418 = vmatpush1.bf16.xpose.msra.mxu0 0
        %7419 = vmatprep.subr.bf16.mxu0 0
        %7420 = vmatpush1.bf16.xpose.msra.mxu0 0
        %7421 = vmatprep.subr.bf16.mxu0 0
        %7422 = vmatpush1.bf16.xpose.msra.mxu0 0
        %7423 = vmatprep.subr.bf16.mxu0 0
        %7424 = vmatpush1.bf16.xpose.msra.mxu0 0
        %7425 = vmatprep.subr.bf16.mxu0 0
        %7426 = vmatpush1.bf16.xpose.msra.mxu0 0
        %7427 = vmatprep.subr.bf16.mxu0 0
        %7428 = vmatpush1.bf16.xpose.msra.mxu0 0
        %7429 = vmatprep.subr.bf16.mxu0 0
        %7430 = vmatpush1.bf16.xpose.msra.mxu0 0
        %7431 = vmatprep.subr.bf16.mxu0 0
        %7432 = vmatpush1.bf16.xpose.msra.mxu0 0
        %7433 = vmatprep.subr.bf16.mxu0 0
        %7434 = vmatpush1.bf16.xpose.msra.mxu0 0
        %7435 = vmatprep.subr.bf16.mxu0 0
        %7436 = vmatpush1.bf16.xpose.msra.mxu0 0
        %7437 = vmatprep.subr.bf16.mxu0 0
        %7438 = vmatpush1.bf16.xpose.msra.mxu0 0
        %7439 = vmatprep.subr.bf16.mxu0 0
        %7440 = vmatpush1.bf16.xpose.msra.mxu0 0
        %7441 = vmatprep.subr.bf16.mxu0 0
        %7442 = vmatpush1.bf16.xpose.msra.mxu0 0
        %7443 = vmatprep.subr.bf16.mxu0 0
        %7444 = vmatpush1.bf16.xpose.msra.mxu0 0
        %7445 = vmatprep.mubr.bf16.mxu0 %v6746
        %7446 = vmatmul.mubr.bf16.gmra.mrb[0].mxu0 %v6745
        %v7447 = vpop.f32.mrb[0].mxu0
        %v7448 = vadd.f32 %v7407, %v7447
        %v7449 = vpop.f32.mrb[0].mxu0
        %v7450 = vpop.f32.mrb[0].mxu0
        %v7451 = vadd.f32 %v7410, %v7450
        %v7452 = vpop.f32.mrb[0].mxu0
        %7453 = vdwg.mxu0
        %7454 = vmatprep.subr.bf16.mxu0 %v1422
        %7455 = vmatpush1.bf16.xpose.msra.mxu0 %v1421
        %7456 = vmatprep.subr.bf16.mxu0 0
        %7457 = vmatpush1.bf16.xpose.msra.mxu0 0
        %7458 = vmatprep.subr.bf16.mxu0 0
        %7459 = vmatpush1.bf16.xpose.msra.mxu0 0
        %7460 = vmatprep.subr.bf16.mxu0 0
        %7461 = vmatpush1.bf16.xpose.msra.mxu0 0
        %7462 = vmatprep.subr.bf16.mxu0 0
        %7463 = vmatpush1.bf16.xpose.msra.mxu0 0
        %7464 = vmatprep.subr.bf16.mxu0 0
        %7465 = vmatpush1.bf16.xpose.msra.mxu0 0
        %7466 = vmatprep.subr.bf16.mxu0 0
        %7467 = vmatpush1.bf16.xpose.msra.mxu0 0
        %7468 = vmatprep.subr.bf16.mxu0 0
        %7469 = vmatpush1.bf16.xpose.msra.mxu0 0
        %7470 = vmatprep.subr.bf16.mxu0 0
        %7471 = vmatpush1.bf16.xpose.msra.mxu0 0
        %7472 = vmatprep.subr.bf16.mxu0 0
        %7473 = vmatpush1.bf16.xpose.msra.mxu0 0
        %7474 = vmatprep.subr.bf16.mxu0 0
        %7475 = vmatpush1.bf16.xpose.msra.mxu0 0
        %7476 = vmatprep.subr.bf16.mxu0 0
        %7477 = vmatpush1.bf16.xpose.msra.mxu0 0
        %7478 = vmatprep.subr.bf16.mxu0 0
        %7479 = vmatpush1.bf16.xpose.msra.mxu0 0
        %7480 = vmatprep.subr.bf16.mxu0 0
        %7481 = vmatpush1.bf16.xpose.msra.mxu0 0
        %7482 = vmatprep.subr.bf16.mxu0 0
        %7483 = vmatpush1.bf16.xpose.msra.mxu0 0
        %7484 = vmatprep.subr.bf16.mxu0 0
        %7485 = vmatpush1.bf16.xpose.msra.mxu0 0
        %7486 = vmatprep.mubr.bf16.mxu0 %v6748
        %7487 = vmatmul.mubr.bf16.gmra.mrb[0].mxu0 %v6747
        %v7488 = vpop.f32.mrb[0].mxu0
        %v7489 = vadd.f32 %v7448, %v7488
        %v7490 = vpop.f32.mrb[0].mxu0
        %v7491 = vpop.f32.mrb[0].mxu0
        %v7492 = vadd.f32 %v7451, %v7491
        %v7493 = vpop.f32.mrb[0].mxu0
        %7494 = vdwg.mxu0
        %7495 = vmatprep.subr.bf16.mxu0 %v1424
        %7496 = vmatpush1.bf16.xpose.msra.mxu0 %v1423
        %7497 = vmatprep.subr.bf16.mxu0 0
        %7498 = vmatpush1.bf16.xpose.msra.mxu0 0
        %7499 = vmatprep.subr.bf16.mxu0 0
        %7500 = vmatpush1.bf16.xpose.msra.mxu0 0
        %7501 = vmatprep.subr.bf16.mxu0 0
        %7502 = vmatpush1.bf16.xpose.msra.mxu0 0
        %7503 = vmatprep.subr.bf16.mxu0 0
        %7504 = vmatpush1.bf16.xpose.msra.mxu0 0
        %7505 = vmatprep.subr.bf16.mxu0 0
        %7506 = vmatpush1.bf16.xpose.msra.mxu0 0
        %7507 = vmatprep.subr.bf16.mxu0 0
        %7508 = vmatpush1.bf16.xpose.msra.mxu0 0
        %7509 = vmatprep.subr.bf16.mxu0 0
        %7510 = vmatpush1.bf16.xpose.msra.mxu0 0
        %7511 = vmatprep.subr.bf16.mxu0 0
        %7512 = vmatpush1.bf16.xpose.msra.mxu0 0
        %7513 = vmatprep.subr.bf16.mxu0 0
        %7514 = vmatpush1.bf16.xpose.msra.mxu0 0
        %7515 = vmatprep.subr.bf16.mxu0 0
        %7516 = vmatpush1.bf16.xpose.msra.mxu0 0
        %7517 = vmatprep.subr.bf16.mxu0 0
        %7518 = vmatpush1.bf16.xpose.msra.mxu0 0
        %7519 = vmatprep.subr.bf16.mxu0 0
        %7520 = vmatpush1.bf16.xpose.msra.mxu0 0
        %7521 = vmatprep.subr.bf16.mxu0 0
        %7522 = vmatpush1.bf16.xpose.msra.mxu0 0
        %7523 = vmatprep.subr.bf16.mxu0 0
        %7524 = vmatpush1.bf16.xpose.msra.mxu0 0
        %7525 = vmatprep.subr.bf16.mxu0 0
        %7526 = vmatpush1.bf16.xpose.msra.mxu0 0
        %7527 = vmatprep.mubr.bf16.mxu0 %v6750
        %7528 = vmatmul.mubr.bf16.gmra.mrb[0].mxu0 %v6749
        %v7529 = vpop.f32.mrb[0].mxu0
        %v7530 = vadd.f32 %v7489, %v7529
        %v7531 = vpop.f32.mrb[0].mxu0
        %v7532 = vpop.f32.mrb[0].mxu0
        %v7533 = vadd.f32 %v7492, %v7532
        %v7534 = vpop.f32.mrb[0].mxu0
        %7535 = vdwg.mxu0
        %7536 = vmatprep.subr.bf16.mxu0 %v1426
        %7537 = vmatpush1.bf16.xpose.msra.mxu0 %v1425
        %7538 = vmatprep.subr.bf16.mxu0 0
        %7539 = vmatpush1.bf16.xpose.msra.mxu0 0
        %7540 = vmatprep.subr.bf16.mxu0 0
        %7541 = vmatpush1.bf16.xpose.msra.mxu0 0
        %7542 = vmatprep.subr.bf16.mxu0 0
        %7543 = vmatpush1.bf16.xpose.msra.mxu0 0
        %7544 = vmatprep.subr.bf16.mxu0 0
        %7545 = vmatpush1.bf16.xpose.msra.mxu0 0
        %7546 = vmatprep.subr.bf16.mxu0 0
        %7547 = vmatpush1.bf16.xpose.msra.mxu0 0
        %7548 = vmatprep.subr.bf16.mxu0 0
        %7549 = vmatpush1.bf16.xpose.msra.mxu0 0
        %7550 = vmatprep.subr.bf16.mxu0 0
        %7551 = vmatpush1.bf16.xpose.msra.mxu0 0
        %7552 = vmatprep.subr.bf16.mxu0 0
        %7553 = vmatpush1.bf16.xpose.msra.mxu0 0
        %7554 = vmatprep.subr.bf16.mxu0 0
        %7555 = vmatpush1.bf16.xpose.msra.mxu0 0
        %7556 = vmatprep.subr.bf16.mxu0 0
        %7557 = vmatpush1.bf16.xpose.msra.mxu0 0
        %7558 = vmatprep.subr.bf16.mxu0 0
        %7559 = vmatpush1.bf16.xpose.msra.mxu0 0
        %7560 = vmatprep.subr.bf16.mxu0 0
        %7561 = vmatpush1.bf16.xpose.msra.mxu0 0
        %7562 = vmatprep.subr.bf16.mxu0 0
        %7563 = vmatpush1.bf16.xpose.msra.mxu0 0
        %7564 = vmatprep.subr.bf16.mxu0 0
        %7565 = vmatpush1.bf16.xpose.msra.mxu0 0
        %7566 = vmatprep.subr.bf16.mxu0 0
        %7567 = vmatpush1.bf16.xpose.msra.mxu0 0
        %7568 = vmatprep.mubr.bf16.mxu0 %v6752
        %7569 = vmatmul.mubr.bf16.gmra.mrb[0].mxu0 %v6751
        %v7570 = vpop.f32.mrb[0].mxu0
        %v7571 = vadd.f32 %v7530, %v7570
        %v7572 = vpop.f32.mrb[0].mxu0
        %v7573 = vpop.f32.mrb[0].mxu0
        %v7574 = vadd.f32 %v7533, %v7573
        %v7575 = vpop.f32.mrb[0].mxu0
        %7576 = vdwg.mxu0
        %7577 = vmatprep.subr.bf16.mxu0 %v1428
        %7578 = vmatpush1.bf16.xpose.msra.mxu0 %v1427
        %7579 = vmatprep.subr.bf16.mxu0 0
        %7580 = vmatpush1.bf16.xpose.msra.mxu0 0
        %7581 = vmatprep.subr.bf16.mxu0 0
        %7582 = vmatpush1.bf16.xpose.msra.mxu0 0
        %7583 = vmatprep.subr.bf16.mxu0 0
        %7584 = vmatpush1.bf16.xpose.msra.mxu0 0
        %7585 = vmatprep.subr.bf16.mxu0 0
        %7586 = vmatpush1.bf16.xpose.msra.mxu0 0
        %7587 = vmatprep.subr.bf16.mxu0 0
        %7588 = vmatpush1.bf16.xpose.msra.mxu0 0
        %7589 = vmatprep.subr.bf16.mxu0 0
        %7590 = vmatpush1.bf16.xpose.msra.mxu0 0
        %7591 = vmatprep.subr.bf16.mxu0 0
        %7592 = vmatpush1.bf16.xpose.msra.mxu0 0
        %7593 = vmatprep.subr.bf16.mxu0 0
        %7594 = vmatpush1.bf16.xpose.msra.mxu0 0
        %7595 = vmatprep.subr.bf16.mxu0 0
        %7596 = vmatpush1.bf16.xpose.msra.mxu0 0
        %7597 = vmatprep.subr.bf16.mxu0 0
        %7598 = vmatpush1.bf16.xpose.msra.mxu0 0
        %7599 = vmatprep.subr.bf16.mxu0 0
        %7600 = vmatpush1.bf16.xpose.msra.mxu0 0
        %7601 = vmatprep.subr.bf16.mxu0 0
        %7602 = vmatpush1.bf16.xpose.msra.mxu0 0
        %7603 = vmatprep.subr.bf16.mxu0 0
        %7604 = vmatpush1.bf16.xpose.msra.mxu0 0
        %7605 = vmatprep.subr.bf16.mxu0 0
        %7606 = vmatpush1.bf16.xpose.msra.mxu0 0
        %7607 = vmatprep.subr.bf16.mxu0 0
        %7608 = vmatpush1.bf16.xpose.msra.mxu0 0
        %7609 = vmatprep.mubr.bf16.mxu0 %v6754
        %7610 = vmatmul.mubr.bf16.gmra.mrb[0].mxu0 %v6753
        %v7611 = vpop.f32.mrb[0].mxu0
        %v7612 = vadd.f32 %v7571, %v7611
        %v7613 = vpop.f32.mrb[0].mxu0
        %v7614 = vpop.f32.mrb[0].mxu0
        %v7615 = vadd.f32 %v7574, %v7614
        %v7616 = vpop.f32.mrb[0].mxu0
        %7617 = vdwg.mxu0
        %7618 = vmatprep.subr.bf16.mxu0 %v1430
        %7619 = vmatpush1.bf16.xpose.msra.mxu0 %v1429
        %7620 = vmatprep.subr.bf16.mxu0 0
        %7621 = vmatpush1.bf16.xpose.msra.mxu0 0
        %7622 = vmatprep.subr.bf16.mxu0 0
        %7623 = vmatpush1.bf16.xpose.msra.mxu0 0
        %7624 = vmatprep.subr.bf16.mxu0 0
        %7625 = vmatpush1.bf16.xpose.msra.mxu0 0
        %7626 = vmatprep.subr.bf16.mxu0 0
        %7627 = vmatpush1.bf16.xpose.msra.mxu0 0
        %7628 = vmatprep.subr.bf16.mxu0 0
        %7629 = vmatpush1.bf16.xpose.msra.mxu0 0
        %7630 = vmatprep.subr.bf16.mxu0 0
        %7631 = vmatpush1.bf16.xpose.msra.mxu0 0
        %7632 = vmatprep.subr.bf16.mxu0 0
        %7633 = vmatpush1.bf16.xpose.msra.mxu0 0
        %7634 = vmatprep.subr.bf16.mxu0 0
        %7635 = vmatpush1.bf16.xpose.msra.mxu0 0
        %7636 = vmatprep.subr.bf16.mxu0 0
        %7637 = vmatpush1.bf16.xpose.msra.mxu0 0
        %7638 = vmatprep.subr.bf16.mxu0 0
        %7639 = vmatpush1.bf16.xpose.msra.mxu0 0
        %7640 = vmatprep.subr.bf16.mxu0 0
        %7641 = vmatpush1.bf16.xpose.msra.mxu0 0
        %7642 = vmatprep.subr.bf16.mxu0 0
        %7643 = vmatpush1.bf16.xpose.msra.mxu0 0
        %7644 = vmatprep.subr.bf16.mxu0 0
        %7645 = vmatpush1.bf16.xpose.msra.mxu0 0
        %7646 = vmatprep.subr.bf16.mxu0 0
        %7647 = vmatpush1.bf16.xpose.msra.mxu0 0
        %7648 = vmatprep.subr.bf16.mxu0 0
        %7649 = vmatpush1.bf16.xpose.msra.mxu0 0
        %7650 = vmatprep.mubr.bf16.mxu0 %v6756
        %7651 = vmatmul.mubr.bf16.gmra.mrb[0].mxu0 %v6755
        %v7652 = vpop.f32.mrb[0].mxu0
        %v7653 = vadd.f32 %v7612, %v7652
        %v7654 = vpop.f32.mrb[0].mxu0
        %v7655 = vpop.f32.mrb[0].mxu0
        %v7656 = vadd.f32 %v7615, %v7655
        %v7657 = vpop.f32.mrb[0].mxu0
        %7658 = vdwg.mxu0
        %7659 = vmatprep.subr.bf16.mxu0 %v1432
        %7660 = vmatpush1.bf16.xpose.msra.mxu0 %v1431
        %7661 = vmatprep.subr.bf16.mxu0 0
        %7662 = vmatpush1.bf16.xpose.msra.mxu0 0
        %7663 = vmatprep.subr.bf16.mxu0 0
        %7664 = vmatpush1.bf16.xpose.msra.mxu0 0
        %7665 = vmatprep.subr.bf16.mxu0 0
        %7666 = vmatpush1.bf16.xpose.msra.mxu0 0
        %7667 = vmatprep.subr.bf16.mxu0 0
        %7668 = vmatpush1.bf16.xpose.msra.mxu0 0
        %7669 = vmatprep.subr.bf16.mxu0 0
        %7670 = vmatpush1.bf16.xpose.msra.mxu0 0
        %7671 = vmatprep.subr.bf16.mxu0 0
        %7672 = vmatpush1.bf16.xpose.msra.mxu0 0
        %7673 = vmatprep.subr.bf16.mxu0 0
        %7674 = vmatpush1.bf16.xpose.msra.mxu0 0
        %7675 = vmatprep.subr.bf16.mxu0 0
        %7676 = vmatpush1.bf16.xpose.msra.mxu0 0
        %7677 = vmatprep.subr.bf16.mxu0 0
        %7678 = vmatpush1.bf16.xpose.msra.mxu0 0
        %7679 = vmatprep.subr.bf16.mxu0 0
        %7680 = vmatpush1.bf16.xpose.msra.mxu0 0
        %7681 = vmatprep.subr.bf16.mxu0 0
        %7682 = vmatpush1.bf16.xpose.msra.mxu0 0
        %7683 = vmatprep.subr.bf16.mxu0 0
        %7684 = vmatpush1.bf16.xpose.msra.mxu0 0
        %7685 = vmatprep.subr.bf16.mxu0 0
        %7686 = vmatpush1.bf16.xpose.msra.mxu0 0
        %7687 = vmatprep.subr.bf16.mxu0 0
        %7688 = vmatpush1.bf16.xpose.msra.mxu0 0
        %7689 = vmatprep.subr.bf16.mxu0 0
        %7690 = vmatpush1.bf16.xpose.msra.mxu0 0
        %7691 = vmatprep.mubr.bf16.mxu0 %v6758
        %7692 = vmatmul.mubr.bf16.gmra.mrb[0].mxu0 %v6757
        %v7693 = vpop.f32.mrb[0].mxu0
        %v7694 = vadd.f32 %v7653, %v7693
        %v7695 = vpop.f32.mrb[0].mxu0
        %v7696 = vpop.f32.mrb[0].mxu0
        %v7697 = vadd.f32 %v7656, %v7696
        %v7698 = vpop.f32.mrb[0].mxu0
        %7699 = vdwg.mxu0
        %7700 = vmatprep.subr.bf16.mxu0 %v1434
        %7701 = vmatpush1.bf16.xpose.msra.mxu0 %v1433
        %7702 = vmatprep.subr.bf16.mxu0 0
        %7703 = vmatpush1.bf16.xpose.msra.mxu0 0
        %7704 = vmatprep.subr.bf16.mxu0 0
        %7705 = vmatpush1.bf16.xpose.msra.mxu0 0
        %7706 = vmatprep.subr.bf16.mxu0 0
        %7707 = vmatpush1.bf16.xpose.msra.mxu0 0
        %7708 = vmatprep.subr.bf16.mxu0 0
        %7709 = vmatpush1.bf16.xpose.msra.mxu0 0
        %7710 = vmatprep.subr.bf16.mxu0 0
        %7711 = vmatpush1.bf16.xpose.msra.mxu0 0
        %7712 = vmatprep.subr.bf16.mxu0 0
        %7713 = vmatpush1.bf16.xpose.msra.mxu0 0
        %7714 = vmatprep.subr.bf16.mxu0 0
        %7715 = vmatpush1.bf16.xpose.msra.mxu0 0
        %7716 = vmatprep.subr.bf16.mxu0 0
        %7717 = vmatpush1.bf16.xpose.msra.mxu0 0
        %7718 = vmatprep.subr.bf16.mxu0 0
        %7719 = vmatpush1.bf16.xpose.msra.mxu0 0
        %7720 = vmatprep.subr.bf16.mxu0 0
        %7721 = vmatpush1.bf16.xpose.msra.mxu0 0
        %7722 = vmatprep.subr.bf16.mxu0 0
        %7723 = vmatpush1.bf16.xpose.msra.mxu0 0
        %7724 = vmatprep.subr.bf16.mxu0 0
        %7725 = vmatpush1.bf16.xpose.msra.mxu0 0
        %7726 = vmatprep.subr.bf16.mxu0 0
        %7727 = vmatpush1.bf16.xpose.msra.mxu0 0
        %7728 = vmatprep.subr.bf16.mxu0 0
        %7729 = vmatpush1.bf16.xpose.msra.mxu0 0
        %7730 = vmatprep.subr.bf16.mxu0 0
        %7731 = vmatpush1.bf16.xpose.msra.mxu0 0
        %7732 = vmatprep.mubr.bf16.mxu0 %v6760
        %7733 = vmatmul.mubr.bf16.gmra.mrb[0].mxu0 %v6759
        %v7734 = vpop.f32.mrb[0].mxu0
        %v7735 = vadd.f32 %v7694, %v7734
        %v7736 = vpop.f32.mrb[0].mxu0
        %v7737 = vpop.f32.mrb[0].mxu0
        %v7738 = vadd.f32 %v7697, %v7737
        %v7739 = vpop.f32.mrb[0].mxu0
        %7740 = vdwg.mxu0
        %7741 = vmatprep.subr.bf16.mxu0 %v1436
        %7742 = vmatpush1.bf16.xpose.msra.mxu0 %v1435
        %7743 = vmatprep.subr.bf16.mxu0 0
        %7744 = vmatpush1.bf16.xpose.msra.mxu0 0
        %7745 = vmatprep.subr.bf16.mxu0 0
        %7746 = vmatpush1.bf16.xpose.msra.mxu0 0
        %7747 = vmatprep.subr.bf16.mxu0 0
        %7748 = vmatpush1.bf16.xpose.msra.mxu0 0
        %7749 = vmatprep.subr.bf16.mxu0 0
        %7750 = vmatpush1.bf16.xpose.msra.mxu0 0
        %7751 = vmatprep.subr.bf16.mxu0 0
        %7752 = vmatpush1.bf16.xpose.msra.mxu0 0
        %7753 = vmatprep.subr.bf16.mxu0 0
        %7754 = vmatpush1.bf16.xpose.msra.mxu0 0
        %7755 = vmatprep.subr.bf16.mxu0 0
        %7756 = vmatpush1.bf16.xpose.msra.mxu0 0
        %7757 = vmatprep.subr.bf16.mxu0 0
        %7758 = vmatpush1.bf16.xpose.msra.mxu0 0
        %7759 = vmatprep.subr.bf16.mxu0 0
        %7760 = vmatpush1.bf16.xpose.msra.mxu0 0
        %7761 = vmatprep.subr.bf16.mxu0 0
        %7762 = vmatpush1.bf16.xpose.msra.mxu0 0
        %7763 = vmatprep.subr.bf16.mxu0 0
        %7764 = vmatpush1.bf16.xpose.msra.mxu0 0
        %7765 = vmatprep.subr.bf16.mxu0 0
        %7766 = vmatpush1.bf16.xpose.msra.mxu0 0
        %7767 = vmatprep.subr.bf16.mxu0 0
        %7768 = vmatpush1.bf16.xpose.msra.mxu0 0
        %7769 = vmatprep.subr.bf16.mxu0 0
        %7770 = vmatpush1.bf16.xpose.msra.mxu0 0
        %7771 = vmatprep.subr.bf16.mxu0 0
        %7772 = vmatpush1.bf16.xpose.msra.mxu0 0
        %7773 = vmatprep.mubr.bf16.mxu0 %v6762
        %7774 = vmatmul.mubr.bf16.gmra.mrb[0].mxu0 %v6761
        %v7775 = vpop.f32.mrb[0].mxu0
        %v7776 = vadd.f32 %v7735, %v7775
        %v7777 = vpop.f32.mrb[0].mxu0
        %v7778 = vpop.f32.mrb[0].mxu0
        %v7779 = vadd.f32 %v7738, %v7778
        %v7780 = vpop.f32.mrb[0].mxu0
        %7781 = vdwg.mxu0
        %7782 = vmatprep.subr.bf16.mxu0 %v1438
        %7783 = vmatpush1.bf16.xpose.msra.mxu0 %v1437
        %7784 = vmatprep.subr.bf16.mxu0 0
        %7785 = vmatpush1.bf16.xpose.msra.mxu0 0
        %7786 = vmatprep.subr.bf16.mxu0 0
        %7787 = vmatpush1.bf16.xpose.msra.mxu0 0
        %7788 = vmatprep.subr.bf16.mxu0 0
        %7789 = vmatpush1.bf16.xpose.msra.mxu0 0
        %7790 = vmatprep.subr.bf16.mxu0 0
        %7791 = vmatpush1.bf16.xpose.msra.mxu0 0
        %7792 = vmatprep.subr.bf16.mxu0 0
        %7793 = vmatpush1.bf16.xpose.msra.mxu0 0
        %7794 = vmatprep.subr.bf16.mxu0 0
        %7795 = vmatpush1.bf16.xpose.msra.mxu0 0
        %7796 = vmatprep.subr.bf16.mxu0 0
        %7797 = vmatpush1.bf16.xpose.msra.mxu0 0
        %7798 = vmatprep.subr.bf16.mxu0 0
        %7799 = vmatpush1.bf16.xpose.msra.mxu0 0
        %7800 = vmatprep.subr.bf16.mxu0 0
        %7801 = vmatpush1.bf16.xpose.msra.mxu0 0
        %7802 = vmatprep.subr.bf16.mxu0 0
        %7803 = vmatpush1.bf16.xpose.msra.mxu0 0
        %7804 = vmatprep.subr.bf16.mxu0 0
        %7805 = vmatpush1.bf16.xpose.msra.mxu0 0
        %7806 = vmatprep.subr.bf16.mxu0 0
        %7807 = vmatpush1.bf16.xpose.msra.mxu0 0
        %7808 = vmatprep.subr.bf16.mxu0 0
        %7809 = vmatpush1.bf16.xpose.msra.mxu0 0
        %7810 = vmatprep.subr.bf16.mxu0 0
        %7811 = vmatpush1.bf16.xpose.msra.mxu0 0
        %7812 = vmatprep.subr.bf16.mxu0 0
        %7813 = vmatpush1.bf16.xpose.msra.mxu0 0
        %7814 = vmatprep.mubr.bf16.mxu0 %v6764
        %7815 = vmatmul.mubr.bf16.gmra.mrb[0].mxu0 %v6763
        %v7816 = vpop.f32.mrb[0].mxu0
        %v7817 = vadd.f32 %v7776, %v7816
        %v7818 = vpop.f32.mrb[0].mxu0
        %v7819 = vpop.f32.mrb[0].mxu0
        %v7820 = vadd.f32 %v7779, %v7819
        %v7821 = vpop.f32.mrb[0].mxu0
        %7822 = vdwg.mxu0
        %7823 = vmatprep.subr.bf16.mxu0 %v1440
        %7824 = vmatpush1.bf16.xpose.msra.mxu0 %v1439
        %7825 = vmatprep.subr.bf16.mxu0 0
        %7826 = vmatpush1.bf16.xpose.msra.mxu0 0
        %7827 = vmatprep.subr.bf16.mxu0 0
        %7828 = vmatpush1.bf16.xpose.msra.mxu0 0
        %7829 = vmatprep.subr.bf16.mxu0 0
        %7830 = vmatpush1.bf16.xpose.msra.mxu0 0
        %7831 = vmatprep.subr.bf16.mxu0 0
        %7832 = vmatpush1.bf16.xpose.msra.mxu0 0
        %7833 = vmatprep.subr.bf16.mxu0 0
        %7834 = vmatpush1.bf16.xpose.msra.mxu0 0
        %7835 = vmatprep.subr.bf16.mxu0 0
        %7836 = vmatpush1.bf16.xpose.msra.mxu0 0
        %7837 = vmatprep.subr.bf16.mxu0 0
        %7838 = vmatpush1.bf16.xpose.msra.mxu0 0
        %7839 = vmatprep.subr.bf16.mxu0 0
        %7840 = vmatpush1.bf16.xpose.msra.mxu0 0
        %7841 = vmatprep.subr.bf16.mxu0 0
        %7842 = vmatpush1.bf16.xpose.msra.mxu0 0
        %7843 = vmatprep.subr.bf16.mxu0 0
        %7844 = vmatpush1.bf16.xpose.msra.mxu0 0
        %7845 = vmatprep.subr.bf16.mxu0 0
        %7846 = vmatpush1.bf16.xpose.msra.mxu0 0
        %7847 = vmatprep.subr.bf16.mxu0 0
        %7848 = vmatpush1.bf16.xpose.msra.mxu0 0
        %7849 = vmatprep.subr.bf16.mxu0 0
        %7850 = vmatpush1.bf16.xpose.msra.mxu0 0
        %7851 = vmatprep.subr.bf16.mxu0 0
        %7852 = vmatpush1.bf16.xpose.msra.mxu0 0
        %7853 = vmatprep.subr.bf16.mxu0 0
        %7854 = vmatpush1.bf16.xpose.msra.mxu0 0
        %7855 = vmatprep.mubr.bf16.mxu0 %v6766
        %7856 = vmatmul.mubr.bf16.gmra.mrb[0].mxu0 %v6765
        %v7857 = vpop.f32.mrb[0].mxu0
        %v7858 = vadd.f32 %v7817, %v7857
        %v7859 = vpop.f32.mrb[0].mxu0
        %v7860 = vpop.f32.mrb[0].mxu0
        %v7861 = vadd.f32 %v7820, %v7860
        %v7862 = vpop.f32.mrb[0].mxu0
        %7863 = vdwg.mxu0
        %7864 = vmatprep.subr.bf16.mxu0 %v1442
        %7865 = vmatpush1.bf16.xpose.msra.mxu0 %v1441
        %7866 = vmatprep.subr.bf16.mxu0 0
        %7867 = vmatpush1.bf16.xpose.msra.mxu0 0
        %7868 = vmatprep.subr.bf16.mxu0 0
        %7869 = vmatpush1.bf16.xpose.msra.mxu0 0
        %7870 = vmatprep.subr.bf16.mxu0 0
        %7871 = vmatpush1.bf16.xpose.msra.mxu0 0
        %7872 = vmatprep.subr.bf16.mxu0 0
        %7873 = vmatpush1.bf16.xpose.msra.mxu0 0
        %7874 = vmatprep.subr.bf16.mxu0 0
        %7875 = vmatpush1.bf16.xpose.msra.mxu0 0
        %7876 = vmatprep.subr.bf16.mxu0 0
        %7877 = vmatpush1.bf16.xpose.msra.mxu0 0
        %7878 = vmatprep.subr.bf16.mxu0 0
        %7879 = vmatpush1.bf16.xpose.msra.mxu0 0
        %7880 = vmatprep.subr.bf16.mxu0 0
        %7881 = vmatpush1.bf16.xpose.msra.mxu0 0
        %7882 = vmatprep.subr.bf16.mxu0 0
        %7883 = vmatpush1.bf16.xpose.msra.mxu0 0
        %7884 = vmatprep.subr.bf16.mxu0 0
        %7885 = vmatpush1.bf16.xpose.msra.mxu0 0
        %7886 = vmatprep.subr.bf16.mxu0 0
        %7887 = vmatpush1.bf16.xpose.msra.mxu0 0
        %7888 = vmatprep.subr.bf16.mxu0 0
        %7889 = vmatpush1.bf16.xpose.msra.mxu0 0
        %7890 = vmatprep.subr.bf16.mxu0 0
        %7891 = vmatpush1.bf16.xpose.msra.mxu0 0
        %7892 = vmatprep.subr.bf16.mxu0 0
        %7893 = vmatpush1.bf16.xpose.msra.mxu0 0
        %7894 = vmatprep.subr.bf16.mxu0 0
        %7895 = vmatpush1.bf16.xpose.msra.mxu0 0
        %7896 = vmatprep.mubr.bf16.mxu0 %v6768
        %7897 = vmatmul.mubr.bf16.gmra.mrb[0].mxu0 %v6767
        %v7898 = vpop.f32.mrb[0].mxu0
        %v7899 = vadd.f32 %v7858, %v7898
        %v7900 = vpop.f32.mrb[0].mxu0
        %v7901 = vpop.f32.mrb[0].mxu0
        %v7902 = vadd.f32 %v7861, %v7901
        %v7903 = vpop.f32.mrb[0].mxu0
        %7904 = vdwg.mxu0
        %7905 = vmatprep.subr.bf16.mxu0 %v1444
        %7906 = vmatpush1.bf16.xpose.msra.mxu0 %v1443
        %7907 = vmatprep.subr.bf16.mxu0 0
        %7908 = vmatpush1.bf16.xpose.msra.mxu0 0
        %7909 = vmatprep.subr.bf16.mxu0 0
        %7910 = vmatpush1.bf16.xpose.msra.mxu0 0
        %7911 = vmatprep.subr.bf16.mxu0 0
        %7912 = vmatpush1.bf16.xpose.msra.mxu0 0
        %7913 = vmatprep.subr.bf16.mxu0 0
        %7914 = vmatpush1.bf16.xpose.msra.mxu0 0
        %7915 = vmatprep.subr.bf16.mxu0 0
        %7916 = vmatpush1.bf16.xpose.msra.mxu0 0
        %7917 = vmatprep.subr.bf16.mxu0 0
        %7918 = vmatpush1.bf16.xpose.msra.mxu0 0
        %7919 = vmatprep.subr.bf16.mxu0 0
        %7920 = vmatpush1.bf16.xpose.msra.mxu0 0
        %7921 = vmatprep.subr.bf16.mxu0 0
        %7922 = vmatpush1.bf16.xpose.msra.mxu0 0
        %7923 = vmatprep.subr.bf16.mxu0 0
        %7924 = vmatpush1.bf16.xpose.msra.mxu0 0
        %7925 = vmatprep.subr.bf16.mxu0 0
        %7926 = vmatpush1.bf16.xpose.msra.mxu0 0
        %7927 = vmatprep.subr.bf16.mxu0 0
        %7928 = vmatpush1.bf16.xpose.msra.mxu0 0
        %7929 = vmatprep.subr.bf16.mxu0 0
        %7930 = vmatpush1.bf16.xpose.msra.mxu0 0
        %7931 = vmatprep.subr.bf16.mxu0 0
        %7932 = vmatpush1.bf16.xpose.msra.mxu0 0
        %7933 = vmatprep.subr.bf16.mxu0 0
        %7934 = vmatpush1.bf16.xpose.msra.mxu0 0
        %7935 = vmatprep.subr.bf16.mxu0 0
        %7936 = vmatpush1.bf16.xpose.msra.mxu0 0
        %7937 = vmatprep.mubr.bf16.mxu0 %v6770
        %7938 = vmatmul.mubr.bf16.gmra.mrb[0].mxu0 %v6769
        %v7939 = vpop.f32.mrb[0].mxu0
        %v7940 = vadd.f32 %v7899, %v7939
        %v7941 = vpop.f32.mrb[0].mxu0
        %v7942 = vpop.f32.mrb[0].mxu0
        %v7943 = vadd.f32 %v7902, %v7942
        %v7944 = vpop.f32.mrb[0].mxu0
        %7945 = vdwg.mxu0
        %7946 = vmatprep.subr.bf16.mxu0 %v1446
        %7947 = vmatpush1.bf16.xpose.msra.mxu0 %v1445
        %7948 = vmatprep.subr.bf16.mxu0 0
        %7949 = vmatpush1.bf16.xpose.msra.mxu0 0
        %7950 = vmatprep.subr.bf16.mxu0 0
        %7951 = vmatpush1.bf16.xpose.msra.mxu0 0
        %7952 = vmatprep.subr.bf16.mxu0 0
        %7953 = vmatpush1.bf16.xpose.msra.mxu0 0
        %7954 = vmatprep.subr.bf16.mxu0 0
        %7955 = vmatpush1.bf16.xpose.msra.mxu0 0
        %7956 = vmatprep.subr.bf16.mxu0 0
        %7957 = vmatpush1.bf16.xpose.msra.mxu0 0
        %7958 = vmatprep.subr.bf16.mxu0 0
        %7959 = vmatpush1.bf16.xpose.msra.mxu0 0
        %7960 = vmatprep.subr.bf16.mxu0 0
        %7961 = vmatpush1.bf16.xpose.msra.mxu0 0
        %7962 = vmatprep.subr.bf16.mxu0 0
        %7963 = vmatpush1.bf16.xpose.msra.mxu0 0
        %7964 = vmatprep.subr.bf16.mxu0 0
        %7965 = vmatpush1.bf16.xpose.msra.mxu0 0
        %7966 = vmatprep.subr.bf16.mxu0 0
        %7967 = vmatpush1.bf16.xpose.msra.mxu0 0
        %7968 = vmatprep.subr.bf16.mxu0 0
        %7969 = vmatpush1.bf16.xpose.msra.mxu0 0
        %7970 = vmatprep.subr.bf16.mxu0 0
        %7971 = vmatpush1.bf16.xpose.msra.mxu0 0
        %7972 = vmatprep.subr.bf16.mxu0 0
        %7973 = vmatpush1.bf16.xpose.msra.mxu0 0
        %7974 = vmatprep.subr.bf16.mxu0 0
        %7975 = vmatpush1.bf16.xpose.msra.mxu0 0
        %7976 = vmatprep.subr.bf16.mxu0 0
        %7977 = vmatpush1.bf16.xpose.msra.mxu0 0
        %7978 = vmatprep.mubr.bf16.mxu0 %v6772
        %7979 = vmatmul.mubr.bf16.gmra.mrb[0].mxu0 %v6771
        %v7980 = vpop.f32.mrb[0].mxu0
        %v7981 = vadd.f32 %v7940, %v7980
        %v7982 = vpop.f32.mrb[0].mxu0
        %v7983 = vpop.f32.mrb[0].mxu0
        %v7984 = vadd.f32 %v7943, %v7983
        %v7985 = vpop.f32.mrb[0].mxu0
        %7986 = vdwg.mxu0
        %7987 = vmatprep.subr.bf16.mxu0 %v1448
        %7988 = vmatpush1.bf16.xpose.msra.mxu0 %v1447
        %7989 = vmatprep.subr.bf16.mxu0 0
        %7990 = vmatpush1.bf16.xpose.msra.mxu0 0
        %7991 = vmatprep.subr.bf16.mxu0 0
        %7992 = vmatpush1.bf16.xpose.msra.mxu0 0
        %7993 = vmatprep.subr.bf16.mxu0 0
        %7994 = vmatpush1.bf16.xpose.msra.mxu0 0
        %7995 = vmatprep.subr.bf16.mxu0 0
        %7996 = vmatpush1.bf16.xpose.msra.mxu0 0
        %7997 = vmatprep.subr.bf16.mxu0 0
        %7998 = vmatpush1.bf16.xpose.msra.mxu0 0
        %7999 = vmatprep.subr.bf16.mxu0 0
        %8000 = vmatpush1.bf16.xpose.msra.mxu0 0
        %8001 = vmatprep.subr.bf16.mxu0 0
        %8002 = vmatpush1.bf16.xpose.msra.mxu0 0
        %8003 = vmatprep.subr.bf16.mxu0 0
        %8004 = vmatpush1.bf16.xpose.msra.mxu0 0
        %8005 = vmatprep.subr.bf16.mxu0 0
        %8006 = vmatpush1.bf16.xpose.msra.mxu0 0
        %8007 = vmatprep.subr.bf16.mxu0 0
        %8008 = vmatpush1.bf16.xpose.msra.mxu0 0
        %8009 = vmatprep.subr.bf16.mxu0 0
        %8010 = vmatpush1.bf16.xpose.msra.mxu0 0
        %8011 = vmatprep.subr.bf16.mxu0 0
        %8012 = vmatpush1.bf16.xpose.msra.mxu0 0
        %8013 = vmatprep.subr.bf16.mxu0 0
        %8014 = vmatpush1.bf16.xpose.msra.mxu0 0
        %8015 = vmatprep.subr.bf16.mxu0 0
        %8016 = vmatpush1.bf16.xpose.msra.mxu0 0
        %8017 = vmatprep.subr.bf16.mxu0 0
        %8018 = vmatpush1.bf16.xpose.msra.mxu0 0
        %8019 = vmatprep.mubr.bf16.mxu0 %v6774
        %8020 = vmatmul.mubr.bf16.gmra.mrb[0].mxu0 %v6773
        %v8021 = vpop.f32.mrb[0].mxu0
        %v8022 = vadd.f32 %v7981, %v8021
        %v8023 = vpop.f32.mrb[0].mxu0
        %v8024 = vpop.f32.mrb[0].mxu0
        %v8025 = vadd.f32 %v7984, %v8024
        %v8026 = vpop.f32.mrb[0].mxu0
        %8027 = vdwg.mxu0
        %8028 = vmatprep.subr.bf16.mxu0 %v1450
        %8029 = vmatpush1.bf16.xpose.msra.mxu0 %v1449
        %8030 = vmatprep.subr.bf16.mxu0 0
        %8031 = vmatpush1.bf16.xpose.msra.mxu0 0
        %8032 = vmatprep.subr.bf16.mxu0 0
        %8033 = vmatpush1.bf16.xpose.msra.mxu0 0
        %8034 = vmatprep.subr.bf16.mxu0 0
        %8035 = vmatpush1.bf16.xpose.msra.mxu0 0
        %8036 = vmatprep.subr.bf16.mxu0 0
        %8037 = vmatpush1.bf16.xpose.msra.mxu0 0
        %8038 = vmatprep.subr.bf16.mxu0 0
        %8039 = vmatpush1.bf16.xpose.msra.mxu0 0
        %8040 = vmatprep.subr.bf16.mxu0 0
        %8041 = vmatpush1.bf16.xpose.msra.mxu0 0
        %8042 = vmatprep.subr.bf16.mxu0 0
        %8043 = vmatpush1.bf16.xpose.msra.mxu0 0
        %8044 = vmatprep.subr.bf16.mxu0 0
        %8045 = vmatpush1.bf16.xpose.msra.mxu0 0
        %8046 = vmatprep.subr.bf16.mxu0 0
        %8047 = vmatpush1.bf16.xpose.msra.mxu0 0
        %8048 = vmatprep.subr.bf16.mxu0 0
        %8049 = vmatpush1.bf16.xpose.msra.mxu0 0
        %8050 = vmatprep.subr.bf16.mxu0 0
        %8051 = vmatpush1.bf16.xpose.msra.mxu0 0
        %8052 = vmatprep.subr.bf16.mxu0 0
        %8053 = vmatpush1.bf16.xpose.msra.mxu0 0
        %8054 = vmatprep.subr.bf16.mxu0 0
        %8055 = vmatpush1.bf16.xpose.msra.mxu0 0
        %8056 = vmatprep.subr.bf16.mxu0 0
        %8057 = vmatpush1.bf16.xpose.msra.mxu0 0
        %8058 = vmatprep.subr.bf16.mxu0 0
        %8059 = vmatpush1.bf16.xpose.msra.mxu0 0
        %8060 = vmatprep.mubr.bf16.mxu0 %v6776
        %8061 = vmatmul.mubr.bf16.gmra.mrb[0].mxu0 %v6775
        %v8062 = vpop.f32.mrb[0].mxu0
        %v8063 = vadd.f32 %v8022, %v8062
        %v8064 = vpop.f32.mrb[0].mxu0
        %v8065 = vpop.f32.mrb[0].mxu0
        %v8066 = vadd.f32 %v8025, %v8065
        %v8067 = vpop.f32.mrb[0].mxu0
        %8068 = vdwg.mxu0
        %8069 = vmatprep.subr.bf16.mxu0 %v1452
        %8070 = vmatpush1.bf16.xpose.msra.mxu0 %v1451
        %8071 = vmatprep.subr.bf16.mxu0 0
        %8072 = vmatpush1.bf16.xpose.msra.mxu0 0
        %8073 = vmatprep.subr.bf16.mxu0 0
        %8074 = vmatpush1.bf16.xpose.msra.mxu0 0
        %8075 = vmatprep.subr.bf16.mxu0 0
        %8076 = vmatpush1.bf16.xpose.msra.mxu0 0
        %8077 = vmatprep.subr.bf16.mxu0 0
        %8078 = vmatpush1.bf16.xpose.msra.mxu0 0
        %8079 = vmatprep.subr.bf16.mxu0 0
        %8080 = vmatpush1.bf16.xpose.msra.mxu0 0
        %8081 = vmatprep.subr.bf16.mxu0 0
        %8082 = vmatpush1.bf16.xpose.msra.mxu0 0
        %8083 = vmatprep.subr.bf16.mxu0 0
        %8084 = vmatpush1.bf16.xpose.msra.mxu0 0
        %8085 = vmatprep.subr.bf16.mxu0 0
        %8086 = vmatpush1.bf16.xpose.msra.mxu0 0
        %8087 = vmatprep.subr.bf16.mxu0 0
        %8088 = vmatpush1.bf16.xpose.msra.mxu0 0
        %8089 = vmatprep.subr.bf16.mxu0 0
        %8090 = vmatpush1.bf16.xpose.msra.mxu0 0
        %8091 = vmatprep.subr.bf16.mxu0 0
        %8092 = vmatpush1.bf16.xpose.msra.mxu0 0
        %8093 = vmatprep.subr.bf16.mxu0 0
        %8094 = vmatpush1.bf16.xpose.msra.mxu0 0
        %8095 = vmatprep.subr.bf16.mxu0 0
        %8096 = vmatpush1.bf16.xpose.msra.mxu0 0
        %8097 = vmatprep.subr.bf16.mxu0 0
        %8098 = vmatpush1.bf16.xpose.msra.mxu0 0
        %8099 = vmatprep.subr.bf16.mxu0 0
        %8100 = vmatpush1.bf16.xpose.msra.mxu0 0
        %8101 = vmatprep.mubr.bf16.mxu0 %v6778
        %8102 = vmatmul.mubr.bf16.gmra.mrb[0].mxu0 %v6777
        %v8103 = vpop.f32.mrb[0].mxu0
        %v8104 = vadd.f32 %v8063, %v8103
        %v8105 = vpop.f32.mrb[0].mxu0
        %v8106 = vpop.f32.mrb[0].mxu0
        %v8107 = vadd.f32 %v8066, %v8106
        %v8108 = vpop.f32.mrb[0].mxu0
        %8109 = vdwg.mxu0
        %8110 = vmatprep.subr.bf16.mxu0 %v1454
        %8111 = vmatpush1.bf16.xpose.msra.mxu0 %v1453
        %8112 = vmatprep.subr.bf16.mxu0 0
        %8113 = vmatpush1.bf16.xpose.msra.mxu0 0
        %8114 = vmatprep.subr.bf16.mxu0 0
        %8115 = vmatpush1.bf16.xpose.msra.mxu0 0
        %8116 = vmatprep.subr.bf16.mxu0 0
        %8117 = vmatpush1.bf16.xpose.msra.mxu0 0
        %8118 = vmatprep.subr.bf16.mxu0 0
        %8119 = vmatpush1.bf16.xpose.msra.mxu0 0
        %8120 = vmatprep.subr.bf16.mxu0 0
        %8121 = vmatpush1.bf16.xpose.msra.mxu0 0
        %8122 = vmatprep.subr.bf16.mxu0 0
        %8123 = vmatpush1.bf16.xpose.msra.mxu0 0
        %8124 = vmatprep.subr.bf16.mxu0 0
        %8125 = vmatpush1.bf16.xpose.msra.mxu0 0
        %8126 = vmatprep.subr.bf16.mxu0 0
        %8127 = vmatpush1.bf16.xpose.msra.mxu0 0
        %8128 = vmatprep.subr.bf16.mxu0 0
        %8129 = vmatpush1.bf16.xpose.msra.mxu0 0
        %8130 = vmatprep.subr.bf16.mxu0 0
        %8131 = vmatpush1.bf16.xpose.msra.mxu0 0
        %8132 = vmatprep.subr.bf16.mxu0 0
        %8133 = vmatpush1.bf16.xpose.msra.mxu0 0
        %8134 = vmatprep.subr.bf16.mxu0 0
        %8135 = vmatpush1.bf16.xpose.msra.mxu0 0
        %8136 = vmatprep.subr.bf16.mxu0 0
        %8137 = vmatpush1.bf16.xpose.msra.mxu0 0
        %8138 = vmatprep.subr.bf16.mxu0 0
        %8139 = vmatpush1.bf16.xpose.msra.mxu0 0
        %8140 = vmatprep.subr.bf16.mxu0 0
        %8141 = vmatpush1.bf16.xpose.msra.mxu0 0
        %8142 = vmatprep.mubr.bf16.mxu0 %v6780
        %8143 = vmatmul.mubr.bf16.gmra.mrb[0].mxu0 %v6779
        %v8144 = vpop.f32.mrb[0].mxu0
        %v8145 = vadd.f32 %v8104, %v8144
        %v8146 = vpop.f32.mrb[0].mxu0
        %v8147 = vpop.f32.mrb[0].mxu0
        %v8148 = vadd.f32 %v8107, %v8147
        %v8149 = vpop.f32.mrb[0].mxu0
        %8150 = vdwg.mxu0
        %8151 = vmatprep.subr.bf16.mxu0 %v1456
        %8152 = vmatpush1.bf16.xpose.msra.mxu0 %v1455
        %8153 = vmatprep.subr.bf16.mxu0 0
        %8154 = vmatpush1.bf16.xpose.msra.mxu0 0
        %8155 = vmatprep.subr.bf16.mxu0 0
        %8156 = vmatpush1.bf16.xpose.msra.mxu0 0
        %8157 = vmatprep.subr.bf16.mxu0 0
        %8158 = vmatpush1.bf16.xpose.msra.mxu0 0
        %8159 = vmatprep.subr.bf16.mxu0 0
        %8160 = vmatpush1.bf16.xpose.msra.mxu0 0
        %8161 = vmatprep.subr.bf16.mxu0 0
        %8162 = vmatpush1.bf16.xpose.msra.mxu0 0
        %8163 = vmatprep.subr.bf16.mxu0 0
        %8164 = vmatpush1.bf16.xpose.msra.mxu0 0
        %8165 = vmatprep.subr.bf16.mxu0 0
        %8166 = vmatpush1.bf16.xpose.msra.mxu0 0
        %8167 = vmatprep.subr.bf16.mxu0 0
        %8168 = vmatpush1.bf16.xpose.msra.mxu0 0
        %8169 = vmatprep.subr.bf16.mxu0 0
        %8170 = vmatpush1.bf16.xpose.msra.mxu0 0
        %8171 = vmatprep.subr.bf16.mxu0 0
        %8172 = vmatpush1.bf16.xpose.msra.mxu0 0
        %8173 = vmatprep.subr.bf16.mxu0 0
        %8174 = vmatpush1.bf16.xpose.msra.mxu0 0
        %8175 = vmatprep.subr.bf16.mxu0 0
        %8176 = vmatpush1.bf16.xpose.msra.mxu0 0
        %8177 = vmatprep.subr.bf16.mxu0 0
        %8178 = vmatpush1.bf16.xpose.msra.mxu0 0
        %8179 = vmatprep.subr.bf16.mxu0 0
        %8180 = vmatpush1.bf16.xpose.msra.mxu0 0
        %8181 = vmatprep.subr.bf16.mxu0 0
        %8182 = vmatpush1.bf16.xpose.msra.mxu0 0
        %8183 = vmatprep.mubr.bf16.mxu0 %v6782
        %8184 = vmatmul.mubr.bf16.gmra.mrb[0].mxu0 %v6781
        %v8185 = vpop.f32.mrb[0].mxu0
        %v8186 = vadd.f32 %v8145, %v8185
        %v8187 = vpop.f32.mrb[0].mxu0
        %v8188 = vpop.f32.mrb[0].mxu0
        %v8189 = vadd.f32 %v8148, %v8188
        %v8190 = vpop.f32.mrb[0].mxu0
        %8191 = vdwg.mxu0
        %8192 = vmatprep.subr.bf16.mxu0 %v1458
        %8193 = vmatpush1.bf16.xpose.msra.mxu0 %v1457
        %8194 = vmatprep.subr.bf16.mxu0 0
        %8195 = vmatpush1.bf16.xpose.msra.mxu0 0
        %8196 = vmatprep.subr.bf16.mxu0 0
        %8197 = vmatpush1.bf16.xpose.msra.mxu0 0
        %8198 = vmatprep.subr.bf16.mxu0 0
        %8199 = vmatpush1.bf16.xpose.msra.mxu0 0
        %8200 = vmatprep.subr.bf16.mxu0 0
        %8201 = vmatpush1.bf16.xpose.msra.mxu0 0
        %8202 = vmatprep.subr.bf16.mxu0 0
        %8203 = vmatpush1.bf16.xpose.msra.mxu0 0
        %8204 = vmatprep.subr.bf16.mxu0 0
        %8205 = vmatpush1.bf16.xpose.msra.mxu0 0
        %8206 = vmatprep.subr.bf16.mxu0 0
        %8207 = vmatpush1.bf16.xpose.msra.mxu0 0
        %8208 = vmatprep.subr.bf16.mxu0 0
        %8209 = vmatpush1.bf16.xpose.msra.mxu0 0
        %8210 = vmatprep.subr.bf16.mxu0 0
        %8211 = vmatpush1.bf16.xpose.msra.mxu0 0
        %8212 = vmatprep.subr.bf16.mxu0 0
        %8213 = vmatpush1.bf16.xpose.msra.mxu0 0
        %8214 = vmatprep.subr.bf16.mxu0 0
        %8215 = vmatpush1.bf16.xpose.msra.mxu0 0
        %8216 = vmatprep.subr.bf16.mxu0 0
        %8217 = vmatpush1.bf16.xpose.msra.mxu0 0
        %8218 = vmatprep.subr.bf16.mxu0 0
        %8219 = vmatpush1.bf16.xpose.msra.mxu0 0
        %8220 = vmatprep.subr.bf16.mxu0 0
        %8221 = vmatpush1.bf16.xpose.msra.mxu0 0
        %8222 = vmatprep.subr.bf16.mxu0 0
        %8223 = vmatpush1.bf16.xpose.msra.mxu0 0
        %8224 = vmatprep.mubr.bf16.mxu0 %v6784
        %8225 = vmatmul.mubr.bf16.gmra.mrb[0].mxu0 %v6783
        %v8226 = vpop.f32.mrb[0].mxu0
        %v8227 = vadd.f32 %v8186, %v8226
        %v8228 = vpop.f32.mrb[0].mxu0
        %v8229 = vpop.f32.mrb[0].mxu0
        %v8230 = vadd.f32 %v8189, %v8229
        %v8231 = vpop.f32.mrb[0].mxu0
        %8232 = vdwg.mxu0
        %8233 = vmatprep.subr.bf16.mxu0 %v1460
        %8234 = vmatpush1.bf16.xpose.msra.mxu0 %v1459
        %8235 = vmatprep.subr.bf16.mxu0 0
        %8236 = vmatpush1.bf16.xpose.msra.mxu0 0
        %8237 = vmatprep.subr.bf16.mxu0 0
        %8238 = vmatpush1.bf16.xpose.msra.mxu0 0
        %8239 = vmatprep.subr.bf16.mxu0 0
        %8240 = vmatpush1.bf16.xpose.msra.mxu0 0
        %8241 = vmatprep.subr.bf16.mxu0 0
        %8242 = vmatpush1.bf16.xpose.msra.mxu0 0
        %8243 = vmatprep.subr.bf16.mxu0 0
        %8244 = vmatpush1.bf16.xpose.msra.mxu0 0
        %8245 = vmatprep.subr.bf16.mxu0 0
        %8246 = vmatpush1.bf16.xpose.msra.mxu0 0
        %8247 = vmatprep.subr.bf16.mxu0 0
        %8248 = vmatpush1.bf16.xpose.msra.mxu0 0
        %8249 = vmatprep.subr.bf16.mxu0 0
        %8250 = vmatpush1.bf16.xpose.msra.mxu0 0
        %8251 = vmatprep.subr.bf16.mxu0 0
        %8252 = vmatpush1.bf16.xpose.msra.mxu0 0
        %8253 = vmatprep.subr.bf16.mxu0 0
        %8254 = vmatpush1.bf16.xpose.msra.mxu0 0
        %8255 = vmatprep.subr.bf16.mxu0 0
        %8256 = vmatpush1.bf16.xpose.msra.mxu0 0
        %8257 = vmatprep.subr.bf16.mxu0 0
        %8258 = vmatpush1.bf16.xpose.msra.mxu0 0
        %8259 = vmatprep.subr.bf16.mxu0 0
        %8260 = vmatpush1.bf16.xpose.msra.mxu0 0
        %8261 = vmatprep.subr.bf16.mxu0 0
        %8262 = vmatpush1.bf16.xpose.msra.mxu0 0
        %8263 = vmatprep.subr.bf16.mxu0 0
        %8264 = vmatpush1.bf16.xpose.msra.mxu0 0
        %8265 = vmatprep.mubr.bf16.mxu0 %v6786
        %8266 = vmatmul.mubr.bf16.gmra.mrb[0].mxu0 %v6785
        %v8267 = vpop.f32.mrb[0].mxu0
        %v8268 = vadd.f32 %v8227, %v8267
        %v8269 = vpop.f32.mrb[0].mxu0
        %v8270 = vpop.f32.mrb[0].mxu0
        %v8271 = vadd.f32 %v8230, %v8270
        %v8272 = vpop.f32.mrb[0].mxu0
        %8273 = vdwg.mxu0
        %8274 = vmatprep.subr.bf16.mxu0 %v1462
        %8275 = vmatpush1.bf16.xpose.msra.mxu0 %v1461
        %8276 = vmatprep.subr.bf16.mxu0 0
        %8277 = vmatpush1.bf16.xpose.msra.mxu0 0
        %8278 = vmatprep.subr.bf16.mxu0 0
        %8279 = vmatpush1.bf16.xpose.msra.mxu0 0
        %8280 = vmatprep.subr.bf16.mxu0 0
        %8281 = vmatpush1.bf16.xpose.msra.mxu0 0
        %8282 = vmatprep.subr.bf16.mxu0 0
        %8283 = vmatpush1.bf16.xpose.msra.mxu0 0
        %8284 = vmatprep.subr.bf16.mxu0 0
        %8285 = vmatpush1.bf16.xpose.msra.mxu0 0
        %8286 = vmatprep.subr.bf16.mxu0 0
        %8287 = vmatpush1.bf16.xpose.msra.mxu0 0
        %8288 = vmatprep.subr.bf16.mxu0 0
        %8289 = vmatpush1.bf16.xpose.msra.mxu0 0
        %8290 = vmatprep.subr.bf16.mxu0 0
        %8291 = vmatpush1.bf16.xpose.msra.mxu0 0
        %8292 = vmatprep.subr.bf16.mxu0 0
        %8293 = vmatpush1.bf16.xpose.msra.mxu0 0
        %8294 = vmatprep.subr.bf16.mxu0 0
        %8295 = vmatpush1.bf16.xpose.msra.mxu0 0
        %8296 = vmatprep.subr.bf16.mxu0 0
        %8297 = vmatpush1.bf16.xpose.msra.mxu0 0
        %8298 = vmatprep.subr.bf16.mxu0 0
        %8299 = vmatpush1.bf16.xpose.msra.mxu0 0
        %8300 = vmatprep.subr.bf16.mxu0 0
        %8301 = vmatpush1.bf16.xpose.msra.mxu0 0
        %8302 = vmatprep.subr.bf16.mxu0 0
        %8303 = vmatpush1.bf16.xpose.msra.mxu0 0
        %8304 = vmatprep.subr.bf16.mxu0 0
        %8305 = vmatpush1.bf16.xpose.msra.mxu0 0
        %8306 = vmatprep.mubr.bf16.mxu0 %v6788
        %8307 = vmatmul.mubr.bf16.gmra.mrb[0].mxu0 %v6787
        %v8308 = vpop.f32.mrb[0].mxu0
        %v8309 = vadd.f32 %v8268, %v8308
        %v8310 = vpop.f32.mrb[0].mxu0
        %v8311 = vpop.f32.mrb[0].mxu0
        %v8312 = vadd.f32 %v8271, %v8311
        %v8313 = vpop.f32.mrb[0].mxu0
        %8314 = vdwg.mxu0
        %8315 = vmatprep.subr.bf16.mxu0 %v1464
        %8316 = vmatpush1.bf16.xpose.msra.mxu0 %v1463
        %8317 = vmatprep.subr.bf16.mxu0 0
        %8318 = vmatpush1.bf16.xpose.msra.mxu0 0
        %8319 = vmatprep.subr.bf16.mxu0 0
        %8320 = vmatpush1.bf16.xpose.msra.mxu0 0
        %8321 = vmatprep.subr.bf16.mxu0 0
        %8322 = vmatpush1.bf16.xpose.msra.mxu0 0
        %8323 = vmatprep.subr.bf16.mxu0 0
        %8324 = vmatpush1.bf16.xpose.msra.mxu0 0
        %8325 = vmatprep.subr.bf16.mxu0 0
        %8326 = vmatpush1.bf16.xpose.msra.mxu0 0
        %8327 = vmatprep.subr.bf16.mxu0 0
        %8328 = vmatpush1.bf16.xpose.msra.mxu0 0
        %8329 = vmatprep.subr.bf16.mxu0 0
        %8330 = vmatpush1.bf16.xpose.msra.mxu0 0
        %8331 = vmatprep.subr.bf16.mxu0 0
        %8332 = vmatpush1.bf16.xpose.msra.mxu0 0
        %8333 = vmatprep.subr.bf16.mxu0 0
        %8334 = vmatpush1.bf16.xpose.msra.mxu0 0
        %8335 = vmatprep.subr.bf16.mxu0 0
        %8336 = vmatpush1.bf16.xpose.msra.mxu0 0
        %8337 = vmatprep.subr.bf16.mxu0 0
        %8338 = vmatpush1.bf16.xpose.msra.mxu0 0
        %8339 = vmatprep.subr.bf16.mxu0 0
        %8340 = vmatpush1.bf16.xpose.msra.mxu0 0
        %8341 = vmatprep.subr.bf16.mxu0 0
        %8342 = vmatpush1.bf16.xpose.msra.mxu0 0
        %8343 = vmatprep.subr.bf16.mxu0 0
        %8344 = vmatpush1.bf16.xpose.msra.mxu0 0
        %8345 = vmatprep.subr.bf16.mxu0 0
        %8346 = vmatpush1.bf16.xpose.msra.mxu0 0
        %8347 = vmatprep.mubr.bf16.mxu0 %v6790
        %8348 = vmatmul.mubr.bf16.gmra.mrb[0].mxu0 %v6789
        %v8349 = vpop.f32.mrb[0].mxu0
        %v8350 = vadd.f32 %v8309, %v8349
        %v8351 = vpop.f32.mrb[0].mxu0
        %v8352 = vpop.f32.mrb[0].mxu0
        %v8353 = vadd.f32 %v8312, %v8352
        %v8354 = vpop.f32.mrb[0].mxu0
        %8355 = vdwg.mxu0
        %8356 = vmatprep.subr.bf16.mxu0 %v1466
        %8357 = vmatpush1.bf16.xpose.msra.mxu0 %v1465
        %8358 = vmatprep.subr.bf16.mxu0 0
        %8359 = vmatpush1.bf16.xpose.msra.mxu0 0
        %8360 = vmatprep.subr.bf16.mxu0 0
        %8361 = vmatpush1.bf16.xpose.msra.mxu0 0
        %8362 = vmatprep.subr.bf16.mxu0 0
        %8363 = vmatpush1.bf16.xpose.msra.mxu0 0
        %8364 = vmatprep.subr.bf16.mxu0 0
        %8365 = vmatpush1.bf16.xpose.msra.mxu0 0
        %8366 = vmatprep.subr.bf16.mxu0 0
        %8367 = vmatpush1.bf16.xpose.msra.mxu0 0
        %8368 = vmatprep.subr.bf16.mxu0 0
        %8369 = vmatpush1.bf16.xpose.msra.mxu0 0
        %8370 = vmatprep.subr.bf16.mxu0 0
        %8371 = vmatpush1.bf16.xpose.msra.mxu0 0
        %8372 = vmatprep.subr.bf16.mxu0 0
        %8373 = vmatpush1.bf16.xpose.msra.mxu0 0
        %8374 = vmatprep.subr.bf16.mxu0 0
        %8375 = vmatpush1.bf16.xpose.msra.mxu0 0
        %8376 = vmatprep.subr.bf16.mxu0 0
        %8377 = vmatpush1.bf16.xpose.msra.mxu0 0
        %8378 = vmatprep.subr.bf16.mxu0 0
        %8379 = vmatpush1.bf16.xpose.msra.mxu0 0
        %8380 = vmatprep.subr.bf16.mxu0 0
        %8381 = vmatpush1.bf16.xpose.msra.mxu0 0
        %8382 = vmatprep.subr.bf16.mxu0 0
        %8383 = vmatpush1.bf16.xpose.msra.mxu0 0
        %8384 = vmatprep.subr.bf16.mxu0 0
        %8385 = vmatpush1.bf16.xpose.msra.mxu0 0
        %8386 = vmatprep.subr.bf16.mxu0 0
        %8387 = vmatpush1.bf16.xpose.msra.mxu0 0
        %8388 = vmatprep.mubr.bf16.mxu0 %v6792
        %8389 = vmatmul.mubr.bf16.gmra.mrb[0].mxu0 %v6791
        %v8390 = vpop.f32.mrb[0].mxu0
        %v8391 = vadd.f32 %v8350, %v8390
        %v8392 = vpop.f32.mrb[0].mxu0
        %v8393 = vpop.f32.mrb[0].mxu0
        %v8394 = vadd.f32 %v8353, %v8393
        %v8395 = vpop.f32.mrb[0].mxu0
        %8396 = vdwg.mxu0
        %8397 = vmatprep.subr.bf16.mxu0 %v1468
        %8398 = vmatpush1.bf16.xpose.msra.mxu0 %v1467
        %8399 = vmatprep.subr.bf16.mxu0 0
        %8400 = vmatpush1.bf16.xpose.msra.mxu0 0
        %8401 = vmatprep.subr.bf16.mxu0 0
        %8402 = vmatpush1.bf16.xpose.msra.mxu0 0
        %8403 = vmatprep.subr.bf16.mxu0 0
        %8404 = vmatpush1.bf16.xpose.msra.mxu0 0
        %8405 = vmatprep.subr.bf16.mxu0 0
        %8406 = vmatpush1.bf16.xpose.msra.mxu0 0
        %8407 = vmatprep.subr.bf16.mxu0 0
        %8408 = vmatpush1.bf16.xpose.msra.mxu0 0
        %8409 = vmatprep.subr.bf16.mxu0 0
        %8410 = vmatpush1.bf16.xpose.msra.mxu0 0
        %8411 = vmatprep.subr.bf16.mxu0 0
        %8412 = vmatpush1.bf16.xpose.msra.mxu0 0
        %8413 = vmatprep.subr.bf16.mxu0 0
        %8414 = vmatpush1.bf16.xpose.msra.mxu0 0
        %8415 = vmatprep.subr.bf16.mxu0 0
        %8416 = vmatpush1.bf16.xpose.msra.mxu0 0
        %8417 = vmatprep.subr.bf16.mxu0 0
        %8418 = vmatpush1.bf16.xpose.msra.mxu0 0
        %8419 = vmatprep.subr.bf16.mxu0 0
        %8420 = vmatpush1.bf16.xpose.msra.mxu0 0
        %8421 = vmatprep.subr.bf16.mxu0 0
        %8422 = vmatpush1.bf16.xpose.msra.mxu0 0
        %8423 = vmatprep.subr.bf16.mxu0 0
        %8424 = vmatpush1.bf16.xpose.msra.mxu0 0
        %8425 = vmatprep.subr.bf16.mxu0 0
        %8426 = vmatpush1.bf16.xpose.msra.mxu0 0
        %8427 = vmatprep.subr.bf16.mxu0 0
        %8428 = vmatpush1.bf16.xpose.msra.mxu0 0
        %8429 = vmatprep.mubr.bf16.mxu0 %v6794
        %8430 = vmatmul.mubr.bf16.gmra.mrb[0].mxu0 %v6793
        %v8431 = vpop.f32.mrb[0].mxu0
        %v8432 = vadd.f32 %v8391, %v8431
        %v8433 = vpop.f32.mrb[0].mxu0
        %v8434 = vpop.f32.mrb[0].mxu0
        %v8435 = vadd.f32 %v8394, %v8434
        %v8436 = vpop.f32.mrb[0].mxu0
        %8437 = vdwg.mxu0
        %8438 = vmatprep.subr.bf16.mxu0 %v1470
        %8439 = vmatpush1.bf16.xpose.msra.mxu0 %v1469
        %8440 = vmatprep.subr.bf16.mxu0 0
        %8441 = vmatpush1.bf16.xpose.msra.mxu0 0
        %8442 = vmatprep.subr.bf16.mxu0 0
        %8443 = vmatpush1.bf16.xpose.msra.mxu0 0
        %8444 = vmatprep.subr.bf16.mxu0 0
        %8445 = vmatpush1.bf16.xpose.msra.mxu0 0
        %8446 = vmatprep.subr.bf16.mxu0 0
        %8447 = vmatpush1.bf16.xpose.msra.mxu0 0
        %8448 = vmatprep.subr.bf16.mxu0 0
        %8449 = vmatpush1.bf16.xpose.msra.mxu0 0
        %8450 = vmatprep.subr.bf16.mxu0 0
        %8451 = vmatpush1.bf16.xpose.msra.mxu0 0
        %8452 = vmatprep.subr.bf16.mxu0 0
        %8453 = vmatpush1.bf16.xpose.msra.mxu0 0
        %8454 = vmatprep.subr.bf16.mxu0 0
        %8455 = vmatpush1.bf16.xpose.msra.mxu0 0
        %8456 = vmatprep.subr.bf16.mxu0 0
        %8457 = vmatpush1.bf16.xpose.msra.mxu0 0
        %8458 = vmatprep.subr.bf16.mxu0 0
        %8459 = vmatpush1.bf16.xpose.msra.mxu0 0
        %8460 = vmatprep.subr.bf16.mxu0 0
        %8461 = vmatpush1.bf16.xpose.msra.mxu0 0
        %8462 = vmatprep.subr.bf16.mxu0 0
        %8463 = vmatpush1.bf16.xpose.msra.mxu0 0
        %8464 = vmatprep.subr.bf16.mxu0 0
        %8465 = vmatpush1.bf16.xpose.msra.mxu0 0
        %8466 = vmatprep.subr.bf16.mxu0 0
        %8467 = vmatpush1.bf16.xpose.msra.mxu0 0
        %8468 = vmatprep.subr.bf16.mxu0 0
        %8469 = vmatpush1.bf16.xpose.msra.mxu0 0
        %8470 = vmatprep.mubr.bf16.mxu0 %v6796
        %8471 = vmatmul.mubr.bf16.gmra.mrb[0].mxu0 %v6795
        %v8472 = vpop.f32.mrb[0].mxu0
        %v8473 = vadd.f32 %v8432, %v8472
        %v8474 = vpop.f32.mrb[0].mxu0
        %v8475 = vpop.f32.mrb[0].mxu0
        %v8476 = vadd.f32 %v8435, %v8475
        %v8477 = vpop.f32.mrb[0].mxu0
        %8478 = vdwg.mxu0
        %8479 = vmatprep.subr.bf16.mxu0 %v1472
        %8480 = vmatpush1.bf16.xpose.msra.mxu0 %v1471
        %8481 = vmatprep.subr.bf16.mxu0 0
        %8482 = vmatpush1.bf16.xpose.msra.mxu0 0
        %8483 = vmatprep.subr.bf16.mxu0 0
        %8484 = vmatpush1.bf16.xpose.msra.mxu0 0
        %8485 = vmatprep.subr.bf16.mxu0 0
        %8486 = vmatpush1.bf16.xpose.msra.mxu0 0
        %8487 = vmatprep.subr.bf16.mxu0 0
        %8488 = vmatpush1.bf16.xpose.msra.mxu0 0
        %8489 = vmatprep.subr.bf16.mxu0 0
        %8490 = vmatpush1.bf16.xpose.msra.mxu0 0
        %8491 = vmatprep.subr.bf16.mxu0 0
        %8492 = vmatpush1.bf16.xpose.msra.mxu0 0
        %8493 = vmatprep.subr.bf16.mxu0 0
        %8494 = vmatpush1.bf16.xpose.msra.mxu0 0
        %8495 = vmatprep.subr.bf16.mxu0 0
        %8496 = vmatpush1.bf16.xpose.msra.mxu0 0
        %8497 = vmatprep.subr.bf16.mxu0 0
        %8498 = vmatpush1.bf16.xpose.msra.mxu0 0
        %8499 = vmatprep.subr.bf16.mxu0 0
        %8500 = vmatpush1.bf16.xpose.msra.mxu0 0
        %8501 = vmatprep.subr.bf16.mxu0 0
        %8502 = vmatpush1.bf16.xpose.msra.mxu0 0
        %8503 = vmatprep.subr.bf16.mxu0 0
        %8504 = vmatpush1.bf16.xpose.msra.mxu0 0
        %8505 = vmatprep.subr.bf16.mxu0 0
        %8506 = vmatpush1.bf16.xpose.msra.mxu0 0
        %8507 = vmatprep.subr.bf16.mxu0 0
        %8508 = vmatpush1.bf16.xpose.msra.mxu0 0
        %8509 = vmatprep.subr.bf16.mxu0 0
        %8510 = vmatpush1.bf16.xpose.msra.mxu0 0
        %8511 = vmatprep.mubr.bf16.mxu0 %v6798
        %8512 = vmatmul.mubr.bf16.gmra.mrb[0].mxu0 %v6797
        %v8513 = vpop.f32.mrb[0].mxu0
        %v8514 = vadd.f32 %v8473, %v8513
        %v8515 = vpop.f32.mrb[0].mxu0
        %v8516 = vpop.f32.mrb[0].mxu0
        %v8517 = vadd.f32 %v8476, %v8516
        %v8518 = vpop.f32.mrb[0].mxu0
        %8519 = vdwg.mxu0
        %8520 = vmatprep.subr.bf16.mxu0 %v1474
        %8521 = vmatpush1.bf16.xpose.msra.mxu0 %v1473
        %8522 = vmatprep.subr.bf16.mxu0 0
        %8523 = vmatpush1.bf16.xpose.msra.mxu0 0
        %8524 = vmatprep.subr.bf16.mxu0 0
        %8525 = vmatpush1.bf16.xpose.msra.mxu0 0
        %8526 = vmatprep.subr.bf16.mxu0 0
        %8527 = vmatpush1.bf16.xpose.msra.mxu0 0
        %8528 = vmatprep.subr.bf16.mxu0 0
        %8529 = vmatpush1.bf16.xpose.msra.mxu0 0
        %8530 = vmatprep.subr.bf16.mxu0 0
        %8531 = vmatpush1.bf16.xpose.msra.mxu0 0
        %8532 = vmatprep.subr.bf16.mxu0 0
        %8533 = vmatpush1.bf16.xpose.msra.mxu0 0
        %8534 = vmatprep.subr.bf16.mxu0 0
        %8535 = vmatpush1.bf16.xpose.msra.mxu0 0
        %8536 = vmatprep.subr.bf16.mxu0 0
        %8537 = vmatpush1.bf16.xpose.msra.mxu0 0
        %8538 = vmatprep.subr.bf16.mxu0 0
        %8539 = vmatpush1.bf16.xpose.msra.mxu0 0
        %8540 = vmatprep.subr.bf16.mxu0 0
        %8541 = vmatpush1.bf16.xpose.msra.mxu0 0
        %8542 = vmatprep.subr.bf16.mxu0 0
        %8543 = vmatpush1.bf16.xpose.msra.mxu0 0
        %8544 = vmatprep.subr.bf16.mxu0 0
        %8545 = vmatpush1.bf16.xpose.msra.mxu0 0
        %8546 = vmatprep.subr.bf16.mxu0 0
        %8547 = vmatpush1.bf16.xpose.msra.mxu0 0
        %8548 = vmatprep.subr.bf16.mxu0 0
        %8549 = vmatpush1.bf16.xpose.msra.mxu0 0
        %8550 = vmatprep.subr.bf16.mxu0 0
        %8551 = vmatpush1.bf16.xpose.msra.mxu0 0
        %8552 = vmatprep.mubr.bf16.mxu0 %v6800
        %8553 = vmatmul.mubr.bf16.gmra.mrb[0].mxu0 %v6799
        %v8554 = vpop.f32.mrb[0].mxu0
        %v8555 = vadd.f32 %v8514, %v8554
        %v8556 = vpop.f32.mrb[0].mxu0
        %v8557 = vpop.f32.mrb[0].mxu0
        %v8558 = vadd.f32 %v8517, %v8557
        %v8559 = vpop.f32.mrb[0].mxu0
        %8560 = vdwg.mxu0
        %8561 = vmatprep.subr.bf16.mxu0 %v1476
        %8562 = vmatpush1.bf16.xpose.msra.mxu0 %v1475
        %8563 = vmatprep.subr.bf16.mxu0 0
        %8564 = vmatpush1.bf16.xpose.msra.mxu0 0
        %8565 = vmatprep.subr.bf16.mxu0 0
        %8566 = vmatpush1.bf16.xpose.msra.mxu0 0
        %8567 = vmatprep.subr.bf16.mxu0 0
        %8568 = vmatpush1.bf16.xpose.msra.mxu0 0
        %8569 = vmatprep.subr.bf16.mxu0 0
        %8570 = vmatpush1.bf16.xpose.msra.mxu0 0
        %8571 = vmatprep.subr.bf16.mxu0 0
        %8572 = vmatpush1.bf16.xpose.msra.mxu0 0
        %8573 = vmatprep.subr.bf16.mxu0 0
        %8574 = vmatpush1.bf16.xpose.msra.mxu0 0
        %8575 = vmatprep.subr.bf16.mxu0 0
        %8576 = vmatpush1.bf16.xpose.msra.mxu0 0
        %8577 = vmatprep.subr.bf16.mxu0 0
        %8578 = vmatpush1.bf16.xpose.msra.mxu0 0
        %8579 = vmatprep.subr.bf16.mxu0 0
        %8580 = vmatpush1.bf16.xpose.msra.mxu0 0
        %8581 = vmatprep.subr.bf16.mxu0 0
        %8582 = vmatpush1.bf16.xpose.msra.mxu0 0
        %8583 = vmatprep.subr.bf16.mxu0 0
        %8584 = vmatpush1.bf16.xpose.msra.mxu0 0
        %8585 = vmatprep.subr.bf16.mxu0 0
        %8586 = vmatpush1.bf16.xpose.msra.mxu0 0
        %8587 = vmatprep.subr.bf16.mxu0 0
        %8588 = vmatpush1.bf16.xpose.msra.mxu0 0
        %8589 = vmatprep.subr.bf16.mxu0 0
        %8590 = vmatpush1.bf16.xpose.msra.mxu0 0
        %8591 = vmatprep.subr.bf16.mxu0 0
        %8592 = vmatpush1.bf16.xpose.msra.mxu0 0
        %8593 = vmatprep.mubr.bf16.mxu0 %v6802
        %8594 = vmatmul.mubr.bf16.gmra.mrb[0].mxu0 %v6801
        %v8595 = vpop.f32.mrb[0].mxu0
        %v8596 = vadd.f32 %v8555, %v8595
        %v8597 = vpop.f32.mrb[0].mxu0
        %v8598 = vpop.f32.mrb[0].mxu0
        %v8599 = vadd.f32 %v8558, %v8598
        %v8600 = vpop.f32.mrb[0].mxu0
        %8601 = vdwg.mxu0
        %8602 = vmatprep.subr.bf16.mxu0 %v1478
        %8603 = vmatpush1.bf16.xpose.msra.mxu0 %v1477
        %8604 = vmatprep.subr.bf16.mxu0 0
        %8605 = vmatpush1.bf16.xpose.msra.mxu0 0
        %8606 = vmatprep.subr.bf16.mxu0 0
        %8607 = vmatpush1.bf16.xpose.msra.mxu0 0
        %8608 = vmatprep.subr.bf16.mxu0 0
        %8609 = vmatpush1.bf16.xpose.msra.mxu0 0
        %8610 = vmatprep.subr.bf16.mxu0 0
        %8611 = vmatpush1.bf16.xpose.msra.mxu0 0
        %8612 = vmatprep.subr.bf16.mxu0 0
        %8613 = vmatpush1.bf16.xpose.msra.mxu0 0
        %8614 = vmatprep.subr.bf16.mxu0 0
        %8615 = vmatpush1.bf16.xpose.msra.mxu0 0
        %8616 = vmatprep.subr.bf16.mxu0 0
        %8617 = vmatpush1.bf16.xpose.msra.mxu0 0
        %8618 = vmatprep.subr.bf16.mxu0 0
        %8619 = vmatpush1.bf16.xpose.msra.mxu0 0
        %8620 = vmatprep.subr.bf16.mxu0 0
        %8621 = vmatpush1.bf16.xpose.msra.mxu0 0
        %8622 = vmatprep.subr.bf16.mxu0 0
        %8623 = vmatpush1.bf16.xpose.msra.mxu0 0
        %8624 = vmatprep.subr.bf16.mxu0 0
        %8625 = vmatpush1.bf16.xpose.msra.mxu0 0
        %8626 = vmatprep.subr.bf16.mxu0 0
        %8627 = vmatpush1.bf16.xpose.msra.mxu0 0
        %8628 = vmatprep.subr.bf16.mxu0 0
        %8629 = vmatpush1.bf16.xpose.msra.mxu0 0
        %8630 = vmatprep.subr.bf16.mxu0 0
        %8631 = vmatpush1.bf16.xpose.msra.mxu0 0
        %8632 = vmatprep.subr.bf16.mxu0 0
        %8633 = vmatpush1.bf16.xpose.msra.mxu0 0
        %8634 = vmatprep.mubr.bf16.mxu0 %v6804
        %8635 = vmatmul.mubr.bf16.gmra.mrb[0].mxu0 %v6803
        %v8636 = vpop.f32.mrb[0].mxu0
        %v8637 = vadd.f32 %v8596, %v8636
        %v8638 = vpop.f32.mrb[0].mxu0
        %v8639 = vpop.f32.mrb[0].mxu0
        %v8640 = vadd.f32 %v8599, %v8639
        %v8641 = vpop.f32.mrb[0].mxu0
        %8642 = vdwg.mxu0
        %8643 = vmatprep.subr.bf16.mxu0 %v1480
        %8644 = vmatpush1.bf16.xpose.msra.mxu0 %v1479
        %8645 = vmatprep.subr.bf16.mxu0 0
        %8646 = vmatpush1.bf16.xpose.msra.mxu0 0
        %8647 = vmatprep.subr.bf16.mxu0 0
        %8648 = vmatpush1.bf16.xpose.msra.mxu0 0
        %8649 = vmatprep.subr.bf16.mxu0 0
        %8650 = vmatpush1.bf16.xpose.msra.mxu0 0
        %8651 = vmatprep.subr.bf16.mxu0 0
        %8652 = vmatpush1.bf16.xpose.msra.mxu0 0
        %8653 = vmatprep.subr.bf16.mxu0 0
        %8654 = vmatpush1.bf16.xpose.msra.mxu0 0
        %8655 = vmatprep.subr.bf16.mxu0 0
        %8656 = vmatpush1.bf16.xpose.msra.mxu0 0
        %8657 = vmatprep.subr.bf16.mxu0 0
        %8658 = vmatpush1.bf16.xpose.msra.mxu0 0
        %8659 = vmatprep.subr.bf16.mxu0 0
        %8660 = vmatpush1.bf16.xpose.msra.mxu0 0
        %8661 = vmatprep.subr.bf16.mxu0 0
        %8662 = vmatpush1.bf16.xpose.msra.mxu0 0
        %8663 = vmatprep.subr.bf16.mxu0 0
        %8664 = vmatpush1.bf16.xpose.msra.mxu0 0
        %8665 = vmatprep.subr.bf16.mxu0 0
        %8666 = vmatpush1.bf16.xpose.msra.mxu0 0
        %8667 = vmatprep.subr.bf16.mxu0 0
        %8668 = vmatpush1.bf16.xpose.msra.mxu0 0
        %8669 = vmatprep.subr.bf16.mxu0 0
        %8670 = vmatpush1.bf16.xpose.msra.mxu0 0
        %8671 = vmatprep.subr.bf16.mxu0 0
        %8672 = vmatpush1.bf16.xpose.msra.mxu0 0
        %8673 = vmatprep.subr.bf16.mxu0 0
        %8674 = vmatpush1.bf16.xpose.msra.mxu0 0
        %8675 = vmatprep.mubr.bf16.mxu0 %v6806
        %8676 = vmatmul.mubr.bf16.gmra.mrb[0].mxu0 %v6805
        %v8677 = vpop.f32.mrb[0].mxu0
        %v8678 = vadd.f32 %v8637, %v8677
        %v8679 = vpop.f32.mrb[0].mxu0
        %v8680 = vpop.f32.mrb[0].mxu0
        %v8681 = vadd.f32 %v8640, %v8680
        %v8682 = vpop.f32.mrb[0].mxu0
        %8683 = vdwg.mxu0
        %8684 = vmatprep.subr.bf16.mxu0 %v1482
        %8685 = vmatpush1.bf16.xpose.msra.mxu0 %v1481
        %8686 = vmatprep.subr.bf16.mxu0 0
        %8687 = vmatpush1.bf16.xpose.msra.mxu0 0
        %8688 = vmatprep.subr.bf16.mxu0 0
        %8689 = vmatpush1.bf16.xpose.msra.mxu0 0
        %8690 = vmatprep.subr.bf16.mxu0 0
        %8691 = vmatpush1.bf16.xpose.msra.mxu0 0
        %8692 = vmatprep.subr.bf16.mxu0 0
        %8693 = vmatpush1.bf16.xpose.msra.mxu0 0
        %8694 = vmatprep.subr.bf16.mxu0 0
        %8695 = vmatpush1.bf16.xpose.msra.mxu0 0
        %8696 = vmatprep.subr.bf16.mxu0 0
        %8697 = vmatpush1.bf16.xpose.msra.mxu0 0
        %8698 = vmatprep.subr.bf16.mxu0 0
        %8699 = vmatpush1.bf16.xpose.msra.mxu0 0
        %8700 = vmatprep.subr.bf16.mxu0 0
        %8701 = vmatpush1.bf16.xpose.msra.mxu0 0
        %8702 = vmatprep.subr.bf16.mxu0 0
        %8703 = vmatpush1.bf16.xpose.msra.mxu0 0
        %8704 = vmatprep.subr.bf16.mxu0 0
        %8705 = vmatpush1.bf16.xpose.msra.mxu0 0
        %8706 = vmatprep.subr.bf16.mxu0 0
        %8707 = vmatpush1.bf16.xpose.msra.mxu0 0
        %8708 = vmatprep.subr.bf16.mxu0 0
        %8709 = vmatpush1.bf16.xpose.msra.mxu0 0
        %8710 = vmatprep.subr.bf16.mxu0 0
        %8711 = vmatpush1.bf16.xpose.msra.mxu0 0
        %8712 = vmatprep.subr.bf16.mxu0 0
        %8713 = vmatpush1.bf16.xpose.msra.mxu0 0
        %8714 = vmatprep.subr.bf16.mxu0 0
        %8715 = vmatpush1.bf16.xpose.msra.mxu0 0
        %8716 = vmatprep.mubr.bf16.mxu0 %v6808
        %8717 = vmatmul.mubr.bf16.gmra.mrb[0].mxu0 %v6807
        %v8718 = vpop.f32.mrb[0].mxu0
        %v8719 = vadd.f32 %v8678, %v8718
        %v8720 = vpop.f32.mrb[0].mxu0
        %v8721 = vpop.f32.mrb[0].mxu0
        %v8722 = vadd.f32 %v8681, %v8721
        %v8723 = vpop.f32.mrb[0].mxu0
        %8724 = vdwg.mxu0
        %8725 = vmatprep.subr.bf16.mxu0 %v1484
        %8726 = vmatpush1.bf16.xpose.msra.mxu0 %v1483
        %8727 = vmatprep.subr.bf16.mxu0 0
        %8728 = vmatpush1.bf16.xpose.msra.mxu0 0
        %8729 = vmatprep.subr.bf16.mxu0 0
        %8730 = vmatpush1.bf16.xpose.msra.mxu0 0
        %8731 = vmatprep.subr.bf16.mxu0 0
        %8732 = vmatpush1.bf16.xpose.msra.mxu0 0
        %8733 = vmatprep.subr.bf16.mxu0 0
        %8734 = vmatpush1.bf16.xpose.msra.mxu0 0
        %8735 = vmatprep.subr.bf16.mxu0 0
        %8736 = vmatpush1.bf16.xpose.msra.mxu0 0
        %8737 = vmatprep.subr.bf16.mxu0 0
        %8738 = vmatpush1.bf16.xpose.msra.mxu0 0
        %8739 = vmatprep.subr.bf16.mxu0 0
        %8740 = vmatpush1.bf16.xpose.msra.mxu0 0
        %8741 = vmatprep.subr.bf16.mxu0 0
        %8742 = vmatpush1.bf16.xpose.msra.mxu0 0
        %8743 = vmatprep.subr.bf16.mxu0 0
        %8744 = vmatpush1.bf16.xpose.msra.mxu0 0
        %8745 = vmatprep.subr.bf16.mxu0 0
        %8746 = vmatpush1.bf16.xpose.msra.mxu0 0
        %8747 = vmatprep.subr.bf16.mxu0 0
        %8748 = vmatpush1.bf16.xpose.msra.mxu0 0
        %8749 = vmatprep.subr.bf16.mxu0 0
        %8750 = vmatpush1.bf16.xpose.msra.mxu0 0
        %8751 = vmatprep.subr.bf16.mxu0 0
        %8752 = vmatpush1.bf16.xpose.msra.mxu0 0
        %8753 = vmatprep.subr.bf16.mxu0 0
        %8754 = vmatpush1.bf16.xpose.msra.mxu0 0
        %8755 = vmatprep.subr.bf16.mxu0 0
        %8756 = vmatpush1.bf16.xpose.msra.mxu0 0
        %8757 = vmatprep.mubr.bf16.mxu0 %v6810
        %8758 = vmatmul.mubr.bf16.gmra.mrb[0].mxu0 %v6809
        %v8759 = vpop.f32.mrb[0].mxu0
        %v8760 = vadd.f32 %v8719, %v8759
        %v8761 = vpop.f32.mrb[0].mxu0
        %v8762 = vpop.f32.mrb[0].mxu0
        %v8763 = vadd.f32 %v8722, %v8762
        %v8764 = vpop.f32.mrb[0].mxu0
        %8765 = vdwg.mxu0
        %8766 = vmatprep.subr.bf16.mxu0 %v1486
        %8767 = vmatpush1.bf16.xpose.msra.mxu0 %v1485
        %8768 = vmatprep.subr.bf16.mxu0 0
        %8769 = vmatpush1.bf16.xpose.msra.mxu0 0
        %8770 = vmatprep.subr.bf16.mxu0 0
        %8771 = vmatpush1.bf16.xpose.msra.mxu0 0
        %8772 = vmatprep.subr.bf16.mxu0 0
        %8773 = vmatpush1.bf16.xpose.msra.mxu0 0
        %8774 = vmatprep.subr.bf16.mxu0 0
        %8775 = vmatpush1.bf16.xpose.msra.mxu0 0
        %8776 = vmatprep.subr.bf16.mxu0 0
        %8777 = vmatpush1.bf16.xpose.msra.mxu0 0
        %8778 = vmatprep.subr.bf16.mxu0 0
        %8779 = vmatpush1.bf16.xpose.msra.mxu0 0
        %8780 = vmatprep.subr.bf16.mxu0 0
        %8781 = vmatpush1.bf16.xpose.msra.mxu0 0
        %8782 = vmatprep.subr.bf16.mxu0 0
        %8783 = vmatpush1.bf16.xpose.msra.mxu0 0
        %8784 = vmatprep.subr.bf16.mxu0 0
        %8785 = vmatpush1.bf16.xpose.msra.mxu0 0
        %8786 = vmatprep.subr.bf16.mxu0 0
        %8787 = vmatpush1.bf16.xpose.msra.mxu0 0
        %8788 = vmatprep.subr.bf16.mxu0 0
        %8789 = vmatpush1.bf16.xpose.msra.mxu0 0
        %8790 = vmatprep.subr.bf16.mxu0 0
        %8791 = vmatpush1.bf16.xpose.msra.mxu0 0
        %8792 = vmatprep.subr.bf16.mxu0 0
        %8793 = vmatpush1.bf16.xpose.msra.mxu0 0
        %8794 = vmatprep.subr.bf16.mxu0 0
        %8795 = vmatpush1.bf16.xpose.msra.mxu0 0
        %8796 = vmatprep.subr.bf16.mxu0 0
        %8797 = vmatpush1.bf16.xpose.msra.mxu0 0
        %8798 = vmatprep.mubr.bf16.mxu0 %v6812
        %8799 = vmatmul.mubr.bf16.gmra.mrb[0].mxu0 %v6811
        %v8800 = vpop.f32.mrb[0].mxu0
        %v8801 = vadd.f32 %v8760, %v8800
        %v8802 = vpop.f32.mrb[0].mxu0
        %v8803 = vpop.f32.mrb[0].mxu0
        %v8804 = vadd.f32 %v8763, %v8803
        %v8805 = vpop.f32.mrb[0].mxu0
        %8806 = vdwg.mxu0
        %8807 = vmatprep.subr.bf16.mxu0 %v1488
        %8808 = vmatpush1.bf16.xpose.msra.mxu0 %v1487
        %8809 = vmatprep.subr.bf16.mxu0 0
        %8810 = vmatpush1.bf16.xpose.msra.mxu0 0
        %8811 = vmatprep.subr.bf16.mxu0 0
        %8812 = vmatpush1.bf16.xpose.msra.mxu0 0
        %8813 = vmatprep.subr.bf16.mxu0 0
        %8814 = vmatpush1.bf16.xpose.msra.mxu0 0
        %8815 = vmatprep.subr.bf16.mxu0 0
        %8816 = vmatpush1.bf16.xpose.msra.mxu0 0
        %8817 = vmatprep.subr.bf16.mxu0 0
        %8818 = vmatpush1.bf16.xpose.msra.mxu0 0
        %8819 = vmatprep.subr.bf16.mxu0 0
        %8820 = vmatpush1.bf16.xpose.msra.mxu0 0
        %8821 = vmatprep.subr.bf16.mxu0 0
        %8822 = vmatpush1.bf16.xpose.msra.mxu0 0
        %8823 = vmatprep.subr.bf16.mxu0 0
        %8824 = vmatpush1.bf16.xpose.msra.mxu0 0
        %8825 = vmatprep.subr.bf16.mxu0 0
        %8826 = vmatpush1.bf16.xpose.msra.mxu0 0
        %8827 = vmatprep.subr.bf16.mxu0 0
        %8828 = vmatpush1.bf16.xpose.msra.mxu0 0
        %8829 = vmatprep.subr.bf16.mxu0 0
        %8830 = vmatpush1.bf16.xpose.msra.mxu0 0
        %8831 = vmatprep.subr.bf16.mxu0 0
        %8832 = vmatpush1.bf16.xpose.msra.mxu0 0
        %8833 = vmatprep.subr.bf16.mxu0 0
        %8834 = vmatpush1.bf16.xpose.msra.mxu0 0
        %8835 = vmatprep.subr.bf16.mxu0 0
        %8836 = vmatpush1.bf16.xpose.msra.mxu0 0
        %8837 = vmatprep.subr.bf16.mxu0 0
        %8838 = vmatpush1.bf16.xpose.msra.mxu0 0
        %8839 = vmatprep.mubr.bf16.mxu0 %v6814
        %8840 = vmatmul.mubr.bf16.gmra.mrb[0].mxu0 %v6813
        %v8841 = vpop.f32.mrb[0].mxu0
        %v8842 = vadd.f32 %v8801, %v8841
        %v8843 = vpop.f32.mrb[0].mxu0
        %v8844 = vpop.f32.mrb[0].mxu0
        %v8845 = vadd.f32 %v8804, %v8844
        %v8846 = vpop.f32.mrb[0].mxu0
        %8847 = vdwg.mxu0
        %8848 = vmatprep.subr.bf16.mxu0 %v1490
        %8849 = vmatpush1.bf16.xpose.msra.mxu0 %v1489
        %8850 = vmatprep.subr.bf16.mxu0 0
        %8851 = vmatpush1.bf16.xpose.msra.mxu0 0
        %8852 = vmatprep.subr.bf16.mxu0 0
        %8853 = vmatpush1.bf16.xpose.msra.mxu0 0
        %8854 = vmatprep.subr.bf16.mxu0 0
        %8855 = vmatpush1.bf16.xpose.msra.mxu0 0
        %8856 = vmatprep.subr.bf16.mxu0 0
        %8857 = vmatpush1.bf16.xpose.msra.mxu0 0
        %8858 = vmatprep.subr.bf16.mxu0 0
        %8859 = vmatpush1.bf16.xpose.msra.mxu0 0
        %8860 = vmatprep.subr.bf16.mxu0 0
        %8861 = vmatpush1.bf16.xpose.msra.mxu0 0
        %8862 = vmatprep.subr.bf16.mxu0 0
        %8863 = vmatpush1.bf16.xpose.msra.mxu0 0
        %8864 = vmatprep.subr.bf16.mxu0 0
        %8865 = vmatpush1.bf16.xpose.msra.mxu0 0
        %8866 = vmatprep.subr.bf16.mxu0 0
        %8867 = vmatpush1.bf16.xpose.msra.mxu0 0
        %8868 = vmatprep.subr.bf16.mxu0 0
        %8869 = vmatpush1.bf16.xpose.msra.mxu0 0
        %8870 = vmatprep.subr.bf16.mxu0 0
        %8871 = vmatpush1.bf16.xpose.msra.mxu0 0
        %8872 = vmatprep.subr.bf16.mxu0 0
        %8873 = vmatpush1.bf16.xpose.msra.mxu0 0
        %8874 = vmatprep.subr.bf16.mxu0 0
        %8875 = vmatpush1.bf16.xpose.msra.mxu0 0
        %8876 = vmatprep.subr.bf16.mxu0 0
        %8877 = vmatpush1.bf16.xpose.msra.mxu0 0
        %8878 = vmatprep.subr.bf16.mxu0 0
        %8879 = vmatpush1.bf16.xpose.msra.mxu0 0
        %8880 = vmatprep.mubr.bf16.mxu0 %v6816
        %8881 = vmatmul.mubr.bf16.gmra.mrb[0].mxu0 %v6815
        %v8882 = vpop.f32.mrb[0].mxu0
        %v8883 = vadd.f32 %v8842, %v8882
        %v8884 = vpop.f32.mrb[0].mxu0
        %v8885 = vpop.f32.mrb[0].mxu0
        %v8886 = vadd.f32 %v8845, %v8885
        %v8887 = vpop.f32.mrb[0].mxu0
        %8888 = vdwg.mxu0
        %8889 = vmatprep.subr.bf16.mxu0 %v1492
        %8890 = vmatpush1.bf16.xpose.msra.mxu0 %v1491
        %8891 = vmatprep.subr.bf16.mxu0 0
        %8892 = vmatpush1.bf16.xpose.msra.mxu0 0
        %8893 = vmatprep.subr.bf16.mxu0 0
        %8894 = vmatpush1.bf16.xpose.msra.mxu0 0
        %8895 = vmatprep.subr.bf16.mxu0 0
        %8896 = vmatpush1.bf16.xpose.msra.mxu0 0
        %8897 = vmatprep.subr.bf16.mxu0 0
        %8898 = vmatpush1.bf16.xpose.msra.mxu0 0
        %8899 = vmatprep.subr.bf16.mxu0 0
        %8900 = vmatpush1.bf16.xpose.msra.mxu0 0
        %8901 = vmatprep.subr.bf16.mxu0 0
        %8902 = vmatpush1.bf16.xpose.msra.mxu0 0
        %8903 = vmatprep.subr.bf16.mxu0 0
        %8904 = vmatpush1.bf16.xpose.msra.mxu0 0
        %8905 = vmatprep.subr.bf16.mxu0 0
        %8906 = vmatpush1.bf16.xpose.msra.mxu0 0
        %8907 = vmatprep.subr.bf16.mxu0 0
        %8908 = vmatpush1.bf16.xpose.msra.mxu0 0
        %8909 = vmatprep.subr.bf16.mxu0 0
        %8910 = vmatpush1.bf16.xpose.msra.mxu0 0
        %8911 = vmatprep.subr.bf16.mxu0 0
        %8912 = vmatpush1.bf16.xpose.msra.mxu0 0
        %8913 = vmatprep.subr.bf16.mxu0 0
        %8914 = vmatpush1.bf16.xpose.msra.mxu0 0
        %8915 = vmatprep.subr.bf16.mxu0 0
        %8916 = vmatpush1.bf16.xpose.msra.mxu0 0
        %8917 = vmatprep.subr.bf16.mxu0 0
        %8918 = vmatpush1.bf16.xpose.msra.mxu0 0
        %8919 = vmatprep.subr.bf16.mxu0 0
        %8920 = vmatpush1.bf16.xpose.msra.mxu0 0
        %8921 = vmatprep.mubr.bf16.mxu0 %v6818
        %8922 = vmatmul.mubr.bf16.gmra.mrb[0].mxu0 %v6817
        %v8923 = vpop.f32.mrb[0].mxu0
        %v8924 = vadd.f32 %v8883, %v8923
        %v8925 = vpop.f32.mrb[0].mxu0
        %v8926 = vpop.f32.mrb[0].mxu0
        %v8927 = vadd.f32 %v8886, %v8926
        %v8928 = vpop.f32.mrb[0].mxu0
        %8929 = vdwg.mxu0
        %8930 = vmatprep.subr.bf16.mxu0 %v1494
        %8931 = vmatpush1.bf16.xpose.msra.mxu0 %v1493
        %8932 = vmatprep.subr.bf16.mxu0 0
        %8933 = vmatpush1.bf16.xpose.msra.mxu0 0
        %8934 = vmatprep.subr.bf16.mxu0 0
        %8935 = vmatpush1.bf16.xpose.msra.mxu0 0
        %8936 = vmatprep.subr.bf16.mxu0 0
        %8937 = vmatpush1.bf16.xpose.msra.mxu0 0
        %8938 = vmatprep.subr.bf16.mxu0 0
        %8939 = vmatpush1.bf16.xpose.msra.mxu0 0
        %8940 = vmatprep.subr.bf16.mxu0 0
        %8941 = vmatpush1.bf16.xpose.msra.mxu0 0
        %8942 = vmatprep.subr.bf16.mxu0 0
        %8943 = vmatpush1.bf16.xpose.msra.mxu0 0
        %8944 = vmatprep.subr.bf16.mxu0 0
        %8945 = vmatpush1.bf16.xpose.msra.mxu0 0
        %8946 = vmatprep.subr.bf16.mxu0 0
        %8947 = vmatpush1.bf16.xpose.msra.mxu0 0
        %8948 = vmatprep.subr.bf16.mxu0 0
        %8949 = vmatpush1.bf16.xpose.msra.mxu0 0
        %8950 = vmatprep.subr.bf16.mxu0 0
        %8951 = vmatpush1.bf16.xpose.msra.mxu0 0
        %8952 = vmatprep.subr.bf16.mxu0 0
        %8953 = vmatpush1.bf16.xpose.msra.mxu0 0
        %8954 = vmatprep.subr.bf16.mxu0 0
        %8955 = vmatpush1.bf16.xpose.msra.mxu0 0
        %8956 = vmatprep.subr.bf16.mxu0 0
        %8957 = vmatpush1.bf16.xpose.msra.mxu0 0
        %8958 = vmatprep.subr.bf16.mxu0 0
        %8959 = vmatpush1.bf16.xpose.msra.mxu0 0
        %8960 = vmatprep.subr.bf16.mxu0 0
        %8961 = vmatpush1.bf16.xpose.msra.mxu0 0
        %8962 = vmatprep.mubr.bf16.mxu0 %v6820
        %8963 = vmatmul.mubr.bf16.gmra.mrb[0].mxu0 %v6819
        %v8964 = vpop.f32.mrb[0].mxu0
        %v8965 = vadd.f32 %v8924, %v8964
        %v8966 = vpop.f32.mrb[0].mxu0
        %v8967 = vpop.f32.mrb[0].mxu0
        %v8968 = vadd.f32 %v8927, %v8967
        %v8969 = vpop.f32.mrb[0].mxu0
        %8970 = vdwg.mxu0
        %v8971 = vadd.f32 %v6419, %v8965
        %v8972 = vadd.f32 %v6420, %v8968
        %8973 = vst.msk [vmem:[%s6418] sm:$0xff] %vm3647, %v8971
        %8974 = vst.msk [vmem:[%s6418 + $0x8] sm:$0x3f] %vm3649, %v8972
        %p8975 = scmp.eq.s32.totalorder %s14, 2
        // Predicated region
        $region60: #{conv_leaky.1} parent=50 // pred_check
          %p8976 = pneg %p8975
        $region61: #{conv_leaky.1} parent=50 // pred_check_branch
          %8978 = sbr.rel (%p8976) target = $region63
        $region62: #{conv_leaky.1} parent=50 // pred_region
          %v8979 = vld [vmem:[%s3] sm:$0xff]
          %v8980 = vld [vmem:[%s3 + $0x8] sm:$0x3f]
          %v8981 = vld [vmem:[%s3 + $0x10] sm:$0xff]
          %v8982 = vld [vmem:[%s3 + $0x18] sm:$0x3f]
          %v8983 = vld [vmem:[%s3 + $0x20] sm:$0xff]
          %v8984 = vld [vmem:[%s3 + $0x28] sm:$0x3f]
          %v8985 = vld [vmem:[%s2] sm:$0x1]
          %v8987 = vlaneseq
          %v8988 = vshrl.u32 %v8987, 7
          %v8989 = vsub.s32 0, %v8988
          %v8990 = vrot.slane %v8985, %v8989
          %v8992 = vadd.f32 %v8979, %v8990
          %v8993 = vadd.f32 %v8980, %v8990
          %v8994 = vadd.f32 %v8981, %v8990
          %v8995 = vadd.f32 %v8982, %v8990
          %v8996 = vadd.f32 %v8983, %v8990
          %v8997 = vadd.f32 %v8984, %v8990
          %vm8998 = vcmp.gt.f32.partialorder %v8992, 0.0
          %vm8999 = vcmp.gt.f32.partialorder %v8993, 0.0
          %vm9000 = vcmp.gt.f32.partialorder %v8994, 0.0
          %vm9001 = vcmp.gt.f32.partialorder %v8995, 0.0
          %vm9002 = vcmp.gt.f32.partialorder %v8996, 0.0
          %vm9003 = vcmp.gt.f32.partialorder %v8997, 0.0
          %v9004 = vmul.f32 %v8992, 0.9503408
          %v9005 = vmul.f32 %v8993, 0.9503408
          %v9006 = vmul.f32 %v8994, 0.9503408
          %v9007 = vmul.f32 %v8995, 0.9503408
          %v9008 = vmul.f32 %v8996, 0.9503408
          %v9009 = vmul.f32 %v8997, 0.9503408
          %v9010 = vsel %vm8998, %v8992, %v9004
          %v9011 = vsel %vm8999, %v8993, %v9005
          %v9012 = vsel %vm9000, %v8994, %v9006
          %v9013 = vsel %vm9001, %v8995, %v9007
          %v9014 = vsel %vm9002, %v8996, %v9008
          %v9015 = vsel %vm9003, %v8997, %v9009
          %9016 = vst.msk [vmem:[%s3] sm:$0xff] %vm3647, %v9010
          %9017 = vst.msk [vmem:[%s3 + $0x8] sm:$0x3f] %vm3649, %v9011
          %9018 = vst.msk [vmem:[%s3 + $0x10] sm:$0xff] %vm3647, %v9012
          %9019 = vst.msk [vmem:[%s3 + $0x18] sm:$0x3f] %vm3649, %v9013
          %9020 = vst.msk [vmem:[%s3 + $0x20] sm:$0xff] %vm3647, %v9014
          %9021 = vst.msk [vmem:[%s3 + $0x28] sm:$0x3f] %vm3649, %v9015
        $region63: #{conv_leaky.1} parent=50 // pred_fallthru
          _
        // Predicated region
        $region64: #{conv_leaky.1} parent=50 // pred_check
          %p9022 = pneg %p95
        $region65: #{conv_leaky.1} parent=50 // pred_check_branch
          %9024 = sbr.rel (%p9022) target = $region67
        $region66: #{conv_leaky.1} parent=50 // pred_region
          _
        $region67: #{conv_leaky.1} parent=50 // pred_fallthru
          _
        // Predicated region
        $region68: #{conv_leaky.1} parent=50 // pred_check
          %p9025 = pneg %p95
        $region69: #{conv_leaky.1} parent=50 // pred_check_branch
          %9027 = sbr.rel (%p9025) target = $region71
        $region70: #{conv_leaky.1} parent=50 // pred_region
          _
        $region71: #{conv_leaky.1} parent=50 // pred_fallthru
          _
      $region51: #{conv_leaky.1} parent=5 // pred_fallthru
        _
      %p9028 = scmp.le.s32.totalorder 2, %s9
      // Predicated region
      $region72: #{conv_leaky.1} parent=5 // pred_check
        %p9029 = pneg %p9028
      $region73: #{conv_leaky.1} parent=5 // pred_check_branch
        %9031 = sbr.rel (%p9029) target = $region75
      $region74: #{conv_leaky.1} parent=5 // pred_region
        %s9032 = ssub.s32 %s9, 2
      $region75: #{conv_leaky.1} parent=5 // pred_fallthru
        _
    $region6: #{conv_leaky.1} parent=1 // loop_footer
      %s13 = sadd.s32 1, %s9
    $region7: #{conv_leaky.1} parent=1 // loop_footer_branch
      %8 = sbr.rel target = $region3
    $region8: #{conv_leaky.1} parent=1 // loop_exit
      _

</llo_original>
